<compile_context>
chip_gen: v7x
topology: tpu7x:2x2x1
jax: 0.10.0
libtpu: 0.0.40
codegen_flags: <defaults>
</compile_context>

<pallas_src>
import jax
import jax.numpy as jnp
import numpy as np
from jax.experimental import pallas as pl
from jax.experimental.pallas import tpu as pltpu

EPS = 1e-5


def _se_conv_bn_kernel(s_ref, w1_ref, b1_ref, x_ref, w2_ref,
                       gamma_ref, beta_ref, o_ref):
    f32 = jnp.float32

    # SE gate: 1x1 conv (88 -> 2112) + bias + sigmoid, channel-major -> [C_mid, 1].
    # M=1 matmul is tiny; do it as a broadcast-multiply + lane reduce in f32.
    prod = w1_ref[...].astype(f32) * s_ref[...]                        # [C_mid, 88]
    gate = jax.nn.sigmoid(jnp.sum(prod, axis=1, keepdims=True)
                          + b1_ref[...])                               # [C_mid, 1]

    # Gate the activations; keep the big matmul operands in the compute dtype.
    xg = (x_ref[...].astype(f32) * gate).astype(x_ref.dtype)           # [C_mid, HW]

    # 1x1 conv (2112 -> block_n output channels) on the MXU, f32 accumulation.
    y = jnp.dot(w2_ref[...], xg, preferred_element_type=f32)           # [block_n, HW]

    # BatchNorm2d (training mode): biased batch stats over N*H*W (= HW here),
    # all in f32.  gamma is folded into the inv-std scale.
    inv_hw = 1.0 / y.shape[1]
    mean = jnp.sum(y, axis=1, keepdims=True) * inv_hw                  # [block_n, 1]
    diff = y - mean
    var = jnp.sum(diff * diff, axis=1, keepdims=True) * inv_hw         # [block_n, 1]
    scale = jax.lax.rsqrt(var + EPS) * gamma_ref[...]
    o_ref[...] = (diff * scale + beta_ref[...]).astype(o_ref.dtype)


def se_conv_bn(x344, x341, w1, b1, w2, gamma, beta, *,
               compute_dtype=jnp.bfloat16, block_n=176):
    """x344: [1, 88, 1, 1], x341: [1, 2112, 7, 7] (NCHW) -> [1, 352, 7, 7] f32."""
    n, c_se = x344.shape[0], x344.shape[1]
    _, c_mid, h, w = x341.shape
    c_out = w2.shape[0]
    hw = h * w
    assert n == 1, "kernel assumes batch size 1 (as in the reference module)"
    assert c_out % block_n == 0 and block_n % 8 == 0

    # Pure reshapes only (no transposes, no HBM round-trips).  .astype is a
    # no-op when the caller pre-cast the weights to compute_dtype.
    s = x344.reshape(1, c_se).astype(jnp.float32)                 # [1, 88]
    w1m = w1.reshape(c_mid, c_se).astype(compute_dtype)           # [2112, 88]
    b1m = b1.reshape(c_mid, 1).astype(jnp.float32)                # [2112, 1]
    x = x341.reshape(c_mid, hw).astype(compute_dtype)             # [2112, 49]
    w2m = w2.reshape(c_out, c_mid).astype(compute_dtype)          # [352, 2112]
    g = gamma.reshape(c_out, 1).astype(jnp.float32)               # [352, 1]
    bt = beta.reshape(c_out, 1).astype(jnp.float32)               # [352, 1]

    out = pl.pallas_call(
        _se_conv_bn_kernel,
        out_shape=jax.ShapeDtypeStruct((c_out, hw), jnp.float32),
        grid_spec=pltpu.PrefetchScalarGridSpec(
            num_scalar_prefetch=0,
            grid=(c_out // block_n,),
            in_specs=[
                pl.BlockSpec((1, c_se), lambda i: (0, 0)),           # s   (resident)
                pl.BlockSpec((c_mid, c_se), lambda i: (0, 0)),       # w1  (resident)
                pl.BlockSpec((c_mid, 1), lambda i: (0, 0)),          # b1  (resident)
                pl.BlockSpec((c_mid, hw), lambda i: (0, 0)),         # x   (resident)
                pl.BlockSpec((block_n, c_mid), lambda i: (i, 0)),    # w2  tile
                pl.BlockSpec((block_n, 1), lambda i: (i, 0)),        # gamma tile
                pl.BlockSpec((block_n, 1), lambda i: (i, 0)),        # beta  tile
            ],
            out_specs=pl.BlockSpec((block_n, hw), lambda i: (i, 0)),
        ),
        compiler_params=pltpu.CompilerParams(
            dimension_semantics=("parallel",)),
    )(s, w1m, b1m, x, w2m, g, bt)

    # [352, 49] -> [1, 352, 7, 7]: pure reshape, no transpose.
    return out.reshape(1, c_out, h, w)


def reference(x344, x341, w1, b1, w2, gamma, beta):
    """Pure-JAX f32 reference matching the PyTorch forward (training-mode BN)."""
    s = x344[:, :, 0, 0]                                          # [1, 88]
    gate = jax.nn.sigmoid(s @ w1.reshape(w1.shape[0], -1).T + b1[None, :])
    x347 = x341 * gate[:, :, None, None]
    y = jnp.einsum('oc,nchw->nohw', w2.reshape(w2.shape[0], -1), x347)
    mean = jnp.mean(y, axis=(0, 2, 3), keepdims=True)
    var = jnp.mean((y - mean) ** 2, axis=(0, 2, 3), keepdims=True)
    return ((y - mean) * jax.lax.rsqrt(var + EPS)
            * gamma[None, :, None, None] + beta[None, :, None, None])


if __name__ == "__main__":
    key = jax.random.PRNGKey(0)
    k1, k2, k3, k4, k5, k6, k7 = jax.random.split(key, 7)

    C_SE, C_MID, C_OUT, H, W = 88, 2112, 352, 7, 7

    # Deterministic synthetic parameters (shapes match the PyTorch module).
    w1 = jax.random.normal(k1, (C_MID, C_SE, 1, 1), jnp.float32) * 0.05   # conv2d112.weight
    b1 = jax.random.normal(k2, (C_MID,), jnp.float32) * 0.05              # conv2d112.bias
    w2 = jax.random.normal(k3, (C_OUT, C_MID, 1, 1), jnp.float32) * 0.02  # conv2d113.weight
    gamma = 1.0 + 0.1 * jax.random.normal(k4, (C_OUT,), jnp.float32)      # bn.weight
    beta = 0.1 * jax.random.normal(k5, (C_OUT,), jnp.float32)             # bn.bias

    # Inputs (same shapes as the reference script).
    x344 = jax.random.normal(k6, (1, C_SE, 1, 1), jnp.float32)
    x341 = jax.random.normal(k7, (1, C_MID, H, W), jnp.float32)

    ref = jax.block_until_ready(reference(x344, x341, w1, b1, w2, gamma, beta))

    # 1) f32 path: validates the kernel math tightly against the f32 reference.
    out_f32 = jax.block_until_ready(
        se_conv_bn(x344, x341, w1, b1, w2, gamma, beta,
                   compute_dtype=jnp.float32))
    np.testing.assert_allclose(np.asarray(out_f32), np.asarray(ref),
                               rtol=1e-3, atol=1e-3)

    # 2) bf16 fast path: weights pre-cast to bf16 once (outside the hot path).
    #    Looser tolerance reflects only bf16 operand quantization (~2^-8 rel
    #    per element) on a unit-scale normalized output; the math itself is
    #    verified exactly by the f32 check above.
    w1_b = w1.astype(jnp.bfloat16)
    w2_b = w2.astype(jnp.bfloat16)
    out_bf16 = jax.block_until_ready(
        se_conv_bn(x344, x341, w1_b, b1, w2_b, gamma, beta,
                   compute_dtype=jnp.bfloat16))
    np.testing.assert_allclose(np.asarray(out_bf16), np.asarray(ref),
                               rtol=3e-2, atol=3e-2)

    assert out_bf16.shape == (1, C_OUT, H, W)
    print("KERNEL_OK")
</pallas_src>

<mosaic_0001>
module attributes {stable_mosaic.version = 11 : i64} {
  func.func @_se_conv_bn_kernel(%arg0: i32, %arg1: memref<1x88xf32, #tpu.memory_space<vmem>>, %arg2: memref<2112x88xf32, #tpu.memory_space<vmem>>, %arg3: memref<2112x1xf32, #tpu.memory_space<vmem>>, %arg4: memref<2112x49xf32, #tpu.memory_space<vmem>>, %arg5: memref<176x2112xf32, #tpu.memory_space<vmem>>, %arg6: memref<176x1xf32, #tpu.memory_space<vmem>>, %arg7: memref<176x1xf32, #tpu.memory_space<vmem>>, %arg8: memref<176x49xf32, #tpu.memory_space<vmem>>) attributes {dimension_semantics = [#tpu.dimension_semantics<parallel>], iteration_bounds = array<i64: 2>, scalar_prefetch = 0 : i64, scratch_operands = 0 : i64, tpu.core_type = #tpu.core_type<tc>, window_params = [{pipeline_mode = #tpu.pipeline_mode<synchronous>, transform_indices = @transform_0, window_bounds = array<i64: 1, 88>}, {pipeline_mode = #tpu.pipeline_mode<synchronous>, transform_indices = @transform_1, window_bounds = array<i64: 2112, 88>}, {pipeline_mode = #tpu.pipeline_mode<synchronous>, transform_indices = @transform_2, window_bounds = array<i64: 2112, 1>}, {pipeline_mode = #tpu.pipeline_mode<synchronous>, transform_indices = @transform_3, window_bounds = array<i64: 2112, 49>}, {transform_indices = @transform_4, window_bounds = array<i64: 176, 2112>}, {transform_indices = @transform_5, window_bounds = array<i64: 176, 1>}, {transform_indices = @transform_6, window_bounds = array<i64: 176, 1>}, {transform_indices = @transform_7, window_bounds = array<i64: 176, 49>}]} {
    %c0 = arith.constant 0 : index
    %c0_0 = arith.constant 0 : index
    %0 = vector.load %arg2[%c0, %c0_0] : memref<2112x88xf32, #tpu.memory_space<vmem>>, vector<2112x88xf32>
    %c0_1 = arith.constant 0 : index
    %c0_2 = arith.constant 0 : index
    %1 = vector.load %arg1[%c0_1, %c0_2] : memref<1x88xf32, #tpu.memory_space<vmem>>, vector<1x88xf32>
    %2 = vector.broadcast %1 : vector<1x88xf32> to vector<2112x88xf32>
    %3 = arith.mulf %0, %2 : vector<2112x88xf32>
    %cst = arith.constant dense<0.000000e+00> : vector<2112xf32>
    %4 = vector.multi_reduction <add>, %3, %cst [1] : vector<2112x88xf32> to vector<2112xf32>
    %5 = vector.shape_cast %4 : vector<2112xf32> to vector<2112x1xf32>
    %c0_3 = arith.constant 0 : index
    %c0_4 = arith.constant 0 : index
    %6 = vector.load %arg3[%c0_3, %c0_4] : memref<2112x1xf32, #tpu.memory_space<vmem>>, vector<2112x1xf32>
    %7 = arith.addf %5, %6 : vector<2112x1xf32>
    %8 = arith.negf %7 : vector<2112x1xf32>
    %9 = math.exp %8 : vector<2112x1xf32>
    %cst_5 = arith.constant 1.000000e+00 : f32
    %10 = vector.broadcast %cst_5 : f32 to vector<2112x1xf32>
    %11 = arith.addf %10, %9 : vector<2112x1xf32>
    %12 = arith.divf %10, %11 : vector<2112x1xf32>
    %c0_6 = arith.constant 0 : index
    %c0_7 = arith.constant 0 : index
    %13 = vector.load %arg4[%c0_6, %c0_7] : memref<2112x49xf32, #tpu.memory_space<vmem>>, vector<2112x49xf32>
    %14 = vector.broadcast %12 : vector<2112x1xf32> to vector<2112x49xf32>
    %15 = arith.mulf %13, %14 : vector<2112x49xf32>
    %c0_8 = arith.constant 0 : index
    %c0_9 = arith.constant 0 : index
    %16 = vector.load %arg5[%c0_8, %c0_9] : memref<176x2112xf32, #tpu.memory_space<vmem>>, vector<176x2112xf32>
    %cst_10 = arith.constant dense<0.000000e+00> : vector<176x49xf32>
    %17 = tpu.matmul %16, %15, %cst_10 {dimension_numbers = #tpu.dot_dimension_numbers<[1], [0], [0], [1], [0, 0, 1, 1], [], []>} : vector<176x2112xf32>, vector<2112x49xf32>, vector<176x49xf32> -> vector<176x49xf32>
    %cst_11 = arith.constant dense<0.000000e+00> : vector<176xf32>
    %18 = vector.multi_reduction <add>, %17, %cst_11 [1] : vector<176x49xf32> to vector<176xf32>
    %19 = vector.shape_cast %18 : vector<176xf32> to vector<176x1xf32>
    %cst_12 = arith.constant 0.0204081628 : f32
    %20 = vector.broadcast %cst_12 : f32 to vector<176x1xf32>
    %21 = arith.mulf %19, %20 : vector<176x1xf32>
    %22 = vector.broadcast %21 : vector<176x1xf32> to vector<176x49xf32>
    %23 = arith.subf %17, %22 : vector<176x49xf32>
    %24 = arith.mulf %23, %23 : vector<176x49xf32>
    %cst_13 = arith.constant dense<0.000000e+00> : vector<176xf32>
    %25 = vector.multi_reduction <add>, %24, %cst_13 [1] : vector<176x49xf32> to vector<176xf32>
    %26 = vector.shape_cast %25 : vector<176xf32> to vector<176x1xf32>
    %cst_14 = arith.constant 0.0204081628 : f32
    %27 = vector.broadcast %cst_14 : f32 to vector<176x1xf32>
    %28 = arith.mulf %26, %27 : vector<176x1xf32>
    %cst_15 = arith.constant 9.99999974E-6 : f32
    %29 = vector.broadcast %cst_15 : f32 to vector<176x1xf32>
    %30 = arith.addf %28, %29 : vector<176x1xf32>
    %31 = math.rsqrt %30 : vector<176x1xf32>
    %c0_16 = arith.constant 0 : index
    %c0_17 = arith.constant 0 : index
    %32 = vector.load %arg6[%c0_16, %c0_17] : memref<176x1xf32, #tpu.memory_space<vmem>>, vector<176x1xf32>
    %33 = arith.mulf %31, %32 : vector<176x1xf32>
    %34 = vector.broadcast %33 : vector<176x1xf32> to vector<176x49xf32>
    %35 = arith.mulf %23, %34 : vector<176x49xf32>
    %c0_18 = arith.constant 0 : index
    %c0_19 = arith.constant 0 : index
    %36 = vector.load %arg7[%c0_18, %c0_19] : memref<176x1xf32, #tpu.memory_space<vmem>>, vector<176x1xf32>
    %37 = vector.broadcast %36 : vector<176x1xf32> to vector<176x49xf32>
    %38 = arith.addf %35, %37 : vector<176x49xf32>
    %c0_20 = arith.constant 0 : index
    %c0_21 = arith.constant 0 : index
    %39 = vector.load %arg8[%c0_20, %c0_21] : memref<176x49xf32, #tpu.memory_space<vmem>>, vector<176x49xf32>
    tpu.vector_store %arg8[%c0_20, %c0_21], %38 {strides = array<i32>} : memref<176x49xf32, #tpu.memory_space<vmem>>, vector<176x49xf32>,
    return
  }
  func.func @transform_0(%arg0: i32) -> (i32, i32) {
    %c0_i32 = arith.constant 0 : i32
    %c0_i32_0 = arith.constant 0 : i32
    %c0_i32_1 = arith.constant 0 : i32
    return %c0_i32, %c0_i32_0 : i32, i32
  }
  func.func @transform_1(%arg0: i32) -> (i32, i32) {
    %c0_i32 = arith.constant 0 : i32
    %c0_i32_0 = arith.constant 0 : i32
    %c0_i32_1 = arith.constant 0 : i32
    return %c0_i32, %c0_i32_0 : i32, i32
  }
  func.func @transform_2(%arg0: i32) -> (i32, i32) {
    %c0_i32 = arith.constant 0 : i32
    %c0_i32_0 = arith.constant 0 : i32
    %c0_i32_1 = arith.constant 0 : i32
    return %c0_i32, %c0_i32_0 : i32, i32
  }
  func.func @transform_3(%arg0: i32) -> (i32, i32) {
    %c0_i32 = arith.constant 0 : i32
    %c0_i32_0 = arith.constant 0 : i32
    %c0_i32_1 = arith.constant 0 : i32
    return %c0_i32, %c0_i32_0 : i32, i32
  }
  func.func @transform_4(%arg0: i32) -> (i32, i32) {
    %c0_i32 = arith.constant 0 : i32
    %c0_i32_0 = arith.constant 0 : i32
    return %arg0, %c0_i32 : i32, i32
  }
  func.func @transform_5(%arg0: i32) -> (i32, i32) {
    %c0_i32 = arith.constant 0 : i32
    %c0_i32_0 = arith.constant 0 : i32
    return %arg0, %c0_i32 : i32, i32
  }
  func.func @transform_6(%arg0: i32) -> (i32, i32) {
    %c0_i32 = arith.constant 0 : i32
    %c0_i32_0 = arith.constant 0 : i32
    return %arg0, %c0_i32 : i32, i32
  }
  func.func @transform_7(%arg0: i32) -> (i32, i32) {
    %c0_i32 = arith.constant 0 : i32
    %c0_i32_0 = arith.constant 0 : i32
    return %arg0, %c0_i32 : i32, i32
  }
}

</mosaic_0001>

<llo_original>
// kernel: tpu_custom_call.1
$region0: #{tpu_custom_call.1}
  #allocation0 [shape = 'u32[]', space=smem, size = 0x4, offset = 0x4, fixed_abs, tag = 'smem constant byte address 0x4 - core index']
  #allocation1 [shape = 'u32[144,128]{1,0:T(1,128)}', space=vmem, size = 0x12000, scoped, tag = 'internal scratch']
  %s0 = inlined_call_operand.vmem [shape: f32[1,88], index: 0, kind: input, shape index: {}]
  %s1 = inlined_call_operand.vmem [shape: f32[2112,88], index: 1, kind: input, shape index: {}]
  %s2 = inlined_call_operand.vmem [shape: f32[2112,1], index: 2, kind: input, shape index: {}]
  %s3 = inlined_call_operand.vmem [shape: f32[2112,49], index: 3, kind: input, shape index: {}]
  %s4 = inlined_call_operand.vmem [shape: f32[352,2112], index: 4, kind: input, shape index: {}]
  %s5 = inlined_call_operand.vmem [shape: f32[352,1], index: 5, kind: input, shape index: {}]
  %s6 = inlined_call_operand.vmem [shape: f32[352,1], index: 6, kind: input, shape index: {}]
  %s7 = inlined_call_operand.vmem [shape: f32[352,49], index: 7, kind: output, shape index: {}]
  %s8 = sld [smem:[#allocation0]]
  $region61: #{tpu_custom_call.1} parent=0
    _
  %s10 = ssub.s32 1, %s8
  %s11 = scalar_select 0, %s10, %s8
  loop: start=0, step=1, limit=4
  $region2: #{tpu_custom_call.1} parent=0 // loop_pre_header
    _
  $region3: #{tpu_custom_call.1} parent=0 // loop_header
    %s13 = sphi 0, %s17
    %p14 = scmp.ge.s32.totalorder %s13, 4
    %s21 = sphi 0, %s21
    %s23 = sphi 0, %s21
    %s24 = sphi 0, %s23
    %s38 = sphi 0, %s24
    %s42 = sphi 0, %s42
    %s44 = sphi 0, %s42
    %s45 = sphi 0, %s44
    %s59 = sphi 0, %s45
    %s63 = sphi 0, %s63
    %s65 = sphi 0, %s63
    %s66 = sphi 0, %s65
    %s80 = sphi 0, %s66
    %s84 = sphi 0, %s84
    %s86 = sphi 0, %s84
    %s87 = sphi 0, %s86
    %s101 = sphi 0, %s87
    %s107 = sphi 0, %s109
    %s110 = sphi 0, %s107
    %s111 = sphi 0, %s110
    %s127 = sphi 0, %s111
    %s133 = sphi 0, %s135
    %s136 = sphi 0, %s133
    %s137 = sphi 0, %s136
    %s153 = sphi 0, %s137
    %s159 = sphi 0, %s161
    %s162 = sphi 0, %s159
    %s163 = sphi 0, %s162
    %s179 = sphi 0, %s163
    %s185 = sphi 0, %s187
    %s188 = sphi 0, %s185
    %s189 = sphi 0, %s188
    %s205 = sphi 0, %s189
  $region4: #{tpu_custom_call.1} parent=0 // loop_header_branch
    %16 = sbr.rel (%p14) target = $region8
  $region5: #{tpu_custom_call.1} parent=0 // loop_body
    %s18 = ssub.s32 %s13, 1
    %s19 = ssub.s32 %s13, 2
    %s20 = sadd.s32 %s13, 1
    %s22 = sadd.s32 %s21, 1
    %p25 = scmp.eq.s32.totalorder %s13, 1
    %p26 = scmp.ne.s32.totalorder %s21, %s23
    %p27 = scmp.eq.s32.totalorder %s13, 0
    %p28 = por %p26, %p27
    %p29 = scmp.ne.s32.totalorder %s21, %s23
    %p30 = scmp.eq.s32.totalorder %s18, 1
    %p31 = por %p29, %p30
    %p32 = scmp.ne.s32.totalorder %s23, %s24
    %p33 = scmp.eq.s32.totalorder %s18, 0
    %p34 = por %p32, %p33
    %p35 = scmp.ne.s32.totalorder %s23, %s24
    %p36 = scmp.eq.s32.totalorder %s19, 1
    %p37 = por %p35, %p36
    %p39 = scmp.ne.s32.totalorder %s24, %s38
    %p40 = scmp.eq.s32.totalorder %s19, 0
    %p41 = por %p39, %p40
    %s43 = sadd.s32 %s42, 1
    %p46 = scmp.eq.s32.totalorder %s13, 1
    %p47 = scmp.ne.s32.totalorder %s42, %s44
    %p48 = scmp.eq.s32.totalorder %s13, 0
    %p49 = por %p47, %p48
    %p50 = scmp.ne.s32.totalorder %s42, %s44
    %p51 = scmp.eq.s32.totalorder %s18, 1
    %p52 = por %p50, %p51
    %p53 = scmp.ne.s32.totalorder %s44, %s45
    %p54 = scmp.eq.s32.totalorder %s18, 0
    %p55 = por %p53, %p54
    %p56 = scmp.ne.s32.totalorder %s44, %s45
    %p57 = scmp.eq.s32.totalorder %s19, 1
    %p58 = por %p56, %p57
    %p60 = scmp.ne.s32.totalorder %s45, %s59
    %p61 = scmp.eq.s32.totalorder %s19, 0
    %p62 = por %p60, %p61
    %s64 = sadd.s32 %s63, 1
    %p67 = scmp.eq.s32.totalorder %s13, 1
    %p68 = scmp.ne.s32.totalorder %s63, %s65
    %p69 = scmp.eq.s32.totalorder %s13, 0
    %p70 = por %p68, %p69
    %p71 = scmp.ne.s32.totalorder %s63, %s65
    %p72 = scmp.eq.s32.totalorder %s18, 1
    %p73 = por %p71, %p72
    %p74 = scmp.ne.s32.totalorder %s65, %s66
    %p75 = scmp.eq.s32.totalorder %s18, 0
    %p76 = por %p74, %p75
    %p77 = scmp.ne.s32.totalorder %s65, %s66
    %p78 = scmp.eq.s32.totalorder %s19, 1
    %p79 = por %p77, %p78
    %p81 = scmp.ne.s32.totalorder %s66, %s80
    %p82 = scmp.eq.s32.totalorder %s19, 0
    %p83 = por %p81, %p82
    %s85 = sadd.s32 %s84, 1
    %p88 = scmp.eq.s32.totalorder %s13, 1
    %p89 = scmp.ne.s32.totalorder %s84, %s86
    %p90 = scmp.eq.s32.totalorder %s13, 0
    %p91 = por %p89, %p90
    %p92 = scmp.ne.s32.totalorder %s84, %s86
    %p93 = scmp.eq.s32.totalorder %s18, 1
    %p94 = por %p92, %p93
    %p95 = scmp.ne.s32.totalorder %s86, %s87
    %p96 = scmp.eq.s32.totalorder %s18, 0
    %p97 = por %p95, %p96
    %p98 = scmp.ne.s32.totalorder %s86, %s87
    %p99 = scmp.eq.s32.totalorder %s19, 1
    %p100 = por %p98, %p99
    %p102 = scmp.ne.s32.totalorder %s87, %s101
    %p103 = scmp.eq.s32.totalorder %s19, 0
    %p104 = por %p102, %p103
    %s105 = ssub.s32 %s13, %s20
    %p106 = scmp.eq.s32.totalorder %s105, 0
    %s108 = sadd.s32 %s107, 1
    %s109 = scalar_select %p106, %s107, %s108
    %p112 = pneg %p106
    %p113 = scmp.eq.s32.totalorder %s13, 1
    %p114 = por %p112, %p113
    %p115 = scmp.ne.s32.totalorder %s107, %s110
    %p116 = scmp.eq.s32.totalorder %s13, 0
    %p117 = por %p115, %p116
    %p118 = scmp.ne.s32.totalorder %s107, %s110
    %p119 = scmp.eq.s32.totalorder %s18, 1
    %p120 = por %p118, %p119
    %p121 = scmp.ne.s32.totalorder %s110, %s111
    %p122 = scmp.eq.s32.totalorder %s18, 0
    %p123 = por %p121, %p122
    %p124 = scmp.ne.s32.totalorder %s110, %s111
    %p125 = scmp.eq.s32.totalorder %s19, 1
    %p126 = por %p124, %p125
    %p128 = scmp.ne.s32.totalorder %s111, %s127
    %p129 = scmp.eq.s32.totalorder %s19, 0
    %p130 = por %p128, %p129
    %s131 = ssub.s32 %s13, %s20
    %p132 = scmp.eq.s32.totalorder %s131, 0
    %s134 = sadd.s32 %s133, 1
    %s135 = scalar_select %p132, %s133, %s134
    %p138 = pneg %p132
    %p139 = scmp.eq.s32.totalorder %s13, 1
    %p140 = por %p138, %p139
    %p141 = scmp.ne.s32.totalorder %s133, %s136
    %p142 = scmp.eq.s32.totalorder %s13, 0
    %p143 = por %p141, %p142
    %p144 = scmp.ne.s32.totalorder %s133, %s136
    %p145 = scmp.eq.s32.totalorder %s18, 1
    %p146 = por %p144, %p145
    %p147 = scmp.ne.s32.totalorder %s136, %s137
    %p148 = scmp.eq.s32.totalorder %s18, 0
    %p149 = por %p147, %p148
    %p150 = scmp.ne.s32.totalorder %s136, %s137
    %p151 = scmp.eq.s32.totalorder %s19, 1
    %p152 = por %p150, %p151
    %p154 = scmp.ne.s32.totalorder %s137, %s153
    %p155 = scmp.eq.s32.totalorder %s19, 0
    %p156 = por %p154, %p155
    %s157 = ssub.s32 %s13, %s20
    %p158 = scmp.eq.s32.totalorder %s157, 0
    %s160 = sadd.s32 %s159, 1
    %s161 = scalar_select %p158, %s159, %s160
    %p164 = pneg %p158
    %p165 = scmp.eq.s32.totalorder %s13, 1
    %p166 = por %p164, %p165
    %p167 = scmp.ne.s32.totalorder %s159, %s162
    %p168 = scmp.eq.s32.totalorder %s13, 0
    %p169 = por %p167, %p168
    %p170 = scmp.ne.s32.totalorder %s159, %s162
    %p171 = scmp.eq.s32.totalorder %s18, 1
    %p172 = por %p170, %p171
    %p173 = scmp.ne.s32.totalorder %s162, %s163
    %p174 = scmp.eq.s32.totalorder %s18, 0
    %p175 = por %p173, %p174
    %p176 = scmp.ne.s32.totalorder %s162, %s163
    %p177 = scmp.eq.s32.totalorder %s19, 1
    %p178 = por %p176, %p177
    %p180 = scmp.ne.s32.totalorder %s163, %s179
    %p181 = scmp.eq.s32.totalorder %s19, 0
    %p182 = por %p180, %p181
    %s183 = ssub.s32 %s13, %s20
    %p184 = scmp.eq.s32.totalorder %s183, 0
    %s186 = sadd.s32 %s185, 1
    %s187 = scalar_select %p184, %s185, %s186
    %p190 = pneg %p184
    %p191 = scmp.eq.s32.totalorder %s13, 1
    %p192 = por %p190, %p191
    %p193 = scmp.ne.s32.totalorder %s185, %s188
    %p194 = scmp.eq.s32.totalorder %s13, 0
    %p195 = por %p193, %p194
    %p196 = scmp.ne.s32.totalorder %s185, %s188
    %p197 = scmp.eq.s32.totalorder %s18, 1
    %p198 = por %p196, %p197
    %p199 = scmp.ne.s32.totalorder %s188, %s189
    %p200 = scmp.eq.s32.totalorder %s18, 0
    %p201 = por %p199, %p200
    %p202 = scmp.ne.s32.totalorder %s188, %s189
    %p203 = scmp.eq.s32.totalorder %s19, 1
    %p204 = por %p202, %p203
    %p206 = scmp.ne.s32.totalorder %s189, %s205
    %p207 = scmp.eq.s32.totalorder %s19, 0
    %p208 = por %p206, %p207
    %p209 = scmp.le.s32.totalorder 1, %s13
    %p210 = scmp.lt.s32.totalorder %s13, 3
    %p211 = pnand %p209, %p210
    %p212 = pneg %p211
    // Predicated region
    $region9: #{tpu_custom_call.1} parent=5 // pred_check
      _
    $region10: #{tpu_custom_call.1} parent=5 // pred_check_branch
      %214 = sbr.rel (%p211) target = $region12
    $region11: #{tpu_custom_call.1} parent=5 // pred_region
      %s215 = ssub.s32 %s13, 1
      // Predicated region
      $region13: #{tpu_custom_call.1} parent=11 // pred_check
        %p216 = pneg %p34
      $region14: #{tpu_custom_call.1} parent=11 // pred_check_branch
        %218 = sbr.rel (%p216) target = $region16
      $region15: #{tpu_custom_call.1} parent=11 // pred_region
        _
      $region16: #{tpu_custom_call.1} parent=11 // pred_fallthru
        _
      // Predicated region
      $region17: #{tpu_custom_call.1} parent=11 // pred_check
        %p219 = pneg %p55
      $region18: #{tpu_custom_call.1} parent=11 // pred_check_branch
        %221 = sbr.rel (%p219) target = $region20
      $region19: #{tpu_custom_call.1} parent=11 // pred_region
        _
      $region20: #{tpu_custom_call.1} parent=11 // pred_fallthru
        _
      // Predicated region
      $region21: #{tpu_custom_call.1} parent=11 // pred_check
        %p222 = pneg %p76
      $region22: #{tpu_custom_call.1} parent=11 // pred_check_branch
        %224 = sbr.rel (%p222) target = $region24
      $region23: #{tpu_custom_call.1} parent=11 // pred_region
        _
      $region24: #{tpu_custom_call.1} parent=11 // pred_fallthru
        _
      // Predicated region
      $region25: #{tpu_custom_call.1} parent=11 // pred_check
        %p225 = pneg %p97
      $region26: #{tpu_custom_call.1} parent=11 // pred_check_branch
        %227 = sbr.rel (%p225) target = $region28
      $region27: #{tpu_custom_call.1} parent=11 // pred_region
        _
      $region28: #{tpu_custom_call.1} parent=11 // pred_fallthru
        _
    $region12: #{tpu_custom_call.1} parent=5 // pred_fallthru
      _
    %p228 = scmp.lt.s32.totalorder %s13, 2
    // Predicated region
    $region29: #{tpu_custom_call.1} parent=5 // pred_check
      %p229 = pneg %p228
    $region30: #{tpu_custom_call.1} parent=5 // pred_check_branch
      %231 = sbr.rel (%p229) target = $region32
    $region31: #{tpu_custom_call.1} parent=5 // pred_region
      // Predicated region
      $region33: #{tpu_custom_call.1} parent=31 // pred_check
        %p232 = pneg %p117
      $region34: #{tpu_custom_call.1} parent=31 // pred_check_branch
        %234 = sbr.rel (%p232) target = $region36
      $region35: #{tpu_custom_call.1} parent=31 // pred_region
        %s235 = smul.u32 22, %s13
        %p236 = scmp.lt.s32.totalorder %s235, 43
        %s237 = scalar_select %p236, %s235, 43
        %s238 = smul.addr %s237, 17
        %s239 = smul.addr %s238, 8
        %s240 = scalar_lea.vmem %s4, %s239
        %s241 = smul.u32 22, %s13
      $region36: #{tpu_custom_call.1} parent=31 // pred_fallthru
        _
      // Predicated region
      $region37: #{tpu_custom_call.1} parent=31 // pred_check
        %p242 = pneg %p143
      $region38: #{tpu_custom_call.1} parent=31 // pred_check_branch
        %244 = sbr.rel (%p242) target = $region40
      $region39: #{tpu_custom_call.1} parent=31 // pred_region
        %s245 = smul.u32 22, %s13
        %p246 = scmp.lt.s32.totalorder %s245, 43
        %s247 = scalar_select %p246, %s245, 43
        %s248 = smul.addr %s247, 8
        %s249 = scalar_lea.vmem %s5, %s248
        %s250 = smul.u32 22, %s13
      $region40: #{tpu_custom_call.1} parent=31 // pred_fallthru
        _
      // Predicated region
      $region41: #{tpu_custom_call.1} parent=31 // pred_check
        %p251 = pneg %p169
      $region42: #{tpu_custom_call.1} parent=31 // pred_check_branch
        %253 = sbr.rel (%p251) target = $region44
      $region43: #{tpu_custom_call.1} parent=31 // pred_region
        %s254 = smul.u32 22, %s13
        %p255 = scmp.lt.s32.totalorder %s254, 43
        %s256 = scalar_select %p255, %s254, 43
        %s257 = smul.addr %s256, 8
        %s258 = scalar_lea.vmem %s6, %s257
        %s259 = smul.u32 22, %s13
      $region44: #{tpu_custom_call.1} parent=31 // pred_fallthru
        _
    $region32: #{tpu_custom_call.1} parent=5 // pred_fallthru
      _
    %p260 = scmp.le.s32.totalorder 1, %s13
    %p261 = scmp.lt.s32.totalorder %s13, 3
    %p262 = pnand %p260, %p261
    %p263 = pneg %p262
    // Predicated region
    $region45: #{tpu_custom_call.1} parent=5 // pred_check
      _
    $region46: #{tpu_custom_call.1} parent=5 // pred_check_branch
      %265 = sbr.rel (%p262) target = $region48
    $region47: #{tpu_custom_call.1} parent=5 // pred_region
      %s266 = ssub.s32 %s13, 1
      %p267 = pneg %p34
      %p268 = pneg %p31
      %p269 = pneg %p55
      %p270 = pneg %p52
      %p271 = pneg %p76
      %p272 = pneg %p73
      %p273 = pneg %p97
      %p274 = pneg %p94
      %s275 = smul.u32 22, %s18
      %p276 = scmp.lt.s32.totalorder %s275, 43
      %s277 = scalar_select %p276, %s275, 43
      %s278 = smul.addr %s277, 17
      %s279 = smul.addr %s278, 8
      %s280 = scalar_lea.vmem %s4, %s279
      %p281 = pneg %p123
      %p282 = pneg %p120
      %s283 = smul.u32 22, %s18
      %p284 = scmp.lt.s32.totalorder %s283, 43
      %s285 = scalar_select %p284, %s283, 43
      %s286 = smul.addr %s285, 8
      %s287 = scalar_lea.vmem %s5, %s286
      %p288 = pneg %p149
      %p289 = pneg %p146
      %s290 = smul.u32 22, %s18
      %p291 = scmp.lt.s32.totalorder %s290, 43
      %s292 = scalar_select %p291, %s290, 43
      %s293 = smul.addr %s292, 8
      %s294 = scalar_lea.vmem %s6, %s293
      %p295 = pneg %p175
      %p296 = pneg %p172
      %p297 = pneg %p201
      %p298 = pneg %p198
      %s299 = smul.u32 22, %s18
      %p300 = scmp.lt.s32.totalorder %s299, 43
      %s301 = scalar_select %p300, %s299, 43
      %s302 = smul.addr %s301, 8
      %s303 = scalar_lea.vmem %s7, %s302
      %s304 = smul.u32 22, %s18
      %p305 = scmp.lt.s32.totalorder %s304, 43
      %s306 = scalar_select %p305, %s304, 43
      %s307 = smul.addr %s306, 17
      %s308 = smul.addr %s307, 8
      %s309 = scalar_lea.vmem %s4, %s308
      %s310 = smul.u32 22, %s18
      %s311 = smul.u32 22, %s18
      %p312 = scmp.lt.s32.totalorder %s311, 43
      %s313 = scalar_select %p312, %s311, 43
      %s314 = smul.addr %s313, 8
      %s315 = scalar_lea.vmem %s5, %s314
      %s316 = smul.u32 22, %s18
      %s317 = smul.u32 22, %s18
      %p318 = scmp.lt.s32.totalorder %s317, 43
      %s319 = scalar_select %p318, %s317, 43
      %s320 = smul.addr %s319, 8
      %s321 = scalar_lea.vmem %s6, %s320
      %s322 = smul.u32 22, %s18
      %s323 = smul.u32 22, %s18
      %p324 = scmp.lt.s32.totalorder %s323, 43
      %s325 = scalar_select %p324, %s323, 43
      %s326 = smul.addr %s325, 8
      %s327 = scalar_lea.vmem %s7, %s326
      %s328 = smul.u32 22, %s18
      %v329 = vld [vmem:[%s1] sm:$0xff]
      %v330 = vld [vmem:[%s1 + $0x8] sm:$0xff]
      %v331 = vld [vmem:[%s1 + $0x10] sm:$0xff]
      %v332 = vld [vmem:[%s1 + $0x18] sm:$0xff]
      %v333 = vld [vmem:[%s1 + $0x20] sm:$0xff]
      %v334 = vld [vmem:[%s1 + $0x28] sm:$0xff]
      %v335 = vld [vmem:[%s1 + $0x30] sm:$0xff]
      %v336 = vld [vmem:[%s1 + $0x38] sm:$0xff]
      %v337 = vld [vmem:[%s1 + $0x40] sm:$0xff]
      %v338 = vld [vmem:[%s1 + $0x48] sm:$0xff]
      %v339 = vld [vmem:[%s1 + $0x50] sm:$0xff]
      %v340 = vld [vmem:[%s1 + $0x58] sm:$0xff]
      %v341 = vld [vmem:[%s1 + $0x60] sm:$0xff]
      %v342 = vld [vmem:[%s1 + $0x68] sm:$0xff]
      %v343 = vld [vmem:[%s1 + $0x70] sm:$0xff]
      %v344 = vld [vmem:[%s1 + $0x78] sm:$0xff]
      %v345 = vld [vmem:[%s1 + $0x80] sm:$0xff]
      %v346 = vld [vmem:[%s1 + $0x88] sm:$0xff]
      %v347 = vld [vmem:[%s1 + $0x90] sm:$0xff]
      %v348 = vld [vmem:[%s1 + $0x98] sm:$0xff]
      %v349 = vld [vmem:[%s1 + $0xa0] sm:$0xff]
      %v350 = vld [vmem:[%s1 + $0xa8] sm:$0xff]
      %v351 = vld [vmem:[%s1 + $0xb0] sm:$0xff]
      %v352 = vld [vmem:[%s1 + $0xb8] sm:$0xff]
      %v353 = vld [vmem:[%s1 + $0xc0] sm:$0xff]
      %v354 = vld [vmem:[%s1 + $0xc8] sm:$0xff]
      %v355 = vld [vmem:[%s1 + $0xd0] sm:$0xff]
      %v356 = vld [vmem:[%s1 + $0xd8] sm:$0xff]
      %v357 = vld [vmem:[%s1 + $0xe0] sm:$0xff]
      %v358 = vld [vmem:[%s1 + $0xe8] sm:$0xff]
      %v359 = vld [vmem:[%s1 + $0xf0] sm:$0xff]
      %v360 = vld [vmem:[%s1 + $0xf8] sm:$0xff]
      %v361 = vld [vmem:[%s1 + $0x100] sm:$0xff]
      %v362 = vld [vmem:[%s1 + $0x108] sm:$0xff]
      %v363 = vld [vmem:[%s1 + $0x110] sm:$0xff]
      %v364 = vld [vmem:[%s1 + $0x118] sm:$0xff]
      %v365 = vld [vmem:[%s1 + $0x120] sm:$0xff]
      %v366 = vld [vmem:[%s1 + $0x128] sm:$0xff]
      %v367 = vld [vmem:[%s1 + $0x130] sm:$0xff]
      %v368 = vld [vmem:[%s1 + $0x138] sm:$0xff]
      %v369 = vld [vmem:[%s1 + $0x140] sm:$0xff]
      %v370 = vld [vmem:[%s1 + $0x148] sm:$0xff]
      %v371 = vld [vmem:[%s1 + $0x150] sm:$0xff]
      %v372 = vld [vmem:[%s1 + $0x158] sm:$0xff]
      %v373 = vld [vmem:[%s1 + $0x160] sm:$0xff]
      %v374 = vld [vmem:[%s1 + $0x168] sm:$0xff]
      %v375 = vld [vmem:[%s1 + $0x170] sm:$0xff]
      %v376 = vld [vmem:[%s1 + $0x178] sm:$0xff]
      %v377 = vld [vmem:[%s1 + $0x180] sm:$0xff]
      %v378 = vld [vmem:[%s1 + $0x188] sm:$0xff]
      %v379 = vld [vmem:[%s1 + $0x190] sm:$0xff]
      %v380 = vld [vmem:[%s1 + $0x198] sm:$0xff]
      %v381 = vld [vmem:[%s1 + $0x1a0] sm:$0xff]
      %v382 = vld [vmem:[%s1 + $0x1a8] sm:$0xff]
      %v383 = vld [vmem:[%s1 + $0x1b0] sm:$0xff]
      %v384 = vld [vmem:[%s1 + $0x1b8] sm:$0xff]
      %v385 = vld [vmem:[%s1 + $0x1c0] sm:$0xff]
      %v386 = vld [vmem:[%s1 + $0x1c8] sm:$0xff]
      %v387 = vld [vmem:[%s1 + $0x1d0] sm:$0xff]
      %v388 = vld [vmem:[%s1 + $0x1d8] sm:$0xff]
      %v389 = vld [vmem:[%s1 + $0x1e0] sm:$0xff]
      %v390 = vld [vmem:[%s1 + $0x1e8] sm:$0xff]
      %v391 = vld [vmem:[%s1 + $0x1f0] sm:$0xff]
      %v392 = vld [vmem:[%s1 + $0x1f8] sm:$0xff]
      %v393 = vld [vmem:[%s1 + $0x200] sm:$0xff]
      %v394 = vld [vmem:[%s1 + $0x208] sm:$0xff]
      %v395 = vld [vmem:[%s1 + $0x210] sm:$0xff]
      %v396 = vld [vmem:[%s1 + $0x218] sm:$0xff]
      %v397 = vld [vmem:[%s1 + $0x220] sm:$0xff]
      %v398 = vld [vmem:[%s1 + $0x228] sm:$0xff]
      %v399 = vld [vmem:[%s1 + $0x230] sm:$0xff]
      %v400 = vld [vmem:[%s1 + $0x238] sm:$0xff]
      %v401 = vld [vmem:[%s1 + $0x240] sm:$0xff]
      %v402 = vld [vmem:[%s1 + $0x248] sm:$0xff]
      %v403 = vld [vmem:[%s1 + $0x250] sm:$0xff]
      %v404 = vld [vmem:[%s1 + $0x258] sm:$0xff]
      %v405 = vld [vmem:[%s1 + $0x260] sm:$0xff]
      %v406 = vld [vmem:[%s1 + $0x268] sm:$0xff]
      %v407 = vld [vmem:[%s1 + $0x270] sm:$0xff]
      %v408 = vld [vmem:[%s1 + $0x278] sm:$0xff]
      %v409 = vld [vmem:[%s1 + $0x280] sm:$0xff]
      %v410 = vld [vmem:[%s1 + $0x288] sm:$0xff]
      %v411 = vld [vmem:[%s1 + $0x290] sm:$0xff]
      %v412 = vld [vmem:[%s1 + $0x298] sm:$0xff]
      %v413 = vld [vmem:[%s1 + $0x2a0] sm:$0xff]
      %v414 = vld [vmem:[%s1 + $0x2a8] sm:$0xff]
      %v415 = vld [vmem:[%s1 + $0x2b0] sm:$0xff]
      %v416 = vld [vmem:[%s1 + $0x2b8] sm:$0xff]
      %v417 = vld [vmem:[%s1 + $0x2c0] sm:$0xff]
      %v418 = vld [vmem:[%s1 + $0x2c8] sm:$0xff]
      %v419 = vld [vmem:[%s1 + $0x2d0] sm:$0xff]
      %v420 = vld [vmem:[%s1 + $0x2d8] sm:$0xff]
      %v421 = vld [vmem:[%s1 + $0x2e0] sm:$0xff]
      %v422 = vld [vmem:[%s1 + $0x2e8] sm:$0xff]
      %v423 = vld [vmem:[%s1 + $0x2f0] sm:$0xff]
      %v424 = vld [vmem:[%s1 + $0x2f8] sm:$0xff]
      %v425 = vld [vmem:[%s1 + $0x300] sm:$0xff]
      %v426 = vld [vmem:[%s1 + $0x308] sm:$0xff]
      %v427 = vld [vmem:[%s1 + $0x310] sm:$0xff]
      %v428 = vld [vmem:[%s1 + $0x318] sm:$0xff]
      %v429 = vld [vmem:[%s1 + $0x320] sm:$0xff]
      %v430 = vld [vmem:[%s1 + $0x328] sm:$0xff]
      %v431 = vld [vmem:[%s1 + $0x330] sm:$0xff]
      %v432 = vld [vmem:[%s1 + $0x338] sm:$0xff]
      %v433 = vld [vmem:[%s1 + $0x340] sm:$0xff]
      %v434 = vld [vmem:[%s1 + $0x348] sm:$0xff]
      %v435 = vld [vmem:[%s1 + $0x350] sm:$0xff]
      %v436 = vld [vmem:[%s1 + $0x358] sm:$0xff]
      %v437 = vld [vmem:[%s1 + $0x360] sm:$0xff]
      %v438 = vld [vmem:[%s1 + $0x368] sm:$0xff]
      %v439 = vld [vmem:[%s1 + $0x370] sm:$0xff]
      %v440 = vld [vmem:[%s1 + $0x378] sm:$0xff]
      %v441 = vld [vmem:[%s1 + $0x380] sm:$0xff]
      %v442 = vld [vmem:[%s1 + $0x388] sm:$0xff]
      %v443 = vld [vmem:[%s1 + $0x390] sm:$0xff]
      %v444 = vld [vmem:[%s1 + $0x398] sm:$0xff]
      %v445 = vld [vmem:[%s1 + $0x3a0] sm:$0xff]
      %v446 = vld [vmem:[%s1 + $0x3a8] sm:$0xff]
      %v447 = vld [vmem:[%s1 + $0x3b0] sm:$0xff]
      %v448 = vld [vmem:[%s1 + $0x3b8] sm:$0xff]
      %v449 = vld [vmem:[%s1 + $0x3c0] sm:$0xff]
      %v450 = vld [vmem:[%s1 + $0x3c8] sm:$0xff]
      %v451 = vld [vmem:[%s1 + $0x3d0] sm:$0xff]
      %v452 = vld [vmem:[%s1 + $0x3d8] sm:$0xff]
      %v453 = vld [vmem:[%s1 + $0x3e0] sm:$0xff]
      %v454 = vld [vmem:[%s1 + $0x3e8] sm:$0xff]
      %v455 = vld [vmem:[%s1 + $0x3f0] sm:$0xff]
      %v456 = vld [vmem:[%s1 + $0x3f8] sm:$0xff]
      %v457 = vld [vmem:[%s1 + $0x400] sm:$0xff]
      %v458 = vld [vmem:[%s1 + $0x408] sm:$0xff]
      %v459 = vld [vmem:[%s1 + $0x410] sm:$0xff]
      %v460 = vld [vmem:[%s1 + $0x418] sm:$0xff]
      %v461 = vld [vmem:[%s1 + $0x420] sm:$0xff]
      %v462 = vld [vmem:[%s1 + $0x428] sm:$0xff]
      %v463 = vld [vmem:[%s1 + $0x430] sm:$0xff]
      %v464 = vld [vmem:[%s1 + $0x438] sm:$0xff]
      %v465 = vld [vmem:[%s1 + $0x440] sm:$0xff]
      %v466 = vld [vmem:[%s1 + $0x448] sm:$0xff]
      %v467 = vld [vmem:[%s1 + $0x450] sm:$0xff]
      %v468 = vld [vmem:[%s1 + $0x458] sm:$0xff]
      %v469 = vld [vmem:[%s1 + $0x460] sm:$0xff]
      %v470 = vld [vmem:[%s1 + $0x468] sm:$0xff]
      %v471 = vld [vmem:[%s1 + $0x470] sm:$0xff]
      %v472 = vld [vmem:[%s1 + $0x478] sm:$0xff]
      %v473 = vld [vmem:[%s1 + $0x480] sm:$0xff]
      %v474 = vld [vmem:[%s1 + $0x488] sm:$0xff]
      %v475 = vld [vmem:[%s1 + $0x490] sm:$0xff]
      %v476 = vld [vmem:[%s1 + $0x498] sm:$0xff]
      %v477 = vld [vmem:[%s1 + $0x4a0] sm:$0xff]
      %v478 = vld [vmem:[%s1 + $0x4a8] sm:$0xff]
      %v479 = vld [vmem:[%s1 + $0x4b0] sm:$0xff]
      %v480 = vld [vmem:[%s1 + $0x4b8] sm:$0xff]
      %v481 = vld [vmem:[%s1 + $0x4c0] sm:$0xff]
      %v482 = vld [vmem:[%s1 + $0x4c8] sm:$0xff]
      %v483 = vld [vmem:[%s1 + $0x4d0] sm:$0xff]
      %v484 = vld [vmem:[%s1 + $0x4d8] sm:$0xff]
      %v485 = vld [vmem:[%s1 + $0x4e0] sm:$0xff]
      %v486 = vld [vmem:[%s1 + $0x4e8] sm:$0xff]
      %v487 = vld [vmem:[%s1 + $0x4f0] sm:$0xff]
      %v488 = vld [vmem:[%s1 + $0x4f8] sm:$0xff]
      %v489 = vld [vmem:[%s1 + $0x500] sm:$0xff]
      %v490 = vld [vmem:[%s1 + $0x508] sm:$0xff]
      %v491 = vld [vmem:[%s1 + $0x510] sm:$0xff]
      %v492 = vld [vmem:[%s1 + $0x518] sm:$0xff]
      %v493 = vld [vmem:[%s1 + $0x520] sm:$0xff]
      %v494 = vld [vmem:[%s1 + $0x528] sm:$0xff]
      %v495 = vld [vmem:[%s1 + $0x530] sm:$0xff]
      %v496 = vld [vmem:[%s1 + $0x538] sm:$0xff]
      %v497 = vld [vmem:[%s1 + $0x540] sm:$0xff]
      %v498 = vld [vmem:[%s1 + $0x548] sm:$0xff]
      %v499 = vld [vmem:[%s1 + $0x550] sm:$0xff]
      %v500 = vld [vmem:[%s1 + $0x558] sm:$0xff]
      %v501 = vld [vmem:[%s1 + $0x560] sm:$0xff]
      %v502 = vld [vmem:[%s1 + $0x568] sm:$0xff]
      %v503 = vld [vmem:[%s1 + $0x570] sm:$0xff]
      %v504 = vld [vmem:[%s1 + $0x578] sm:$0xff]
      %v505 = vld [vmem:[%s1 + $0x580] sm:$0xff]
      %v506 = vld [vmem:[%s1 + $0x588] sm:$0xff]
      %v507 = vld [vmem:[%s1 + $0x590] sm:$0xff]
      %v508 = vld [vmem:[%s1 + $0x598] sm:$0xff]
      %v509 = vld [vmem:[%s1 + $0x5a0] sm:$0xff]
      %v510 = vld [vmem:[%s1 + $0x5a8] sm:$0xff]
      %v511 = vld [vmem:[%s1 + $0x5b0] sm:$0xff]
      %v512 = vld [vmem:[%s1 + $0x5b8] sm:$0xff]
      %v513 = vld [vmem:[%s1 + $0x5c0] sm:$0xff]
      %v514 = vld [vmem:[%s1 + $0x5c8] sm:$0xff]
      %v515 = vld [vmem:[%s1 + $0x5d0] sm:$0xff]
      %v516 = vld [vmem:[%s1 + $0x5d8] sm:$0xff]
      %v517 = vld [vmem:[%s1 + $0x5e0] sm:$0xff]
      %v518 = vld [vmem:[%s1 + $0x5e8] sm:$0xff]
      %v519 = vld [vmem:[%s1 + $0x5f0] sm:$0xff]
      %v520 = vld [vmem:[%s1 + $0x5f8] sm:$0xff]
      %v521 = vld [vmem:[%s1 + $0x600] sm:$0xff]
      %v522 = vld [vmem:[%s1 + $0x608] sm:$0xff]
      %v523 = vld [vmem:[%s1 + $0x610] sm:$0xff]
      %v524 = vld [vmem:[%s1 + $0x618] sm:$0xff]
      %v525 = vld [vmem:[%s1 + $0x620] sm:$0xff]
      %v526 = vld [vmem:[%s1 + $0x628] sm:$0xff]
      %v527 = vld [vmem:[%s1 + $0x630] sm:$0xff]
      %v528 = vld [vmem:[%s1 + $0x638] sm:$0xff]
      %v529 = vld [vmem:[%s1 + $0x640] sm:$0xff]
      %v530 = vld [vmem:[%s1 + $0x648] sm:$0xff]
      %v531 = vld [vmem:[%s1 + $0x650] sm:$0xff]
      %v532 = vld [vmem:[%s1 + $0x658] sm:$0xff]
      %v533 = vld [vmem:[%s1 + $0x660] sm:$0xff]
      %v534 = vld [vmem:[%s1 + $0x668] sm:$0xff]
      %v535 = vld [vmem:[%s1 + $0x670] sm:$0xff]
      %v536 = vld [vmem:[%s1 + $0x678] sm:$0xff]
      %v537 = vld [vmem:[%s1 + $0x680] sm:$0xff]
      %v538 = vld [vmem:[%s1 + $0x688] sm:$0xff]
      %v539 = vld [vmem:[%s1 + $0x690] sm:$0xff]
      %v540 = vld [vmem:[%s1 + $0x698] sm:$0xff]
      %v541 = vld [vmem:[%s1 + $0x6a0] sm:$0xff]
      %v542 = vld [vmem:[%s1 + $0x6a8] sm:$0xff]
      %v543 = vld [vmem:[%s1 + $0x6b0] sm:$0xff]
      %v544 = vld [vmem:[%s1 + $0x6b8] sm:$0xff]
      %v545 = vld [vmem:[%s1 + $0x6c0] sm:$0xff]
      %v546 = vld [vmem:[%s1 + $0x6c8] sm:$0xff]
      %v547 = vld [vmem:[%s1 + $0x6d0] sm:$0xff]
      %v548 = vld [vmem:[%s1 + $0x6d8] sm:$0xff]
      %v549 = vld [vmem:[%s1 + $0x6e0] sm:$0xff]
      %v550 = vld [vmem:[%s1 + $0x6e8] sm:$0xff]
      %v551 = vld [vmem:[%s1 + $0x6f0] sm:$0xff]
      %v552 = vld [vmem:[%s1 + $0x6f8] sm:$0xff]
      %v553 = vld [vmem:[%s1 + $0x700] sm:$0xff]
      %v554 = vld [vmem:[%s1 + $0x708] sm:$0xff]
      %v555 = vld [vmem:[%s1 + $0x710] sm:$0xff]
      %v556 = vld [vmem:[%s1 + $0x718] sm:$0xff]
      %v557 = vld [vmem:[%s1 + $0x720] sm:$0xff]
      %v558 = vld [vmem:[%s1 + $0x728] sm:$0xff]
      %v559 = vld [vmem:[%s1 + $0x730] sm:$0xff]
      %v560 = vld [vmem:[%s1 + $0x738] sm:$0xff]
      %v561 = vld [vmem:[%s1 + $0x740] sm:$0xff]
      %v562 = vld [vmem:[%s1 + $0x748] sm:$0xff]
      %v563 = vld [vmem:[%s1 + $0x750] sm:$0xff]
      %v564 = vld [vmem:[%s1 + $0x758] sm:$0xff]
      %v565 = vld [vmem:[%s1 + $0x760] sm:$0xff]
      %v566 = vld [vmem:[%s1 + $0x768] sm:$0xff]
      %v567 = vld [vmem:[%s1 + $0x770] sm:$0xff]
      %v568 = vld [vmem:[%s1 + $0x778] sm:$0xff]
      %v569 = vld [vmem:[%s1 + $0x780] sm:$0xff]
      %v570 = vld [vmem:[%s1 + $0x788] sm:$0xff]
      %v571 = vld [vmem:[%s1 + $0x790] sm:$0xff]
      %v572 = vld [vmem:[%s1 + $0x798] sm:$0xff]
      %v573 = vld [vmem:[%s1 + $0x7a0] sm:$0xff]
      %v574 = vld [vmem:[%s1 + $0x7a8] sm:$0xff]
      %v575 = vld [vmem:[%s1 + $0x7b0] sm:$0xff]
      %v576 = vld [vmem:[%s1 + $0x7b8] sm:$0xff]
      %v577 = vld [vmem:[%s1 + $0x7c0] sm:$0xff]
      %v578 = vld [vmem:[%s1 + $0x7c8] sm:$0xff]
      %v579 = vld [vmem:[%s1 + $0x7d0] sm:$0xff]
      %v580 = vld [vmem:[%s1 + $0x7d8] sm:$0xff]
      %v581 = vld [vmem:[%s1 + $0x7e0] sm:$0xff]
      %v582 = vld [vmem:[%s1 + $0x7e8] sm:$0xff]
      %v583 = vld [vmem:[%s1 + $0x7f0] sm:$0xff]
      %v584 = vld [vmem:[%s1 + $0x7f8] sm:$0xff]
      %v585 = vld [vmem:[%s1 + $0x800] sm:$0xff]
      %v586 = vld [vmem:[%s1 + $0x808] sm:$0xff]
      %v587 = vld [vmem:[%s1 + $0x810] sm:$0xff]
      %v588 = vld [vmem:[%s1 + $0x818] sm:$0xff]
      %v589 = vld [vmem:[%s1 + $0x820] sm:$0xff]
      %v590 = vld [vmem:[%s1 + $0x828] sm:$0xff]
      %v591 = vld [vmem:[%s1 + $0x830] sm:$0xff]
      %v592 = vld [vmem:[%s1 + $0x838] sm:$0xff]
      %v593 = vld [vmem:[%s0] sm:$0x1]
      %v595 = vlaneseq
      %v596 = vshrl.u32 %v595, 7
      %v597 = vsub.s32 0, %v596
      %v598 = vrot.slane %v593, %v597
      %v600 = vmul.f32 %v329, %v598
      %v601 = vmul.f32 %v330, %v598
      %v602 = vmul.f32 %v331, %v598
      %v603 = vmul.f32 %v332, %v598
      %v604 = vmul.f32 %v333, %v598
      %v605 = vmul.f32 %v334, %v598
      %v606 = vmul.f32 %v335, %v598
      %v607 = vmul.f32 %v336, %v598
      %v608 = vmul.f32 %v337, %v598
      %v609 = vmul.f32 %v338, %v598
      %v610 = vmul.f32 %v339, %v598
      %v611 = vmul.f32 %v340, %v598
      %v612 = vmul.f32 %v341, %v598
      %v613 = vmul.f32 %v342, %v598
      %v614 = vmul.f32 %v343, %v598
      %v615 = vmul.f32 %v344, %v598
      %v616 = vmul.f32 %v345, %v598
      %v617 = vmul.f32 %v346, %v598
      %v618 = vmul.f32 %v347, %v598
      %v619 = vmul.f32 %v348, %v598
      %v620 = vmul.f32 %v349, %v598
      %v621 = vmul.f32 %v350, %v598
      %v622 = vmul.f32 %v351, %v598
      %v623 = vmul.f32 %v352, %v598
      %v624 = vmul.f32 %v353, %v598
      %v625 = vmul.f32 %v354, %v598
      %v626 = vmul.f32 %v355, %v598
      %v627 = vmul.f32 %v356, %v598
      %v628 = vmul.f32 %v357, %v598
      %v629 = vmul.f32 %v358, %v598
      %v630 = vmul.f32 %v359, %v598
      %v631 = vmul.f32 %v360, %v598
      %v632 = vmul.f32 %v361, %v598
      %v633 = vmul.f32 %v362, %v598
      %v634 = vmul.f32 %v363, %v598
      %v635 = vmul.f32 %v364, %v598
      %v636 = vmul.f32 %v365, %v598
      %v637 = vmul.f32 %v366, %v598
      %v638 = vmul.f32 %v367, %v598
      %v639 = vmul.f32 %v368, %v598
      %v640 = vmul.f32 %v369, %v598
      %v641 = vmul.f32 %v370, %v598
      %v642 = vmul.f32 %v371, %v598
      %v643 = vmul.f32 %v372, %v598
      %v644 = vmul.f32 %v373, %v598
      %v645 = vmul.f32 %v374, %v598
      %v646 = vmul.f32 %v375, %v598
      %v647 = vmul.f32 %v376, %v598
      %v648 = vmul.f32 %v377, %v598
      %v649 = vmul.f32 %v378, %v598
      %v650 = vmul.f32 %v379, %v598
      %v651 = vmul.f32 %v380, %v598
      %v652 = vmul.f32 %v381, %v598
      %v653 = vmul.f32 %v382, %v598
      %v654 = vmul.f32 %v383, %v598
      %v655 = vmul.f32 %v384, %v598
      %v656 = vmul.f32 %v385, %v598
      %v657 = vmul.f32 %v386, %v598
      %v658 = vmul.f32 %v387, %v598
      %v659 = vmul.f32 %v388, %v598
      %v660 = vmul.f32 %v389, %v598
      %v661 = vmul.f32 %v390, %v598
      %v662 = vmul.f32 %v391, %v598
      %v663 = vmul.f32 %v392, %v598
      %v664 = vmul.f32 %v393, %v598
      %v665 = vmul.f32 %v394, %v598
      %v666 = vmul.f32 %v395, %v598
      %v667 = vmul.f32 %v396, %v598
      %v668 = vmul.f32 %v397, %v598
      %v669 = vmul.f32 %v398, %v598
      %v670 = vmul.f32 %v399, %v598
      %v671 = vmul.f32 %v400, %v598
      %v672 = vmul.f32 %v401, %v598
      %v673 = vmul.f32 %v402, %v598
      %v674 = vmul.f32 %v403, %v598
      %v675 = vmul.f32 %v404, %v598
      %v676 = vmul.f32 %v405, %v598
      %v677 = vmul.f32 %v406, %v598
      %v678 = vmul.f32 %v407, %v598
      %v679 = vmul.f32 %v408, %v598
      %v680 = vmul.f32 %v409, %v598
      %v681 = vmul.f32 %v410, %v598
      %v682 = vmul.f32 %v411, %v598
      %v683 = vmul.f32 %v412, %v598
      %v684 = vmul.f32 %v413, %v598
      %v685 = vmul.f32 %v414, %v598
      %v686 = vmul.f32 %v415, %v598
      %v687 = vmul.f32 %v416, %v598
      %v688 = vmul.f32 %v417, %v598
      %v689 = vmul.f32 %v418, %v598
      %v690 = vmul.f32 %v419, %v598
      %v691 = vmul.f32 %v420, %v598
      %v692 = vmul.f32 %v421, %v598
      %v693 = vmul.f32 %v422, %v598
      %v694 = vmul.f32 %v423, %v598
      %v695 = vmul.f32 %v424, %v598
      %v696 = vmul.f32 %v425, %v598
      %v697 = vmul.f32 %v426, %v598
      %v698 = vmul.f32 %v427, %v598
      %v699 = vmul.f32 %v428, %v598
      %v700 = vmul.f32 %v429, %v598
      %v701 = vmul.f32 %v430, %v598
      %v702 = vmul.f32 %v431, %v598
      %v703 = vmul.f32 %v432, %v598
      %v704 = vmul.f32 %v433, %v598
      %v705 = vmul.f32 %v434, %v598
      %v706 = vmul.f32 %v435, %v598
      %v707 = vmul.f32 %v436, %v598
      %v708 = vmul.f32 %v437, %v598
      %v709 = vmul.f32 %v438, %v598
      %v710 = vmul.f32 %v439, %v598
      %v711 = vmul.f32 %v440, %v598
      %v712 = vmul.f32 %v441, %v598
      %v713 = vmul.f32 %v442, %v598
      %v714 = vmul.f32 %v443, %v598
      %v715 = vmul.f32 %v444, %v598
      %v716 = vmul.f32 %v445, %v598
      %v717 = vmul.f32 %v446, %v598
      %v718 = vmul.f32 %v447, %v598
      %v719 = vmul.f32 %v448, %v598
      %v720 = vmul.f32 %v449, %v598
      %v721 = vmul.f32 %v450, %v598
      %v722 = vmul.f32 %v451, %v598
      %v723 = vmul.f32 %v452, %v598
      %v724 = vmul.f32 %v453, %v598
      %v725 = vmul.f32 %v454, %v598
      %v726 = vmul.f32 %v455, %v598
      %v727 = vmul.f32 %v456, %v598
      %v728 = vmul.f32 %v457, %v598
      %v729 = vmul.f32 %v458, %v598
      %v730 = vmul.f32 %v459, %v598
      %v731 = vmul.f32 %v460, %v598
      %v732 = vmul.f32 %v461, %v598
      %v733 = vmul.f32 %v462, %v598
      %v734 = vmul.f32 %v463, %v598
      %v735 = vmul.f32 %v464, %v598
      %v736 = vmul.f32 %v465, %v598
      %v737 = vmul.f32 %v466, %v598
      %v738 = vmul.f32 %v467, %v598
      %v739 = vmul.f32 %v468, %v598
      %v740 = vmul.f32 %v469, %v598
      %v741 = vmul.f32 %v470, %v598
      %v742 = vmul.f32 %v471, %v598
      %v743 = vmul.f32 %v472, %v598
      %v744 = vmul.f32 %v473, %v598
      %v745 = vmul.f32 %v474, %v598
      %v746 = vmul.f32 %v475, %v598
      %v747 = vmul.f32 %v476, %v598
      %v748 = vmul.f32 %v477, %v598
      %v749 = vmul.f32 %v478, %v598
      %v750 = vmul.f32 %v479, %v598
      %v751 = vmul.f32 %v480, %v598
      %v752 = vmul.f32 %v481, %v598
      %v753 = vmul.f32 %v482, %v598
      %v754 = vmul.f32 %v483, %v598
      %v755 = vmul.f32 %v484, %v598
      %v756 = vmul.f32 %v485, %v598
      %v757 = vmul.f32 %v486, %v598
      %v758 = vmul.f32 %v487, %v598
      %v759 = vmul.f32 %v488, %v598
      %v760 = vmul.f32 %v489, %v598
      %v761 = vmul.f32 %v490, %v598
      %v762 = vmul.f32 %v491, %v598
      %v763 = vmul.f32 %v492, %v598
      %v764 = vmul.f32 %v493, %v598
      %v765 = vmul.f32 %v494, %v598
      %v766 = vmul.f32 %v495, %v598
      %v767 = vmul.f32 %v496, %v598
      %v768 = vmul.f32 %v497, %v598
      %v769 = vmul.f32 %v498, %v598
      %v770 = vmul.f32 %v499, %v598
      %v771 = vmul.f32 %v500, %v598
      %v772 = vmul.f32 %v501, %v598
      %v773 = vmul.f32 %v502, %v598
      %v774 = vmul.f32 %v503, %v598
      %v775 = vmul.f32 %v504, %v598
      %v776 = vmul.f32 %v505, %v598
      %v777 = vmul.f32 %v506, %v598
      %v778 = vmul.f32 %v507, %v598
      %v779 = vmul.f32 %v508, %v598
      %v780 = vmul.f32 %v509, %v598
      %v781 = vmul.f32 %v510, %v598
      %v782 = vmul.f32 %v511, %v598
      %v783 = vmul.f32 %v512, %v598
      %v784 = vmul.f32 %v513, %v598
      %v785 = vmul.f32 %v514, %v598
      %v786 = vmul.f32 %v515, %v598
      %v787 = vmul.f32 %v516, %v598
      %v788 = vmul.f32 %v517, %v598
      %v789 = vmul.f32 %v518, %v598
      %v790 = vmul.f32 %v519, %v598
      %v791 = vmul.f32 %v520, %v598
      %v792 = vmul.f32 %v521, %v598
      %v793 = vmul.f32 %v522, %v598
      %v794 = vmul.f32 %v523, %v598
      %v795 = vmul.f32 %v524, %v598
      %v796 = vmul.f32 %v525, %v598
      %v797 = vmul.f32 %v526, %v598
      %v798 = vmul.f32 %v527, %v598
      %v799 = vmul.f32 %v528, %v598
      %v800 = vmul.f32 %v529, %v598
      %v801 = vmul.f32 %v530, %v598
      %v802 = vmul.f32 %v531, %v598
      %v803 = vmul.f32 %v532, %v598
      %v804 = vmul.f32 %v533, %v598
      %v805 = vmul.f32 %v534, %v598
      %v806 = vmul.f32 %v535, %v598
      %v807 = vmul.f32 %v536, %v598
      %v808 = vmul.f32 %v537, %v598
      %v809 = vmul.f32 %v538, %v598
      %v810 = vmul.f32 %v539, %v598
      %v811 = vmul.f32 %v540, %v598
      %v812 = vmul.f32 %v541, %v598
      %v813 = vmul.f32 %v542, %v598
      %v814 = vmul.f32 %v543, %v598
      %v815 = vmul.f32 %v544, %v598
      %v816 = vmul.f32 %v545, %v598
      %v817 = vmul.f32 %v546, %v598
      %v818 = vmul.f32 %v547, %v598
      %v819 = vmul.f32 %v548, %v598
      %v820 = vmul.f32 %v549, %v598
      %v821 = vmul.f32 %v550, %v598
      %v822 = vmul.f32 %v551, %v598
      %v823 = vmul.f32 %v552, %v598
      %v824 = vmul.f32 %v553, %v598
      %v825 = vmul.f32 %v554, %v598
      %v826 = vmul.f32 %v555, %v598
      %v827 = vmul.f32 %v556, %v598
      %v828 = vmul.f32 %v557, %v598
      %v829 = vmul.f32 %v558, %v598
      %v830 = vmul.f32 %v559, %v598
      %v831 = vmul.f32 %v560, %v598
      %v832 = vmul.f32 %v561, %v598
      %v833 = vmul.f32 %v562, %v598
      %v834 = vmul.f32 %v563, %v598
      %v835 = vmul.f32 %v564, %v598
      %v836 = vmul.f32 %v565, %v598
      %v837 = vmul.f32 %v566, %v598
      %v838 = vmul.f32 %v567, %v598
      %v839 = vmul.f32 %v568, %v598
      %v840 = vmul.f32 %v569, %v598
      %v841 = vmul.f32 %v570, %v598
      %v842 = vmul.f32 %v571, %v598
      %v843 = vmul.f32 %v572, %v598
      %v844 = vmul.f32 %v573, %v598
      %v845 = vmul.f32 %v574, %v598
      %v846 = vmul.f32 %v575, %v598
      %v847 = vmul.f32 %v576, %v598
      %v848 = vmul.f32 %v577, %v598
      %v849 = vmul.f32 %v578, %v598
      %v850 = vmul.f32 %v579, %v598
      %v851 = vmul.f32 %v580, %v598
      %v852 = vmul.f32 %v581, %v598
      %v853 = vmul.f32 %v582, %v598
      %v854 = vmul.f32 %v583, %v598
      %v855 = vmul.f32 %v584, %v598
      %v856 = vmul.f32 %v585, %v598
      %v857 = vmul.f32 %v586, %v598
      %v858 = vmul.f32 %v587, %v598
      %v859 = vmul.f32 %v588, %v598
      %v860 = vmul.f32 %v589, %v598
      %v861 = vmul.f32 %v590, %v598
      %v862 = vmul.f32 %v591, %v598
      %v863 = vmul.f32 %v592, %v598
      %vm864 = vcmask 719872
      %v865 = vsel %vm864, %v600, 0.0
      %866 = vadd.xlane.f32.xlu0 %v865
      %v867 = vpop.xlane.xlu0 %866
      %v868 = vsel %vm864, %v601, 0.0
      %869 = vadd.xlane.f32.xlu0 %v868
      %v870 = vpop.xlane.xlu0 %869
      %v871 = vsel %vm864, %v602, 0.0
      %872 = vadd.xlane.f32.xlu0 %v871
      %v873 = vpop.xlane.xlu0 %872
      %v874 = vsel %vm864, %v603, 0.0
      %875 = vadd.xlane.f32.xlu0 %v874
      %v876 = vpop.xlane.xlu0 %875
      %v877 = vsel %vm864, %v604, 0.0
      %878 = vadd.xlane.f32.xlu0 %v877
      %v879 = vpop.xlane.xlu0 %878
      %v880 = vsel %vm864, %v605, 0.0
      %881 = vadd.xlane.f32.xlu0 %v880
      %v882 = vpop.xlane.xlu0 %881
      %v883 = vsel %vm864, %v606, 0.0
      %884 = vadd.xlane.f32.xlu0 %v883
      %v885 = vpop.xlane.xlu0 %884
      %v886 = vsel %vm864, %v607, 0.0
      %887 = vadd.xlane.f32.xlu0 %v886
      %v888 = vpop.xlane.xlu0 %887
      %v889 = vsel %vm864, %v608, 0.0
      %890 = vadd.xlane.f32.xlu0 %v889
      %v891 = vpop.xlane.xlu0 %890
      %v892 = vsel %vm864, %v609, 0.0
      %893 = vadd.xlane.f32.xlu0 %v892
      %v894 = vpop.xlane.xlu0 %893
      %v895 = vsel %vm864, %v610, 0.0
      %896 = vadd.xlane.f32.xlu0 %v895
      %v897 = vpop.xlane.xlu0 %896
      %v898 = vsel %vm864, %v611, 0.0
      %899 = vadd.xlane.f32.xlu0 %v898
      %v900 = vpop.xlane.xlu0 %899
      %v901 = vsel %vm864, %v612, 0.0
      %902 = vadd.xlane.f32.xlu0 %v901
      %v903 = vpop.xlane.xlu0 %902
      %v904 = vsel %vm864, %v613, 0.0
      %905 = vadd.xlane.f32.xlu0 %v904
      %v906 = vpop.xlane.xlu0 %905
      %v907 = vsel %vm864, %v614, 0.0
      %908 = vadd.xlane.f32.xlu0 %v907
      %v909 = vpop.xlane.xlu0 %908
      %v910 = vsel %vm864, %v615, 0.0
      %911 = vadd.xlane.f32.xlu0 %v910
      %v912 = vpop.xlane.xlu0 %911
      %v913 = vsel %vm864, %v616, 0.0
      %914 = vadd.xlane.f32.xlu0 %v913
      %v915 = vpop.xlane.xlu0 %914
      %v916 = vsel %vm864, %v617, 0.0
      %917 = vadd.xlane.f32.xlu0 %v916
      %v918 = vpop.xlane.xlu0 %917
      %v919 = vsel %vm864, %v618, 0.0
      %920 = vadd.xlane.f32.xlu0 %v919
      %v921 = vpop.xlane.xlu0 %920
      %v922 = vsel %vm864, %v619, 0.0
      %923 = vadd.xlane.f32.xlu0 %v922
      %v924 = vpop.xlane.xlu0 %923
      %v925 = vsel %vm864, %v620, 0.0
      %926 = vadd.xlane.f32.xlu0 %v925
      %v927 = vpop.xlane.xlu0 %926
      %v928 = vsel %vm864, %v621, 0.0
      %929 = vadd.xlane.f32.xlu0 %v928
      %v930 = vpop.xlane.xlu0 %929
      %v931 = vsel %vm864, %v622, 0.0
      %932 = vadd.xlane.f32.xlu0 %v931
      %v933 = vpop.xlane.xlu0 %932
      %v934 = vsel %vm864, %v623, 0.0
      %935 = vadd.xlane.f32.xlu0 %v934
      %v936 = vpop.xlane.xlu0 %935
      %v937 = vsel %vm864, %v624, 0.0
      %938 = vadd.xlane.f32.xlu0 %v937
      %v939 = vpop.xlane.xlu0 %938
      %v940 = vsel %vm864, %v625, 0.0
      %941 = vadd.xlane.f32.xlu0 %v940
      %v942 = vpop.xlane.xlu0 %941
      %v943 = vsel %vm864, %v626, 0.0
      %944 = vadd.xlane.f32.xlu0 %v943
      %v945 = vpop.xlane.xlu0 %944
      %v946 = vsel %vm864, %v627, 0.0
      %947 = vadd.xlane.f32.xlu0 %v946
      %v948 = vpop.xlane.xlu0 %947
      %v949 = vsel %vm864, %v628, 0.0
      %950 = vadd.xlane.f32.xlu0 %v949
      %v951 = vpop.xlane.xlu0 %950
      %v952 = vsel %vm864, %v629, 0.0
      %953 = vadd.xlane.f32.xlu0 %v952
      %v954 = vpop.xlane.xlu0 %953
      %v955 = vsel %vm864, %v630, 0.0
      %956 = vadd.xlane.f32.xlu0 %v955
      %v957 = vpop.xlane.xlu0 %956
      %v958 = vsel %vm864, %v631, 0.0
      %959 = vadd.xlane.f32.xlu0 %v958
      %v960 = vpop.xlane.xlu0 %959
      %v961 = vsel %vm864, %v632, 0.0
      %962 = vadd.xlane.f32.xlu0 %v961
      %v963 = vpop.xlane.xlu0 %962
      %v964 = vsel %vm864, %v633, 0.0
      %965 = vadd.xlane.f32.xlu0 %v964
      %v966 = vpop.xlane.xlu0 %965
      %v967 = vsel %vm864, %v634, 0.0
      %968 = vadd.xlane.f32.xlu0 %v967
      %v969 = vpop.xlane.xlu0 %968
      %v970 = vsel %vm864, %v635, 0.0
      %971 = vadd.xlane.f32.xlu0 %v970
      %v972 = vpop.xlane.xlu0 %971
      %v973 = vsel %vm864, %v636, 0.0
      %974 = vadd.xlane.f32.xlu0 %v973
      %v975 = vpop.xlane.xlu0 %974
      %v976 = vsel %vm864, %v637, 0.0
      %977 = vadd.xlane.f32.xlu0 %v976
      %v978 = vpop.xlane.xlu0 %977
      %v979 = vsel %vm864, %v638, 0.0
      %980 = vadd.xlane.f32.xlu0 %v979
      %v981 = vpop.xlane.xlu0 %980
      %v982 = vsel %vm864, %v639, 0.0
      %983 = vadd.xlane.f32.xlu0 %v982
      %v984 = vpop.xlane.xlu0 %983
      %v985 = vsel %vm864, %v640, 0.0
      %986 = vadd.xlane.f32.xlu0 %v985
      %v987 = vpop.xlane.xlu0 %986
      %v988 = vsel %vm864, %v641, 0.0
      %989 = vadd.xlane.f32.xlu0 %v988
      %v990 = vpop.xlane.xlu0 %989
      %v991 = vsel %vm864, %v642, 0.0
      %992 = vadd.xlane.f32.xlu0 %v991
      %v993 = vpop.xlane.xlu0 %992
      %v994 = vsel %vm864, %v643, 0.0
      %995 = vadd.xlane.f32.xlu0 %v994
      %v996 = vpop.xlane.xlu0 %995
      %v997 = vsel %vm864, %v644, 0.0
      %998 = vadd.xlane.f32.xlu0 %v997
      %v999 = vpop.xlane.xlu0 %998
      %v1000 = vsel %vm864, %v645, 0.0
      %1001 = vadd.xlane.f32.xlu0 %v1000
      %v1002 = vpop.xlane.xlu0 %1001
      %v1003 = vsel %vm864, %v646, 0.0
      %1004 = vadd.xlane.f32.xlu0 %v1003
      %v1005 = vpop.xlane.xlu0 %1004
      %v1006 = vsel %vm864, %v647, 0.0
      %1007 = vadd.xlane.f32.xlu0 %v1006
      %v1008 = vpop.xlane.xlu0 %1007
      %v1009 = vsel %vm864, %v648, 0.0
      %1010 = vadd.xlane.f32.xlu0 %v1009
      %v1011 = vpop.xlane.xlu0 %1010
      %v1012 = vsel %vm864, %v649, 0.0
      %1013 = vadd.xlane.f32.xlu0 %v1012
      %v1014 = vpop.xlane.xlu0 %1013
      %v1015 = vsel %vm864, %v650, 0.0
      %1016 = vadd.xlane.f32.xlu0 %v1015
      %v1017 = vpop.xlane.xlu0 %1016
      %v1018 = vsel %vm864, %v651, 0.0
      %1019 = vadd.xlane.f32.xlu0 %v1018
      %v1020 = vpop.xlane.xlu0 %1019
      %v1021 = vsel %vm864, %v652, 0.0
      %1022 = vadd.xlane.f32.xlu0 %v1021
      %v1023 = vpop.xlane.xlu0 %1022
      %v1024 = vsel %vm864, %v653, 0.0
      %1025 = vadd.xlane.f32.xlu0 %v1024
      %v1026 = vpop.xlane.xlu0 %1025
      %v1027 = vsel %vm864, %v654, 0.0
      %1028 = vadd.xlane.f32.xlu0 %v1027
      %v1029 = vpop.xlane.xlu0 %1028
      %v1030 = vsel %vm864, %v655, 0.0
      %1031 = vadd.xlane.f32.xlu0 %v1030
      %v1032 = vpop.xlane.xlu0 %1031
      %v1033 = vsel %vm864, %v656, 0.0
      %1034 = vadd.xlane.f32.xlu0 %v1033
      %v1035 = vpop.xlane.xlu0 %1034
      %v1036 = vsel %vm864, %v657, 0.0
      %1037 = vadd.xlane.f32.xlu0 %v1036
      %v1038 = vpop.xlane.xlu0 %1037
      %v1039 = vsel %vm864, %v658, 0.0
      %1040 = vadd.xlane.f32.xlu0 %v1039
      %v1041 = vpop.xlane.xlu0 %1040
      %v1042 = vsel %vm864, %v659, 0.0
      %1043 = vadd.xlane.f32.xlu0 %v1042
      %v1044 = vpop.xlane.xlu0 %1043
      %v1045 = vsel %vm864, %v660, 0.0
      %1046 = vadd.xlane.f32.xlu0 %v1045
      %v1047 = vpop.xlane.xlu0 %1046
      %v1048 = vsel %vm864, %v661, 0.0
      %1049 = vadd.xlane.f32.xlu0 %v1048
      %v1050 = vpop.xlane.xlu0 %1049
      %v1051 = vsel %vm864, %v662, 0.0
      %1052 = vadd.xlane.f32.xlu0 %v1051
      %v1053 = vpop.xlane.xlu0 %1052
      %v1054 = vsel %vm864, %v663, 0.0
      %1055 = vadd.xlane.f32.xlu0 %v1054
      %v1056 = vpop.xlane.xlu0 %1055
      %v1057 = vsel %vm864, %v664, 0.0
      %1058 = vadd.xlane.f32.xlu0 %v1057
      %v1059 = vpop.xlane.xlu0 %1058
      %v1060 = vsel %vm864, %v665, 0.0
      %1061 = vadd.xlane.f32.xlu0 %v1060
      %v1062 = vpop.xlane.xlu0 %1061
      %v1063 = vsel %vm864, %v666, 0.0
      %1064 = vadd.xlane.f32.xlu0 %v1063
      %v1065 = vpop.xlane.xlu0 %1064
      %v1066 = vsel %vm864, %v667, 0.0
      %1067 = vadd.xlane.f32.xlu0 %v1066
      %v1068 = vpop.xlane.xlu0 %1067
      %v1069 = vsel %vm864, %v668, 0.0
      %1070 = vadd.xlane.f32.xlu0 %v1069
      %v1071 = vpop.xlane.xlu0 %1070
      %v1072 = vsel %vm864, %v669, 0.0
      %1073 = vadd.xlane.f32.xlu0 %v1072
      %v1074 = vpop.xlane.xlu0 %1073
      %v1075 = vsel %vm864, %v670, 0.0
      %1076 = vadd.xlane.f32.xlu0 %v1075
      %v1077 = vpop.xlane.xlu0 %1076
      %v1078 = vsel %vm864, %v671, 0.0
      %1079 = vadd.xlane.f32.xlu0 %v1078
      %v1080 = vpop.xlane.xlu0 %1079
      %v1081 = vsel %vm864, %v672, 0.0
      %1082 = vadd.xlane.f32.xlu0 %v1081
      %v1083 = vpop.xlane.xlu0 %1082
      %v1084 = vsel %vm864, %v673, 0.0
      %1085 = vadd.xlane.f32.xlu0 %v1084
      %v1086 = vpop.xlane.xlu0 %1085
      %v1087 = vsel %vm864, %v674, 0.0
      %1088 = vadd.xlane.f32.xlu0 %v1087
      %v1089 = vpop.xlane.xlu0 %1088
      %v1090 = vsel %vm864, %v675, 0.0
      %1091 = vadd.xlane.f32.xlu0 %v1090
      %v1092 = vpop.xlane.xlu0 %1091
      %v1093 = vsel %vm864, %v676, 0.0
      %1094 = vadd.xlane.f32.xlu0 %v1093
      %v1095 = vpop.xlane.xlu0 %1094
      %v1096 = vsel %vm864, %v677, 0.0
      %1097 = vadd.xlane.f32.xlu0 %v1096
      %v1098 = vpop.xlane.xlu0 %1097
      %v1099 = vsel %vm864, %v678, 0.0
      %1100 = vadd.xlane.f32.xlu0 %v1099
      %v1101 = vpop.xlane.xlu0 %1100
      %v1102 = vsel %vm864, %v679, 0.0
      %1103 = vadd.xlane.f32.xlu0 %v1102
      %v1104 = vpop.xlane.xlu0 %1103
      %v1105 = vsel %vm864, %v680, 0.0
      %1106 = vadd.xlane.f32.xlu0 %v1105
      %v1107 = vpop.xlane.xlu0 %1106
      %v1108 = vsel %vm864, %v681, 0.0
      %1109 = vadd.xlane.f32.xlu0 %v1108
      %v1110 = vpop.xlane.xlu0 %1109
      %v1111 = vsel %vm864, %v682, 0.0
      %1112 = vadd.xlane.f32.xlu0 %v1111
      %v1113 = vpop.xlane.xlu0 %1112
      %v1114 = vsel %vm864, %v683, 0.0
      %1115 = vadd.xlane.f32.xlu0 %v1114
      %v1116 = vpop.xlane.xlu0 %1115
      %v1117 = vsel %vm864, %v684, 0.0
      %1118 = vadd.xlane.f32.xlu0 %v1117
      %v1119 = vpop.xlane.xlu0 %1118
      %v1120 = vsel %vm864, %v685, 0.0
      %1121 = vadd.xlane.f32.xlu0 %v1120
      %v1122 = vpop.xlane.xlu0 %1121
      %v1123 = vsel %vm864, %v686, 0.0
      %1124 = vadd.xlane.f32.xlu0 %v1123
      %v1125 = vpop.xlane.xlu0 %1124
      %v1126 = vsel %vm864, %v687, 0.0
      %1127 = vadd.xlane.f32.xlu0 %v1126
      %v1128 = vpop.xlane.xlu0 %1127
      %v1129 = vsel %vm864, %v688, 0.0
      %1130 = vadd.xlane.f32.xlu0 %v1129
      %v1131 = vpop.xlane.xlu0 %1130
      %v1132 = vsel %vm864, %v689, 0.0
      %1133 = vadd.xlane.f32.xlu0 %v1132
      %v1134 = vpop.xlane.xlu0 %1133
      %v1135 = vsel %vm864, %v690, 0.0
      %1136 = vadd.xlane.f32.xlu0 %v1135
      %v1137 = vpop.xlane.xlu0 %1136
      %v1138 = vsel %vm864, %v691, 0.0
      %1139 = vadd.xlane.f32.xlu0 %v1138
      %v1140 = vpop.xlane.xlu0 %1139
      %v1141 = vsel %vm864, %v692, 0.0
      %1142 = vadd.xlane.f32.xlu0 %v1141
      %v1143 = vpop.xlane.xlu0 %1142
      %v1144 = vsel %vm864, %v693, 0.0
      %1145 = vadd.xlane.f32.xlu0 %v1144
      %v1146 = vpop.xlane.xlu0 %1145
      %v1147 = vsel %vm864, %v694, 0.0
      %1148 = vadd.xlane.f32.xlu0 %v1147
      %v1149 = vpop.xlane.xlu0 %1148
      %v1150 = vsel %vm864, %v695, 0.0
      %1151 = vadd.xlane.f32.xlu0 %v1150
      %v1152 = vpop.xlane.xlu0 %1151
      %v1153 = vsel %vm864, %v696, 0.0
      %1154 = vadd.xlane.f32.xlu0 %v1153
      %v1155 = vpop.xlane.xlu0 %1154
      %v1156 = vsel %vm864, %v697, 0.0
      %1157 = vadd.xlane.f32.xlu0 %v1156
      %v1158 = vpop.xlane.xlu0 %1157
      %v1159 = vsel %vm864, %v698, 0.0
      %1160 = vadd.xlane.f32.xlu0 %v1159
      %v1161 = vpop.xlane.xlu0 %1160
      %v1162 = vsel %vm864, %v699, 0.0
      %1163 = vadd.xlane.f32.xlu0 %v1162
      %v1164 = vpop.xlane.xlu0 %1163
      %v1165 = vsel %vm864, %v700, 0.0
      %1166 = vadd.xlane.f32.xlu0 %v1165
      %v1167 = vpop.xlane.xlu0 %1166
      %v1168 = vsel %vm864, %v701, 0.0
      %1169 = vadd.xlane.f32.xlu0 %v1168
      %v1170 = vpop.xlane.xlu0 %1169
      %v1171 = vsel %vm864, %v702, 0.0
      %1172 = vadd.xlane.f32.xlu0 %v1171
      %v1173 = vpop.xlane.xlu0 %1172
      %v1174 = vsel %vm864, %v703, 0.0
      %1175 = vadd.xlane.f32.xlu0 %v1174
      %v1176 = vpop.xlane.xlu0 %1175
      %v1177 = vsel %vm864, %v704, 0.0
      %1178 = vadd.xlane.f32.xlu0 %v1177
      %v1179 = vpop.xlane.xlu0 %1178
      %v1180 = vsel %vm864, %v705, 0.0
      %1181 = vadd.xlane.f32.xlu0 %v1180
      %v1182 = vpop.xlane.xlu0 %1181
      %v1183 = vsel %vm864, %v706, 0.0
      %1184 = vadd.xlane.f32.xlu0 %v1183
      %v1185 = vpop.xlane.xlu0 %1184
      %v1186 = vsel %vm864, %v707, 0.0
      %1187 = vadd.xlane.f32.xlu0 %v1186
      %v1188 = vpop.xlane.xlu0 %1187
      %v1189 = vsel %vm864, %v708, 0.0
      %1190 = vadd.xlane.f32.xlu0 %v1189
      %v1191 = vpop.xlane.xlu0 %1190
      %v1192 = vsel %vm864, %v709, 0.0
      %1193 = vadd.xlane.f32.xlu0 %v1192
      %v1194 = vpop.xlane.xlu0 %1193
      %v1195 = vsel %vm864, %v710, 0.0
      %1196 = vadd.xlane.f32.xlu0 %v1195
      %v1197 = vpop.xlane.xlu0 %1196
      %v1198 = vsel %vm864, %v711, 0.0
      %1199 = vadd.xlane.f32.xlu0 %v1198
      %v1200 = vpop.xlane.xlu0 %1199
      %v1201 = vsel %vm864, %v712, 0.0
      %1202 = vadd.xlane.f32.xlu0 %v1201
      %v1203 = vpop.xlane.xlu0 %1202
      %v1204 = vsel %vm864, %v713, 0.0
      %1205 = vadd.xlane.f32.xlu0 %v1204
      %v1206 = vpop.xlane.xlu0 %1205
      %v1207 = vsel %vm864, %v714, 0.0
      %1208 = vadd.xlane.f32.xlu0 %v1207
      %v1209 = vpop.xlane.xlu0 %1208
      %v1210 = vsel %vm864, %v715, 0.0
      %1211 = vadd.xlane.f32.xlu0 %v1210
      %v1212 = vpop.xlane.xlu0 %1211
      %v1213 = vsel %vm864, %v716, 0.0
      %1214 = vadd.xlane.f32.xlu0 %v1213
      %v1215 = vpop.xlane.xlu0 %1214
      %v1216 = vsel %vm864, %v717, 0.0
      %1217 = vadd.xlane.f32.xlu0 %v1216
      %v1218 = vpop.xlane.xlu0 %1217
      %v1219 = vsel %vm864, %v718, 0.0
      %1220 = vadd.xlane.f32.xlu0 %v1219
      %v1221 = vpop.xlane.xlu0 %1220
      %v1222 = vsel %vm864, %v719, 0.0
      %1223 = vadd.xlane.f32.xlu0 %v1222
      %v1224 = vpop.xlane.xlu0 %1223
      %v1225 = vsel %vm864, %v720, 0.0
      %1226 = vadd.xlane.f32.xlu0 %v1225
      %v1227 = vpop.xlane.xlu0 %1226
      %v1228 = vsel %vm864, %v721, 0.0
      %1229 = vadd.xlane.f32.xlu0 %v1228
      %v1230 = vpop.xlane.xlu0 %1229
      %v1231 = vsel %vm864, %v722, 0.0
      %1232 = vadd.xlane.f32.xlu0 %v1231
      %v1233 = vpop.xlane.xlu0 %1232
      %v1234 = vsel %vm864, %v723, 0.0
      %1235 = vadd.xlane.f32.xlu0 %v1234
      %v1236 = vpop.xlane.xlu0 %1235
      %v1237 = vsel %vm864, %v724, 0.0
      %1238 = vadd.xlane.f32.xlu0 %v1237
      %v1239 = vpop.xlane.xlu0 %1238
      %v1240 = vsel %vm864, %v725, 0.0
      %1241 = vadd.xlane.f32.xlu0 %v1240
      %v1242 = vpop.xlane.xlu0 %1241
      %v1243 = vsel %vm864, %v726, 0.0
      %1244 = vadd.xlane.f32.xlu0 %v1243
      %v1245 = vpop.xlane.xlu0 %1244
      %v1246 = vsel %vm864, %v727, 0.0
      %1247 = vadd.xlane.f32.xlu0 %v1246
      %v1248 = vpop.xlane.xlu0 %1247
      %v1249 = vsel %vm864, %v728, 0.0
      %1250 = vadd.xlane.f32.xlu0 %v1249
      %v1251 = vpop.xlane.xlu0 %1250
      %v1252 = vsel %vm864, %v729, 0.0
      %1253 = vadd.xlane.f32.xlu0 %v1252
      %v1254 = vpop.xlane.xlu0 %1253
      %v1255 = vsel %vm864, %v730, 0.0
      %1256 = vadd.xlane.f32.xlu0 %v1255
      %v1257 = vpop.xlane.xlu0 %1256
      %v1258 = vsel %vm864, %v731, 0.0
      %1259 = vadd.xlane.f32.xlu0 %v1258
      %v1260 = vpop.xlane.xlu0 %1259
      %v1261 = vsel %vm864, %v732, 0.0
      %1262 = vadd.xlane.f32.xlu0 %v1261
      %v1263 = vpop.xlane.xlu0 %1262
      %v1264 = vsel %vm864, %v733, 0.0
      %1265 = vadd.xlane.f32.xlu0 %v1264
      %v1266 = vpop.xlane.xlu0 %1265
      %v1267 = vsel %vm864, %v734, 0.0
      %1268 = vadd.xlane.f32.xlu0 %v1267
      %v1269 = vpop.xlane.xlu0 %1268
      %v1270 = vsel %vm864, %v735, 0.0
      %1271 = vadd.xlane.f32.xlu0 %v1270
      %v1272 = vpop.xlane.xlu0 %1271
      %v1273 = vsel %vm864, %v736, 0.0
      %1274 = vadd.xlane.f32.xlu0 %v1273
      %v1275 = vpop.xlane.xlu0 %1274
      %v1276 = vsel %vm864, %v737, 0.0
      %1277 = vadd.xlane.f32.xlu0 %v1276
      %v1278 = vpop.xlane.xlu0 %1277
      %v1279 = vsel %vm864, %v738, 0.0
      %1280 = vadd.xlane.f32.xlu0 %v1279
      %v1281 = vpop.xlane.xlu0 %1280
      %v1282 = vsel %vm864, %v739, 0.0
      %1283 = vadd.xlane.f32.xlu0 %v1282
      %v1284 = vpop.xlane.xlu0 %1283
      %v1285 = vsel %vm864, %v740, 0.0
      %1286 = vadd.xlane.f32.xlu0 %v1285
      %v1287 = vpop.xlane.xlu0 %1286
      %v1288 = vsel %vm864, %v741, 0.0
      %1289 = vadd.xlane.f32.xlu0 %v1288
      %v1290 = vpop.xlane.xlu0 %1289
      %v1291 = vsel %vm864, %v742, 0.0
      %1292 = vadd.xlane.f32.xlu0 %v1291
      %v1293 = vpop.xlane.xlu0 %1292
      %v1294 = vsel %vm864, %v743, 0.0
      %1295 = vadd.xlane.f32.xlu0 %v1294
      %v1296 = vpop.xlane.xlu0 %1295
      %v1297 = vsel %vm864, %v744, 0.0
      %1298 = vadd.xlane.f32.xlu0 %v1297
      %v1299 = vpop.xlane.xlu0 %1298
      %v1300 = vsel %vm864, %v745, 0.0
      %1301 = vadd.xlane.f32.xlu0 %v1300
      %v1302 = vpop.xlane.xlu0 %1301
      %v1303 = vsel %vm864, %v746, 0.0
      %1304 = vadd.xlane.f32.xlu0 %v1303
      %v1305 = vpop.xlane.xlu0 %1304
      %v1306 = vsel %vm864, %v747, 0.0
      %1307 = vadd.xlane.f32.xlu0 %v1306
      %v1308 = vpop.xlane.xlu0 %1307
      %v1309 = vsel %vm864, %v748, 0.0
      %1310 = vadd.xlane.f32.xlu0 %v1309
      %v1311 = vpop.xlane.xlu0 %1310
      %v1312 = vsel %vm864, %v749, 0.0
      %1313 = vadd.xlane.f32.xlu0 %v1312
      %v1314 = vpop.xlane.xlu0 %1313
      %v1315 = vsel %vm864, %v750, 0.0
      %1316 = vadd.xlane.f32.xlu0 %v1315
      %v1317 = vpop.xlane.xlu0 %1316
      %v1318 = vsel %vm864, %v751, 0.0
      %1319 = vadd.xlane.f32.xlu0 %v1318
      %v1320 = vpop.xlane.xlu0 %1319
      %v1321 = vsel %vm864, %v752, 0.0
      %1322 = vadd.xlane.f32.xlu0 %v1321
      %v1323 = vpop.xlane.xlu0 %1322
      %v1324 = vsel %vm864, %v753, 0.0
      %1325 = vadd.xlane.f32.xlu0 %v1324
      %v1326 = vpop.xlane.xlu0 %1325
      %v1327 = vsel %vm864, %v754, 0.0
      %1328 = vadd.xlane.f32.xlu0 %v1327
      %v1329 = vpop.xlane.xlu0 %1328
      %v1330 = vsel %vm864, %v755, 0.0
      %1331 = vadd.xlane.f32.xlu0 %v1330
      %v1332 = vpop.xlane.xlu0 %1331
      %v1333 = vsel %vm864, %v756, 0.0
      %1334 = vadd.xlane.f32.xlu0 %v1333
      %v1335 = vpop.xlane.xlu0 %1334
      %v1336 = vsel %vm864, %v757, 0.0
      %1337 = vadd.xlane.f32.xlu0 %v1336
      %v1338 = vpop.xlane.xlu0 %1337
      %v1339 = vsel %vm864, %v758, 0.0
      %1340 = vadd.xlane.f32.xlu0 %v1339
      %v1341 = vpop.xlane.xlu0 %1340
      %v1342 = vsel %vm864, %v759, 0.0
      %1343 = vadd.xlane.f32.xlu0 %v1342
      %v1344 = vpop.xlane.xlu0 %1343
      %v1345 = vsel %vm864, %v760, 0.0
      %1346 = vadd.xlane.f32.xlu0 %v1345
      %v1347 = vpop.xlane.xlu0 %1346
      %v1348 = vsel %vm864, %v761, 0.0
      %1349 = vadd.xlane.f32.xlu0 %v1348
      %v1350 = vpop.xlane.xlu0 %1349
      %v1351 = vsel %vm864, %v762, 0.0
      %1352 = vadd.xlane.f32.xlu0 %v1351
      %v1353 = vpop.xlane.xlu0 %1352
      %v1354 = vsel %vm864, %v763, 0.0
      %1355 = vadd.xlane.f32.xlu0 %v1354
      %v1356 = vpop.xlane.xlu0 %1355
      %v1357 = vsel %vm864, %v764, 0.0
      %1358 = vadd.xlane.f32.xlu0 %v1357
      %v1359 = vpop.xlane.xlu0 %1358
      %v1360 = vsel %vm864, %v765, 0.0
      %1361 = vadd.xlane.f32.xlu0 %v1360
      %v1362 = vpop.xlane.xlu0 %1361
      %v1363 = vsel %vm864, %v766, 0.0
      %1364 = vadd.xlane.f32.xlu0 %v1363
      %v1365 = vpop.xlane.xlu0 %1364
      %v1366 = vsel %vm864, %v767, 0.0
      %1367 = vadd.xlane.f32.xlu0 %v1366
      %v1368 = vpop.xlane.xlu0 %1367
      %v1369 = vsel %vm864, %v768, 0.0
      %1370 = vadd.xlane.f32.xlu0 %v1369
      %v1371 = vpop.xlane.xlu0 %1370
      %v1372 = vsel %vm864, %v769, 0.0
      %1373 = vadd.xlane.f32.xlu0 %v1372
      %v1374 = vpop.xlane.xlu0 %1373
      %v1375 = vsel %vm864, %v770, 0.0
      %1376 = vadd.xlane.f32.xlu0 %v1375
      %v1377 = vpop.xlane.xlu0 %1376
      %v1378 = vsel %vm864, %v771, 0.0
      %1379 = vadd.xlane.f32.xlu0 %v1378
      %v1380 = vpop.xlane.xlu0 %1379
      %v1381 = vsel %vm864, %v772, 0.0
      %1382 = vadd.xlane.f32.xlu0 %v1381
      %v1383 = vpop.xlane.xlu0 %1382
      %v1384 = vsel %vm864, %v773, 0.0
      %1385 = vadd.xlane.f32.xlu0 %v1384
      %v1386 = vpop.xlane.xlu0 %1385
      %v1387 = vsel %vm864, %v774, 0.0
      %1388 = vadd.xlane.f32.xlu0 %v1387
      %v1389 = vpop.xlane.xlu0 %1388
      %v1390 = vsel %vm864, %v775, 0.0
      %1391 = vadd.xlane.f32.xlu0 %v1390
      %v1392 = vpop.xlane.xlu0 %1391
      %v1393 = vsel %vm864, %v776, 0.0
      %1394 = vadd.xlane.f32.xlu0 %v1393
      %v1395 = vpop.xlane.xlu0 %1394
      %v1396 = vsel %vm864, %v777, 0.0
      %1397 = vadd.xlane.f32.xlu0 %v1396
      %v1398 = vpop.xlane.xlu0 %1397
      %v1399 = vsel %vm864, %v778, 0.0
      %1400 = vadd.xlane.f32.xlu0 %v1399
      %v1401 = vpop.xlane.xlu0 %1400
      %v1402 = vsel %vm864, %v779, 0.0
      %1403 = vadd.xlane.f32.xlu0 %v1402
      %v1404 = vpop.xlane.xlu0 %1403
      %v1405 = vsel %vm864, %v780, 0.0
      %1406 = vadd.xlane.f32.xlu0 %v1405
      %v1407 = vpop.xlane.xlu0 %1406
      %v1408 = vsel %vm864, %v781, 0.0
      %1409 = vadd.xlane.f32.xlu0 %v1408
      %v1410 = vpop.xlane.xlu0 %1409
      %v1411 = vsel %vm864, %v782, 0.0
      %1412 = vadd.xlane.f32.xlu0 %v1411
      %v1413 = vpop.xlane.xlu0 %1412
      %v1414 = vsel %vm864, %v783, 0.0
      %1415 = vadd.xlane.f32.xlu0 %v1414
      %v1416 = vpop.xlane.xlu0 %1415
      %v1417 = vsel %vm864, %v784, 0.0
      %1418 = vadd.xlane.f32.xlu0 %v1417
      %v1419 = vpop.xlane.xlu0 %1418
      %v1420 = vsel %vm864, %v785, 0.0
      %1421 = vadd.xlane.f32.xlu0 %v1420
      %v1422 = vpop.xlane.xlu0 %1421
      %v1423 = vsel %vm864, %v786, 0.0
      %1424 = vadd.xlane.f32.xlu0 %v1423
      %v1425 = vpop.xlane.xlu0 %1424
      %v1426 = vsel %vm864, %v787, 0.0
      %1427 = vadd.xlane.f32.xlu0 %v1426
      %v1428 = vpop.xlane.xlu0 %1427
      %v1429 = vsel %vm864, %v788, 0.0
      %1430 = vadd.xlane.f32.xlu0 %v1429
      %v1431 = vpop.xlane.xlu0 %1430
      %v1432 = vsel %vm864, %v789, 0.0
      %1433 = vadd.xlane.f32.xlu0 %v1432
      %v1434 = vpop.xlane.xlu0 %1433
      %v1435 = vsel %vm864, %v790, 0.0
      %1436 = vadd.xlane.f32.xlu0 %v1435
      %v1437 = vpop.xlane.xlu0 %1436
      %v1438 = vsel %vm864, %v791, 0.0
      %1439 = vadd.xlane.f32.xlu0 %v1438
      %v1440 = vpop.xlane.xlu0 %1439
      %v1441 = vsel %vm864, %v792, 0.0
      %1442 = vadd.xlane.f32.xlu0 %v1441
      %v1443 = vpop.xlane.xlu0 %1442
      %v1444 = vsel %vm864, %v793, 0.0
      %1445 = vadd.xlane.f32.xlu0 %v1444
      %v1446 = vpop.xlane.xlu0 %1445
      %v1447 = vsel %vm864, %v794, 0.0
      %1448 = vadd.xlane.f32.xlu0 %v1447
      %v1449 = vpop.xlane.xlu0 %1448
      %v1450 = vsel %vm864, %v795, 0.0
      %1451 = vadd.xlane.f32.xlu0 %v1450
      %v1452 = vpop.xlane.xlu0 %1451
      %v1453 = vsel %vm864, %v796, 0.0
      %1454 = vadd.xlane.f32.xlu0 %v1453
      %v1455 = vpop.xlane.xlu0 %1454
      %v1456 = vsel %vm864, %v797, 0.0
      %1457 = vadd.xlane.f32.xlu0 %v1456
      %v1458 = vpop.xlane.xlu0 %1457
      %v1459 = vsel %vm864, %v798, 0.0
      %1460 = vadd.xlane.f32.xlu0 %v1459
      %v1461 = vpop.xlane.xlu0 %1460
      %v1462 = vsel %vm864, %v799, 0.0
      %1463 = vadd.xlane.f32.xlu0 %v1462
      %v1464 = vpop.xlane.xlu0 %1463
      %v1465 = vsel %vm864, %v800, 0.0
      %1466 = vadd.xlane.f32.xlu0 %v1465
      %v1467 = vpop.xlane.xlu0 %1466
      %v1468 = vsel %vm864, %v801, 0.0
      %1469 = vadd.xlane.f32.xlu0 %v1468
      %v1470 = vpop.xlane.xlu0 %1469
      %v1471 = vsel %vm864, %v802, 0.0
      %1472 = vadd.xlane.f32.xlu0 %v1471
      %v1473 = vpop.xlane.xlu0 %1472
      %v1474 = vsel %vm864, %v803, 0.0
      %1475 = vadd.xlane.f32.xlu0 %v1474
      %v1476 = vpop.xlane.xlu0 %1475
      %v1477 = vsel %vm864, %v804, 0.0
      %1478 = vadd.xlane.f32.xlu0 %v1477
      %v1479 = vpop.xlane.xlu0 %1478
      %v1480 = vsel %vm864, %v805, 0.0
      %1481 = vadd.xlane.f32.xlu0 %v1480
      %v1482 = vpop.xlane.xlu0 %1481
      %v1483 = vsel %vm864, %v806, 0.0
      %1484 = vadd.xlane.f32.xlu0 %v1483
      %v1485 = vpop.xlane.xlu0 %1484
      %v1486 = vsel %vm864, %v807, 0.0
      %1487 = vadd.xlane.f32.xlu0 %v1486
      %v1488 = vpop.xlane.xlu0 %1487
      %v1489 = vsel %vm864, %v808, 0.0
      %1490 = vadd.xlane.f32.xlu0 %v1489
      %v1491 = vpop.xlane.xlu0 %1490
      %v1492 = vsel %vm864, %v809, 0.0
      %1493 = vadd.xlane.f32.xlu0 %v1492
      %v1494 = vpop.xlane.xlu0 %1493
      %v1495 = vsel %vm864, %v810, 0.0
      %1496 = vadd.xlane.f32.xlu0 %v1495
      %v1497 = vpop.xlane.xlu0 %1496
      %v1498 = vsel %vm864, %v811, 0.0
      %1499 = vadd.xlane.f32.xlu0 %v1498
      %v1500 = vpop.xlane.xlu0 %1499
      %v1501 = vsel %vm864, %v812, 0.0
      %1502 = vadd.xlane.f32.xlu0 %v1501
      %v1503 = vpop.xlane.xlu0 %1502
      %v1504 = vsel %vm864, %v813, 0.0
      %1505 = vadd.xlane.f32.xlu0 %v1504
      %v1506 = vpop.xlane.xlu0 %1505
      %v1507 = vsel %vm864, %v814, 0.0
      %1508 = vadd.xlane.f32.xlu0 %v1507
      %v1509 = vpop.xlane.xlu0 %1508
      %v1510 = vsel %vm864, %v815, 0.0
      %1511 = vadd.xlane.f32.xlu0 %v1510
      %v1512 = vpop.xlane.xlu0 %1511
      %v1513 = vsel %vm864, %v816, 0.0
      %1514 = vadd.xlane.f32.xlu0 %v1513
      %v1515 = vpop.xlane.xlu0 %1514
      %v1516 = vsel %vm864, %v817, 0.0
      %1517 = vadd.xlane.f32.xlu0 %v1516
      %v1518 = vpop.xlane.xlu0 %1517
      %v1519 = vsel %vm864, %v818, 0.0
      %1520 = vadd.xlane.f32.xlu0 %v1519
      %v1521 = vpop.xlane.xlu0 %1520
      %v1522 = vsel %vm864, %v819, 0.0
      %1523 = vadd.xlane.f32.xlu0 %v1522
      %v1524 = vpop.xlane.xlu0 %1523
      %v1525 = vsel %vm864, %v820, 0.0
      %1526 = vadd.xlane.f32.xlu0 %v1525
      %v1527 = vpop.xlane.xlu0 %1526
      %v1528 = vsel %vm864, %v821, 0.0
      %1529 = vadd.xlane.f32.xlu0 %v1528
      %v1530 = vpop.xlane.xlu0 %1529
      %v1531 = vsel %vm864, %v822, 0.0
      %1532 = vadd.xlane.f32.xlu0 %v1531
      %v1533 = vpop.xlane.xlu0 %1532
      %v1534 = vsel %vm864, %v823, 0.0
      %1535 = vadd.xlane.f32.xlu0 %v1534
      %v1536 = vpop.xlane.xlu0 %1535
      %v1537 = vsel %vm864, %v824, 0.0
      %1538 = vadd.xlane.f32.xlu0 %v1537
      %v1539 = vpop.xlane.xlu0 %1538
      %v1540 = vsel %vm864, %v825, 0.0
      %1541 = vadd.xlane.f32.xlu0 %v1540
      %v1542 = vpop.xlane.xlu0 %1541
      %v1543 = vsel %vm864, %v826, 0.0
      %1544 = vadd.xlane.f32.xlu0 %v1543
      %v1545 = vpop.xlane.xlu0 %1544
      %v1546 = vsel %vm864, %v827, 0.0
      %1547 = vadd.xlane.f32.xlu0 %v1546
      %v1548 = vpop.xlane.xlu0 %1547
      %v1549 = vsel %vm864, %v828, 0.0
      %1550 = vadd.xlane.f32.xlu0 %v1549
      %v1551 = vpop.xlane.xlu0 %1550
      %v1552 = vsel %vm864, %v829, 0.0
      %1553 = vadd.xlane.f32.xlu0 %v1552
      %v1554 = vpop.xlane.xlu0 %1553
      %v1555 = vsel %vm864, %v830, 0.0
      %1556 = vadd.xlane.f32.xlu0 %v1555
      %v1557 = vpop.xlane.xlu0 %1556
      %v1558 = vsel %vm864, %v831, 0.0
      %1559 = vadd.xlane.f32.xlu0 %v1558
      %v1560 = vpop.xlane.xlu0 %1559
      %v1561 = vsel %vm864, %v832, 0.0
      %1562 = vadd.xlane.f32.xlu0 %v1561
      %v1563 = vpop.xlane.xlu0 %1562
      %v1564 = vsel %vm864, %v833, 0.0
      %1565 = vadd.xlane.f32.xlu0 %v1564
      %v1566 = vpop.xlane.xlu0 %1565
      %v1567 = vsel %vm864, %v834, 0.0
      %1568 = vadd.xlane.f32.xlu0 %v1567
      %v1569 = vpop.xlane.xlu0 %1568
      %v1570 = vsel %vm864, %v835, 0.0
      %1571 = vadd.xlane.f32.xlu0 %v1570
      %v1572 = vpop.xlane.xlu0 %1571
      %v1573 = vsel %vm864, %v836, 0.0
      %1574 = vadd.xlane.f32.xlu0 %v1573
      %v1575 = vpop.xlane.xlu0 %1574
      %v1576 = vsel %vm864, %v837, 0.0
      %1577 = vadd.xlane.f32.xlu0 %v1576
      %v1578 = vpop.xlane.xlu0 %1577
      %v1579 = vsel %vm864, %v838, 0.0
      %1580 = vadd.xlane.f32.xlu0 %v1579
      %v1581 = vpop.xlane.xlu0 %1580
      %v1582 = vsel %vm864, %v839, 0.0
      %1583 = vadd.xlane.f32.xlu0 %v1582
      %v1584 = vpop.xlane.xlu0 %1583
      %v1585 = vsel %vm864, %v840, 0.0
      %1586 = vadd.xlane.f32.xlu0 %v1585
      %v1587 = vpop.xlane.xlu0 %1586
      %v1588 = vsel %vm864, %v841, 0.0
      %1589 = vadd.xlane.f32.xlu0 %v1588
      %v1590 = vpop.xlane.xlu0 %1589
      %v1591 = vsel %vm864, %v842, 0.0
      %1592 = vadd.xlane.f32.xlu0 %v1591
      %v1593 = vpop.xlane.xlu0 %1592
      %v1594 = vsel %vm864, %v843, 0.0
      %1595 = vadd.xlane.f32.xlu0 %v1594
      %v1596 = vpop.xlane.xlu0 %1595
      %v1597 = vsel %vm864, %v844, 0.0
      %1598 = vadd.xlane.f32.xlu0 %v1597
      %v1599 = vpop.xlane.xlu0 %1598
      %v1600 = vsel %vm864, %v845, 0.0
      %1601 = vadd.xlane.f32.xlu0 %v1600
      %v1602 = vpop.xlane.xlu0 %1601
      %v1603 = vsel %vm864, %v846, 0.0
      %1604 = vadd.xlane.f32.xlu0 %v1603
      %v1605 = vpop.xlane.xlu0 %1604
      %v1606 = vsel %vm864, %v847, 0.0
      %1607 = vadd.xlane.f32.xlu0 %v1606
      %v1608 = vpop.xlane.xlu0 %1607
      %v1609 = vsel %vm864, %v848, 0.0
      %1610 = vadd.xlane.f32.xlu0 %v1609
      %v1611 = vpop.xlane.xlu0 %1610
      %v1612 = vsel %vm864, %v849, 0.0
      %1613 = vadd.xlane.f32.xlu0 %v1612
      %v1614 = vpop.xlane.xlu0 %1613
      %v1615 = vsel %vm864, %v850, 0.0
      %1616 = vadd.xlane.f32.xlu0 %v1615
      %v1617 = vpop.xlane.xlu0 %1616
      %v1618 = vsel %vm864, %v851, 0.0
      %1619 = vadd.xlane.f32.xlu0 %v1618
      %v1620 = vpop.xlane.xlu0 %1619
      %v1621 = vsel %vm864, %v852, 0.0
      %1622 = vadd.xlane.f32.xlu0 %v1621
      %v1623 = vpop.xlane.xlu0 %1622
      %v1624 = vsel %vm864, %v853, 0.0
      %1625 = vadd.xlane.f32.xlu0 %v1624
      %v1626 = vpop.xlane.xlu0 %1625
      %v1627 = vsel %vm864, %v854, 0.0
      %1628 = vadd.xlane.f32.xlu0 %v1627
      %v1629 = vpop.xlane.xlu0 %1628
      %v1630 = vsel %vm864, %v855, 0.0
      %1631 = vadd.xlane.f32.xlu0 %v1630
      %v1632 = vpop.xlane.xlu0 %1631
      %v1633 = vsel %vm864, %v856, 0.0
      %1634 = vadd.xlane.f32.xlu0 %v1633
      %v1635 = vpop.xlane.xlu0 %1634
      %v1636 = vsel %vm864, %v857, 0.0
      %1637 = vadd.xlane.f32.xlu0 %v1636
      %v1638 = vpop.xlane.xlu0 %1637
      %v1639 = vsel %vm864, %v858, 0.0
      %1640 = vadd.xlane.f32.xlu0 %v1639
      %v1641 = vpop.xlane.xlu0 %1640
      %v1642 = vsel %vm864, %v859, 0.0
      %1643 = vadd.xlane.f32.xlu0 %v1642
      %v1644 = vpop.xlane.xlu0 %1643
      %v1645 = vsel %vm864, %v860, 0.0
      %1646 = vadd.xlane.f32.xlu0 %v1645
      %v1647 = vpop.xlane.xlu0 %1646
      %v1648 = vsel %vm864, %v861, 0.0
      %1649 = vadd.xlane.f32.xlu0 %v1648
      %v1650 = vpop.xlane.xlu0 %1649
      %v1651 = vsel %vm864, %v862, 0.0
      %1652 = vadd.xlane.f32.xlu0 %v1651
      %v1653 = vpop.xlane.xlu0 %1652
      %v1654 = vsel %vm864, %v863, 0.0
      %1655 = vadd.xlane.f32.xlu0 %v1654
      %v1656 = vpop.xlane.xlu0 %1655
      %v1657 = vld [vmem:[%s2] sm:$0xff]
      %v1658 = vld [vmem:[%s2 + $0x8] sm:$0xff]
      %v1659 = vld [vmem:[%s2 + $0x10] sm:$0xff]
      %v1660 = vld [vmem:[%s2 + $0x18] sm:$0xff]
      %v1661 = vld [vmem:[%s2 + $0x20] sm:$0xff]
      %v1662 = vld [vmem:[%s2 + $0x28] sm:$0xff]
      %v1663 = vld [vmem:[%s2 + $0x30] sm:$0xff]
      %v1664 = vld [vmem:[%s2 + $0x38] sm:$0xff]
      %v1665 = vld [vmem:[%s2 + $0x40] sm:$0xff]
      %v1666 = vld [vmem:[%s2 + $0x48] sm:$0xff]
      %v1667 = vld [vmem:[%s2 + $0x50] sm:$0xff]
      %v1668 = vld [vmem:[%s2 + $0x58] sm:$0xff]
      %v1669 = vld [vmem:[%s2 + $0x60] sm:$0xff]
      %v1670 = vld [vmem:[%s2 + $0x68] sm:$0xff]
      %v1671 = vld [vmem:[%s2 + $0x70] sm:$0xff]
      %v1672 = vld [vmem:[%s2 + $0x78] sm:$0xff]
      %v1673 = vld [vmem:[%s2 + $0x80] sm:$0xff]
      %v1674 = vld [vmem:[%s2 + $0x88] sm:$0xff]
      %v1675 = vld [vmem:[%s2 + $0x90] sm:$0xff]
      %v1676 = vld [vmem:[%s2 + $0x98] sm:$0xff]
      %v1677 = vld [vmem:[%s2 + $0xa0] sm:$0xff]
      %v1678 = vld [vmem:[%s2 + $0xa8] sm:$0xff]
      %v1679 = vld [vmem:[%s2 + $0xb0] sm:$0xff]
      %v1680 = vld [vmem:[%s2 + $0xb8] sm:$0xff]
      %v1681 = vld [vmem:[%s2 + $0xc0] sm:$0xff]
      %v1682 = vld [vmem:[%s2 + $0xc8] sm:$0xff]
      %v1683 = vld [vmem:[%s2 + $0xd0] sm:$0xff]
      %v1684 = vld [vmem:[%s2 + $0xd8] sm:$0xff]
      %v1685 = vld [vmem:[%s2 + $0xe0] sm:$0xff]
      %v1686 = vld [vmem:[%s2 + $0xe8] sm:$0xff]
      %v1687 = vld [vmem:[%s2 + $0xf0] sm:$0xff]
      %v1688 = vld [vmem:[%s2 + $0xf8] sm:$0xff]
      %v1689 = vld [vmem:[%s2 + $0x100] sm:$0xff]
      %v1690 = vld [vmem:[%s2 + $0x108] sm:$0xff]
      %v1691 = vld [vmem:[%s2 + $0x110] sm:$0xff]
      %v1692 = vld [vmem:[%s2 + $0x118] sm:$0xff]
      %v1693 = vld [vmem:[%s2 + $0x120] sm:$0xff]
      %v1694 = vld [vmem:[%s2 + $0x128] sm:$0xff]
      %v1695 = vld [vmem:[%s2 + $0x130] sm:$0xff]
      %v1696 = vld [vmem:[%s2 + $0x138] sm:$0xff]
      %v1697 = vld [vmem:[%s2 + $0x140] sm:$0xff]
      %v1698 = vld [vmem:[%s2 + $0x148] sm:$0xff]
      %v1699 = vld [vmem:[%s2 + $0x150] sm:$0xff]
      %v1700 = vld [vmem:[%s2 + $0x158] sm:$0xff]
      %v1701 = vld [vmem:[%s2 + $0x160] sm:$0xff]
      %v1702 = vld [vmem:[%s2 + $0x168] sm:$0xff]
      %v1703 = vld [vmem:[%s2 + $0x170] sm:$0xff]
      %v1704 = vld [vmem:[%s2 + $0x178] sm:$0xff]
      %v1705 = vld [vmem:[%s2 + $0x180] sm:$0xff]
      %v1706 = vld [vmem:[%s2 + $0x188] sm:$0xff]
      %v1707 = vld [vmem:[%s2 + $0x190] sm:$0xff]
      %v1708 = vld [vmem:[%s2 + $0x198] sm:$0xff]
      %v1709 = vld [vmem:[%s2 + $0x1a0] sm:$0xff]
      %v1710 = vld [vmem:[%s2 + $0x1a8] sm:$0xff]
      %v1711 = vld [vmem:[%s2 + $0x1b0] sm:$0xff]
      %v1712 = vld [vmem:[%s2 + $0x1b8] sm:$0xff]
      %v1713 = vld [vmem:[%s2 + $0x1c0] sm:$0xff]
      %v1714 = vld [vmem:[%s2 + $0x1c8] sm:$0xff]
      %v1715 = vld [vmem:[%s2 + $0x1d0] sm:$0xff]
      %v1716 = vld [vmem:[%s2 + $0x1d8] sm:$0xff]
      %v1717 = vld [vmem:[%s2 + $0x1e0] sm:$0xff]
      %v1718 = vld [vmem:[%s2 + $0x1e8] sm:$0xff]
      %v1719 = vld [vmem:[%s2 + $0x1f0] sm:$0xff]
      %v1720 = vld [vmem:[%s2 + $0x1f8] sm:$0xff]
      %v1721 = vld [vmem:[%s2 + $0x200] sm:$0xff]
      %v1722 = vld [vmem:[%s2 + $0x208] sm:$0xff]
      %v1723 = vld [vmem:[%s2 + $0x210] sm:$0xff]
      %v1724 = vld [vmem:[%s2 + $0x218] sm:$0xff]
      %v1725 = vld [vmem:[%s2 + $0x220] sm:$0xff]
      %v1726 = vld [vmem:[%s2 + $0x228] sm:$0xff]
      %v1727 = vld [vmem:[%s2 + $0x230] sm:$0xff]
      %v1728 = vld [vmem:[%s2 + $0x238] sm:$0xff]
      %v1729 = vld [vmem:[%s2 + $0x240] sm:$0xff]
      %v1730 = vld [vmem:[%s2 + $0x248] sm:$0xff]
      %v1731 = vld [vmem:[%s2 + $0x250] sm:$0xff]
      %v1732 = vld [vmem:[%s2 + $0x258] sm:$0xff]
      %v1733 = vld [vmem:[%s2 + $0x260] sm:$0xff]
      %v1734 = vld [vmem:[%s2 + $0x268] sm:$0xff]
      %v1735 = vld [vmem:[%s2 + $0x270] sm:$0xff]
      %v1736 = vld [vmem:[%s2 + $0x278] sm:$0xff]
      %v1737 = vld [vmem:[%s2 + $0x280] sm:$0xff]
      %v1738 = vld [vmem:[%s2 + $0x288] sm:$0xff]
      %v1739 = vld [vmem:[%s2 + $0x290] sm:$0xff]
      %v1740 = vld [vmem:[%s2 + $0x298] sm:$0xff]
      %v1741 = vld [vmem:[%s2 + $0x2a0] sm:$0xff]
      %v1742 = vld [vmem:[%s2 + $0x2a8] sm:$0xff]
      %v1743 = vld [vmem:[%s2 + $0x2b0] sm:$0xff]
      %v1744 = vld [vmem:[%s2 + $0x2b8] sm:$0xff]
      %v1745 = vld [vmem:[%s2 + $0x2c0] sm:$0xff]
      %v1746 = vld [vmem:[%s2 + $0x2c8] sm:$0xff]
      %v1747 = vld [vmem:[%s2 + $0x2d0] sm:$0xff]
      %v1748 = vld [vmem:[%s2 + $0x2d8] sm:$0xff]
      %v1749 = vld [vmem:[%s2 + $0x2e0] sm:$0xff]
      %v1750 = vld [vmem:[%s2 + $0x2e8] sm:$0xff]
      %v1751 = vld [vmem:[%s2 + $0x2f0] sm:$0xff]
      %v1752 = vld [vmem:[%s2 + $0x2f8] sm:$0xff]
      %v1753 = vld [vmem:[%s2 + $0x300] sm:$0xff]
      %v1754 = vld [vmem:[%s2 + $0x308] sm:$0xff]
      %v1755 = vld [vmem:[%s2 + $0x310] sm:$0xff]
      %v1756 = vld [vmem:[%s2 + $0x318] sm:$0xff]
      %v1757 = vld [vmem:[%s2 + $0x320] sm:$0xff]
      %v1758 = vld [vmem:[%s2 + $0x328] sm:$0xff]
      %v1759 = vld [vmem:[%s2 + $0x330] sm:$0xff]
      %v1760 = vld [vmem:[%s2 + $0x338] sm:$0xff]
      %v1761 = vld [vmem:[%s2 + $0x340] sm:$0xff]
      %v1762 = vld [vmem:[%s2 + $0x348] sm:$0xff]
      %v1763 = vld [vmem:[%s2 + $0x350] sm:$0xff]
      %v1764 = vld [vmem:[%s2 + $0x358] sm:$0xff]
      %v1765 = vld [vmem:[%s2 + $0x360] sm:$0xff]
      %v1766 = vld [vmem:[%s2 + $0x368] sm:$0xff]
      %v1767 = vld [vmem:[%s2 + $0x370] sm:$0xff]
      %v1768 = vld [vmem:[%s2 + $0x378] sm:$0xff]
      %v1769 = vld [vmem:[%s2 + $0x380] sm:$0xff]
      %v1770 = vld [vmem:[%s2 + $0x388] sm:$0xff]
      %v1771 = vld [vmem:[%s2 + $0x390] sm:$0xff]
      %v1772 = vld [vmem:[%s2 + $0x398] sm:$0xff]
      %v1773 = vld [vmem:[%s2 + $0x3a0] sm:$0xff]
      %v1774 = vld [vmem:[%s2 + $0x3a8] sm:$0xff]
      %v1775 = vld [vmem:[%s2 + $0x3b0] sm:$0xff]
      %v1776 = vld [vmem:[%s2 + $0x3b8] sm:$0xff]
      %v1777 = vld [vmem:[%s2 + $0x3c0] sm:$0xff]
      %v1778 = vld [vmem:[%s2 + $0x3c8] sm:$0xff]
      %v1779 = vld [vmem:[%s2 + $0x3d0] sm:$0xff]
      %v1780 = vld [vmem:[%s2 + $0x3d8] sm:$0xff]
      %v1781 = vld [vmem:[%s2 + $0x3e0] sm:$0xff]
      %v1782 = vld [vmem:[%s2 + $0x3e8] sm:$0xff]
      %v1783 = vld [vmem:[%s2 + $0x3f0] sm:$0xff]
      %v1784 = vld [vmem:[%s2 + $0x3f8] sm:$0xff]
      %v1785 = vld [vmem:[%s2 + $0x400] sm:$0xff]
      %v1786 = vld [vmem:[%s2 + $0x408] sm:$0xff]
      %v1787 = vld [vmem:[%s2 + $0x410] sm:$0xff]
      %v1788 = vld [vmem:[%s2 + $0x418] sm:$0xff]
      %v1789 = vld [vmem:[%s2 + $0x420] sm:$0xff]
      %v1790 = vld [vmem:[%s2 + $0x428] sm:$0xff]
      %v1791 = vld [vmem:[%s2 + $0x430] sm:$0xff]
      %v1792 = vld [vmem:[%s2 + $0x438] sm:$0xff]
      %v1793 = vld [vmem:[%s2 + $0x440] sm:$0xff]
      %v1794 = vld [vmem:[%s2 + $0x448] sm:$0xff]
      %v1795 = vld [vmem:[%s2 + $0x450] sm:$0xff]
      %v1796 = vld [vmem:[%s2 + $0x458] sm:$0xff]
      %v1797 = vld [vmem:[%s2 + $0x460] sm:$0xff]
      %v1798 = vld [vmem:[%s2 + $0x468] sm:$0xff]
      %v1799 = vld [vmem:[%s2 + $0x470] sm:$0xff]
      %v1800 = vld [vmem:[%s2 + $0x478] sm:$0xff]
      %v1801 = vld [vmem:[%s2 + $0x480] sm:$0xff]
      %v1802 = vld [vmem:[%s2 + $0x488] sm:$0xff]
      %v1803 = vld [vmem:[%s2 + $0x490] sm:$0xff]
      %v1804 = vld [vmem:[%s2 + $0x498] sm:$0xff]
      %v1805 = vld [vmem:[%s2 + $0x4a0] sm:$0xff]
      %v1806 = vld [vmem:[%s2 + $0x4a8] sm:$0xff]
      %v1807 = vld [vmem:[%s2 + $0x4b0] sm:$0xff]
      %v1808 = vld [vmem:[%s2 + $0x4b8] sm:$0xff]
      %v1809 = vld [vmem:[%s2 + $0x4c0] sm:$0xff]
      %v1810 = vld [vmem:[%s2 + $0x4c8] sm:$0xff]
      %v1811 = vld [vmem:[%s2 + $0x4d0] sm:$0xff]
      %v1812 = vld [vmem:[%s2 + $0x4d8] sm:$0xff]
      %v1813 = vld [vmem:[%s2 + $0x4e0] sm:$0xff]
      %v1814 = vld [vmem:[%s2 + $0x4e8] sm:$0xff]
      %v1815 = vld [vmem:[%s2 + $0x4f0] sm:$0xff]
      %v1816 = vld [vmem:[%s2 + $0x4f8] sm:$0xff]
      %v1817 = vld [vmem:[%s2 + $0x500] sm:$0xff]
      %v1818 = vld [vmem:[%s2 + $0x508] sm:$0xff]
      %v1819 = vld [vmem:[%s2 + $0x510] sm:$0xff]
      %v1820 = vld [vmem:[%s2 + $0x518] sm:$0xff]
      %v1821 = vld [vmem:[%s2 + $0x520] sm:$0xff]
      %v1822 = vld [vmem:[%s2 + $0x528] sm:$0xff]
      %v1823 = vld [vmem:[%s2 + $0x530] sm:$0xff]
      %v1824 = vld [vmem:[%s2 + $0x538] sm:$0xff]
      %v1825 = vld [vmem:[%s2 + $0x540] sm:$0xff]
      %v1826 = vld [vmem:[%s2 + $0x548] sm:$0xff]
      %v1827 = vld [vmem:[%s2 + $0x550] sm:$0xff]
      %v1828 = vld [vmem:[%s2 + $0x558] sm:$0xff]
      %v1829 = vld [vmem:[%s2 + $0x560] sm:$0xff]
      %v1830 = vld [vmem:[%s2 + $0x568] sm:$0xff]
      %v1831 = vld [vmem:[%s2 + $0x570] sm:$0xff]
      %v1832 = vld [vmem:[%s2 + $0x578] sm:$0xff]
      %v1833 = vld [vmem:[%s2 + $0x580] sm:$0xff]
      %v1834 = vld [vmem:[%s2 + $0x588] sm:$0xff]
      %v1835 = vld [vmem:[%s2 + $0x590] sm:$0xff]
      %v1836 = vld [vmem:[%s2 + $0x598] sm:$0xff]
      %v1837 = vld [vmem:[%s2 + $0x5a0] sm:$0xff]
      %v1838 = vld [vmem:[%s2 + $0x5a8] sm:$0xff]
      %v1839 = vld [vmem:[%s2 + $0x5b0] sm:$0xff]
      %v1840 = vld [vmem:[%s2 + $0x5b8] sm:$0xff]
      %v1841 = vld [vmem:[%s2 + $0x5c0] sm:$0xff]
      %v1842 = vld [vmem:[%s2 + $0x5c8] sm:$0xff]
      %v1843 = vld [vmem:[%s2 + $0x5d0] sm:$0xff]
      %v1844 = vld [vmem:[%s2 + $0x5d8] sm:$0xff]
      %v1845 = vld [vmem:[%s2 + $0x5e0] sm:$0xff]
      %v1846 = vld [vmem:[%s2 + $0x5e8] sm:$0xff]
      %v1847 = vld [vmem:[%s2 + $0x5f0] sm:$0xff]
      %v1848 = vld [vmem:[%s2 + $0x5f8] sm:$0xff]
      %v1849 = vld [vmem:[%s2 + $0x600] sm:$0xff]
      %v1850 = vld [vmem:[%s2 + $0x608] sm:$0xff]
      %v1851 = vld [vmem:[%s2 + $0x610] sm:$0xff]
      %v1852 = vld [vmem:[%s2 + $0x618] sm:$0xff]
      %v1853 = vld [vmem:[%s2 + $0x620] sm:$0xff]
      %v1854 = vld [vmem:[%s2 + $0x628] sm:$0xff]
      %v1855 = vld [vmem:[%s2 + $0x630] sm:$0xff]
      %v1856 = vld [vmem:[%s2 + $0x638] sm:$0xff]
      %v1857 = vld [vmem:[%s2 + $0x640] sm:$0xff]
      %v1858 = vld [vmem:[%s2 + $0x648] sm:$0xff]
      %v1859 = vld [vmem:[%s2 + $0x650] sm:$0xff]
      %v1860 = vld [vmem:[%s2 + $0x658] sm:$0xff]
      %v1861 = vld [vmem:[%s2 + $0x660] sm:$0xff]
      %v1862 = vld [vmem:[%s2 + $0x668] sm:$0xff]
      %v1863 = vld [vmem:[%s2 + $0x670] sm:$0xff]
      %v1864 = vld [vmem:[%s2 + $0x678] sm:$0xff]
      %v1865 = vld [vmem:[%s2 + $0x680] sm:$0xff]
      %v1866 = vld [vmem:[%s2 + $0x688] sm:$0xff]
      %v1867 = vld [vmem:[%s2 + $0x690] sm:$0xff]
      %v1868 = vld [vmem:[%s2 + $0x698] sm:$0xff]
      %v1869 = vld [vmem:[%s2 + $0x6a0] sm:$0xff]
      %v1870 = vld [vmem:[%s2 + $0x6a8] sm:$0xff]
      %v1871 = vld [vmem:[%s2 + $0x6b0] sm:$0xff]
      %v1872 = vld [vmem:[%s2 + $0x6b8] sm:$0xff]
      %v1873 = vld [vmem:[%s2 + $0x6c0] sm:$0xff]
      %v1874 = vld [vmem:[%s2 + $0x6c8] sm:$0xff]
      %v1875 = vld [vmem:[%s2 + $0x6d0] sm:$0xff]
      %v1876 = vld [vmem:[%s2 + $0x6d8] sm:$0xff]
      %v1877 = vld [vmem:[%s2 + $0x6e0] sm:$0xff]
      %v1878 = vld [vmem:[%s2 + $0x6e8] sm:$0xff]
      %v1879 = vld [vmem:[%s2 + $0x6f0] sm:$0xff]
      %v1880 = vld [vmem:[%s2 + $0x6f8] sm:$0xff]
      %v1881 = vld [vmem:[%s2 + $0x700] sm:$0xff]
      %v1882 = vld [vmem:[%s2 + $0x708] sm:$0xff]
      %v1883 = vld [vmem:[%s2 + $0x710] sm:$0xff]
      %v1884 = vld [vmem:[%s2 + $0x718] sm:$0xff]
      %v1885 = vld [vmem:[%s2 + $0x720] sm:$0xff]
      %v1886 = vld [vmem:[%s2 + $0x728] sm:$0xff]
      %v1887 = vld [vmem:[%s2 + $0x730] sm:$0xff]
      %v1888 = vld [vmem:[%s2 + $0x738] sm:$0xff]
      %v1889 = vld [vmem:[%s2 + $0x740] sm:$0xff]
      %v1890 = vld [vmem:[%s2 + $0x748] sm:$0xff]
      %v1891 = vld [vmem:[%s2 + $0x750] sm:$0xff]
      %v1892 = vld [vmem:[%s2 + $0x758] sm:$0xff]
      %v1893 = vld [vmem:[%s2 + $0x760] sm:$0xff]
      %v1894 = vld [vmem:[%s2 + $0x768] sm:$0xff]
      %v1895 = vld [vmem:[%s2 + $0x770] sm:$0xff]
      %v1896 = vld [vmem:[%s2 + $0x778] sm:$0xff]
      %v1897 = vld [vmem:[%s2 + $0x780] sm:$0xff]
      %v1898 = vld [vmem:[%s2 + $0x788] sm:$0xff]
      %v1899 = vld [vmem:[%s2 + $0x790] sm:$0xff]
      %v1900 = vld [vmem:[%s2 + $0x798] sm:$0xff]
      %v1901 = vld [vmem:[%s2 + $0x7a0] sm:$0xff]
      %v1902 = vld [vmem:[%s2 + $0x7a8] sm:$0xff]
      %v1903 = vld [vmem:[%s2 + $0x7b0] sm:$0xff]
      %v1904 = vld [vmem:[%s2 + $0x7b8] sm:$0xff]
      %v1905 = vld [vmem:[%s2 + $0x7c0] sm:$0xff]
      %v1906 = vld [vmem:[%s2 + $0x7c8] sm:$0xff]
      %v1907 = vld [vmem:[%s2 + $0x7d0] sm:$0xff]
      %v1908 = vld [vmem:[%s2 + $0x7d8] sm:$0xff]
      %v1909 = vld [vmem:[%s2 + $0x7e0] sm:$0xff]
      %v1910 = vld [vmem:[%s2 + $0x7e8] sm:$0xff]
      %v1911 = vld [vmem:[%s2 + $0x7f0] sm:$0xff]
      %v1912 = vld [vmem:[%s2 + $0x7f8] sm:$0xff]
      %v1913 = vld [vmem:[%s2 + $0x800] sm:$0xff]
      %v1914 = vld [vmem:[%s2 + $0x808] sm:$0xff]
      %v1915 = vld [vmem:[%s2 + $0x810] sm:$0xff]
      %v1916 = vld [vmem:[%s2 + $0x818] sm:$0xff]
      %v1917 = vld [vmem:[%s2 + $0x820] sm:$0xff]
      %v1918 = vld [vmem:[%s2 + $0x828] sm:$0xff]
      %v1919 = vld [vmem:[%s2 + $0x830] sm:$0xff]
      %v1920 = vld [vmem:[%s2 + $0x838] sm:$0xff]
      %v1921 = vadd.f32 %v867, %v1657
      %v1922 = vadd.f32 %v870, %v1658
      %v1923 = vadd.f32 %v873, %v1659
      %v1924 = vadd.f32 %v876, %v1660
      %v1925 = vadd.f32 %v879, %v1661
      %v1926 = vadd.f32 %v882, %v1662
      %v1927 = vadd.f32 %v885, %v1663
      %v1928 = vadd.f32 %v888, %v1664
      %v1929 = vadd.f32 %v891, %v1665
      %v1930 = vadd.f32 %v894, %v1666
      %v1931 = vadd.f32 %v897, %v1667
      %v1932 = vadd.f32 %v900, %v1668
      %v1933 = vadd.f32 %v903, %v1669
      %v1934 = vadd.f32 %v906, %v1670
      %v1935 = vadd.f32 %v909, %v1671
      %v1936 = vadd.f32 %v912, %v1672
      %v1937 = vadd.f32 %v915, %v1673
      %v1938 = vadd.f32 %v918, %v1674
      %v1939 = vadd.f32 %v921, %v1675
      %v1940 = vadd.f32 %v924, %v1676
      %v1941 = vadd.f32 %v927, %v1677
      %v1942 = vadd.f32 %v930, %v1678
      %v1943 = vadd.f32 %v933, %v1679
      %v1944 = vadd.f32 %v936, %v1680
      %v1945 = vadd.f32 %v939, %v1681
      %v1946 = vadd.f32 %v942, %v1682
      %v1947 = vadd.f32 %v945, %v1683
      %v1948 = vadd.f32 %v948, %v1684
      %v1949 = vadd.f32 %v951, %v1685
      %v1950 = vadd.f32 %v954, %v1686
      %v1951 = vadd.f32 %v957, %v1687
      %v1952 = vadd.f32 %v960, %v1688
      %v1953 = vadd.f32 %v963, %v1689
      %v1954 = vadd.f32 %v966, %v1690
      %v1955 = vadd.f32 %v969, %v1691
      %v1956 = vadd.f32 %v972, %v1692
      %v1957 = vadd.f32 %v975, %v1693
      %v1958 = vadd.f32 %v978, %v1694
      %v1959 = vadd.f32 %v981, %v1695
      %v1960 = vadd.f32 %v984, %v1696
      %v1961 = vadd.f32 %v987, %v1697
      %v1962 = vadd.f32 %v990, %v1698
      %v1963 = vadd.f32 %v993, %v1699
      %v1964 = vadd.f32 %v996, %v1700
      %v1965 = vadd.f32 %v999, %v1701
      %v1966 = vadd.f32 %v1002, %v1702
      %v1967 = vadd.f32 %v1005, %v1703
      %v1968 = vadd.f32 %v1008, %v1704
      %v1969 = vadd.f32 %v1011, %v1705
      %v1970 = vadd.f32 %v1014, %v1706
      %v1971 = vadd.f32 %v1017, %v1707
      %v1972 = vadd.f32 %v1020, %v1708
      %v1973 = vadd.f32 %v1023, %v1709
      %v1974 = vadd.f32 %v1026, %v1710
      %v1975 = vadd.f32 %v1029, %v1711
      %v1976 = vadd.f32 %v1032, %v1712
      %v1977 = vadd.f32 %v1035, %v1713
      %v1978 = vadd.f32 %v1038, %v1714
      %v1979 = vadd.f32 %v1041, %v1715
      %v1980 = vadd.f32 %v1044, %v1716
      %v1981 = vadd.f32 %v1047, %v1717
      %v1982 = vadd.f32 %v1050, %v1718
      %v1983 = vadd.f32 %v1053, %v1719
      %v1984 = vadd.f32 %v1056, %v1720
      %v1985 = vadd.f32 %v1059, %v1721
      %v1986 = vadd.f32 %v1062, %v1722
      %v1987 = vadd.f32 %v1065, %v1723
      %v1988 = vadd.f32 %v1068, %v1724
      %v1989 = vadd.f32 %v1071, %v1725
      %v1990 = vadd.f32 %v1074, %v1726
      %v1991 = vadd.f32 %v1077, %v1727
      %v1992 = vadd.f32 %v1080, %v1728
      %v1993 = vadd.f32 %v1083, %v1729
      %v1994 = vadd.f32 %v1086, %v1730
      %v1995 = vadd.f32 %v1089, %v1731
      %v1996 = vadd.f32 %v1092, %v1732
      %v1997 = vadd.f32 %v1095, %v1733
      %v1998 = vadd.f32 %v1098, %v1734
      %v1999 = vadd.f32 %v1101, %v1735
      %v2000 = vadd.f32 %v1104, %v1736
      %v2001 = vadd.f32 %v1107, %v1737
      %v2002 = vadd.f32 %v1110, %v1738
      %v2003 = vadd.f32 %v1113, %v1739
      %v2004 = vadd.f32 %v1116, %v1740
      %v2005 = vadd.f32 %v1119, %v1741
      %v2006 = vadd.f32 %v1122, %v1742
      %v2007 = vadd.f32 %v1125, %v1743
      %v2008 = vadd.f32 %v1128, %v1744
      %v2009 = vadd.f32 %v1131, %v1745
      %v2010 = vadd.f32 %v1134, %v1746
      %v2011 = vadd.f32 %v1137, %v1747
      %v2012 = vadd.f32 %v1140, %v1748
      %v2013 = vadd.f32 %v1143, %v1749
      %v2014 = vadd.f32 %v1146, %v1750
      %v2015 = vadd.f32 %v1149, %v1751
      %v2016 = vadd.f32 %v1152, %v1752
      %v2017 = vadd.f32 %v1155, %v1753
      %v2018 = vadd.f32 %v1158, %v1754
      %v2019 = vadd.f32 %v1161, %v1755
      %v2020 = vadd.f32 %v1164, %v1756
      %v2021 = vadd.f32 %v1167, %v1757
      %v2022 = vadd.f32 %v1170, %v1758
      %v2023 = vadd.f32 %v1173, %v1759
      %v2024 = vadd.f32 %v1176, %v1760
      %v2025 = vadd.f32 %v1179, %v1761
      %v2026 = vadd.f32 %v1182, %v1762
      %v2027 = vadd.f32 %v1185, %v1763
      %v2028 = vadd.f32 %v1188, %v1764
      %v2029 = vadd.f32 %v1191, %v1765
      %v2030 = vadd.f32 %v1194, %v1766
      %v2031 = vadd.f32 %v1197, %v1767
      %v2032 = vadd.f32 %v1200, %v1768
      %v2033 = vadd.f32 %v1203, %v1769
      %v2034 = vadd.f32 %v1206, %v1770
      %v2035 = vadd.f32 %v1209, %v1771
      %v2036 = vadd.f32 %v1212, %v1772
      %v2037 = vadd.f32 %v1215, %v1773
      %v2038 = vadd.f32 %v1218, %v1774
      %v2039 = vadd.f32 %v1221, %v1775
      %v2040 = vadd.f32 %v1224, %v1776
      %v2041 = vadd.f32 %v1227, %v1777
      %v2042 = vadd.f32 %v1230, %v1778
      %v2043 = vadd.f32 %v1233, %v1779
      %v2044 = vadd.f32 %v1236, %v1780
      %v2045 = vadd.f32 %v1239, %v1781
      %v2046 = vadd.f32 %v1242, %v1782
      %v2047 = vadd.f32 %v1245, %v1783
      %v2048 = vadd.f32 %v1248, %v1784
      %v2049 = vadd.f32 %v1251, %v1785
      %v2050 = vadd.f32 %v1254, %v1786
      %v2051 = vadd.f32 %v1257, %v1787
      %v2052 = vadd.f32 %v1260, %v1788
      %v2053 = vadd.f32 %v1263, %v1789
      %v2054 = vadd.f32 %v1266, %v1790
      %v2055 = vadd.f32 %v1269, %v1791
      %v2056 = vadd.f32 %v1272, %v1792
      %v2057 = vadd.f32 %v1275, %v1793
      %v2058 = vadd.f32 %v1278, %v1794
      %v2059 = vadd.f32 %v1281, %v1795
      %v2060 = vadd.f32 %v1284, %v1796
      %v2061 = vadd.f32 %v1287, %v1797
      %v2062 = vadd.f32 %v1290, %v1798
      %v2063 = vadd.f32 %v1293, %v1799
      %v2064 = vadd.f32 %v1296, %v1800
      %v2065 = vadd.f32 %v1299, %v1801
      %v2066 = vadd.f32 %v1302, %v1802
      %v2067 = vadd.f32 %v1305, %v1803
      %v2068 = vadd.f32 %v1308, %v1804
      %v2069 = vadd.f32 %v1311, %v1805
      %v2070 = vadd.f32 %v1314, %v1806
      %v2071 = vadd.f32 %v1317, %v1807
      %v2072 = vadd.f32 %v1320, %v1808
      %v2073 = vadd.f32 %v1323, %v1809
      %v2074 = vadd.f32 %v1326, %v1810
      %v2075 = vadd.f32 %v1329, %v1811
      %v2076 = vadd.f32 %v1332, %v1812
      %v2077 = vadd.f32 %v1335, %v1813
      %v2078 = vadd.f32 %v1338, %v1814
      %v2079 = vadd.f32 %v1341, %v1815
      %v2080 = vadd.f32 %v1344, %v1816
      %v2081 = vadd.f32 %v1347, %v1817
      %v2082 = vadd.f32 %v1350, %v1818
      %v2083 = vadd.f32 %v1353, %v1819
      %v2084 = vadd.f32 %v1356, %v1820
      %v2085 = vadd.f32 %v1359, %v1821
      %v2086 = vadd.f32 %v1362, %v1822
      %v2087 = vadd.f32 %v1365, %v1823
      %v2088 = vadd.f32 %v1368, %v1824
      %v2089 = vadd.f32 %v1371, %v1825
      %v2090 = vadd.f32 %v1374, %v1826
      %v2091 = vadd.f32 %v1377, %v1827
      %v2092 = vadd.f32 %v1380, %v1828
      %v2093 = vadd.f32 %v1383, %v1829
      %v2094 = vadd.f32 %v1386, %v1830
      %v2095 = vadd.f32 %v1389, %v1831
      %v2096 = vadd.f32 %v1392, %v1832
      %v2097 = vadd.f32 %v1395, %v1833
      %v2098 = vadd.f32 %v1398, %v1834
      %v2099 = vadd.f32 %v1401, %v1835
      %v2100 = vadd.f32 %v1404, %v1836
      %v2101 = vadd.f32 %v1407, %v1837
      %v2102 = vadd.f32 %v1410, %v1838
      %v2103 = vadd.f32 %v1413, %v1839
      %v2104 = vadd.f32 %v1416, %v1840
      %v2105 = vadd.f32 %v1419, %v1841
      %v2106 = vadd.f32 %v1422, %v1842
      %v2107 = vadd.f32 %v1425, %v1843
      %v2108 = vadd.f32 %v1428, %v1844
      %v2109 = vadd.f32 %v1431, %v1845
      %v2110 = vadd.f32 %v1434, %v1846
      %v2111 = vadd.f32 %v1437, %v1847
      %v2112 = vadd.f32 %v1440, %v1848
      %v2113 = vadd.f32 %v1443, %v1849
      %v2114 = vadd.f32 %v1446, %v1850
      %v2115 = vadd.f32 %v1449, %v1851
      %v2116 = vadd.f32 %v1452, %v1852
      %v2117 = vadd.f32 %v1455, %v1853
      %v2118 = vadd.f32 %v1458, %v1854
      %v2119 = vadd.f32 %v1461, %v1855
      %v2120 = vadd.f32 %v1464, %v1856
      %v2121 = vadd.f32 %v1467, %v1857
      %v2122 = vadd.f32 %v1470, %v1858
      %v2123 = vadd.f32 %v1473, %v1859
      %v2124 = vadd.f32 %v1476, %v1860
      %v2125 = vadd.f32 %v1479, %v1861
      %v2126 = vadd.f32 %v1482, %v1862
      %v2127 = vadd.f32 %v1485, %v1863
      %v2128 = vadd.f32 %v1488, %v1864
      %v2129 = vadd.f32 %v1491, %v1865
      %v2130 = vadd.f32 %v1494, %v1866
      %v2131 = vadd.f32 %v1497, %v1867
      %v2132 = vadd.f32 %v1500, %v1868
      %v2133 = vadd.f32 %v1503, %v1869
      %v2134 = vadd.f32 %v1506, %v1870
      %v2135 = vadd.f32 %v1509, %v1871
      %v2136 = vadd.f32 %v1512, %v1872
      %v2137 = vadd.f32 %v1515, %v1873
      %v2138 = vadd.f32 %v1518, %v1874
      %v2139 = vadd.f32 %v1521, %v1875
      %v2140 = vadd.f32 %v1524, %v1876
      %v2141 = vadd.f32 %v1527, %v1877
      %v2142 = vadd.f32 %v1530, %v1878
      %v2143 = vadd.f32 %v1533, %v1879
      %v2144 = vadd.f32 %v1536, %v1880
      %v2145 = vadd.f32 %v1539, %v1881
      %v2146 = vadd.f32 %v1542, %v1882
      %v2147 = vadd.f32 %v1545, %v1883
      %v2148 = vadd.f32 %v1548, %v1884
      %v2149 = vadd.f32 %v1551, %v1885
      %v2150 = vadd.f32 %v1554, %v1886
      %v2151 = vadd.f32 %v1557, %v1887
      %v2152 = vadd.f32 %v1560, %v1888
      %v2153 = vadd.f32 %v1563, %v1889
      %v2154 = vadd.f32 %v1566, %v1890
      %v2155 = vadd.f32 %v1569, %v1891
      %v2156 = vadd.f32 %v1572, %v1892
      %v2157 = vadd.f32 %v1575, %v1893
      %v2158 = vadd.f32 %v1578, %v1894
      %v2159 = vadd.f32 %v1581, %v1895
      %v2160 = vadd.f32 %v1584, %v1896
      %v2161 = vadd.f32 %v1587, %v1897
      %v2162 = vadd.f32 %v1590, %v1898
      %v2163 = vadd.f32 %v1593, %v1899
      %v2164 = vadd.f32 %v1596, %v1900
      %v2165 = vadd.f32 %v1599, %v1901
      %v2166 = vadd.f32 %v1602, %v1902
      %v2167 = vadd.f32 %v1605, %v1903
      %v2168 = vadd.f32 %v1608, %v1904
      %v2169 = vadd.f32 %v1611, %v1905
      %v2170 = vadd.f32 %v1614, %v1906
      %v2171 = vadd.f32 %v1617, %v1907
      %v2172 = vadd.f32 %v1620, %v1908
      %v2173 = vadd.f32 %v1623, %v1909
      %v2174 = vadd.f32 %v1626, %v1910
      %v2175 = vadd.f32 %v1629, %v1911
      %v2176 = vadd.f32 %v1632, %v1912
      %v2177 = vadd.f32 %v1635, %v1913
      %v2178 = vadd.f32 %v1638, %v1914
      %v2179 = vadd.f32 %v1641, %v1915
      %v2180 = vadd.f32 %v1644, %v1916
      %v2181 = vadd.f32 %v1647, %v1917
      %v2182 = vadd.f32 %v1650, %v1918
      %v2183 = vadd.f32 %v1653, %v1919
      %v2184 = vadd.f32 %v1656, %v1920
      %v2185 = vxor.u32 %v1921, 2147483648
      %v2186 = vxor.u32 %v1922, 2147483648
      %v2187 = vxor.u32 %v1923, 2147483648
      %v2188 = vxor.u32 %v1924, 2147483648
      %v2189 = vxor.u32 %v1925, 2147483648
      %v2190 = vxor.u32 %v1926, 2147483648
      %v2191 = vxor.u32 %v1927, 2147483648
      %v2192 = vxor.u32 %v1928, 2147483648
      %v2193 = vxor.u32 %v1929, 2147483648
      %v2194 = vxor.u32 %v1930, 2147483648
      %v2195 = vxor.u32 %v1931, 2147483648
      %v2196 = vxor.u32 %v1932, 2147483648
      %v2197 = vxor.u32 %v1933, 2147483648
      %v2198 = vxor.u32 %v1934, 2147483648
      %v2199 = vxor.u32 %v1935, 2147483648
      %v2200 = vxor.u32 %v1936, 2147483648
      %v2201 = vxor.u32 %v1937, 2147483648
      %v2202 = vxor.u32 %v1938, 2147483648
      %v2203 = vxor.u32 %v1939, 2147483648
      %v2204 = vxor.u32 %v1940, 2147483648
      %v2205 = vxor.u32 %v1941, 2147483648
      %v2206 = vxor.u32 %v1942, 2147483648
      %v2207 = vxor.u32 %v1943, 2147483648
      %v2208 = vxor.u32 %v1944, 2147483648
      %v2209 = vxor.u32 %v1945, 2147483648
      %v2210 = vxor.u32 %v1946, 2147483648
      %v2211 = vxor.u32 %v1947, 2147483648
      %v2212 = vxor.u32 %v1948, 2147483648
      %v2213 = vxor.u32 %v1949, 2147483648
      %v2214 = vxor.u32 %v1950, 2147483648
      %v2215 = vxor.u32 %v1951, 2147483648
      %v2216 = vxor.u32 %v1952, 2147483648
      %v2217 = vxor.u32 %v1953, 2147483648
      %v2218 = vxor.u32 %v1954, 2147483648
      %v2219 = vxor.u32 %v1955, 2147483648
      %v2220 = vxor.u32 %v1956, 2147483648
      %v2221 = vxor.u32 %v1957, 2147483648
      %v2222 = vxor.u32 %v1958, 2147483648
      %v2223 = vxor.u32 %v1959, 2147483648
      %v2224 = vxor.u32 %v1960, 2147483648
      %v2225 = vxor.u32 %v1961, 2147483648
      %v2226 = vxor.u32 %v1962, 2147483648
      %v2227 = vxor.u32 %v1963, 2147483648
      %v2228 = vxor.u32 %v1964, 2147483648
      %v2229 = vxor.u32 %v1965, 2147483648
      %v2230 = vxor.u32 %v1966, 2147483648
      %v2231 = vxor.u32 %v1967, 2147483648
      %v2232 = vxor.u32 %v1968, 2147483648
      %v2233 = vxor.u32 %v1969, 2147483648
      %v2234 = vxor.u32 %v1970, 2147483648
      %v2235 = vxor.u32 %v1971, 2147483648
      %v2236 = vxor.u32 %v1972, 2147483648
      %v2237 = vxor.u32 %v1973, 2147483648
      %v2238 = vxor.u32 %v1974, 2147483648
      %v2239 = vxor.u32 %v1975, 2147483648
      %v2240 = vxor.u32 %v1976, 2147483648
      %v2241 = vxor.u32 %v1977, 2147483648
      %v2242 = vxor.u32 %v1978, 2147483648
      %v2243 = vxor.u32 %v1979, 2147483648
      %v2244 = vxor.u32 %v1980, 2147483648
      %v2245 = vxor.u32 %v1981, 2147483648
      %v2246 = vxor.u32 %v1982, 2147483648
      %v2247 = vxor.u32 %v1983, 2147483648
      %v2248 = vxor.u32 %v1984, 2147483648
      %v2249 = vxor.u32 %v1985, 2147483648
      %v2250 = vxor.u32 %v1986, 2147483648
      %v2251 = vxor.u32 %v1987, 2147483648
      %v2252 = vxor.u32 %v1988, 2147483648
      %v2253 = vxor.u32 %v1989, 2147483648
      %v2254 = vxor.u32 %v1990, 2147483648
      %v2255 = vxor.u32 %v1991, 2147483648
      %v2256 = vxor.u32 %v1992, 2147483648
      %v2257 = vxor.u32 %v1993, 2147483648
      %v2258 = vxor.u32 %v1994, 2147483648
      %v2259 = vxor.u32 %v1995, 2147483648
      %v2260 = vxor.u32 %v1996, 2147483648
      %v2261 = vxor.u32 %v1997, 2147483648
      %v2262 = vxor.u32 %v1998, 2147483648
      %v2263 = vxor.u32 %v1999, 2147483648
      %v2264 = vxor.u32 %v2000, 2147483648
      %v2265 = vxor.u32 %v2001, 2147483648
      %v2266 = vxor.u32 %v2002, 2147483648
      %v2267 = vxor.u32 %v2003, 2147483648
      %v2268 = vxor.u32 %v2004, 2147483648
      %v2269 = vxor.u32 %v2005, 2147483648
      %v2270 = vxor.u32 %v2006, 2147483648
      %v2271 = vxor.u32 %v2007, 2147483648
      %v2272 = vxor.u32 %v2008, 2147483648
      %v2273 = vxor.u32 %v2009, 2147483648
      %v2274 = vxor.u32 %v2010, 2147483648
      %v2275 = vxor.u32 %v2011, 2147483648
      %v2276 = vxor.u32 %v2012, 2147483648
      %v2277 = vxor.u32 %v2013, 2147483648
      %v2278 = vxor.u32 %v2014, 2147483648
      %v2279 = vxor.u32 %v2015, 2147483648
      %v2280 = vxor.u32 %v2016, 2147483648
      %v2281 = vxor.u32 %v2017, 2147483648
      %v2282 = vxor.u32 %v2018, 2147483648
      %v2283 = vxor.u32 %v2019, 2147483648
      %v2284 = vxor.u32 %v2020, 2147483648
      %v2285 = vxor.u32 %v2021, 2147483648
      %v2286 = vxor.u32 %v2022, 2147483648
      %v2287 = vxor.u32 %v2023, 2147483648
      %v2288 = vxor.u32 %v2024, 2147483648
      %v2289 = vxor.u32 %v2025, 2147483648
      %v2290 = vxor.u32 %v2026, 2147483648
      %v2291 = vxor.u32 %v2027, 2147483648
      %v2292 = vxor.u32 %v2028, 2147483648
      %v2293 = vxor.u32 %v2029, 2147483648
      %v2294 = vxor.u32 %v2030, 2147483648
      %v2295 = vxor.u32 %v2031, 2147483648
      %v2296 = vxor.u32 %v2032, 2147483648
      %v2297 = vxor.u32 %v2033, 2147483648
      %v2298 = vxor.u32 %v2034, 2147483648
      %v2299 = vxor.u32 %v2035, 2147483648
      %v2300 = vxor.u32 %v2036, 2147483648
      %v2301 = vxor.u32 %v2037, 2147483648
      %v2302 = vxor.u32 %v2038, 2147483648
      %v2303 = vxor.u32 %v2039, 2147483648
      %v2304 = vxor.u32 %v2040, 2147483648
      %v2305 = vxor.u32 %v2041, 2147483648
      %v2306 = vxor.u32 %v2042, 2147483648
      %v2307 = vxor.u32 %v2043, 2147483648
      %v2308 = vxor.u32 %v2044, 2147483648
      %v2309 = vxor.u32 %v2045, 2147483648
      %v2310 = vxor.u32 %v2046, 2147483648
      %v2311 = vxor.u32 %v2047, 2147483648
      %v2312 = vxor.u32 %v2048, 2147483648
      %v2313 = vxor.u32 %v2049, 2147483648
      %v2314 = vxor.u32 %v2050, 2147483648
      %v2315 = vxor.u32 %v2051, 2147483648
      %v2316 = vxor.u32 %v2052, 2147483648
      %v2317 = vxor.u32 %v2053, 2147483648
      %v2318 = vxor.u32 %v2054, 2147483648
      %v2319 = vxor.u32 %v2055, 2147483648
      %v2320 = vxor.u32 %v2056, 2147483648
      %v2321 = vxor.u32 %v2057, 2147483648
      %v2322 = vxor.u32 %v2058, 2147483648
      %v2323 = vxor.u32 %v2059, 2147483648
      %v2324 = vxor.u32 %v2060, 2147483648
      %v2325 = vxor.u32 %v2061, 2147483648
      %v2326 = vxor.u32 %v2062, 2147483648
      %v2327 = vxor.u32 %v2063, 2147483648
      %v2328 = vxor.u32 %v2064, 2147483648
      %v2329 = vxor.u32 %v2065, 2147483648
      %v2330 = vxor.u32 %v2066, 2147483648
      %v2331 = vxor.u32 %v2067, 2147483648
      %v2332 = vxor.u32 %v2068, 2147483648
      %v2333 = vxor.u32 %v2069, 2147483648
      %v2334 = vxor.u32 %v2070, 2147483648
      %v2335 = vxor.u32 %v2071, 2147483648
      %v2336 = vxor.u32 %v2072, 2147483648
      %v2337 = vxor.u32 %v2073, 2147483648
      %v2338 = vxor.u32 %v2074, 2147483648
      %v2339 = vxor.u32 %v2075, 2147483648
      %v2340 = vxor.u32 %v2076, 2147483648
      %v2341 = vxor.u32 %v2077, 2147483648
      %v2342 = vxor.u32 %v2078, 2147483648
      %v2343 = vxor.u32 %v2079, 2147483648
      %v2344 = vxor.u32 %v2080, 2147483648
      %v2345 = vxor.u32 %v2081, 2147483648
      %v2346 = vxor.u32 %v2082, 2147483648
      %v2347 = vxor.u32 %v2083, 2147483648
      %v2348 = vxor.u32 %v2084, 2147483648
      %v2349 = vxor.u32 %v2085, 2147483648
      %v2350 = vxor.u32 %v2086, 2147483648
      %v2351 = vxor.u32 %v2087, 2147483648
      %v2352 = vxor.u32 %v2088, 2147483648
      %v2353 = vxor.u32 %v2089, 2147483648
      %v2354 = vxor.u32 %v2090, 2147483648
      %v2355 = vxor.u32 %v2091, 2147483648
      %v2356 = vxor.u32 %v2092, 2147483648
      %v2357 = vxor.u32 %v2093, 2147483648
      %v2358 = vxor.u32 %v2094, 2147483648
      %v2359 = vxor.u32 %v2095, 2147483648
      %v2360 = vxor.u32 %v2096, 2147483648
      %v2361 = vxor.u32 %v2097, 2147483648
      %v2362 = vxor.u32 %v2098, 2147483648
      %v2363 = vxor.u32 %v2099, 2147483648
      %v2364 = vxor.u32 %v2100, 2147483648
      %v2365 = vxor.u32 %v2101, 2147483648
      %v2366 = vxor.u32 %v2102, 2147483648
      %v2367 = vxor.u32 %v2103, 2147483648
      %v2368 = vxor.u32 %v2104, 2147483648
      %v2369 = vxor.u32 %v2105, 2147483648
      %v2370 = vxor.u32 %v2106, 2147483648
      %v2371 = vxor.u32 %v2107, 2147483648
      %v2372 = vxor.u32 %v2108, 2147483648
      %v2373 = vxor.u32 %v2109, 2147483648
      %v2374 = vxor.u32 %v2110, 2147483648
      %v2375 = vxor.u32 %v2111, 2147483648
      %v2376 = vxor.u32 %v2112, 2147483648
      %v2377 = vxor.u32 %v2113, 2147483648
      %v2378 = vxor.u32 %v2114, 2147483648
      %v2379 = vxor.u32 %v2115, 2147483648
      %v2380 = vxor.u32 %v2116, 2147483648
      %v2381 = vxor.u32 %v2117, 2147483648
      %v2382 = vxor.u32 %v2118, 2147483648
      %v2383 = vxor.u32 %v2119, 2147483648
      %v2384 = vxor.u32 %v2120, 2147483648
      %v2385 = vxor.u32 %v2121, 2147483648
      %v2386 = vxor.u32 %v2122, 2147483648
      %v2387 = vxor.u32 %v2123, 2147483648
      %v2388 = vxor.u32 %v2124, 2147483648
      %v2389 = vxor.u32 %v2125, 2147483648
      %v2390 = vxor.u32 %v2126, 2147483648
      %v2391 = vxor.u32 %v2127, 2147483648
      %v2392 = vxor.u32 %v2128, 2147483648
      %v2393 = vxor.u32 %v2129, 2147483648
      %v2394 = vxor.u32 %v2130, 2147483648
      %v2395 = vxor.u32 %v2131, 2147483648
      %v2396 = vxor.u32 %v2132, 2147483648
      %v2397 = vxor.u32 %v2133, 2147483648
      %v2398 = vxor.u32 %v2134, 2147483648
      %v2399 = vxor.u32 %v2135, 2147483648
      %v2400 = vxor.u32 %v2136, 2147483648
      %v2401 = vxor.u32 %v2137, 2147483648
      %v2402 = vxor.u32 %v2138, 2147483648
      %v2403 = vxor.u32 %v2139, 2147483648
      %v2404 = vxor.u32 %v2140, 2147483648
      %v2405 = vxor.u32 %v2141, 2147483648
      %v2406 = vxor.u32 %v2142, 2147483648
      %v2407 = vxor.u32 %v2143, 2147483648
      %v2408 = vxor.u32 %v2144, 2147483648
      %v2409 = vxor.u32 %v2145, 2147483648
      %v2410 = vxor.u32 %v2146, 2147483648
      %v2411 = vxor.u32 %v2147, 2147483648
      %v2412 = vxor.u32 %v2148, 2147483648
      %v2413 = vxor.u32 %v2149, 2147483648
      %v2414 = vxor.u32 %v2150, 2147483648
      %v2415 = vxor.u32 %v2151, 2147483648
      %v2416 = vxor.u32 %v2152, 2147483648
      %v2417 = vxor.u32 %v2153, 2147483648
      %v2418 = vxor.u32 %v2154, 2147483648
      %v2419 = vxor.u32 %v2155, 2147483648
      %v2420 = vxor.u32 %v2156, 2147483648
      %v2421 = vxor.u32 %v2157, 2147483648
      %v2422 = vxor.u32 %v2158, 2147483648
      %v2423 = vxor.u32 %v2159, 2147483648
      %v2424 = vxor.u32 %v2160, 2147483648
      %v2425 = vxor.u32 %v2161, 2147483648
      %v2426 = vxor.u32 %v2162, 2147483648
      %v2427 = vxor.u32 %v2163, 2147483648
      %v2428 = vxor.u32 %v2164, 2147483648
      %v2429 = vxor.u32 %v2165, 2147483648
      %v2430 = vxor.u32 %v2166, 2147483648
      %v2431 = vxor.u32 %v2167, 2147483648
      %v2432 = vxor.u32 %v2168, 2147483648
      %v2433 = vxor.u32 %v2169, 2147483648
      %v2434 = vxor.u32 %v2170, 2147483648
      %v2435 = vxor.u32 %v2171, 2147483648
      %v2436 = vxor.u32 %v2172, 2147483648
      %v2437 = vxor.u32 %v2173, 2147483648
      %v2438 = vxor.u32 %v2174, 2147483648
      %v2439 = vxor.u32 %v2175, 2147483648
      %v2440 = vxor.u32 %v2176, 2147483648
      %v2441 = vxor.u32 %v2177, 2147483648
      %v2442 = vxor.u32 %v2178, 2147483648
      %v2443 = vxor.u32 %v2179, 2147483648
      %v2444 = vxor.u32 %v2180, 2147483648
      %v2445 = vxor.u32 %v2181, 2147483648
      %v2446 = vxor.u32 %v2182, 2147483648
      %v2447 = vxor.u32 %v2183, 2147483648
      %v2448 = vxor.u32 %v2184, 2147483648
      %v2449 = vmul.f32 %v2185, 1.442695
      %v2450 = vpow.pop %v2449
      %v2451 = vmul.f32 %v2186, 1.442695
      %v2452 = vpow.pop %v2451
      %v2453 = vmul.f32 %v2187, 1.442695
      %v2454 = vpow.pop %v2453
      %v2455 = vmul.f32 %v2188, 1.442695
      %v2456 = vpow.pop %v2455
      %v2457 = vmul.f32 %v2189, 1.442695
      %v2458 = vpow.pop %v2457
      %v2459 = vmul.f32 %v2190, 1.442695
      %v2460 = vpow.pop %v2459
      %v2461 = vmul.f32 %v2191, 1.442695
      %v2462 = vpow.pop %v2461
      %v2463 = vmul.f32 %v2192, 1.442695
      %v2464 = vpow.pop %v2463
      %v2465 = vmul.f32 %v2193, 1.442695
      %v2466 = vpow.pop %v2465
      %v2467 = vmul.f32 %v2194, 1.442695
      %v2468 = vpow.pop %v2467
      %v2469 = vmul.f32 %v2195, 1.442695
      %v2470 = vpow.pop %v2469
      %v2471 = vmul.f32 %v2196, 1.442695
      %v2472 = vpow.pop %v2471
      %v2473 = vmul.f32 %v2197, 1.442695
      %v2474 = vpow.pop %v2473
      %v2475 = vmul.f32 %v2198, 1.442695
      %v2476 = vpow.pop %v2475
      %v2477 = vmul.f32 %v2199, 1.442695
      %v2478 = vpow.pop %v2477
      %v2479 = vmul.f32 %v2200, 1.442695
      %v2480 = vpow.pop %v2479
      %v2481 = vmul.f32 %v2201, 1.442695
      %v2482 = vpow.pop %v2481
      %v2483 = vmul.f32 %v2202, 1.442695
      %v2484 = vpow.pop %v2483
      %v2485 = vmul.f32 %v2203, 1.442695
      %v2486 = vpow.pop %v2485
      %v2487 = vmul.f32 %v2204, 1.442695
      %v2488 = vpow.pop %v2487
      %v2489 = vmul.f32 %v2205, 1.442695
      %v2490 = vpow.pop %v2489
      %v2491 = vmul.f32 %v2206, 1.442695
      %v2492 = vpow.pop %v2491
      %v2493 = vmul.f32 %v2207, 1.442695
      %v2494 = vpow.pop %v2493
      %v2495 = vmul.f32 %v2208, 1.442695
      %v2496 = vpow.pop %v2495
      %v2497 = vmul.f32 %v2209, 1.442695
      %v2498 = vpow.pop %v2497
      %v2499 = vmul.f32 %v2210, 1.442695
      %v2500 = vpow.pop %v2499
      %v2501 = vmul.f32 %v2211, 1.442695
      %v2502 = vpow.pop %v2501
      %v2503 = vmul.f32 %v2212, 1.442695
      %v2504 = vpow.pop %v2503
      %v2505 = vmul.f32 %v2213, 1.442695
      %v2506 = vpow.pop %v2505
      %v2507 = vmul.f32 %v2214, 1.442695
      %v2508 = vpow.pop %v2507
      %v2509 = vmul.f32 %v2215, 1.442695
      %v2510 = vpow.pop %v2509
      %v2511 = vmul.f32 %v2216, 1.442695
      %v2512 = vpow.pop %v2511
      %v2513 = vmul.f32 %v2217, 1.442695
      %v2514 = vpow.pop %v2513
      %v2515 = vmul.f32 %v2218, 1.442695
      %v2516 = vpow.pop %v2515
      %v2517 = vmul.f32 %v2219, 1.442695
      %v2518 = vpow.pop %v2517
      %v2519 = vmul.f32 %v2220, 1.442695
      %v2520 = vpow.pop %v2519
      %v2521 = vmul.f32 %v2221, 1.442695
      %v2522 = vpow.pop %v2521
      %v2523 = vmul.f32 %v2222, 1.442695
      %v2524 = vpow.pop %v2523
      %v2525 = vmul.f32 %v2223, 1.442695
      %v2526 = vpow.pop %v2525
      %v2527 = vmul.f32 %v2224, 1.442695
      %v2528 = vpow.pop %v2527
      %v2529 = vmul.f32 %v2225, 1.442695
      %v2530 = vpow.pop %v2529
      %v2531 = vmul.f32 %v2226, 1.442695
      %v2532 = vpow.pop %v2531
      %v2533 = vmul.f32 %v2227, 1.442695
      %v2534 = vpow.pop %v2533
      %v2535 = vmul.f32 %v2228, 1.442695
      %v2536 = vpow.pop %v2535
      %v2537 = vmul.f32 %v2229, 1.442695
      %v2538 = vpow.pop %v2537
      %v2539 = vmul.f32 %v2230, 1.442695
      %v2540 = vpow.pop %v2539
      %v2541 = vmul.f32 %v2231, 1.442695
      %v2542 = vpow.pop %v2541
      %v2543 = vmul.f32 %v2232, 1.442695
      %v2544 = vpow.pop %v2543
      %v2545 = vmul.f32 %v2233, 1.442695
      %v2546 = vpow.pop %v2545
      %v2547 = vmul.f32 %v2234, 1.442695
      %v2548 = vpow.pop %v2547
      %v2549 = vmul.f32 %v2235, 1.442695
      %v2550 = vpow.pop %v2549
      %v2551 = vmul.f32 %v2236, 1.442695
      %v2552 = vpow.pop %v2551
      %v2553 = vmul.f32 %v2237, 1.442695
      %v2554 = vpow.pop %v2553
      %v2555 = vmul.f32 %v2238, 1.442695
      %v2556 = vpow.pop %v2555
      %v2557 = vmul.f32 %v2239, 1.442695
      %v2558 = vpow.pop %v2557
      %v2559 = vmul.f32 %v2240, 1.442695
      %v2560 = vpow.pop %v2559
      %v2561 = vmul.f32 %v2241, 1.442695
      %v2562 = vpow.pop %v2561
      %v2563 = vmul.f32 %v2242, 1.442695
      %v2564 = vpow.pop %v2563
      %v2565 = vmul.f32 %v2243, 1.442695
      %v2566 = vpow.pop %v2565
      %v2567 = vmul.f32 %v2244, 1.442695
      %v2568 = vpow.pop %v2567
      %v2569 = vmul.f32 %v2245, 1.442695
      %v2570 = vpow.pop %v2569
      %v2571 = vmul.f32 %v2246, 1.442695
      %v2572 = vpow.pop %v2571
      %v2573 = vmul.f32 %v2247, 1.442695
      %v2574 = vpow.pop %v2573
      %v2575 = vmul.f32 %v2248, 1.442695
      %v2576 = vpow.pop %v2575
      %v2577 = vmul.f32 %v2249, 1.442695
      %v2578 = vpow.pop %v2577
      %v2579 = vmul.f32 %v2250, 1.442695
      %v2580 = vpow.pop %v2579
      %v2581 = vmul.f32 %v2251, 1.442695
      %v2582 = vpow.pop %v2581
      %v2583 = vmul.f32 %v2252, 1.442695
      %v2584 = vpow.pop %v2583
      %v2585 = vmul.f32 %v2253, 1.442695
      %v2586 = vpow.pop %v2585
      %v2587 = vmul.f32 %v2254, 1.442695
      %v2588 = vpow.pop %v2587
      %v2589 = vmul.f32 %v2255, 1.442695
      %v2590 = vpow.pop %v2589
      %v2591 = vmul.f32 %v2256, 1.442695
      %v2592 = vpow.pop %v2591
      %v2593 = vmul.f32 %v2257, 1.442695
      %v2594 = vpow.pop %v2593
      %v2595 = vmul.f32 %v2258, 1.442695
      %v2596 = vpow.pop %v2595
      %v2597 = vmul.f32 %v2259, 1.442695
      %v2598 = vpow.pop %v2597
      %v2599 = vmul.f32 %v2260, 1.442695
      %v2600 = vpow.pop %v2599
      %v2601 = vmul.f32 %v2261, 1.442695
      %v2602 = vpow.pop %v2601
      %v2603 = vmul.f32 %v2262, 1.442695
      %v2604 = vpow.pop %v2603
      %v2605 = vmul.f32 %v2263, 1.442695
      %v2606 = vpow.pop %v2605
      %v2607 = vmul.f32 %v2264, 1.442695
      %v2608 = vpow.pop %v2607
      %v2609 = vmul.f32 %v2265, 1.442695
      %v2610 = vpow.pop %v2609
      %v2611 = vmul.f32 %v2266, 1.442695
      %v2612 = vpow.pop %v2611
      %v2613 = vmul.f32 %v2267, 1.442695
      %v2614 = vpow.pop %v2613
      %v2615 = vmul.f32 %v2268, 1.442695
      %v2616 = vpow.pop %v2615
      %v2617 = vmul.f32 %v2269, 1.442695
      %v2618 = vpow.pop %v2617
      %v2619 = vmul.f32 %v2270, 1.442695
      %v2620 = vpow.pop %v2619
      %v2621 = vmul.f32 %v2271, 1.442695
      %v2622 = vpow.pop %v2621
      %v2623 = vmul.f32 %v2272, 1.442695
      %v2624 = vpow.pop %v2623
      %v2625 = vmul.f32 %v2273, 1.442695
      %v2626 = vpow.pop %v2625
      %v2627 = vmul.f32 %v2274, 1.442695
      %v2628 = vpow.pop %v2627
      %v2629 = vmul.f32 %v2275, 1.442695
      %v2630 = vpow.pop %v2629
      %v2631 = vmul.f32 %v2276, 1.442695
      %v2632 = vpow.pop %v2631
      %v2633 = vmul.f32 %v2277, 1.442695
      %v2634 = vpow.pop %v2633
      %v2635 = vmul.f32 %v2278, 1.442695
      %v2636 = vpow.pop %v2635
      %v2637 = vmul.f32 %v2279, 1.442695
      %v2638 = vpow.pop %v2637
      %v2639 = vmul.f32 %v2280, 1.442695
      %v2640 = vpow.pop %v2639
      %v2641 = vmul.f32 %v2281, 1.442695
      %v2642 = vpow.pop %v2641
      %v2643 = vmul.f32 %v2282, 1.442695
      %v2644 = vpow.pop %v2643
      %v2645 = vmul.f32 %v2283, 1.442695
      %v2646 = vpow.pop %v2645
      %v2647 = vmul.f32 %v2284, 1.442695
      %v2648 = vpow.pop %v2647
      %v2649 = vmul.f32 %v2285, 1.442695
      %v2650 = vpow.pop %v2649
      %v2651 = vmul.f32 %v2286, 1.442695
      %v2652 = vpow.pop %v2651
      %v2653 = vmul.f32 %v2287, 1.442695
      %v2654 = vpow.pop %v2653
      %v2655 = vmul.f32 %v2288, 1.442695
      %v2656 = vpow.pop %v2655
      %v2657 = vmul.f32 %v2289, 1.442695
      %v2658 = vpow.pop %v2657
      %v2659 = vmul.f32 %v2290, 1.442695
      %v2660 = vpow.pop %v2659
      %v2661 = vmul.f32 %v2291, 1.442695
      %v2662 = vpow.pop %v2661
      %v2663 = vmul.f32 %v2292, 1.442695
      %v2664 = vpow.pop %v2663
      %v2665 = vmul.f32 %v2293, 1.442695
      %v2666 = vpow.pop %v2665
      %v2667 = vmul.f32 %v2294, 1.442695
      %v2668 = vpow.pop %v2667
      %v2669 = vmul.f32 %v2295, 1.442695
      %v2670 = vpow.pop %v2669
      %v2671 = vmul.f32 %v2296, 1.442695
      %v2672 = vpow.pop %v2671
      %v2673 = vmul.f32 %v2297, 1.442695
      %v2674 = vpow.pop %v2673
      %v2675 = vmul.f32 %v2298, 1.442695
      %v2676 = vpow.pop %v2675
      %v2677 = vmul.f32 %v2299, 1.442695
      %v2678 = vpow.pop %v2677
      %v2679 = vmul.f32 %v2300, 1.442695
      %v2680 = vpow.pop %v2679
      %v2681 = vmul.f32 %v2301, 1.442695
      %v2682 = vpow.pop %v2681
      %v2683 = vmul.f32 %v2302, 1.442695
      %v2684 = vpow.pop %v2683
      %v2685 = vmul.f32 %v2303, 1.442695
      %v2686 = vpow.pop %v2685
      %v2687 = vmul.f32 %v2304, 1.442695
      %v2688 = vpow.pop %v2687
      %v2689 = vmul.f32 %v2305, 1.442695
      %v2690 = vpow.pop %v2689
      %v2691 = vmul.f32 %v2306, 1.442695
      %v2692 = vpow.pop %v2691
      %v2693 = vmul.f32 %v2307, 1.442695
      %v2694 = vpow.pop %v2693
      %v2695 = vmul.f32 %v2308, 1.442695
      %v2696 = vpow.pop %v2695
      %v2697 = vmul.f32 %v2309, 1.442695
      %v2698 = vpow.pop %v2697
      %v2699 = vmul.f32 %v2310, 1.442695
      %v2700 = vpow.pop %v2699
      %v2701 = vmul.f32 %v2311, 1.442695
      %v2702 = vpow.pop %v2701
      %v2703 = vmul.f32 %v2312, 1.442695
      %v2704 = vpow.pop %v2703
      %v2705 = vmul.f32 %v2313, 1.442695
      %v2706 = vpow.pop %v2705
      %v2707 = vmul.f32 %v2314, 1.442695
      %v2708 = vpow.pop %v2707
      %v2709 = vmul.f32 %v2315, 1.442695
      %v2710 = vpow.pop %v2709
      %v2711 = vmul.f32 %v2316, 1.442695
      %v2712 = vpow.pop %v2711
      %v2713 = vmul.f32 %v2317, 1.442695
      %v2714 = vpow.pop %v2713
      %v2715 = vmul.f32 %v2318, 1.442695
      %v2716 = vpow.pop %v2715
      %v2717 = vmul.f32 %v2319, 1.442695
      %v2718 = vpow.pop %v2717
      %v2719 = vmul.f32 %v2320, 1.442695
      %v2720 = vpow.pop %v2719
      %v2721 = vmul.f32 %v2321, 1.442695
      %v2722 = vpow.pop %v2721
      %v2723 = vmul.f32 %v2322, 1.442695
      %v2724 = vpow.pop %v2723
      %v2725 = vmul.f32 %v2323, 1.442695
      %v2726 = vpow.pop %v2725
      %v2727 = vmul.f32 %v2324, 1.442695
      %v2728 = vpow.pop %v2727
      %v2729 = vmul.f32 %v2325, 1.442695
      %v2730 = vpow.pop %v2729
      %v2731 = vmul.f32 %v2326, 1.442695
      %v2732 = vpow.pop %v2731
      %v2733 = vmul.f32 %v2327, 1.442695
      %v2734 = vpow.pop %v2733
      %v2735 = vmul.f32 %v2328, 1.442695
      %v2736 = vpow.pop %v2735
      %v2737 = vmul.f32 %v2329, 1.442695
      %v2738 = vpow.pop %v2737
      %v2739 = vmul.f32 %v2330, 1.442695
      %v2740 = vpow.pop %v2739
      %v2741 = vmul.f32 %v2331, 1.442695
      %v2742 = vpow.pop %v2741
      %v2743 = vmul.f32 %v2332, 1.442695
      %v2744 = vpow.pop %v2743
      %v2745 = vmul.f32 %v2333, 1.442695
      %v2746 = vpow.pop %v2745
      %v2747 = vmul.f32 %v2334, 1.442695
      %v2748 = vpow.pop %v2747
      %v2749 = vmul.f32 %v2335, 1.442695
      %v2750 = vpow.pop %v2749
      %v2751 = vmul.f32 %v2336, 1.442695
      %v2752 = vpow.pop %v2751
      %v2753 = vmul.f32 %v2337, 1.442695
      %v2754 = vpow.pop %v2753
      %v2755 = vmul.f32 %v2338, 1.442695
      %v2756 = vpow.pop %v2755
      %v2757 = vmul.f32 %v2339, 1.442695
      %v2758 = vpow.pop %v2757
      %v2759 = vmul.f32 %v2340, 1.442695
      %v2760 = vpow.pop %v2759
      %v2761 = vmul.f32 %v2341, 1.442695
      %v2762 = vpow.pop %v2761
      %v2763 = vmul.f32 %v2342, 1.442695
      %v2764 = vpow.pop %v2763
      %v2765 = vmul.f32 %v2343, 1.442695
      %v2766 = vpow.pop %v2765
      %v2767 = vmul.f32 %v2344, 1.442695
      %v2768 = vpow.pop %v2767
      %v2769 = vmul.f32 %v2345, 1.442695
      %v2770 = vpow.pop %v2769
      %v2771 = vmul.f32 %v2346, 1.442695
      %v2772 = vpow.pop %v2771
      %v2773 = vmul.f32 %v2347, 1.442695
      %v2774 = vpow.pop %v2773
      %v2775 = vmul.f32 %v2348, 1.442695
      %v2776 = vpow.pop %v2775
      %v2777 = vmul.f32 %v2349, 1.442695
      %v2778 = vpow.pop %v2777
      %v2779 = vmul.f32 %v2350, 1.442695
      %v2780 = vpow.pop %v2779
      %v2781 = vmul.f32 %v2351, 1.442695
      %v2782 = vpow.pop %v2781
      %v2783 = vmul.f32 %v2352, 1.442695
      %v2784 = vpow.pop %v2783
      %v2785 = vmul.f32 %v2353, 1.442695
      %v2786 = vpow.pop %v2785
      %v2787 = vmul.f32 %v2354, 1.442695
      %v2788 = vpow.pop %v2787
      %v2789 = vmul.f32 %v2355, 1.442695
      %v2790 = vpow.pop %v2789
      %v2791 = vmul.f32 %v2356, 1.442695
      %v2792 = vpow.pop %v2791
      %v2793 = vmul.f32 %v2357, 1.442695
      %v2794 = vpow.pop %v2793
      %v2795 = vmul.f32 %v2358, 1.442695
      %v2796 = vpow.pop %v2795
      %v2797 = vmul.f32 %v2359, 1.442695
      %v2798 = vpow.pop %v2797
      %v2799 = vmul.f32 %v2360, 1.442695
      %v2800 = vpow.pop %v2799
      %v2801 = vmul.f32 %v2361, 1.442695
      %v2802 = vpow.pop %v2801
      %v2803 = vmul.f32 %v2362, 1.442695
      %v2804 = vpow.pop %v2803
      %v2805 = vmul.f32 %v2363, 1.442695
      %v2806 = vpow.pop %v2805
      %v2807 = vmul.f32 %v2364, 1.442695
      %v2808 = vpow.pop %v2807
      %v2809 = vmul.f32 %v2365, 1.442695
      %v2810 = vpow.pop %v2809
      %v2811 = vmul.f32 %v2366, 1.442695
      %v2812 = vpow.pop %v2811
      %v2813 = vmul.f32 %v2367, 1.442695
      %v2814 = vpow.pop %v2813
      %v2815 = vmul.f32 %v2368, 1.442695
      %v2816 = vpow.pop %v2815
      %v2817 = vmul.f32 %v2369, 1.442695
      %v2818 = vpow.pop %v2817
      %v2819 = vmul.f32 %v2370, 1.442695
      %v2820 = vpow.pop %v2819
      %v2821 = vmul.f32 %v2371, 1.442695
      %v2822 = vpow.pop %v2821
      %v2823 = vmul.f32 %v2372, 1.442695
      %v2824 = vpow.pop %v2823
      %v2825 = vmul.f32 %v2373, 1.442695
      %v2826 = vpow.pop %v2825
      %v2827 = vmul.f32 %v2374, 1.442695
      %v2828 = vpow.pop %v2827
      %v2829 = vmul.f32 %v2375, 1.442695
      %v2830 = vpow.pop %v2829
      %v2831 = vmul.f32 %v2376, 1.442695
      %v2832 = vpow.pop %v2831
      %v2833 = vmul.f32 %v2377, 1.442695
      %v2834 = vpow.pop %v2833
      %v2835 = vmul.f32 %v2378, 1.442695
      %v2836 = vpow.pop %v2835
      %v2837 = vmul.f32 %v2379, 1.442695
      %v2838 = vpow.pop %v2837
      %v2839 = vmul.f32 %v2380, 1.442695
      %v2840 = vpow.pop %v2839
      %v2841 = vmul.f32 %v2381, 1.442695
      %v2842 = vpow.pop %v2841
      %v2843 = vmul.f32 %v2382, 1.442695
      %v2844 = vpow.pop %v2843
      %v2845 = vmul.f32 %v2383, 1.442695
      %v2846 = vpow.pop %v2845
      %v2847 = vmul.f32 %v2384, 1.442695
      %v2848 = vpow.pop %v2847
      %v2849 = vmul.f32 %v2385, 1.442695
      %v2850 = vpow.pop %v2849
      %v2851 = vmul.f32 %v2386, 1.442695
      %v2852 = vpow.pop %v2851
      %v2853 = vmul.f32 %v2387, 1.442695
      %v2854 = vpow.pop %v2853
      %v2855 = vmul.f32 %v2388, 1.442695
      %v2856 = vpow.pop %v2855
      %v2857 = vmul.f32 %v2389, 1.442695
      %v2858 = vpow.pop %v2857
      %v2859 = vmul.f32 %v2390, 1.442695
      %v2860 = vpow.pop %v2859
      %v2861 = vmul.f32 %v2391, 1.442695
      %v2862 = vpow.pop %v2861
      %v2863 = vmul.f32 %v2392, 1.442695
      %v2864 = vpow.pop %v2863
      %v2865 = vmul.f32 %v2393, 1.442695
      %v2866 = vpow.pop %v2865
      %v2867 = vmul.f32 %v2394, 1.442695
      %v2868 = vpow.pop %v2867
      %v2869 = vmul.f32 %v2395, 1.442695
      %v2870 = vpow.pop %v2869
      %v2871 = vmul.f32 %v2396, 1.442695
      %v2872 = vpow.pop %v2871
      %v2873 = vmul.f32 %v2397, 1.442695
      %v2874 = vpow.pop %v2873
      %v2875 = vmul.f32 %v2398, 1.442695
      %v2876 = vpow.pop %v2875
      %v2877 = vmul.f32 %v2399, 1.442695
      %v2878 = vpow.pop %v2877
      %v2879 = vmul.f32 %v2400, 1.442695
      %v2880 = vpow.pop %v2879
      %v2881 = vmul.f32 %v2401, 1.442695
      %v2882 = vpow.pop %v2881
      %v2883 = vmul.f32 %v2402, 1.442695
      %v2884 = vpow.pop %v2883
      %v2885 = vmul.f32 %v2403, 1.442695
      %v2886 = vpow.pop %v2885
      %v2887 = vmul.f32 %v2404, 1.442695
      %v2888 = vpow.pop %v2887
      %v2889 = vmul.f32 %v2405, 1.442695
      %v2890 = vpow.pop %v2889
      %v2891 = vmul.f32 %v2406, 1.442695
      %v2892 = vpow.pop %v2891
      %v2893 = vmul.f32 %v2407, 1.442695
      %v2894 = vpow.pop %v2893
      %v2895 = vmul.f32 %v2408, 1.442695
      %v2896 = vpow.pop %v2895
      %v2897 = vmul.f32 %v2409, 1.442695
      %v2898 = vpow.pop %v2897
      %v2899 = vmul.f32 %v2410, 1.442695
      %v2900 = vpow.pop %v2899
      %v2901 = vmul.f32 %v2411, 1.442695
      %v2902 = vpow.pop %v2901
      %v2903 = vmul.f32 %v2412, 1.442695
      %v2904 = vpow.pop %v2903
      %v2905 = vmul.f32 %v2413, 1.442695
      %v2906 = vpow.pop %v2905
      %v2907 = vmul.f32 %v2414, 1.442695
      %v2908 = vpow.pop %v2907
      %v2909 = vmul.f32 %v2415, 1.442695
      %v2910 = vpow.pop %v2909
      %v2911 = vmul.f32 %v2416, 1.442695
      %v2912 = vpow.pop %v2911
      %v2913 = vmul.f32 %v2417, 1.442695
      %v2914 = vpow.pop %v2913
      %v2915 = vmul.f32 %v2418, 1.442695
      %v2916 = vpow.pop %v2915
      %v2917 = vmul.f32 %v2419, 1.442695
      %v2918 = vpow.pop %v2917
      %v2919 = vmul.f32 %v2420, 1.442695
      %v2920 = vpow.pop %v2919
      %v2921 = vmul.f32 %v2421, 1.442695
      %v2922 = vpow.pop %v2921
      %v2923 = vmul.f32 %v2422, 1.442695
      %v2924 = vpow.pop %v2923
      %v2925 = vmul.f32 %v2423, 1.442695
      %v2926 = vpow.pop %v2925
      %v2927 = vmul.f32 %v2424, 1.442695
      %v2928 = vpow.pop %v2927
      %v2929 = vmul.f32 %v2425, 1.442695
      %v2930 = vpow.pop %v2929
      %v2931 = vmul.f32 %v2426, 1.442695
      %v2932 = vpow.pop %v2931
      %v2933 = vmul.f32 %v2427, 1.442695
      %v2934 = vpow.pop %v2933
      %v2935 = vmul.f32 %v2428, 1.442695
      %v2936 = vpow.pop %v2935
      %v2937 = vmul.f32 %v2429, 1.442695
      %v2938 = vpow.pop %v2937
      %v2939 = vmul.f32 %v2430, 1.442695
      %v2940 = vpow.pop %v2939
      %v2941 = vmul.f32 %v2431, 1.442695
      %v2942 = vpow.pop %v2941
      %v2943 = vmul.f32 %v2432, 1.442695
      %v2944 = vpow.pop %v2943
      %v2945 = vmul.f32 %v2433, 1.442695
      %v2946 = vpow.pop %v2945
      %v2947 = vmul.f32 %v2434, 1.442695
      %v2948 = vpow.pop %v2947
      %v2949 = vmul.f32 %v2435, 1.442695
      %v2950 = vpow.pop %v2949
      %v2951 = vmul.f32 %v2436, 1.442695
      %v2952 = vpow.pop %v2951
      %v2953 = vmul.f32 %v2437, 1.442695
      %v2954 = vpow.pop %v2953
      %v2955 = vmul.f32 %v2438, 1.442695
      %v2956 = vpow.pop %v2955
      %v2957 = vmul.f32 %v2439, 1.442695
      %v2958 = vpow.pop %v2957
      %v2959 = vmul.f32 %v2440, 1.442695
      %v2960 = vpow.pop %v2959
      %v2961 = vmul.f32 %v2441, 1.442695
      %v2962 = vpow.pop %v2961
      %v2963 = vmul.f32 %v2442, 1.442695
      %v2964 = vpow.pop %v2963
      %v2965 = vmul.f32 %v2443, 1.442695
      %v2966 = vpow.pop %v2965
      %v2967 = vmul.f32 %v2444, 1.442695
      %v2968 = vpow.pop %v2967
      %v2969 = vmul.f32 %v2445, 1.442695
      %v2970 = vpow.pop %v2969
      %v2971 = vmul.f32 %v2446, 1.442695
      %v2972 = vpow.pop %v2971
      %v2973 = vmul.f32 %v2447, 1.442695
      %v2974 = vpow.pop %v2973
      %v2975 = vmul.f32 %v2448, 1.442695
      %v2976 = vpow.pop %v2975
      %v2977 = vadd.f32 %v2450, 1.0
      %v2978 = vadd.f32 %v2452, 1.0
      %v2979 = vadd.f32 %v2454, 1.0
      %v2980 = vadd.f32 %v2456, 1.0
      %v2981 = vadd.f32 %v2458, 1.0
      %v2982 = vadd.f32 %v2460, 1.0
      %v2983 = vadd.f32 %v2462, 1.0
      %v2984 = vadd.f32 %v2464, 1.0
      %v2985 = vadd.f32 %v2466, 1.0
      %v2986 = vadd.f32 %v2468, 1.0
      %v2987 = vadd.f32 %v2470, 1.0
      %v2988 = vadd.f32 %v2472, 1.0
      %v2989 = vadd.f32 %v2474, 1.0
      %v2990 = vadd.f32 %v2476, 1.0
      %v2991 = vadd.f32 %v2478, 1.0
      %v2992 = vadd.f32 %v2480, 1.0
      %v2993 = vadd.f32 %v2482, 1.0
      %v2994 = vadd.f32 %v2484, 1.0
      %v2995 = vadd.f32 %v2486, 1.0
      %v2996 = vadd.f32 %v2488, 1.0
      %v2997 = vadd.f32 %v2490, 1.0
      %v2998 = vadd.f32 %v2492, 1.0
      %v2999 = vadd.f32 %v2494, 1.0
      %v3000 = vadd.f32 %v2496, 1.0
      %v3001 = vadd.f32 %v2498, 1.0
      %v3002 = vadd.f32 %v2500, 1.0
      %v3003 = vadd.f32 %v2502, 1.0
      %v3004 = vadd.f32 %v2504, 1.0
      %v3005 = vadd.f32 %v2506, 1.0
      %v3006 = vadd.f32 %v2508, 1.0
      %v3007 = vadd.f32 %v2510, 1.0
      %v3008 = vadd.f32 %v2512, 1.0
      %v3009 = vadd.f32 %v2514, 1.0
      %v3010 = vadd.f32 %v2516, 1.0
      %v3011 = vadd.f32 %v2518, 1.0
      %v3012 = vadd.f32 %v2520, 1.0
      %v3013 = vadd.f32 %v2522, 1.0
      %v3014 = vadd.f32 %v2524, 1.0
      %v3015 = vadd.f32 %v2526, 1.0
      %v3016 = vadd.f32 %v2528, 1.0
      %v3017 = vadd.f32 %v2530, 1.0
      %v3018 = vadd.f32 %v2532, 1.0
      %v3019 = vadd.f32 %v2534, 1.0
      %v3020 = vadd.f32 %v2536, 1.0
      %v3021 = vadd.f32 %v2538, 1.0
      %v3022 = vadd.f32 %v2540, 1.0
      %v3023 = vadd.f32 %v2542, 1.0
      %v3024 = vadd.f32 %v2544, 1.0
      %v3025 = vadd.f32 %v2546, 1.0
      %v3026 = vadd.f32 %v2548, 1.0
      %v3027 = vadd.f32 %v2550, 1.0
      %v3028 = vadd.f32 %v2552, 1.0
      %v3029 = vadd.f32 %v2554, 1.0
      %v3030 = vadd.f32 %v2556, 1.0
      %v3031 = vadd.f32 %v2558, 1.0
      %v3032 = vadd.f32 %v2560, 1.0
      %v3033 = vadd.f32 %v2562, 1.0
      %v3034 = vadd.f32 %v2564, 1.0
      %v3035 = vadd.f32 %v2566, 1.0
      %v3036 = vadd.f32 %v2568, 1.0
      %v3037 = vadd.f32 %v2570, 1.0
      %v3038 = vadd.f32 %v2572, 1.0
      %v3039 = vadd.f32 %v2574, 1.0
      %v3040 = vadd.f32 %v2576, 1.0
      %v3041 = vadd.f32 %v2578, 1.0
      %v3042 = vadd.f32 %v2580, 1.0
      %v3043 = vadd.f32 %v2582, 1.0
      %v3044 = vadd.f32 %v2584, 1.0
      %v3045 = vadd.f32 %v2586, 1.0
      %v3046 = vadd.f32 %v2588, 1.0
      %v3047 = vadd.f32 %v2590, 1.0
      %v3048 = vadd.f32 %v2592, 1.0
      %v3049 = vadd.f32 %v2594, 1.0
      %v3050 = vadd.f32 %v2596, 1.0
      %v3051 = vadd.f32 %v2598, 1.0
      %v3052 = vadd.f32 %v2600, 1.0
      %v3053 = vadd.f32 %v2602, 1.0
      %v3054 = vadd.f32 %v2604, 1.0
      %v3055 = vadd.f32 %v2606, 1.0
      %v3056 = vadd.f32 %v2608, 1.0
      %v3057 = vadd.f32 %v2610, 1.0
      %v3058 = vadd.f32 %v2612, 1.0
      %v3059 = vadd.f32 %v2614, 1.0
      %v3060 = vadd.f32 %v2616, 1.0
      %v3061 = vadd.f32 %v2618, 1.0
      %v3062 = vadd.f32 %v2620, 1.0
      %v3063 = vadd.f32 %v2622, 1.0
      %v3064 = vadd.f32 %v2624, 1.0
      %v3065 = vadd.f32 %v2626, 1.0
      %v3066 = vadd.f32 %v2628, 1.0
      %v3067 = vadd.f32 %v2630, 1.0
      %v3068 = vadd.f32 %v2632, 1.0
      %v3069 = vadd.f32 %v2634, 1.0
      %v3070 = vadd.f32 %v2636, 1.0
      %v3071 = vadd.f32 %v2638, 1.0
      %v3072 = vadd.f32 %v2640, 1.0
      %v3073 = vadd.f32 %v2642, 1.0
      %v3074 = vadd.f32 %v2644, 1.0
      %v3075 = vadd.f32 %v2646, 1.0
      %v3076 = vadd.f32 %v2648, 1.0
      %v3077 = vadd.f32 %v2650, 1.0
      %v3078 = vadd.f32 %v2652, 1.0
      %v3079 = vadd.f32 %v2654, 1.0
      %v3080 = vadd.f32 %v2656, 1.0
      %v3081 = vadd.f32 %v2658, 1.0
      %v3082 = vadd.f32 %v2660, 1.0
      %v3083 = vadd.f32 %v2662, 1.0
      %v3084 = vadd.f32 %v2664, 1.0
      %v3085 = vadd.f32 %v2666, 1.0
      %v3086 = vadd.f32 %v2668, 1.0
      %v3087 = vadd.f32 %v2670, 1.0
      %v3088 = vadd.f32 %v2672, 1.0
      %v3089 = vadd.f32 %v2674, 1.0
      %v3090 = vadd.f32 %v2676, 1.0
      %v3091 = vadd.f32 %v2678, 1.0
      %v3092 = vadd.f32 %v2680, 1.0
      %v3093 = vadd.f32 %v2682, 1.0
      %v3094 = vadd.f32 %v2684, 1.0
      %v3095 = vadd.f32 %v2686, 1.0
      %v3096 = vadd.f32 %v2688, 1.0
      %v3097 = vadd.f32 %v2690, 1.0
      %v3098 = vadd.f32 %v2692, 1.0
      %v3099 = vadd.f32 %v2694, 1.0
      %v3100 = vadd.f32 %v2696, 1.0
      %v3101 = vadd.f32 %v2698, 1.0
      %v3102 = vadd.f32 %v2700, 1.0
      %v3103 = vadd.f32 %v2702, 1.0
      %v3104 = vadd.f32 %v2704, 1.0
      %v3105 = vadd.f32 %v2706, 1.0
      %v3106 = vadd.f32 %v2708, 1.0
      %v3107 = vadd.f32 %v2710, 1.0
      %v3108 = vadd.f32 %v2712, 1.0
      %v3109 = vadd.f32 %v2714, 1.0
      %v3110 = vadd.f32 %v2716, 1.0
      %v3111 = vadd.f32 %v2718, 1.0
      %v3112 = vadd.f32 %v2720, 1.0
      %v3113 = vadd.f32 %v2722, 1.0
      %v3114 = vadd.f32 %v2724, 1.0
      %v3115 = vadd.f32 %v2726, 1.0
      %v3116 = vadd.f32 %v2728, 1.0
      %v3117 = vadd.f32 %v2730, 1.0
      %v3118 = vadd.f32 %v2732, 1.0
      %v3119 = vadd.f32 %v2734, 1.0
      %v3120 = vadd.f32 %v2736, 1.0
      %v3121 = vadd.f32 %v2738, 1.0
      %v3122 = vadd.f32 %v2740, 1.0
      %v3123 = vadd.f32 %v2742, 1.0
      %v3124 = vadd.f32 %v2744, 1.0
      %v3125 = vadd.f32 %v2746, 1.0
      %v3126 = vadd.f32 %v2748, 1.0
      %v3127 = vadd.f32 %v2750, 1.0
      %v3128 = vadd.f32 %v2752, 1.0
      %v3129 = vadd.f32 %v2754, 1.0
      %v3130 = vadd.f32 %v2756, 1.0
      %v3131 = vadd.f32 %v2758, 1.0
      %v3132 = vadd.f32 %v2760, 1.0
      %v3133 = vadd.f32 %v2762, 1.0
      %v3134 = vadd.f32 %v2764, 1.0
      %v3135 = vadd.f32 %v2766, 1.0
      %v3136 = vadd.f32 %v2768, 1.0
      %v3137 = vadd.f32 %v2770, 1.0
      %v3138 = vadd.f32 %v2772, 1.0
      %v3139 = vadd.f32 %v2774, 1.0
      %v3140 = vadd.f32 %v2776, 1.0
      %v3141 = vadd.f32 %v2778, 1.0
      %v3142 = vadd.f32 %v2780, 1.0
      %v3143 = vadd.f32 %v2782, 1.0
      %v3144 = vadd.f32 %v2784, 1.0
      %v3145 = vadd.f32 %v2786, 1.0
      %v3146 = vadd.f32 %v2788, 1.0
      %v3147 = vadd.f32 %v2790, 1.0
      %v3148 = vadd.f32 %v2792, 1.0
      %v3149 = vadd.f32 %v2794, 1.0
      %v3150 = vadd.f32 %v2796, 1.0
      %v3151 = vadd.f32 %v2798, 1.0
      %v3152 = vadd.f32 %v2800, 1.0
      %v3153 = vadd.f32 %v2802, 1.0
      %v3154 = vadd.f32 %v2804, 1.0
      %v3155 = vadd.f32 %v2806, 1.0
      %v3156 = vadd.f32 %v2808, 1.0
      %v3157 = vadd.f32 %v2810, 1.0
      %v3158 = vadd.f32 %v2812, 1.0
      %v3159 = vadd.f32 %v2814, 1.0
      %v3160 = vadd.f32 %v2816, 1.0
      %v3161 = vadd.f32 %v2818, 1.0
      %v3162 = vadd.f32 %v2820, 1.0
      %v3163 = vadd.f32 %v2822, 1.0
      %v3164 = vadd.f32 %v2824, 1.0
      %v3165 = vadd.f32 %v2826, 1.0
      %v3166 = vadd.f32 %v2828, 1.0
      %v3167 = vadd.f32 %v2830, 1.0
      %v3168 = vadd.f32 %v2832, 1.0
      %v3169 = vadd.f32 %v2834, 1.0
      %v3170 = vadd.f32 %v2836, 1.0
      %v3171 = vadd.f32 %v2838, 1.0
      %v3172 = vadd.f32 %v2840, 1.0
      %v3173 = vadd.f32 %v2842, 1.0
      %v3174 = vadd.f32 %v2844, 1.0
      %v3175 = vadd.f32 %v2846, 1.0
      %v3176 = vadd.f32 %v2848, 1.0
      %v3177 = vadd.f32 %v2850, 1.0
      %v3178 = vadd.f32 %v2852, 1.0
      %v3179 = vadd.f32 %v2854, 1.0
      %v3180 = vadd.f32 %v2856, 1.0
      %v3181 = vadd.f32 %v2858, 1.0
      %v3182 = vadd.f32 %v2860, 1.0
      %v3183 = vadd.f32 %v2862, 1.0
      %v3184 = vadd.f32 %v2864, 1.0
      %v3185 = vadd.f32 %v2866, 1.0
      %v3186 = vadd.f32 %v2868, 1.0
      %v3187 = vadd.f32 %v2870, 1.0
      %v3188 = vadd.f32 %v2872, 1.0
      %v3189 = vadd.f32 %v2874, 1.0
      %v3190 = vadd.f32 %v2876, 1.0
      %v3191 = vadd.f32 %v2878, 1.0
      %v3192 = vadd.f32 %v2880, 1.0
      %v3193 = vadd.f32 %v2882, 1.0
      %v3194 = vadd.f32 %v2884, 1.0
      %v3195 = vadd.f32 %v2886, 1.0
      %v3196 = vadd.f32 %v2888, 1.0
      %v3197 = vadd.f32 %v2890, 1.0
      %v3198 = vadd.f32 %v2892, 1.0
      %v3199 = vadd.f32 %v2894, 1.0
      %v3200 = vadd.f32 %v2896, 1.0
      %v3201 = vadd.f32 %v2898, 1.0
      %v3202 = vadd.f32 %v2900, 1.0
      %v3203 = vadd.f32 %v2902, 1.0
      %v3204 = vadd.f32 %v2904, 1.0
      %v3205 = vadd.f32 %v2906, 1.0
      %v3206 = vadd.f32 %v2908, 1.0
      %v3207 = vadd.f32 %v2910, 1.0
      %v3208 = vadd.f32 %v2912, 1.0
      %v3209 = vadd.f32 %v2914, 1.0
      %v3210 = vadd.f32 %v2916, 1.0
      %v3211 = vadd.f32 %v2918, 1.0
      %v3212 = vadd.f32 %v2920, 1.0
      %v3213 = vadd.f32 %v2922, 1.0
      %v3214 = vadd.f32 %v2924, 1.0
      %v3215 = vadd.f32 %v2926, 1.0
      %v3216 = vadd.f32 %v2928, 1.0
      %v3217 = vadd.f32 %v2930, 1.0
      %v3218 = vadd.f32 %v2932, 1.0
      %v3219 = vadd.f32 %v2934, 1.0
      %v3220 = vadd.f32 %v2936, 1.0
      %v3221 = vadd.f32 %v2938, 1.0
      %v3222 = vadd.f32 %v2940, 1.0
      %v3223 = vadd.f32 %v2942, 1.0
      %v3224 = vadd.f32 %v2944, 1.0
      %v3225 = vadd.f32 %v2946, 1.0
      %v3226 = vadd.f32 %v2948, 1.0
      %v3227 = vadd.f32 %v2950, 1.0
      %v3228 = vadd.f32 %v2952, 1.0
      %v3229 = vadd.f32 %v2954, 1.0
      %v3230 = vadd.f32 %v2956, 1.0
      %v3231 = vadd.f32 %v2958, 1.0
      %v3232 = vadd.f32 %v2960, 1.0
      %v3233 = vadd.f32 %v2962, 1.0
      %v3234 = vadd.f32 %v2964, 1.0
      %v3235 = vadd.f32 %v2966, 1.0
      %v3236 = vadd.f32 %v2968, 1.0
      %v3237 = vadd.f32 %v2970, 1.0
      %v3238 = vadd.f32 %v2972, 1.0
      %v3239 = vadd.f32 %v2974, 1.0
      %v3240 = vadd.f32 %v2976, 1.0
      %v3241 = vrcp.pop %v2977
      %v3242 = vmul.f32 1.0, %v3241
      %v3243 = vrcp.pop %v2978
      %v3244 = vmul.f32 1.0, %v3243
      %v3245 = vrcp.pop %v2979
      %v3246 = vmul.f32 1.0, %v3245
      %v3247 = vrcp.pop %v2980
      %v3248 = vmul.f32 1.0, %v3247
      %v3249 = vrcp.pop %v2981
      %v3250 = vmul.f32 1.0, %v3249
      %v3251 = vrcp.pop %v2982
      %v3252 = vmul.f32 1.0, %v3251
      %v3253 = vrcp.pop %v2983
      %v3254 = vmul.f32 1.0, %v3253
      %v3255 = vrcp.pop %v2984
      %v3256 = vmul.f32 1.0, %v3255
      %v3257 = vrcp.pop %v2985
      %v3258 = vmul.f32 1.0, %v3257
      %v3259 = vrcp.pop %v2986
      %v3260 = vmul.f32 1.0, %v3259
      %v3261 = vrcp.pop %v2987
      %v3262 = vmul.f32 1.0, %v3261
      %v3263 = vrcp.pop %v2988
      %v3264 = vmul.f32 1.0, %v3263
      %v3265 = vrcp.pop %v2989
      %v3266 = vmul.f32 1.0, %v3265
      %v3267 = vrcp.pop %v2990
      %v3268 = vmul.f32 1.0, %v3267
      %v3269 = vrcp.pop %v2991
      %v3270 = vmul.f32 1.0, %v3269
      %v3271 = vrcp.pop %v2992
      %v3272 = vmul.f32 1.0, %v3271
      %v3273 = vrcp.pop %v2993
      %v3274 = vmul.f32 1.0, %v3273
      %v3275 = vrcp.pop %v2994
      %v3276 = vmul.f32 1.0, %v3275
      %v3277 = vrcp.pop %v2995
      %v3278 = vmul.f32 1.0, %v3277
      %v3279 = vrcp.pop %v2996
      %v3280 = vmul.f32 1.0, %v3279
      %v3281 = vrcp.pop %v2997
      %v3282 = vmul.f32 1.0, %v3281
      %v3283 = vrcp.pop %v2998
      %v3284 = vmul.f32 1.0, %v3283
      %v3285 = vrcp.pop %v2999
      %v3286 = vmul.f32 1.0, %v3285
      %v3287 = vrcp.pop %v3000
      %v3288 = vmul.f32 1.0, %v3287
      %v3289 = vrcp.pop %v3001
      %v3290 = vmul.f32 1.0, %v3289
      %v3291 = vrcp.pop %v3002
      %v3292 = vmul.f32 1.0, %v3291
      %v3293 = vrcp.pop %v3003
      %v3294 = vmul.f32 1.0, %v3293
      %v3295 = vrcp.pop %v3004
      %v3296 = vmul.f32 1.0, %v3295
      %v3297 = vrcp.pop %v3005
      %v3298 = vmul.f32 1.0, %v3297
      %v3299 = vrcp.pop %v3006
      %v3300 = vmul.f32 1.0, %v3299
      %v3301 = vrcp.pop %v3007
      %v3302 = vmul.f32 1.0, %v3301
      %v3303 = vrcp.pop %v3008
      %v3304 = vmul.f32 1.0, %v3303
      %v3305 = vrcp.pop %v3009
      %v3306 = vmul.f32 1.0, %v3305
      %v3307 = vrcp.pop %v3010
      %v3308 = vmul.f32 1.0, %v3307
      %v3309 = vrcp.pop %v3011
      %v3310 = vmul.f32 1.0, %v3309
      %v3311 = vrcp.pop %v3012
      %v3312 = vmul.f32 1.0, %v3311
      %v3313 = vrcp.pop %v3013
      %v3314 = vmul.f32 1.0, %v3313
      %v3315 = vrcp.pop %v3014
      %v3316 = vmul.f32 1.0, %v3315
      %v3317 = vrcp.pop %v3015
      %v3318 = vmul.f32 1.0, %v3317
      %v3319 = vrcp.pop %v3016
      %v3320 = vmul.f32 1.0, %v3319
      %v3321 = vrcp.pop %v3017
      %v3322 = vmul.f32 1.0, %v3321
      %v3323 = vrcp.pop %v3018
      %v3324 = vmul.f32 1.0, %v3323
      %v3325 = vrcp.pop %v3019
      %v3326 = vmul.f32 1.0, %v3325
      %v3327 = vrcp.pop %v3020
      %v3328 = vmul.f32 1.0, %v3327
      %v3329 = vrcp.pop %v3021
      %v3330 = vmul.f32 1.0, %v3329
      %v3331 = vrcp.pop %v3022
      %v3332 = vmul.f32 1.0, %v3331
      %v3333 = vrcp.pop %v3023
      %v3334 = vmul.f32 1.0, %v3333
      %v3335 = vrcp.pop %v3024
      %v3336 = vmul.f32 1.0, %v3335
      %v3337 = vrcp.pop %v3025
      %v3338 = vmul.f32 1.0, %v3337
      %v3339 = vrcp.pop %v3026
      %v3340 = vmul.f32 1.0, %v3339
      %v3341 = vrcp.pop %v3027
      %v3342 = vmul.f32 1.0, %v3341
      %v3343 = vrcp.pop %v3028
      %v3344 = vmul.f32 1.0, %v3343
      %v3345 = vrcp.pop %v3029
      %v3346 = vmul.f32 1.0, %v3345
      %v3347 = vrcp.pop %v3030
      %v3348 = vmul.f32 1.0, %v3347
      %v3349 = vrcp.pop %v3031
      %v3350 = vmul.f32 1.0, %v3349
      %v3351 = vrcp.pop %v3032
      %v3352 = vmul.f32 1.0, %v3351
      %v3353 = vrcp.pop %v3033
      %v3354 = vmul.f32 1.0, %v3353
      %v3355 = vrcp.pop %v3034
      %v3356 = vmul.f32 1.0, %v3355
      %v3357 = vrcp.pop %v3035
      %v3358 = vmul.f32 1.0, %v3357
      %v3359 = vrcp.pop %v3036
      %v3360 = vmul.f32 1.0, %v3359
      %v3361 = vrcp.pop %v3037
      %v3362 = vmul.f32 1.0, %v3361
      %v3363 = vrcp.pop %v3038
      %v3364 = vmul.f32 1.0, %v3363
      %v3365 = vrcp.pop %v3039
      %v3366 = vmul.f32 1.0, %v3365
      %v3367 = vrcp.pop %v3040
      %v3368 = vmul.f32 1.0, %v3367
      %v3369 = vrcp.pop %v3041
      %v3370 = vmul.f32 1.0, %v3369
      %v3371 = vrcp.pop %v3042
      %v3372 = vmul.f32 1.0, %v3371
      %v3373 = vrcp.pop %v3043
      %v3374 = vmul.f32 1.0, %v3373
      %v3375 = vrcp.pop %v3044
      %v3376 = vmul.f32 1.0, %v3375
      %v3377 = vrcp.pop %v3045
      %v3378 = vmul.f32 1.0, %v3377
      %v3379 = vrcp.pop %v3046
      %v3380 = vmul.f32 1.0, %v3379
      %v3381 = vrcp.pop %v3047
      %v3382 = vmul.f32 1.0, %v3381
      %v3383 = vrcp.pop %v3048
      %v3384 = vmul.f32 1.0, %v3383
      %v3385 = vrcp.pop %v3049
      %v3386 = vmul.f32 1.0, %v3385
      %v3387 = vrcp.pop %v3050
      %v3388 = vmul.f32 1.0, %v3387
      %v3389 = vrcp.pop %v3051
      %v3390 = vmul.f32 1.0, %v3389
      %v3391 = vrcp.pop %v3052
      %v3392 = vmul.f32 1.0, %v3391
      %v3393 = vrcp.pop %v3053
      %v3394 = vmul.f32 1.0, %v3393
      %v3395 = vrcp.pop %v3054
      %v3396 = vmul.f32 1.0, %v3395
      %v3397 = vrcp.pop %v3055
      %v3398 = vmul.f32 1.0, %v3397
      %v3399 = vrcp.pop %v3056
      %v3400 = vmul.f32 1.0, %v3399
      %v3401 = vrcp.pop %v3057
      %v3402 = vmul.f32 1.0, %v3401
      %v3403 = vrcp.pop %v3058
      %v3404 = vmul.f32 1.0, %v3403
      %v3405 = vrcp.pop %v3059
      %v3406 = vmul.f32 1.0, %v3405
      %v3407 = vrcp.pop %v3060
      %v3408 = vmul.f32 1.0, %v3407
      %v3409 = vrcp.pop %v3061
      %v3410 = vmul.f32 1.0, %v3409
      %v3411 = vrcp.pop %v3062
      %v3412 = vmul.f32 1.0, %v3411
      %v3413 = vrcp.pop %v3063
      %v3414 = vmul.f32 1.0, %v3413
      %v3415 = vrcp.pop %v3064
      %v3416 = vmul.f32 1.0, %v3415
      %v3417 = vrcp.pop %v3065
      %v3418 = vmul.f32 1.0, %v3417
      %v3419 = vrcp.pop %v3066
      %v3420 = vmul.f32 1.0, %v3419
      %v3421 = vrcp.pop %v3067
      %v3422 = vmul.f32 1.0, %v3421
      %v3423 = vrcp.pop %v3068
      %v3424 = vmul.f32 1.0, %v3423
      %v3425 = vrcp.pop %v3069
      %v3426 = vmul.f32 1.0, %v3425
      %v3427 = vrcp.pop %v3070
      %v3428 = vmul.f32 1.0, %v3427
      %v3429 = vrcp.pop %v3071
      %v3430 = vmul.f32 1.0, %v3429
      %v3431 = vrcp.pop %v3072
      %v3432 = vmul.f32 1.0, %v3431
      %v3433 = vrcp.pop %v3073
      %v3434 = vmul.f32 1.0, %v3433
      %v3435 = vrcp.pop %v3074
      %v3436 = vmul.f32 1.0, %v3435
      %v3437 = vrcp.pop %v3075
      %v3438 = vmul.f32 1.0, %v3437
      %v3439 = vrcp.pop %v3076
      %v3440 = vmul.f32 1.0, %v3439
      %v3441 = vrcp.pop %v3077
      %v3442 = vmul.f32 1.0, %v3441
      %v3443 = vrcp.pop %v3078
      %v3444 = vmul.f32 1.0, %v3443
      %v3445 = vrcp.pop %v3079
      %v3446 = vmul.f32 1.0, %v3445
      %v3447 = vrcp.pop %v3080
      %v3448 = vmul.f32 1.0, %v3447
      %v3449 = vrcp.pop %v3081
      %v3450 = vmul.f32 1.0, %v3449
      %v3451 = vrcp.pop %v3082
      %v3452 = vmul.f32 1.0, %v3451
      %v3453 = vrcp.pop %v3083
      %v3454 = vmul.f32 1.0, %v3453
      %v3455 = vrcp.pop %v3084
      %v3456 = vmul.f32 1.0, %v3455
      %v3457 = vrcp.pop %v3085
      %v3458 = vmul.f32 1.0, %v3457
      %v3459 = vrcp.pop %v3086
      %v3460 = vmul.f32 1.0, %v3459
      %v3461 = vrcp.pop %v3087
      %v3462 = vmul.f32 1.0, %v3461
      %v3463 = vrcp.pop %v3088
      %v3464 = vmul.f32 1.0, %v3463
      %v3465 = vrcp.pop %v3089
      %v3466 = vmul.f32 1.0, %v3465
      %v3467 = vrcp.pop %v3090
      %v3468 = vmul.f32 1.0, %v3467
      %v3469 = vrcp.pop %v3091
      %v3470 = vmul.f32 1.0, %v3469
      %v3471 = vrcp.pop %v3092
      %v3472 = vmul.f32 1.0, %v3471
      %v3473 = vrcp.pop %v3093
      %v3474 = vmul.f32 1.0, %v3473
      %v3475 = vrcp.pop %v3094
      %v3476 = vmul.f32 1.0, %v3475
      %v3477 = vrcp.pop %v3095
      %v3478 = vmul.f32 1.0, %v3477
      %v3479 = vrcp.pop %v3096
      %v3480 = vmul.f32 1.0, %v3479
      %v3481 = vrcp.pop %v3097
      %v3482 = vmul.f32 1.0, %v3481
      %v3483 = vrcp.pop %v3098
      %v3484 = vmul.f32 1.0, %v3483
      %v3485 = vrcp.pop %v3099
      %v3486 = vmul.f32 1.0, %v3485
      %v3487 = vrcp.pop %v3100
      %v3488 = vmul.f32 1.0, %v3487
      %v3489 = vrcp.pop %v3101
      %v3490 = vmul.f32 1.0, %v3489
      %v3491 = vrcp.pop %v3102
      %v3492 = vmul.f32 1.0, %v3491
      %v3493 = vrcp.pop %v3103
      %v3494 = vmul.f32 1.0, %v3493
      %v3495 = vrcp.pop %v3104
      %v3496 = vmul.f32 1.0, %v3495
      %v3497 = vrcp.pop %v3105
      %v3498 = vmul.f32 1.0, %v3497
      %v3499 = vrcp.pop %v3106
      %v3500 = vmul.f32 1.0, %v3499
      %v3501 = vrcp.pop %v3107
      %v3502 = vmul.f32 1.0, %v3501
      %v3503 = vrcp.pop %v3108
      %v3504 = vmul.f32 1.0, %v3503
      %v3505 = vrcp.pop %v3109
      %v3506 = vmul.f32 1.0, %v3505
      %v3507 = vrcp.pop %v3110
      %v3508 = vmul.f32 1.0, %v3507
      %v3509 = vrcp.pop %v3111
      %v3510 = vmul.f32 1.0, %v3509
      %v3511 = vrcp.pop %v3112
      %v3512 = vmul.f32 1.0, %v3511
      %v3513 = vrcp.pop %v3113
      %v3514 = vmul.f32 1.0, %v3513
      %v3515 = vrcp.pop %v3114
      %v3516 = vmul.f32 1.0, %v3515
      %v3517 = vrcp.pop %v3115
      %v3518 = vmul.f32 1.0, %v3517
      %v3519 = vrcp.pop %v3116
      %v3520 = vmul.f32 1.0, %v3519
      %v3521 = vrcp.pop %v3117
      %v3522 = vmul.f32 1.0, %v3521
      %v3523 = vrcp.pop %v3118
      %v3524 = vmul.f32 1.0, %v3523
      %v3525 = vrcp.pop %v3119
      %v3526 = vmul.f32 1.0, %v3525
      %v3527 = vrcp.pop %v3120
      %v3528 = vmul.f32 1.0, %v3527
      %v3529 = vrcp.pop %v3121
      %v3530 = vmul.f32 1.0, %v3529
      %v3531 = vrcp.pop %v3122
      %v3532 = vmul.f32 1.0, %v3531
      %v3533 = vrcp.pop %v3123
      %v3534 = vmul.f32 1.0, %v3533
      %v3535 = vrcp.pop %v3124
      %v3536 = vmul.f32 1.0, %v3535
      %v3537 = vrcp.pop %v3125
      %v3538 = vmul.f32 1.0, %v3537
      %v3539 = vrcp.pop %v3126
      %v3540 = vmul.f32 1.0, %v3539
      %v3541 = vrcp.pop %v3127
      %v3542 = vmul.f32 1.0, %v3541
      %v3543 = vrcp.pop %v3128
      %v3544 = vmul.f32 1.0, %v3543
      %v3545 = vrcp.pop %v3129
      %v3546 = vmul.f32 1.0, %v3545
      %v3547 = vrcp.pop %v3130
      %v3548 = vmul.f32 1.0, %v3547
      %v3549 = vrcp.pop %v3131
      %v3550 = vmul.f32 1.0, %v3549
      %v3551 = vrcp.pop %v3132
      %v3552 = vmul.f32 1.0, %v3551
      %v3553 = vrcp.pop %v3133
      %v3554 = vmul.f32 1.0, %v3553
      %v3555 = vrcp.pop %v3134
      %v3556 = vmul.f32 1.0, %v3555
      %v3557 = vrcp.pop %v3135
      %v3558 = vmul.f32 1.0, %v3557
      %v3559 = vrcp.pop %v3136
      %v3560 = vmul.f32 1.0, %v3559
      %v3561 = vrcp.pop %v3137
      %v3562 = vmul.f32 1.0, %v3561
      %v3563 = vrcp.pop %v3138
      %v3564 = vmul.f32 1.0, %v3563
      %v3565 = vrcp.pop %v3139
      %v3566 = vmul.f32 1.0, %v3565
      %v3567 = vrcp.pop %v3140
      %v3568 = vmul.f32 1.0, %v3567
      %v3569 = vrcp.pop %v3141
      %v3570 = vmul.f32 1.0, %v3569
      %v3571 = vrcp.pop %v3142
      %v3572 = vmul.f32 1.0, %v3571
      %v3573 = vrcp.pop %v3143
      %v3574 = vmul.f32 1.0, %v3573
      %v3575 = vrcp.pop %v3144
      %v3576 = vmul.f32 1.0, %v3575
      %v3577 = vrcp.pop %v3145
      %v3578 = vmul.f32 1.0, %v3577
      %v3579 = vrcp.pop %v3146
      %v3580 = vmul.f32 1.0, %v3579
      %v3581 = vrcp.pop %v3147
      %v3582 = vmul.f32 1.0, %v3581
      %v3583 = vrcp.pop %v3148
      %v3584 = vmul.f32 1.0, %v3583
      %v3585 = vrcp.pop %v3149
      %v3586 = vmul.f32 1.0, %v3585
      %v3587 = vrcp.pop %v3150
      %v3588 = vmul.f32 1.0, %v3587
      %v3589 = vrcp.pop %v3151
      %v3590 = vmul.f32 1.0, %v3589
      %v3591 = vrcp.pop %v3152
      %v3592 = vmul.f32 1.0, %v3591
      %v3593 = vrcp.pop %v3153
      %v3594 = vmul.f32 1.0, %v3593
      %v3595 = vrcp.pop %v3154
      %v3596 = vmul.f32 1.0, %v3595
      %v3597 = vrcp.pop %v3155
      %v3598 = vmul.f32 1.0, %v3597
      %v3599 = vrcp.pop %v3156
      %v3600 = vmul.f32 1.0, %v3599
      %v3601 = vrcp.pop %v3157
      %v3602 = vmul.f32 1.0, %v3601
      %v3603 = vrcp.pop %v3158
      %v3604 = vmul.f32 1.0, %v3603
      %v3605 = vrcp.pop %v3159
      %v3606 = vmul.f32 1.0, %v3605
      %v3607 = vrcp.pop %v3160
      %v3608 = vmul.f32 1.0, %v3607
      %v3609 = vrcp.pop %v3161
      %v3610 = vmul.f32 1.0, %v3609
      %v3611 = vrcp.pop %v3162
      %v3612 = vmul.f32 1.0, %v3611
      %v3613 = vrcp.pop %v3163
      %v3614 = vmul.f32 1.0, %v3613
      %v3615 = vrcp.pop %v3164
      %v3616 = vmul.f32 1.0, %v3615
      %v3617 = vrcp.pop %v3165
      %v3618 = vmul.f32 1.0, %v3617
      %v3619 = vrcp.pop %v3166
      %v3620 = vmul.f32 1.0, %v3619
      %v3621 = vrcp.pop %v3167
      %v3622 = vmul.f32 1.0, %v3621
      %v3623 = vrcp.pop %v3168
      %v3624 = vmul.f32 1.0, %v3623
      %v3625 = vrcp.pop %v3169
      %v3626 = vmul.f32 1.0, %v3625
      %v3627 = vrcp.pop %v3170
      %v3628 = vmul.f32 1.0, %v3627
      %v3629 = vrcp.pop %v3171
      %v3630 = vmul.f32 1.0, %v3629
      %v3631 = vrcp.pop %v3172
      %v3632 = vmul.f32 1.0, %v3631
      %v3633 = vrcp.pop %v3173
      %v3634 = vmul.f32 1.0, %v3633
      %v3635 = vrcp.pop %v3174
      %v3636 = vmul.f32 1.0, %v3635
      %v3637 = vrcp.pop %v3175
      %v3638 = vmul.f32 1.0, %v3637
      %v3639 = vrcp.pop %v3176
      %v3640 = vmul.f32 1.0, %v3639
      %v3641 = vrcp.pop %v3177
      %v3642 = vmul.f32 1.0, %v3641
      %v3643 = vrcp.pop %v3178
      %v3644 = vmul.f32 1.0, %v3643
      %v3645 = vrcp.pop %v3179
      %v3646 = vmul.f32 1.0, %v3645
      %v3647 = vrcp.pop %v3180
      %v3648 = vmul.f32 1.0, %v3647
      %v3649 = vrcp.pop %v3181
      %v3650 = vmul.f32 1.0, %v3649
      %v3651 = vrcp.pop %v3182
      %v3652 = vmul.f32 1.0, %v3651
      %v3653 = vrcp.pop %v3183
      %v3654 = vmul.f32 1.0, %v3653
      %v3655 = vrcp.pop %v3184
      %v3656 = vmul.f32 1.0, %v3655
      %v3657 = vrcp.pop %v3185
      %v3658 = vmul.f32 1.0, %v3657
      %v3659 = vrcp.pop %v3186
      %v3660 = vmul.f32 1.0, %v3659
      %v3661 = vrcp.pop %v3187
      %v3662 = vmul.f32 1.0, %v3661
      %v3663 = vrcp.pop %v3188
      %v3664 = vmul.f32 1.0, %v3663
      %v3665 = vrcp.pop %v3189
      %v3666 = vmul.f32 1.0, %v3665
      %v3667 = vrcp.pop %v3190
      %v3668 = vmul.f32 1.0, %v3667
      %v3669 = vrcp.pop %v3191
      %v3670 = vmul.f32 1.0, %v3669
      %v3671 = vrcp.pop %v3192
      %v3672 = vmul.f32 1.0, %v3671
      %v3673 = vrcp.pop %v3193
      %v3674 = vmul.f32 1.0, %v3673
      %v3675 = vrcp.pop %v3194
      %v3676 = vmul.f32 1.0, %v3675
      %v3677 = vrcp.pop %v3195
      %v3678 = vmul.f32 1.0, %v3677
      %v3679 = vrcp.pop %v3196
      %v3680 = vmul.f32 1.0, %v3679
      %v3681 = vrcp.pop %v3197
      %v3682 = vmul.f32 1.0, %v3681
      %v3683 = vrcp.pop %v3198
      %v3684 = vmul.f32 1.0, %v3683
      %v3685 = vrcp.pop %v3199
      %v3686 = vmul.f32 1.0, %v3685
      %v3687 = vrcp.pop %v3200
      %v3688 = vmul.f32 1.0, %v3687
      %v3689 = vrcp.pop %v3201
      %v3690 = vmul.f32 1.0, %v3689
      %v3691 = vrcp.pop %v3202
      %v3692 = vmul.f32 1.0, %v3691
      %v3693 = vrcp.pop %v3203
      %v3694 = vmul.f32 1.0, %v3693
      %v3695 = vrcp.pop %v3204
      %v3696 = vmul.f32 1.0, %v3695
      %v3697 = vrcp.pop %v3205
      %v3698 = vmul.f32 1.0, %v3697
      %v3699 = vrcp.pop %v3206
      %v3700 = vmul.f32 1.0, %v3699
      %v3701 = vrcp.pop %v3207
      %v3702 = vmul.f32 1.0, %v3701
      %v3703 = vrcp.pop %v3208
      %v3704 = vmul.f32 1.0, %v3703
      %v3705 = vrcp.pop %v3209
      %v3706 = vmul.f32 1.0, %v3705
      %v3707 = vrcp.pop %v3210
      %v3708 = vmul.f32 1.0, %v3707
      %v3709 = vrcp.pop %v3211
      %v3710 = vmul.f32 1.0, %v3709
      %v3711 = vrcp.pop %v3212
      %v3712 = vmul.f32 1.0, %v3711
      %v3713 = vrcp.pop %v3213
      %v3714 = vmul.f32 1.0, %v3713
      %v3715 = vrcp.pop %v3214
      %v3716 = vmul.f32 1.0, %v3715
      %v3717 = vrcp.pop %v3215
      %v3718 = vmul.f32 1.0, %v3717
      %v3719 = vrcp.pop %v3216
      %v3720 = vmul.f32 1.0, %v3719
      %v3721 = vrcp.pop %v3217
      %v3722 = vmul.f32 1.0, %v3721
      %v3723 = vrcp.pop %v3218
      %v3724 = vmul.f32 1.0, %v3723
      %v3725 = vrcp.pop %v3219
      %v3726 = vmul.f32 1.0, %v3725
      %v3727 = vrcp.pop %v3220
      %v3728 = vmul.f32 1.0, %v3727
      %v3729 = vrcp.pop %v3221
      %v3730 = vmul.f32 1.0, %v3729
      %v3731 = vrcp.pop %v3222
      %v3732 = vmul.f32 1.0, %v3731
      %v3733 = vrcp.pop %v3223
      %v3734 = vmul.f32 1.0, %v3733
      %v3735 = vrcp.pop %v3224
      %v3736 = vmul.f32 1.0, %v3735
      %v3737 = vrcp.pop %v3225
      %v3738 = vmul.f32 1.0, %v3737
      %v3739 = vrcp.pop %v3226
      %v3740 = vmul.f32 1.0, %v3739
      %v3741 = vrcp.pop %v3227
      %v3742 = vmul.f32 1.0, %v3741
      %v3743 = vrcp.pop %v3228
      %v3744 = vmul.f32 1.0, %v3743
      %v3745 = vrcp.pop %v3229
      %v3746 = vmul.f32 1.0, %v3745
      %v3747 = vrcp.pop %v3230
      %v3748 = vmul.f32 1.0, %v3747
      %v3749 = vrcp.pop %v3231
      %v3750 = vmul.f32 1.0, %v3749
      %v3751 = vrcp.pop %v3232
      %v3752 = vmul.f32 1.0, %v3751
      %v3753 = vrcp.pop %v3233
      %v3754 = vmul.f32 1.0, %v3753
      %v3755 = vrcp.pop %v3234
      %v3756 = vmul.f32 1.0, %v3755
      %v3757 = vrcp.pop %v3235
      %v3758 = vmul.f32 1.0, %v3757
      %v3759 = vrcp.pop %v3236
      %v3760 = vmul.f32 1.0, %v3759
      %v3761 = vrcp.pop %v3237
      %v3762 = vmul.f32 1.0, %v3761
      %v3763 = vrcp.pop %v3238
      %v3764 = vmul.f32 1.0, %v3763
      %v3765 = vrcp.pop %v3239
      %v3766 = vmul.f32 1.0, %v3765
      %v3767 = vrcp.pop %v3240
      %v3768 = vmul.f32 1.0, %v3767
      %v3769 = vld [vmem:[%s3] sm:$0xff]
      %v3770 = vld [vmem:[%s3 + $0x8] sm:$0xff]
      %v3771 = vld [vmem:[%s3 + $0x10] sm:$0xff]
      %v3772 = vld [vmem:[%s3 + $0x18] sm:$0xff]
      %v3773 = vld [vmem:[%s3 + $0x20] sm:$0xff]
      %v3774 = vld [vmem:[%s3 + $0x28] sm:$0xff]
      %v3775 = vld [vmem:[%s3 + $0x30] sm:$0xff]
      %v3776 = vld [vmem:[%s3 + $0x38] sm:$0xff]
      %v3777 = vld [vmem:[%s3 + $0x40] sm:$0xff]
      %v3778 = vld [vmem:[%s3 + $0x48] sm:$0xff]
      %v3779 = vld [vmem:[%s3 + $0x50] sm:$0xff]
      %v3780 = vld [vmem:[%s3 + $0x58] sm:$0xff]
      %v3781 = vld [vmem:[%s3 + $0x60] sm:$0xff]
      %v3782 = vld [vmem:[%s3 + $0x68] sm:$0xff]
      %v3783 = vld [vmem:[%s3 + $0x70] sm:$0xff]
      %v3784 = vld [vmem:[%s3 + $0x78] sm:$0xff]
      %v3785 = vld [vmem:[%s3 + $0x80] sm:$0xff]
      %v3786 = vld [vmem:[%s3 + $0x88] sm:$0xff]
      %v3787 = vld [vmem:[%s3 + $0x90] sm:$0xff]
      %v3788 = vld [vmem:[%s3 + $0x98] sm:$0xff]
      %v3789 = vld [vmem:[%s3 + $0xa0] sm:$0xff]
      %v3790 = vld [vmem:[%s3 + $0xa8] sm:$0xff]
      %v3791 = vld [vmem:[%s3 + $0xb0] sm:$0xff]
      %v3792 = vld [vmem:[%s3 + $0xb8] sm:$0xff]
      %v3793 = vld [vmem:[%s3 + $0xc0] sm:$0xff]
      %v3794 = vld [vmem:[%s3 + $0xc8] sm:$0xff]
      %v3795 = vld [vmem:[%s3 + $0xd0] sm:$0xff]
      %v3796 = vld [vmem:[%s3 + $0xd8] sm:$0xff]
      %v3797 = vld [vmem:[%s3 + $0xe0] sm:$0xff]
      %v3798 = vld [vmem:[%s3 + $0xe8] sm:$0xff]
      %v3799 = vld [vmem:[%s3 + $0xf0] sm:$0xff]
      %v3800 = vld [vmem:[%s3 + $0xf8] sm:$0xff]
      %v3801 = vld [vmem:[%s3 + $0x100] sm:$0xff]
      %v3802 = vld [vmem:[%s3 + $0x108] sm:$0xff]
      %v3803 = vld [vmem:[%s3 + $0x110] sm:$0xff]
      %v3804 = vld [vmem:[%s3 + $0x118] sm:$0xff]
      %v3805 = vld [vmem:[%s3 + $0x120] sm:$0xff]
      %v3806 = vld [vmem:[%s3 + $0x128] sm:$0xff]
      %v3807 = vld [vmem:[%s3 + $0x130] sm:$0xff]
      %v3808 = vld [vmem:[%s3 + $0x138] sm:$0xff]
      %v3809 = vld [vmem:[%s3 + $0x140] sm:$0xff]
      %v3810 = vld [vmem:[%s3 + $0x148] sm:$0xff]
      %v3811 = vld [vmem:[%s3 + $0x150] sm:$0xff]
      %v3812 = vld [vmem:[%s3 + $0x158] sm:$0xff]
      %v3813 = vld [vmem:[%s3 + $0x160] sm:$0xff]
      %v3814 = vld [vmem:[%s3 + $0x168] sm:$0xff]
      %v3815 = vld [vmem:[%s3 + $0x170] sm:$0xff]
      %v3816 = vld [vmem:[%s3 + $0x178] sm:$0xff]
      %v3817 = vld [vmem:[%s3 + $0x180] sm:$0xff]
      %v3818 = vld [vmem:[%s3 + $0x188] sm:$0xff]
      %v3819 = vld [vmem:[%s3 + $0x190] sm:$0xff]
      %v3820 = vld [vmem:[%s3 + $0x198] sm:$0xff]
      %v3821 = vld [vmem:[%s3 + $0x1a0] sm:$0xff]
      %v3822 = vld [vmem:[%s3 + $0x1a8] sm:$0xff]
      %v3823 = vld [vmem:[%s3 + $0x1b0] sm:$0xff]
      %v3824 = vld [vmem:[%s3 + $0x1b8] sm:$0xff]
      %v3825 = vld [vmem:[%s3 + $0x1c0] sm:$0xff]
      %v3826 = vld [vmem:[%s3 + $0x1c8] sm:$0xff]
      %v3827 = vld [vmem:[%s3 + $0x1d0] sm:$0xff]
      %v3828 = vld [vmem:[%s3 + $0x1d8] sm:$0xff]
      %v3829 = vld [vmem:[%s3 + $0x1e0] sm:$0xff]
      %v3830 = vld [vmem:[%s3 + $0x1e8] sm:$0xff]
      %v3831 = vld [vmem:[%s3 + $0x1f0] sm:$0xff]
      %v3832 = vld [vmem:[%s3 + $0x1f8] sm:$0xff]
      %v3833 = vld [vmem:[%s3 + $0x200] sm:$0xff]
      %v3834 = vld [vmem:[%s3 + $0x208] sm:$0xff]
      %v3835 = vld [vmem:[%s3 + $0x210] sm:$0xff]
      %v3836 = vld [vmem:[%s3 + $0x218] sm:$0xff]
      %v3837 = vld [vmem:[%s3 + $0x220] sm:$0xff]
      %v3838 = vld [vmem:[%s3 + $0x228] sm:$0xff]
      %v3839 = vld [vmem:[%s3 + $0x230] sm:$0xff]
      %v3840 = vld [vmem:[%s3 + $0x238] sm:$0xff]
      %v3841 = vld [vmem:[%s3 + $0x240] sm:$0xff]
      %v3842 = vld [vmem:[%s3 + $0x248] sm:$0xff]
      %v3843 = vld [vmem:[%s3 + $0x250] sm:$0xff]
      %v3844 = vld [vmem:[%s3 + $0x258] sm:$0xff]
      %v3845 = vld [vmem:[%s3 + $0x260] sm:$0xff]
      %v3846 = vld [vmem:[%s3 + $0x268] sm:$0xff]
      %v3847 = vld [vmem:[%s3 + $0x270] sm:$0xff]
      %v3848 = vld [vmem:[%s3 + $0x278] sm:$0xff]
      %v3849 = vld [vmem:[%s3 + $0x280] sm:$0xff]
      %v3850 = vld [vmem:[%s3 + $0x288] sm:$0xff]
      %v3851 = vld [vmem:[%s3 + $0x290] sm:$0xff]
      %v3852 = vld [vmem:[%s3 + $0x298] sm:$0xff]
      %v3853 = vld [vmem:[%s3 + $0x2a0] sm:$0xff]
      %v3854 = vld [vmem:[%s3 + $0x2a8] sm:$0xff]
      %v3855 = vld [vmem:[%s3 + $0x2b0] sm:$0xff]
      %v3856 = vld [vmem:[%s3 + $0x2b8] sm:$0xff]
      %v3857 = vld [vmem:[%s3 + $0x2c0] sm:$0xff]
      %v3858 = vld [vmem:[%s3 + $0x2c8] sm:$0xff]
      %v3859 = vld [vmem:[%s3 + $0x2d0] sm:$0xff]
      %v3860 = vld [vmem:[%s3 + $0x2d8] sm:$0xff]
      %v3861 = vld [vmem:[%s3 + $0x2e0] sm:$0xff]
      %v3862 = vld [vmem:[%s3 + $0x2e8] sm:$0xff]
      %v3863 = vld [vmem:[%s3 + $0x2f0] sm:$0xff]
      %v3864 = vld [vmem:[%s3 + $0x2f8] sm:$0xff]
      %v3865 = vld [vmem:[%s3 + $0x300] sm:$0xff]
      %v3866 = vld [vmem:[%s3 + $0x308] sm:$0xff]
      %v3867 = vld [vmem:[%s3 + $0x310] sm:$0xff]
      %v3868 = vld [vmem:[%s3 + $0x318] sm:$0xff]
      %v3869 = vld [vmem:[%s3 + $0x320] sm:$0xff]
      %v3870 = vld [vmem:[%s3 + $0x328] sm:$0xff]
      %v3871 = vld [vmem:[%s3 + $0x330] sm:$0xff]
      %v3872 = vld [vmem:[%s3 + $0x338] sm:$0xff]
      %v3873 = vld [vmem:[%s3 + $0x340] sm:$0xff]
      %v3874 = vld [vmem:[%s3 + $0x348] sm:$0xff]
      %v3875 = vld [vmem:[%s3 + $0x350] sm:$0xff]
      %v3876 = vld [vmem:[%s3 + $0x358] sm:$0xff]
      %v3877 = vld [vmem:[%s3 + $0x360] sm:$0xff]
      %v3878 = vld [vmem:[%s3 + $0x368] sm:$0xff]
      %v3879 = vld [vmem:[%s3 + $0x370] sm:$0xff]
      %v3880 = vld [vmem:[%s3 + $0x378] sm:$0xff]
      %v3881 = vld [vmem:[%s3 + $0x380] sm:$0xff]
      %v3882 = vld [vmem:[%s3 + $0x388] sm:$0xff]
      %v3883 = vld [vmem:[%s3 + $0x390] sm:$0xff]
      %v3884 = vld [vmem:[%s3 + $0x398] sm:$0xff]
      %v3885 = vld [vmem:[%s3 + $0x3a0] sm:$0xff]
      %v3886 = vld [vmem:[%s3 + $0x3a8] sm:$0xff]
      %v3887 = vld [vmem:[%s3 + $0x3b0] sm:$0xff]
      %v3888 = vld [vmem:[%s3 + $0x3b8] sm:$0xff]
      %v3889 = vld [vmem:[%s3 + $0x3c0] sm:$0xff]
      %v3890 = vld [vmem:[%s3 + $0x3c8] sm:$0xff]
      %v3891 = vld [vmem:[%s3 + $0x3d0] sm:$0xff]
      %v3892 = vld [vmem:[%s3 + $0x3d8] sm:$0xff]
      %v3893 = vld [vmem:[%s3 + $0x3e0] sm:$0xff]
      %v3894 = vld [vmem:[%s3 + $0x3e8] sm:$0xff]
      %v3895 = vld [vmem:[%s3 + $0x3f0] sm:$0xff]
      %v3896 = vld [vmem:[%s3 + $0x3f8] sm:$0xff]
      %v3897 = vld [vmem:[%s3 + $0x400] sm:$0xff]
      %v3898 = vld [vmem:[%s3 + $0x408] sm:$0xff]
      %v3899 = vld [vmem:[%s3 + $0x410] sm:$0xff]
      %v3900 = vld [vmem:[%s3 + $0x418] sm:$0xff]
      %v3901 = vld [vmem:[%s3 + $0x420] sm:$0xff]
      %v3902 = vld [vmem:[%s3 + $0x428] sm:$0xff]
      %v3903 = vld [vmem:[%s3 + $0x430] sm:$0xff]
      %v3904 = vld [vmem:[%s3 + $0x438] sm:$0xff]
      %v3905 = vld [vmem:[%s3 + $0x440] sm:$0xff]
      %v3906 = vld [vmem:[%s3 + $0x448] sm:$0xff]
      %v3907 = vld [vmem:[%s3 + $0x450] sm:$0xff]
      %v3908 = vld [vmem:[%s3 + $0x458] sm:$0xff]
      %v3909 = vld [vmem:[%s3 + $0x460] sm:$0xff]
      %v3910 = vld [vmem:[%s3 + $0x468] sm:$0xff]
      %v3911 = vld [vmem:[%s3 + $0x470] sm:$0xff]
      %v3912 = vld [vmem:[%s3 + $0x478] sm:$0xff]
      %v3913 = vld [vmem:[%s3 + $0x480] sm:$0xff]
      %v3914 = vld [vmem:[%s3 + $0x488] sm:$0xff]
      %v3915 = vld [vmem:[%s3 + $0x490] sm:$0xff]
      %v3916 = vld [vmem:[%s3 + $0x498] sm:$0xff]
      %v3917 = vld [vmem:[%s3 + $0x4a0] sm:$0xff]
      %v3918 = vld [vmem:[%s3 + $0x4a8] sm:$0xff]
      %v3919 = vld [vmem:[%s3 + $0x4b0] sm:$0xff]
      %v3920 = vld [vmem:[%s3 + $0x4b8] sm:$0xff]
      %v3921 = vld [vmem:[%s3 + $0x4c0] sm:$0xff]
      %v3922 = vld [vmem:[%s3 + $0x4c8] sm:$0xff]
      %v3923 = vld [vmem:[%s3 + $0x4d0] sm:$0xff]
      %v3924 = vld [vmem:[%s3 + $0x4d8] sm:$0xff]
      %v3925 = vld [vmem:[%s3 + $0x4e0] sm:$0xff]
      %v3926 = vld [vmem:[%s3 + $0x4e8] sm:$0xff]
      %v3927 = vld [vmem:[%s3 + $0x4f0] sm:$0xff]
      %v3928 = vld [vmem:[%s3 + $0x4f8] sm:$0xff]
      %v3929 = vld [vmem:[%s3 + $0x500] sm:$0xff]
      %v3930 = vld [vmem:[%s3 + $0x508] sm:$0xff]
      %v3931 = vld [vmem:[%s3 + $0x510] sm:$0xff]
      %v3932 = vld [vmem:[%s3 + $0x518] sm:$0xff]
      %v3933 = vld [vmem:[%s3 + $0x520] sm:$0xff]
      %v3934 = vld [vmem:[%s3 + $0x528] sm:$0xff]
      %v3935 = vld [vmem:[%s3 + $0x530] sm:$0xff]
      %v3936 = vld [vmem:[%s3 + $0x538] sm:$0xff]
      %v3937 = vld [vmem:[%s3 + $0x540] sm:$0xff]
      %v3938 = vld [vmem:[%s3 + $0x548] sm:$0xff]
      %v3939 = vld [vmem:[%s3 + $0x550] sm:$0xff]
      %v3940 = vld [vmem:[%s3 + $0x558] sm:$0xff]
      %v3941 = vld [vmem:[%s3 + $0x560] sm:$0xff]
      %v3942 = vld [vmem:[%s3 + $0x568] sm:$0xff]
      %v3943 = vld [vmem:[%s3 + $0x570] sm:$0xff]
      %v3944 = vld [vmem:[%s3 + $0x578] sm:$0xff]
      %v3945 = vld [vmem:[%s3 + $0x580] sm:$0xff]
      %v3946 = vld [vmem:[%s3 + $0x588] sm:$0xff]
      %v3947 = vld [vmem:[%s3 + $0x590] sm:$0xff]
      %v3948 = vld [vmem:[%s3 + $0x598] sm:$0xff]
      %v3949 = vld [vmem:[%s3 + $0x5a0] sm:$0xff]
      %v3950 = vld [vmem:[%s3 + $0x5a8] sm:$0xff]
      %v3951 = vld [vmem:[%s3 + $0x5b0] sm:$0xff]
      %v3952 = vld [vmem:[%s3 + $0x5b8] sm:$0xff]
      %v3953 = vld [vmem:[%s3 + $0x5c0] sm:$0xff]
      %v3954 = vld [vmem:[%s3 + $0x5c8] sm:$0xff]
      %v3955 = vld [vmem:[%s3 + $0x5d0] sm:$0xff]
      %v3956 = vld [vmem:[%s3 + $0x5d8] sm:$0xff]
      %v3957 = vld [vmem:[%s3 + $0x5e0] sm:$0xff]
      %v3958 = vld [vmem:[%s3 + $0x5e8] sm:$0xff]
      %v3959 = vld [vmem:[%s3 + $0x5f0] sm:$0xff]
      %v3960 = vld [vmem:[%s3 + $0x5f8] sm:$0xff]
      %v3961 = vld [vmem:[%s3 + $0x600] sm:$0xff]
      %v3962 = vld [vmem:[%s3 + $0x608] sm:$0xff]
      %v3963 = vld [vmem:[%s3 + $0x610] sm:$0xff]
      %v3964 = vld [vmem:[%s3 + $0x618] sm:$0xff]
      %v3965 = vld [vmem:[%s3 + $0x620] sm:$0xff]
      %v3966 = vld [vmem:[%s3 + $0x628] sm:$0xff]
      %v3967 = vld [vmem:[%s3 + $0x630] sm:$0xff]
      %v3968 = vld [vmem:[%s3 + $0x638] sm:$0xff]
      %v3969 = vld [vmem:[%s3 + $0x640] sm:$0xff]
      %v3970 = vld [vmem:[%s3 + $0x648] sm:$0xff]
      %v3971 = vld [vmem:[%s3 + $0x650] sm:$0xff]
      %v3972 = vld [vmem:[%s3 + $0x658] sm:$0xff]
      %v3973 = vld [vmem:[%s3 + $0x660] sm:$0xff]
      %v3974 = vld [vmem:[%s3 + $0x668] sm:$0xff]
      %v3975 = vld [vmem:[%s3 + $0x670] sm:$0xff]
      %v3976 = vld [vmem:[%s3 + $0x678] sm:$0xff]
      %v3977 = vld [vmem:[%s3 + $0x680] sm:$0xff]
      %v3978 = vld [vmem:[%s3 + $0x688] sm:$0xff]
      %v3979 = vld [vmem:[%s3 + $0x690] sm:$0xff]
      %v3980 = vld [vmem:[%s3 + $0x698] sm:$0xff]
      %v3981 = vld [vmem:[%s3 + $0x6a0] sm:$0xff]
      %v3982 = vld [vmem:[%s3 + $0x6a8] sm:$0xff]
      %v3983 = vld [vmem:[%s3 + $0x6b0] sm:$0xff]
      %v3984 = vld [vmem:[%s3 + $0x6b8] sm:$0xff]
      %v3985 = vld [vmem:[%s3 + $0x6c0] sm:$0xff]
      %v3986 = vld [vmem:[%s3 + $0x6c8] sm:$0xff]
      %v3987 = vld [vmem:[%s3 + $0x6d0] sm:$0xff]
      %v3988 = vld [vmem:[%s3 + $0x6d8] sm:$0xff]
      %v3989 = vld [vmem:[%s3 + $0x6e0] sm:$0xff]
      %v3990 = vld [vmem:[%s3 + $0x6e8] sm:$0xff]
      %v3991 = vld [vmem:[%s3 + $0x6f0] sm:$0xff]
      %v3992 = vld [vmem:[%s3 + $0x6f8] sm:$0xff]
      %v3993 = vld [vmem:[%s3 + $0x700] sm:$0xff]
      %v3994 = vld [vmem:[%s3 + $0x708] sm:$0xff]
      %v3995 = vld [vmem:[%s3 + $0x710] sm:$0xff]
      %v3996 = vld [vmem:[%s3 + $0x718] sm:$0xff]
      %v3997 = vld [vmem:[%s3 + $0x720] sm:$0xff]
      %v3998 = vld [vmem:[%s3 + $0x728] sm:$0xff]
      %v3999 = vld [vmem:[%s3 + $0x730] sm:$0xff]
      %v4000 = vld [vmem:[%s3 + $0x738] sm:$0xff]
      %v4001 = vld [vmem:[%s3 + $0x740] sm:$0xff]
      %v4002 = vld [vmem:[%s3 + $0x748] sm:$0xff]
      %v4003 = vld [vmem:[%s3 + $0x750] sm:$0xff]
      %v4004 = vld [vmem:[%s3 + $0x758] sm:$0xff]
      %v4005 = vld [vmem:[%s3 + $0x760] sm:$0xff]
      %v4006 = vld [vmem:[%s3 + $0x768] sm:$0xff]
      %v4007 = vld [vmem:[%s3 + $0x770] sm:$0xff]
      %v4008 = vld [vmem:[%s3 + $0x778] sm:$0xff]
      %v4009 = vld [vmem:[%s3 + $0x780] sm:$0xff]
      %v4010 = vld [vmem:[%s3 + $0x788] sm:$0xff]
      %v4011 = vld [vmem:[%s3 + $0x790] sm:$0xff]
      %v4012 = vld [vmem:[%s3 + $0x798] sm:$0xff]
      %v4013 = vld [vmem:[%s3 + $0x7a0] sm:$0xff]
      %v4014 = vld [vmem:[%s3 + $0x7a8] sm:$0xff]
      %v4015 = vld [vmem:[%s3 + $0x7b0] sm:$0xff]
      %v4016 = vld [vmem:[%s3 + $0x7b8] sm:$0xff]
      %v4017 = vld [vmem:[%s3 + $0x7c0] sm:$0xff]
      %v4018 = vld [vmem:[%s3 + $0x7c8] sm:$0xff]
      %v4019 = vld [vmem:[%s3 + $0x7d0] sm:$0xff]
      %v4020 = vld [vmem:[%s3 + $0x7d8] sm:$0xff]
      %v4021 = vld [vmem:[%s3 + $0x7e0] sm:$0xff]
      %v4022 = vld [vmem:[%s3 + $0x7e8] sm:$0xff]
      %v4023 = vld [vmem:[%s3 + $0x7f0] sm:$0xff]
      %v4024 = vld [vmem:[%s3 + $0x7f8] sm:$0xff]
      %v4025 = vld [vmem:[%s3 + $0x800] sm:$0xff]
      %v4026 = vld [vmem:[%s3 + $0x808] sm:$0xff]
      %v4027 = vld [vmem:[%s3 + $0x810] sm:$0xff]
      %v4028 = vld [vmem:[%s3 + $0x818] sm:$0xff]
      %v4029 = vld [vmem:[%s3 + $0x820] sm:$0xff]
      %v4030 = vld [vmem:[%s3 + $0x828] sm:$0xff]
      %v4031 = vld [vmem:[%s3 + $0x830] sm:$0xff]
      %v4032 = vld [vmem:[%s3 + $0x838] sm:$0xff]
      %4034 = vset.pattern.permute.xlu0 0
      %4035 = vperm.xlu0 %4034, %v3242
      %v4036 = vpop.permute.xlu0 %4035
      %4039 = vset.pattern.permute.xlu0 0
      %4040 = vperm.xlu0 %4039, %v3244
      %v4041 = vpop.permute.xlu0 %4040
      %4044 = vset.pattern.permute.xlu0 0
      %4045 = vperm.xlu0 %4044, %v3246
      %v4046 = vpop.permute.xlu0 %4045
      %4049 = vset.pattern.permute.xlu0 0
      %4050 = vperm.xlu0 %4049, %v3248
      %v4051 = vpop.permute.xlu0 %4050
      %4054 = vset.pattern.permute.xlu0 0
      %4055 = vperm.xlu0 %4054, %v3250
      %v4056 = vpop.permute.xlu0 %4055
      %4059 = vset.pattern.permute.xlu0 0
      %4060 = vperm.xlu0 %4059, %v3252
      %v4061 = vpop.permute.xlu0 %4060
      %4064 = vset.pattern.permute.xlu0 0
      %4065 = vperm.xlu0 %4064, %v3254
      %v4066 = vpop.permute.xlu0 %4065
      %4069 = vset.pattern.permute.xlu0 0
      %4070 = vperm.xlu0 %4069, %v3256
      %v4071 = vpop.permute.xlu0 %4070
      %4074 = vset.pattern.permute.xlu0 0
      %4075 = vperm.xlu0 %4074, %v3258
      %v4076 = vpop.permute.xlu0 %4075
      %4079 = vset.pattern.permute.xlu0 0
      %4080 = vperm.xlu0 %4079, %v3260
      %v4081 = vpop.permute.xlu0 %4080
      %4084 = vset.pattern.permute.xlu0 0
      %4085 = vperm.xlu0 %4084, %v3262
      %v4086 = vpop.permute.xlu0 %4085
      %4089 = vset.pattern.permute.xlu0 0
      %4090 = vperm.xlu0 %4089, %v3264
      %v4091 = vpop.permute.xlu0 %4090
      %4094 = vset.pattern.permute.xlu0 0
      %4095 = vperm.xlu0 %4094, %v3266
      %v4096 = vpop.permute.xlu0 %4095
      %4099 = vset.pattern.permute.xlu0 0
      %4100 = vperm.xlu0 %4099, %v3268
      %v4101 = vpop.permute.xlu0 %4100
      %4104 = vset.pattern.permute.xlu0 0
      %4105 = vperm.xlu0 %4104, %v3270
      %v4106 = vpop.permute.xlu0 %4105
      %4109 = vset.pattern.permute.xlu0 0
      %4110 = vperm.xlu0 %4109, %v3272
      %v4111 = vpop.permute.xlu0 %4110
      %4114 = vset.pattern.permute.xlu0 0
      %4115 = vperm.xlu0 %4114, %v3274
      %v4116 = vpop.permute.xlu0 %4115
      %4119 = vset.pattern.permute.xlu0 0
      %4120 = vperm.xlu0 %4119, %v3276
      %v4121 = vpop.permute.xlu0 %4120
      %4124 = vset.pattern.permute.xlu0 0
      %4125 = vperm.xlu0 %4124, %v3278
      %v4126 = vpop.permute.xlu0 %4125
      %4129 = vset.pattern.permute.xlu0 0
      %4130 = vperm.xlu0 %4129, %v3280
      %v4131 = vpop.permute.xlu0 %4130
      %4134 = vset.pattern.permute.xlu0 0
      %4135 = vperm.xlu0 %4134, %v3282
      %v4136 = vpop.permute.xlu0 %4135
      %4139 = vset.pattern.permute.xlu0 0
      %4140 = vperm.xlu0 %4139, %v3284
      %v4141 = vpop.permute.xlu0 %4140
      %4144 = vset.pattern.permute.xlu0 0
      %4145 = vperm.xlu0 %4144, %v3286
      %v4146 = vpop.permute.xlu0 %4145
      %4149 = vset.pattern.permute.xlu0 0
      %4150 = vperm.xlu0 %4149, %v3288
      %v4151 = vpop.permute.xlu0 %4150
      %4154 = vset.pattern.permute.xlu0 0
      %4155 = vperm.xlu0 %4154, %v3290
      %v4156 = vpop.permute.xlu0 %4155
      %4159 = vset.pattern.permute.xlu0 0
      %4160 = vperm.xlu0 %4159, %v3292
      %v4161 = vpop.permute.xlu0 %4160
      %4164 = vset.pattern.permute.xlu0 0
      %4165 = vperm.xlu0 %4164, %v3294
      %v4166 = vpop.permute.xlu0 %4165
      %4169 = vset.pattern.permute.xlu0 0
      %4170 = vperm.xlu0 %4169, %v3296
      %v4171 = vpop.permute.xlu0 %4170
      %4174 = vset.pattern.permute.xlu0 0
      %4175 = vperm.xlu0 %4174, %v3298
      %v4176 = vpop.permute.xlu0 %4175
      %4179 = vset.pattern.permute.xlu0 0
      %4180 = vperm.xlu0 %4179, %v3300
      %v4181 = vpop.permute.xlu0 %4180
      %4184 = vset.pattern.permute.xlu0 0
      %4185 = vperm.xlu0 %4184, %v3302
      %v4186 = vpop.permute.xlu0 %4185
      %4189 = vset.pattern.permute.xlu0 0
      %4190 = vperm.xlu0 %4189, %v3304
      %v4191 = vpop.permute.xlu0 %4190
      %4194 = vset.pattern.permute.xlu0 0
      %4195 = vperm.xlu0 %4194, %v3306
      %v4196 = vpop.permute.xlu0 %4195
      %4199 = vset.pattern.permute.xlu0 0
      %4200 = vperm.xlu0 %4199, %v3308
      %v4201 = vpop.permute.xlu0 %4200
      %4204 = vset.pattern.permute.xlu0 0
      %4205 = vperm.xlu0 %4204, %v3310
      %v4206 = vpop.permute.xlu0 %4205
      %4209 = vset.pattern.permute.xlu0 0
      %4210 = vperm.xlu0 %4209, %v3312
      %v4211 = vpop.permute.xlu0 %4210
      %4214 = vset.pattern.permute.xlu0 0
      %4215 = vperm.xlu0 %4214, %v3314
      %v4216 = vpop.permute.xlu0 %4215
      %4219 = vset.pattern.permute.xlu0 0
      %4220 = vperm.xlu0 %4219, %v3316
      %v4221 = vpop.permute.xlu0 %4220
      %4224 = vset.pattern.permute.xlu0 0
      %4225 = vperm.xlu0 %4224, %v3318
      %v4226 = vpop.permute.xlu0 %4225
      %4229 = vset.pattern.permute.xlu0 0
      %4230 = vperm.xlu0 %4229, %v3320
      %v4231 = vpop.permute.xlu0 %4230
      %4234 = vset.pattern.permute.xlu0 0
      %4235 = vperm.xlu0 %4234, %v3322
      %v4236 = vpop.permute.xlu0 %4235
      %4239 = vset.pattern.permute.xlu0 0
      %4240 = vperm.xlu0 %4239, %v3324
      %v4241 = vpop.permute.xlu0 %4240
      %4244 = vset.pattern.permute.xlu0 0
      %4245 = vperm.xlu0 %4244, %v3326
      %v4246 = vpop.permute.xlu0 %4245
      %4249 = vset.pattern.permute.xlu0 0
      %4250 = vperm.xlu0 %4249, %v3328
      %v4251 = vpop.permute.xlu0 %4250
      %4254 = vset.pattern.permute.xlu0 0
      %4255 = vperm.xlu0 %4254, %v3330
      %v4256 = vpop.permute.xlu0 %4255
      %4259 = vset.pattern.permute.xlu0 0
      %4260 = vperm.xlu0 %4259, %v3332
      %v4261 = vpop.permute.xlu0 %4260
      %4264 = vset.pattern.permute.xlu0 0
      %4265 = vperm.xlu0 %4264, %v3334
      %v4266 = vpop.permute.xlu0 %4265
      %4269 = vset.pattern.permute.xlu0 0
      %4270 = vperm.xlu0 %4269, %v3336
      %v4271 = vpop.permute.xlu0 %4270
      %4274 = vset.pattern.permute.xlu0 0
      %4275 = vperm.xlu0 %4274, %v3338
      %v4276 = vpop.permute.xlu0 %4275
      %4279 = vset.pattern.permute.xlu0 0
      %4280 = vperm.xlu0 %4279, %v3340
      %v4281 = vpop.permute.xlu0 %4280
      %4284 = vset.pattern.permute.xlu0 0
      %4285 = vperm.xlu0 %4284, %v3342
      %v4286 = vpop.permute.xlu0 %4285
      %4289 = vset.pattern.permute.xlu0 0
      %4290 = vperm.xlu0 %4289, %v3344
      %v4291 = vpop.permute.xlu0 %4290
      %4294 = vset.pattern.permute.xlu0 0
      %4295 = vperm.xlu0 %4294, %v3346
      %v4296 = vpop.permute.xlu0 %4295
      %4299 = vset.pattern.permute.xlu0 0
      %4300 = vperm.xlu0 %4299, %v3348
      %v4301 = vpop.permute.xlu0 %4300
      %4304 = vset.pattern.permute.xlu0 0
      %4305 = vperm.xlu0 %4304, %v3350
      %v4306 = vpop.permute.xlu0 %4305
      %4309 = vset.pattern.permute.xlu0 0
      %4310 = vperm.xlu0 %4309, %v3352
      %v4311 = vpop.permute.xlu0 %4310
      %4314 = vset.pattern.permute.xlu0 0
      %4315 = vperm.xlu0 %4314, %v3354
      %v4316 = vpop.permute.xlu0 %4315
      %4319 = vset.pattern.permute.xlu0 0
      %4320 = vperm.xlu0 %4319, %v3356
      %v4321 = vpop.permute.xlu0 %4320
      %4324 = vset.pattern.permute.xlu0 0
      %4325 = vperm.xlu0 %4324, %v3358
      %v4326 = vpop.permute.xlu0 %4325
      %4329 = vset.pattern.permute.xlu0 0
      %4330 = vperm.xlu0 %4329, %v3360
      %v4331 = vpop.permute.xlu0 %4330
      %4334 = vset.pattern.permute.xlu0 0
      %4335 = vperm.xlu0 %4334, %v3362
      %v4336 = vpop.permute.xlu0 %4335
      %4339 = vset.pattern.permute.xlu0 0
      %4340 = vperm.xlu0 %4339, %v3364
      %v4341 = vpop.permute.xlu0 %4340
      %4344 = vset.pattern.permute.xlu0 0
      %4345 = vperm.xlu0 %4344, %v3366
      %v4346 = vpop.permute.xlu0 %4345
      %4349 = vset.pattern.permute.xlu0 0
      %4350 = vperm.xlu0 %4349, %v3368
      %v4351 = vpop.permute.xlu0 %4350
      %4354 = vset.pattern.permute.xlu0 0
      %4355 = vperm.xlu0 %4354, %v3370
      %v4356 = vpop.permute.xlu0 %4355
      %4359 = vset.pattern.permute.xlu0 0
      %4360 = vperm.xlu0 %4359, %v3372
      %v4361 = vpop.permute.xlu0 %4360
      %4364 = vset.pattern.permute.xlu0 0
      %4365 = vperm.xlu0 %4364, %v3374
      %v4366 = vpop.permute.xlu0 %4365
      %4369 = vset.pattern.permute.xlu0 0
      %4370 = vperm.xlu0 %4369, %v3376
      %v4371 = vpop.permute.xlu0 %4370
      %4374 = vset.pattern.permute.xlu0 0
      %4375 = vperm.xlu0 %4374, %v3378
      %v4376 = vpop.permute.xlu0 %4375
      %4379 = vset.pattern.permute.xlu0 0
      %4380 = vperm.xlu0 %4379, %v3380
      %v4381 = vpop.permute.xlu0 %4380
      %4384 = vset.pattern.permute.xlu0 0
      %4385 = vperm.xlu0 %4384, %v3382
      %v4386 = vpop.permute.xlu0 %4385
      %4389 = vset.pattern.permute.xlu0 0
      %4390 = vperm.xlu0 %4389, %v3384
      %v4391 = vpop.permute.xlu0 %4390
      %4394 = vset.pattern.permute.xlu0 0
      %4395 = vperm.xlu0 %4394, %v3386
      %v4396 = vpop.permute.xlu0 %4395
      %4399 = vset.pattern.permute.xlu0 0
      %4400 = vperm.xlu0 %4399, %v3388
      %v4401 = vpop.permute.xlu0 %4400
      %4404 = vset.pattern.permute.xlu0 0
      %4405 = vperm.xlu0 %4404, %v3390
      %v4406 = vpop.permute.xlu0 %4405
      %4409 = vset.pattern.permute.xlu0 0
      %4410 = vperm.xlu0 %4409, %v3392
      %v4411 = vpop.permute.xlu0 %4410
      %4414 = vset.pattern.permute.xlu0 0
      %4415 = vperm.xlu0 %4414, %v3394
      %v4416 = vpop.permute.xlu0 %4415
      %4419 = vset.pattern.permute.xlu0 0
      %4420 = vperm.xlu0 %4419, %v3396
      %v4421 = vpop.permute.xlu0 %4420
      %4424 = vset.pattern.permute.xlu0 0
      %4425 = vperm.xlu0 %4424, %v3398
      %v4426 = vpop.permute.xlu0 %4425
      %4429 = vset.pattern.permute.xlu0 0
      %4430 = vperm.xlu0 %4429, %v3400
      %v4431 = vpop.permute.xlu0 %4430
      %4434 = vset.pattern.permute.xlu0 0
      %4435 = vperm.xlu0 %4434, %v3402
      %v4436 = vpop.permute.xlu0 %4435
      %4439 = vset.pattern.permute.xlu0 0
      %4440 = vperm.xlu0 %4439, %v3404
      %v4441 = vpop.permute.xlu0 %4440
      %4444 = vset.pattern.permute.xlu0 0
      %4445 = vperm.xlu0 %4444, %v3406
      %v4446 = vpop.permute.xlu0 %4445
      %4449 = vset.pattern.permute.xlu0 0
      %4450 = vperm.xlu0 %4449, %v3408
      %v4451 = vpop.permute.xlu0 %4450
      %4454 = vset.pattern.permute.xlu0 0
      %4455 = vperm.xlu0 %4454, %v3410
      %v4456 = vpop.permute.xlu0 %4455
      %4459 = vset.pattern.permute.xlu0 0
      %4460 = vperm.xlu0 %4459, %v3412
      %v4461 = vpop.permute.xlu0 %4460
      %4464 = vset.pattern.permute.xlu0 0
      %4465 = vperm.xlu0 %4464, %v3414
      %v4466 = vpop.permute.xlu0 %4465
      %4469 = vset.pattern.permute.xlu0 0
      %4470 = vperm.xlu0 %4469, %v3416
      %v4471 = vpop.permute.xlu0 %4470
      %4474 = vset.pattern.permute.xlu0 0
      %4475 = vperm.xlu0 %4474, %v3418
      %v4476 = vpop.permute.xlu0 %4475
      %4479 = vset.pattern.permute.xlu0 0
      %4480 = vperm.xlu0 %4479, %v3420
      %v4481 = vpop.permute.xlu0 %4480
      %4484 = vset.pattern.permute.xlu0 0
      %4485 = vperm.xlu0 %4484, %v3422
      %v4486 = vpop.permute.xlu0 %4485
      %4489 = vset.pattern.permute.xlu0 0
      %4490 = vperm.xlu0 %4489, %v3424
      %v4491 = vpop.permute.xlu0 %4490
      %4494 = vset.pattern.permute.xlu0 0
      %4495 = vperm.xlu0 %4494, %v3426
      %v4496 = vpop.permute.xlu0 %4495
      %4499 = vset.pattern.permute.xlu0 0
      %4500 = vperm.xlu0 %4499, %v3428
      %v4501 = vpop.permute.xlu0 %4500
      %4504 = vset.pattern.permute.xlu0 0
      %4505 = vperm.xlu0 %4504, %v3430
      %v4506 = vpop.permute.xlu0 %4505
      %4509 = vset.pattern.permute.xlu0 0
      %4510 = vperm.xlu0 %4509, %v3432
      %v4511 = vpop.permute.xlu0 %4510
      %4514 = vset.pattern.permute.xlu0 0
      %4515 = vperm.xlu0 %4514, %v3434
      %v4516 = vpop.permute.xlu0 %4515
      %4519 = vset.pattern.permute.xlu0 0
      %4520 = vperm.xlu0 %4519, %v3436
      %v4521 = vpop.permute.xlu0 %4520
      %4524 = vset.pattern.permute.xlu0 0
      %4525 = vperm.xlu0 %4524, %v3438
      %v4526 = vpop.permute.xlu0 %4525
      %4529 = vset.pattern.permute.xlu0 0
      %4530 = vperm.xlu0 %4529, %v3440
      %v4531 = vpop.permute.xlu0 %4530
      %4534 = vset.pattern.permute.xlu0 0
      %4535 = vperm.xlu0 %4534, %v3442
      %v4536 = vpop.permute.xlu0 %4535
      %4539 = vset.pattern.permute.xlu0 0
      %4540 = vperm.xlu0 %4539, %v3444
      %v4541 = vpop.permute.xlu0 %4540
      %4544 = vset.pattern.permute.xlu0 0
      %4545 = vperm.xlu0 %4544, %v3446
      %v4546 = vpop.permute.xlu0 %4545
      %4549 = vset.pattern.permute.xlu0 0
      %4550 = vperm.xlu0 %4549, %v3448
      %v4551 = vpop.permute.xlu0 %4550
      %4554 = vset.pattern.permute.xlu0 0
      %4555 = vperm.xlu0 %4554, %v3450
      %v4556 = vpop.permute.xlu0 %4555
      %4559 = vset.pattern.permute.xlu0 0
      %4560 = vperm.xlu0 %4559, %v3452
      %v4561 = vpop.permute.xlu0 %4560
      %4564 = vset.pattern.permute.xlu0 0
      %4565 = vperm.xlu0 %4564, %v3454
      %v4566 = vpop.permute.xlu0 %4565
      %4569 = vset.pattern.permute.xlu0 0
      %4570 = vperm.xlu0 %4569, %v3456
      %v4571 = vpop.permute.xlu0 %4570
      %4574 = vset.pattern.permute.xlu0 0
      %4575 = vperm.xlu0 %4574, %v3458
      %v4576 = vpop.permute.xlu0 %4575
      %4579 = vset.pattern.permute.xlu0 0
      %4580 = vperm.xlu0 %4579, %v3460
      %v4581 = vpop.permute.xlu0 %4580
      %4584 = vset.pattern.permute.xlu0 0
      %4585 = vperm.xlu0 %4584, %v3462
      %v4586 = vpop.permute.xlu0 %4585
      %4589 = vset.pattern.permute.xlu0 0
      %4590 = vperm.xlu0 %4589, %v3464
      %v4591 = vpop.permute.xlu0 %4590
      %4594 = vset.pattern.permute.xlu0 0
      %4595 = vperm.xlu0 %4594, %v3466
      %v4596 = vpop.permute.xlu0 %4595
      %4599 = vset.pattern.permute.xlu0 0
      %4600 = vperm.xlu0 %4599, %v3468
      %v4601 = vpop.permute.xlu0 %4600
      %4604 = vset.pattern.permute.xlu0 0
      %4605 = vperm.xlu0 %4604, %v3470
      %v4606 = vpop.permute.xlu0 %4605
      %4609 = vset.pattern.permute.xlu0 0
      %4610 = vperm.xlu0 %4609, %v3472
      %v4611 = vpop.permute.xlu0 %4610
      %4614 = vset.pattern.permute.xlu0 0
      %4615 = vperm.xlu0 %4614, %v3474
      %v4616 = vpop.permute.xlu0 %4615
      %4619 = vset.pattern.permute.xlu0 0
      %4620 = vperm.xlu0 %4619, %v3476
      %v4621 = vpop.permute.xlu0 %4620
      %4624 = vset.pattern.permute.xlu0 0
      %4625 = vperm.xlu0 %4624, %v3478
      %v4626 = vpop.permute.xlu0 %4625
      %4629 = vset.pattern.permute.xlu0 0
      %4630 = vperm.xlu0 %4629, %v3480
      %v4631 = vpop.permute.xlu0 %4630
      %4634 = vset.pattern.permute.xlu0 0
      %4635 = vperm.xlu0 %4634, %v3482
      %v4636 = vpop.permute.xlu0 %4635
      %4639 = vset.pattern.permute.xlu0 0
      %4640 = vperm.xlu0 %4639, %v3484
      %v4641 = vpop.permute.xlu0 %4640
      %4644 = vset.pattern.permute.xlu0 0
      %4645 = vperm.xlu0 %4644, %v3486
      %v4646 = vpop.permute.xlu0 %4645
      %4649 = vset.pattern.permute.xlu0 0
      %4650 = vperm.xlu0 %4649, %v3488
      %v4651 = vpop.permute.xlu0 %4650
      %4654 = vset.pattern.permute.xlu0 0
      %4655 = vperm.xlu0 %4654, %v3490
      %v4656 = vpop.permute.xlu0 %4655
      %4659 = vset.pattern.permute.xlu0 0
      %4660 = vperm.xlu0 %4659, %v3492
      %v4661 = vpop.permute.xlu0 %4660
      %4664 = vset.pattern.permute.xlu0 0
      %4665 = vperm.xlu0 %4664, %v3494
      %v4666 = vpop.permute.xlu0 %4665
      %4669 = vset.pattern.permute.xlu0 0
      %4670 = vperm.xlu0 %4669, %v3496
      %v4671 = vpop.permute.xlu0 %4670
      %4674 = vset.pattern.permute.xlu0 0
      %4675 = vperm.xlu0 %4674, %v3498
      %v4676 = vpop.permute.xlu0 %4675
      %4679 = vset.pattern.permute.xlu0 0
      %4680 = vperm.xlu0 %4679, %v3500
      %v4681 = vpop.permute.xlu0 %4680
      %4684 = vset.pattern.permute.xlu0 0
      %4685 = vperm.xlu0 %4684, %v3502
      %v4686 = vpop.permute.xlu0 %4685
      %4689 = vset.pattern.permute.xlu0 0
      %4690 = vperm.xlu0 %4689, %v3504
      %v4691 = vpop.permute.xlu0 %4690
      %4694 = vset.pattern.permute.xlu0 0
      %4695 = vperm.xlu0 %4694, %v3506
      %v4696 = vpop.permute.xlu0 %4695
      %4699 = vset.pattern.permute.xlu0 0
      %4700 = vperm.xlu0 %4699, %v3508
      %v4701 = vpop.permute.xlu0 %4700
      %4704 = vset.pattern.permute.xlu0 0
      %4705 = vperm.xlu0 %4704, %v3510
      %v4706 = vpop.permute.xlu0 %4705
      %4709 = vset.pattern.permute.xlu0 0
      %4710 = vperm.xlu0 %4709, %v3512
      %v4711 = vpop.permute.xlu0 %4710
      %4714 = vset.pattern.permute.xlu0 0
      %4715 = vperm.xlu0 %4714, %v3514
      %v4716 = vpop.permute.xlu0 %4715
      %4719 = vset.pattern.permute.xlu0 0
      %4720 = vperm.xlu0 %4719, %v3516
      %v4721 = vpop.permute.xlu0 %4720
      %4724 = vset.pattern.permute.xlu0 0
      %4725 = vperm.xlu0 %4724, %v3518
      %v4726 = vpop.permute.xlu0 %4725
      %4729 = vset.pattern.permute.xlu0 0
      %4730 = vperm.xlu0 %4729, %v3520
      %v4731 = vpop.permute.xlu0 %4730
      %4734 = vset.pattern.permute.xlu0 0
      %4735 = vperm.xlu0 %4734, %v3522
      %v4736 = vpop.permute.xlu0 %4735
      %4739 = vset.pattern.permute.xlu0 0
      %4740 = vperm.xlu0 %4739, %v3524
      %v4741 = vpop.permute.xlu0 %4740
      %4744 = vset.pattern.permute.xlu0 0
      %4745 = vperm.xlu0 %4744, %v3526
      %v4746 = vpop.permute.xlu0 %4745
      %4749 = vset.pattern.permute.xlu0 0
      %4750 = vperm.xlu0 %4749, %v3528
      %v4751 = vpop.permute.xlu0 %4750
      %4754 = vset.pattern.permute.xlu0 0
      %4755 = vperm.xlu0 %4754, %v3530
      %v4756 = vpop.permute.xlu0 %4755
      %4759 = vset.pattern.permute.xlu0 0
      %4760 = vperm.xlu0 %4759, %v3532
      %v4761 = vpop.permute.xlu0 %4760
      %4764 = vset.pattern.permute.xlu0 0
      %4765 = vperm.xlu0 %4764, %v3534
      %v4766 = vpop.permute.xlu0 %4765
      %4769 = vset.pattern.permute.xlu0 0
      %4770 = vperm.xlu0 %4769, %v3536
      %v4771 = vpop.permute.xlu0 %4770
      %4774 = vset.pattern.permute.xlu0 0
      %4775 = vperm.xlu0 %4774, %v3538
      %v4776 = vpop.permute.xlu0 %4775
      %4779 = vset.pattern.permute.xlu0 0
      %4780 = vperm.xlu0 %4779, %v3540
      %v4781 = vpop.permute.xlu0 %4780
      %4784 = vset.pattern.permute.xlu0 0
      %4785 = vperm.xlu0 %4784, %v3542
      %v4786 = vpop.permute.xlu0 %4785
      %4789 = vset.pattern.permute.xlu0 0
      %4790 = vperm.xlu0 %4789, %v3544
      %v4791 = vpop.permute.xlu0 %4790
      %4794 = vset.pattern.permute.xlu0 0
      %4795 = vperm.xlu0 %4794, %v3546
      %v4796 = vpop.permute.xlu0 %4795
      %4799 = vset.pattern.permute.xlu0 0
      %4800 = vperm.xlu0 %4799, %v3548
      %v4801 = vpop.permute.xlu0 %4800
      %4804 = vset.pattern.permute.xlu0 0
      %4805 = vperm.xlu0 %4804, %v3550
      %v4806 = vpop.permute.xlu0 %4805
      %4809 = vset.pattern.permute.xlu0 0
      %4810 = vperm.xlu0 %4809, %v3552
      %v4811 = vpop.permute.xlu0 %4810
      %4814 = vset.pattern.permute.xlu0 0
      %4815 = vperm.xlu0 %4814, %v3554
      %v4816 = vpop.permute.xlu0 %4815
      %4819 = vset.pattern.permute.xlu0 0
      %4820 = vperm.xlu0 %4819, %v3556
      %v4821 = vpop.permute.xlu0 %4820
      %4824 = vset.pattern.permute.xlu0 0
      %4825 = vperm.xlu0 %4824, %v3558
      %v4826 = vpop.permute.xlu0 %4825
      %4829 = vset.pattern.permute.xlu0 0
      %4830 = vperm.xlu0 %4829, %v3560
      %v4831 = vpop.permute.xlu0 %4830
      %4834 = vset.pattern.permute.xlu0 0
      %4835 = vperm.xlu0 %4834, %v3562
      %v4836 = vpop.permute.xlu0 %4835
      %4839 = vset.pattern.permute.xlu0 0
      %4840 = vperm.xlu0 %4839, %v3564
      %v4841 = vpop.permute.xlu0 %4840
      %4844 = vset.pattern.permute.xlu0 0
      %4845 = vperm.xlu0 %4844, %v3566
      %v4846 = vpop.permute.xlu0 %4845
      %4849 = vset.pattern.permute.xlu0 0
      %4850 = vperm.xlu0 %4849, %v3568
      %v4851 = vpop.permute.xlu0 %4850
      %4854 = vset.pattern.permute.xlu0 0
      %4855 = vperm.xlu0 %4854, %v3570
      %v4856 = vpop.permute.xlu0 %4855
      %4859 = vset.pattern.permute.xlu0 0
      %4860 = vperm.xlu0 %4859, %v3572
      %v4861 = vpop.permute.xlu0 %4860
      %4864 = vset.pattern.permute.xlu0 0
      %4865 = vperm.xlu0 %4864, %v3574
      %v4866 = vpop.permute.xlu0 %4865
      %4869 = vset.pattern.permute.xlu0 0
      %4870 = vperm.xlu0 %4869, %v3576
      %v4871 = vpop.permute.xlu0 %4870
      %4874 = vset.pattern.permute.xlu0 0
      %4875 = vperm.xlu0 %4874, %v3578
      %v4876 = vpop.permute.xlu0 %4875
      %4879 = vset.pattern.permute.xlu0 0
      %4880 = vperm.xlu0 %4879, %v3580
      %v4881 = vpop.permute.xlu0 %4880
      %4884 = vset.pattern.permute.xlu0 0
      %4885 = vperm.xlu0 %4884, %v3582
      %v4886 = vpop.permute.xlu0 %4885
      %4889 = vset.pattern.permute.xlu0 0
      %4890 = vperm.xlu0 %4889, %v3584
      %v4891 = vpop.permute.xlu0 %4890
      %4894 = vset.pattern.permute.xlu0 0
      %4895 = vperm.xlu0 %4894, %v3586
      %v4896 = vpop.permute.xlu0 %4895
      %4899 = vset.pattern.permute.xlu0 0
      %4900 = vperm.xlu0 %4899, %v3588
      %v4901 = vpop.permute.xlu0 %4900
      %4904 = vset.pattern.permute.xlu0 0
      %4905 = vperm.xlu0 %4904, %v3590
      %v4906 = vpop.permute.xlu0 %4905
      %4909 = vset.pattern.permute.xlu0 0
      %4910 = vperm.xlu0 %4909, %v3592
      %v4911 = vpop.permute.xlu0 %4910
      %4914 = vset.pattern.permute.xlu0 0
      %4915 = vperm.xlu0 %4914, %v3594
      %v4916 = vpop.permute.xlu0 %4915
      %4919 = vset.pattern.permute.xlu0 0
      %4920 = vperm.xlu0 %4919, %v3596
      %v4921 = vpop.permute.xlu0 %4920
      %4924 = vset.pattern.permute.xlu0 0
      %4925 = vperm.xlu0 %4924, %v3598
      %v4926 = vpop.permute.xlu0 %4925
      %4929 = vset.pattern.permute.xlu0 0
      %4930 = vperm.xlu0 %4929, %v3600
      %v4931 = vpop.permute.xlu0 %4930
      %4934 = vset.pattern.permute.xlu0 0
      %4935 = vperm.xlu0 %4934, %v3602
      %v4936 = vpop.permute.xlu0 %4935
      %4939 = vset.pattern.permute.xlu0 0
      %4940 = vperm.xlu0 %4939, %v3604
      %v4941 = vpop.permute.xlu0 %4940
      %4944 = vset.pattern.permute.xlu0 0
      %4945 = vperm.xlu0 %4944, %v3606
      %v4946 = vpop.permute.xlu0 %4945
      %4949 = vset.pattern.permute.xlu0 0
      %4950 = vperm.xlu0 %4949, %v3608
      %v4951 = vpop.permute.xlu0 %4950
      %4954 = vset.pattern.permute.xlu0 0
      %4955 = vperm.xlu0 %4954, %v3610
      %v4956 = vpop.permute.xlu0 %4955
      %4959 = vset.pattern.permute.xlu0 0
      %4960 = vperm.xlu0 %4959, %v3612
      %v4961 = vpop.permute.xlu0 %4960
      %4964 = vset.pattern.permute.xlu0 0
      %4965 = vperm.xlu0 %4964, %v3614
      %v4966 = vpop.permute.xlu0 %4965
      %4969 = vset.pattern.permute.xlu0 0
      %4970 = vperm.xlu0 %4969, %v3616
      %v4971 = vpop.permute.xlu0 %4970
      %4974 = vset.pattern.permute.xlu0 0
      %4975 = vperm.xlu0 %4974, %v3618
      %v4976 = vpop.permute.xlu0 %4975
      %4979 = vset.pattern.permute.xlu0 0
      %4980 = vperm.xlu0 %4979, %v3620
      %v4981 = vpop.permute.xlu0 %4980
      %4984 = vset.pattern.permute.xlu0 0
      %4985 = vperm.xlu0 %4984, %v3622
      %v4986 = vpop.permute.xlu0 %4985
      %4989 = vset.pattern.permute.xlu0 0
      %4990 = vperm.xlu0 %4989, %v3624
      %v4991 = vpop.permute.xlu0 %4990
      %4994 = vset.pattern.permute.xlu0 0
      %4995 = vperm.xlu0 %4994, %v3626
      %v4996 = vpop.permute.xlu0 %4995
      %4999 = vset.pattern.permute.xlu0 0
      %5000 = vperm.xlu0 %4999, %v3628
      %v5001 = vpop.permute.xlu0 %5000
      %5004 = vset.pattern.permute.xlu0 0
      %5005 = vperm.xlu0 %5004, %v3630
      %v5006 = vpop.permute.xlu0 %5005
      %5009 = vset.pattern.permute.xlu0 0
      %5010 = vperm.xlu0 %5009, %v3632
      %v5011 = vpop.permute.xlu0 %5010
      %5014 = vset.pattern.permute.xlu0 0
      %5015 = vperm.xlu0 %5014, %v3634
      %v5016 = vpop.permute.xlu0 %5015
      %5019 = vset.pattern.permute.xlu0 0
      %5020 = vperm.xlu0 %5019, %v3636
      %v5021 = vpop.permute.xlu0 %5020
      %5024 = vset.pattern.permute.xlu0 0
      %5025 = vperm.xlu0 %5024, %v3638
      %v5026 = vpop.permute.xlu0 %5025
      %5029 = vset.pattern.permute.xlu0 0
      %5030 = vperm.xlu0 %5029, %v3640
      %v5031 = vpop.permute.xlu0 %5030
      %5034 = vset.pattern.permute.xlu0 0
      %5035 = vperm.xlu0 %5034, %v3642
      %v5036 = vpop.permute.xlu0 %5035
      %5039 = vset.pattern.permute.xlu0 0
      %5040 = vperm.xlu0 %5039, %v3644
      %v5041 = vpop.permute.xlu0 %5040
      %5044 = vset.pattern.permute.xlu0 0
      %5045 = vperm.xlu0 %5044, %v3646
      %v5046 = vpop.permute.xlu0 %5045
      %5049 = vset.pattern.permute.xlu0 0
      %5050 = vperm.xlu0 %5049, %v3648
      %v5051 = vpop.permute.xlu0 %5050
      %5054 = vset.pattern.permute.xlu0 0
      %5055 = vperm.xlu0 %5054, %v3650
      %v5056 = vpop.permute.xlu0 %5055
      %5059 = vset.pattern.permute.xlu0 0
      %5060 = vperm.xlu0 %5059, %v3652
      %v5061 = vpop.permute.xlu0 %5060
      %5064 = vset.pattern.permute.xlu0 0
      %5065 = vperm.xlu0 %5064, %v3654
      %v5066 = vpop.permute.xlu0 %5065
      %5069 = vset.pattern.permute.xlu0 0
      %5070 = vperm.xlu0 %5069, %v3656
      %v5071 = vpop.permute.xlu0 %5070
      %5074 = vset.pattern.permute.xlu0 0
      %5075 = vperm.xlu0 %5074, %v3658
      %v5076 = vpop.permute.xlu0 %5075
      %5079 = vset.pattern.permute.xlu0 0
      %5080 = vperm.xlu0 %5079, %v3660
      %v5081 = vpop.permute.xlu0 %5080
      %5084 = vset.pattern.permute.xlu0 0
      %5085 = vperm.xlu0 %5084, %v3662
      %v5086 = vpop.permute.xlu0 %5085
      %5089 = vset.pattern.permute.xlu0 0
      %5090 = vperm.xlu0 %5089, %v3664
      %v5091 = vpop.permute.xlu0 %5090
      %5094 = vset.pattern.permute.xlu0 0
      %5095 = vperm.xlu0 %5094, %v3666
      %v5096 = vpop.permute.xlu0 %5095
      %5099 = vset.pattern.permute.xlu0 0
      %5100 = vperm.xlu0 %5099, %v3668
      %v5101 = vpop.permute.xlu0 %5100
      %5104 = vset.pattern.permute.xlu0 0
      %5105 = vperm.xlu0 %5104, %v3670
      %v5106 = vpop.permute.xlu0 %5105
      %5109 = vset.pattern.permute.xlu0 0
      %5110 = vperm.xlu0 %5109, %v3672
      %v5111 = vpop.permute.xlu0 %5110
      %5114 = vset.pattern.permute.xlu0 0
      %5115 = vperm.xlu0 %5114, %v3674
      %v5116 = vpop.permute.xlu0 %5115
      %5119 = vset.pattern.permute.xlu0 0
      %5120 = vperm.xlu0 %5119, %v3676
      %v5121 = vpop.permute.xlu0 %5120
      %5124 = vset.pattern.permute.xlu0 0
      %5125 = vperm.xlu0 %5124, %v3678
      %v5126 = vpop.permute.xlu0 %5125
      %5129 = vset.pattern.permute.xlu0 0
      %5130 = vperm.xlu0 %5129, %v3680
      %v5131 = vpop.permute.xlu0 %5130
      %5134 = vset.pattern.permute.xlu0 0
      %5135 = vperm.xlu0 %5134, %v3682
      %v5136 = vpop.permute.xlu0 %5135
      %5139 = vset.pattern.permute.xlu0 0
      %5140 = vperm.xlu0 %5139, %v3684
      %v5141 = vpop.permute.xlu0 %5140
      %5144 = vset.pattern.permute.xlu0 0
      %5145 = vperm.xlu0 %5144, %v3686
      %v5146 = vpop.permute.xlu0 %5145
      %5149 = vset.pattern.permute.xlu0 0
      %5150 = vperm.xlu0 %5149, %v3688
      %v5151 = vpop.permute.xlu0 %5150
      %5154 = vset.pattern.permute.xlu0 0
      %5155 = vperm.xlu0 %5154, %v3690
      %v5156 = vpop.permute.xlu0 %5155
      %5159 = vset.pattern.permute.xlu0 0
      %5160 = vperm.xlu0 %5159, %v3692
      %v5161 = vpop.permute.xlu0 %5160
      %5164 = vset.pattern.permute.xlu0 0
      %5165 = vperm.xlu0 %5164, %v3694
      %v5166 = vpop.permute.xlu0 %5165
      %5169 = vset.pattern.permute.xlu0 0
      %5170 = vperm.xlu0 %5169, %v3696
      %v5171 = vpop.permute.xlu0 %5170
      %5174 = vset.pattern.permute.xlu0 0
      %5175 = vperm.xlu0 %5174, %v3698
      %v5176 = vpop.permute.xlu0 %5175
      %5179 = vset.pattern.permute.xlu0 0
      %5180 = vperm.xlu0 %5179, %v3700
      %v5181 = vpop.permute.xlu0 %5180
      %5184 = vset.pattern.permute.xlu0 0
      %5185 = vperm.xlu0 %5184, %v3702
      %v5186 = vpop.permute.xlu0 %5185
      %5189 = vset.pattern.permute.xlu0 0
      %5190 = vperm.xlu0 %5189, %v3704
      %v5191 = vpop.permute.xlu0 %5190
      %5194 = vset.pattern.permute.xlu0 0
      %5195 = vperm.xlu0 %5194, %v3706
      %v5196 = vpop.permute.xlu0 %5195
      %5199 = vset.pattern.permute.xlu0 0
      %5200 = vperm.xlu0 %5199, %v3708
      %v5201 = vpop.permute.xlu0 %5200
      %5204 = vset.pattern.permute.xlu0 0
      %5205 = vperm.xlu0 %5204, %v3710
      %v5206 = vpop.permute.xlu0 %5205
      %5209 = vset.pattern.permute.xlu0 0
      %5210 = vperm.xlu0 %5209, %v3712
      %v5211 = vpop.permute.xlu0 %5210
      %5214 = vset.pattern.permute.xlu0 0
      %5215 = vperm.xlu0 %5214, %v3714
      %v5216 = vpop.permute.xlu0 %5215
      %5219 = vset.pattern.permute.xlu0 0
      %5220 = vperm.xlu0 %5219, %v3716
      %v5221 = vpop.permute.xlu0 %5220
      %5224 = vset.pattern.permute.xlu0 0
      %5225 = vperm.xlu0 %5224, %v3718
      %v5226 = vpop.permute.xlu0 %5225
      %5229 = vset.pattern.permute.xlu0 0
      %5230 = vperm.xlu0 %5229, %v3720
      %v5231 = vpop.permute.xlu0 %5230
      %5234 = vset.pattern.permute.xlu0 0
      %5235 = vperm.xlu0 %5234, %v3722
      %v5236 = vpop.permute.xlu0 %5235
      %5239 = vset.pattern.permute.xlu0 0
      %5240 = vperm.xlu0 %5239, %v3724
      %v5241 = vpop.permute.xlu0 %5240
      %5244 = vset.pattern.permute.xlu0 0
      %5245 = vperm.xlu0 %5244, %v3726
      %v5246 = vpop.permute.xlu0 %5245
      %5249 = vset.pattern.permute.xlu0 0
      %5250 = vperm.xlu0 %5249, %v3728
      %v5251 = vpop.permute.xlu0 %5250
      %5254 = vset.pattern.permute.xlu0 0
      %5255 = vperm.xlu0 %5254, %v3730
      %v5256 = vpop.permute.xlu0 %5255
      %5259 = vset.pattern.permute.xlu0 0
      %5260 = vperm.xlu0 %5259, %v3732
      %v5261 = vpop.permute.xlu0 %5260
      %5264 = vset.pattern.permute.xlu0 0
      %5265 = vperm.xlu0 %5264, %v3734
      %v5266 = vpop.permute.xlu0 %5265
      %5269 = vset.pattern.permute.xlu0 0
      %5270 = vperm.xlu0 %5269, %v3736
      %v5271 = vpop.permute.xlu0 %5270
      %5274 = vset.pattern.permute.xlu0 0
      %5275 = vperm.xlu0 %5274, %v3738
      %v5276 = vpop.permute.xlu0 %5275
      %5279 = vset.pattern.permute.xlu0 0
      %5280 = vperm.xlu0 %5279, %v3740
      %v5281 = vpop.permute.xlu0 %5280
      %5284 = vset.pattern.permute.xlu0 0
      %5285 = vperm.xlu0 %5284, %v3742
      %v5286 = vpop.permute.xlu0 %5285
      %5289 = vset.pattern.permute.xlu0 0
      %5290 = vperm.xlu0 %5289, %v3744
      %v5291 = vpop.permute.xlu0 %5290
      %5294 = vset.pattern.permute.xlu0 0
      %5295 = vperm.xlu0 %5294, %v3746
      %v5296 = vpop.permute.xlu0 %5295
      %5299 = vset.pattern.permute.xlu0 0
      %5300 = vperm.xlu0 %5299, %v3748
      %v5301 = vpop.permute.xlu0 %5300
      %5304 = vset.pattern.permute.xlu0 0
      %5305 = vperm.xlu0 %5304, %v3750
      %v5306 = vpop.permute.xlu0 %5305
      %5309 = vset.pattern.permute.xlu0 0
      %5310 = vperm.xlu0 %5309, %v3752
      %v5311 = vpop.permute.xlu0 %5310
      %5314 = vset.pattern.permute.xlu0 0
      %5315 = vperm.xlu0 %5314, %v3754
      %v5316 = vpop.permute.xlu0 %5315
      %5319 = vset.pattern.permute.xlu0 0
      %5320 = vperm.xlu0 %5319, %v3756
      %v5321 = vpop.permute.xlu0 %5320
      %5324 = vset.pattern.permute.xlu0 0
      %5325 = vperm.xlu0 %5324, %v3758
      %v5326 = vpop.permute.xlu0 %5325
      %5329 = vset.pattern.permute.xlu0 0
      %5330 = vperm.xlu0 %5329, %v3760
      %v5331 = vpop.permute.xlu0 %5330
      %5334 = vset.pattern.permute.xlu0 0
      %5335 = vperm.xlu0 %5334, %v3762
      %v5336 = vpop.permute.xlu0 %5335
      %5339 = vset.pattern.permute.xlu0 0
      %5340 = vperm.xlu0 %5339, %v3764
      %v5341 = vpop.permute.xlu0 %5340
      %5344 = vset.pattern.permute.xlu0 0
      %5345 = vperm.xlu0 %5344, %v3766
      %v5346 = vpop.permute.xlu0 %5345
      %5349 = vset.pattern.permute.xlu0 0
      %5350 = vperm.xlu0 %5349, %v3768
      %v5351 = vpop.permute.xlu0 %5350
      %v5353 = vmul.f32 %v3769, %v4036
      %v5354 = vmul.f32 %v3770, %v4041
      %v5355 = vmul.f32 %v3771, %v4046
      %v5356 = vmul.f32 %v3772, %v4051
      %v5357 = vmul.f32 %v3773, %v4056
      %v5358 = vmul.f32 %v3774, %v4061
      %v5359 = vmul.f32 %v3775, %v4066
      %v5360 = vmul.f32 %v3776, %v4071
      %v5361 = vmul.f32 %v3777, %v4076
      %v5362 = vmul.f32 %v3778, %v4081
      %v5363 = vmul.f32 %v3779, %v4086
      %v5364 = vmul.f32 %v3780, %v4091
      %v5365 = vmul.f32 %v3781, %v4096
      %v5366 = vmul.f32 %v3782, %v4101
      %v5367 = vmul.f32 %v3783, %v4106
      %v5368 = vmul.f32 %v3784, %v4111
      %v5369 = vmul.f32 %v3785, %v4116
      %v5370 = vmul.f32 %v3786, %v4121
      %v5371 = vmul.f32 %v3787, %v4126
      %v5372 = vmul.f32 %v3788, %v4131
      %v5373 = vmul.f32 %v3789, %v4136
      %v5374 = vmul.f32 %v3790, %v4141
      %v5375 = vmul.f32 %v3791, %v4146
      %v5376 = vmul.f32 %v3792, %v4151
      %v5377 = vmul.f32 %v3793, %v4156
      %v5378 = vmul.f32 %v3794, %v4161
      %v5379 = vmul.f32 %v3795, %v4166
      %v5380 = vmul.f32 %v3796, %v4171
      %v5381 = vmul.f32 %v3797, %v4176
      %v5382 = vmul.f32 %v3798, %v4181
      %v5383 = vmul.f32 %v3799, %v4186
      %v5384 = vmul.f32 %v3800, %v4191
      %v5385 = vmul.f32 %v3801, %v4196
      %v5386 = vmul.f32 %v3802, %v4201
      %v5387 = vmul.f32 %v3803, %v4206
      %v5388 = vmul.f32 %v3804, %v4211
      %v5389 = vmul.f32 %v3805, %v4216
      %v5390 = vmul.f32 %v3806, %v4221
      %v5391 = vmul.f32 %v3807, %v4226
      %v5392 = vmul.f32 %v3808, %v4231
      %v5393 = vmul.f32 %v3809, %v4236
      %v5394 = vmul.f32 %v3810, %v4241
      %v5395 = vmul.f32 %v3811, %v4246
      %v5396 = vmul.f32 %v3812, %v4251
      %v5397 = vmul.f32 %v3813, %v4256
      %v5398 = vmul.f32 %v3814, %v4261
      %v5399 = vmul.f32 %v3815, %v4266
      %v5400 = vmul.f32 %v3816, %v4271
      %v5401 = vmul.f32 %v3817, %v4276
      %v5402 = vmul.f32 %v3818, %v4281
      %v5403 = vmul.f32 %v3819, %v4286
      %v5404 = vmul.f32 %v3820, %v4291
      %v5405 = vmul.f32 %v3821, %v4296
      %v5406 = vmul.f32 %v3822, %v4301
      %v5407 = vmul.f32 %v3823, %v4306
      %v5408 = vmul.f32 %v3824, %v4311
      %v5409 = vmul.f32 %v3825, %v4316
      %v5410 = vmul.f32 %v3826, %v4321
      %v5411 = vmul.f32 %v3827, %v4326
      %v5412 = vmul.f32 %v3828, %v4331
      %v5413 = vmul.f32 %v3829, %v4336
      %v5414 = vmul.f32 %v3830, %v4341
      %v5415 = vmul.f32 %v3831, %v4346
      %v5416 = vmul.f32 %v3832, %v4351
      %v5417 = vmul.f32 %v3833, %v4356
      %v5418 = vmul.f32 %v3834, %v4361
      %v5419 = vmul.f32 %v3835, %v4366
      %v5420 = vmul.f32 %v3836, %v4371
      %v5421 = vmul.f32 %v3837, %v4376
      %v5422 = vmul.f32 %v3838, %v4381
      %v5423 = vmul.f32 %v3839, %v4386
      %v5424 = vmul.f32 %v3840, %v4391
      %v5425 = vmul.f32 %v3841, %v4396
      %v5426 = vmul.f32 %v3842, %v4401
      %v5427 = vmul.f32 %v3843, %v4406
      %v5428 = vmul.f32 %v3844, %v4411
      %v5429 = vmul.f32 %v3845, %v4416
      %v5430 = vmul.f32 %v3846, %v4421
      %v5431 = vmul.f32 %v3847, %v4426
      %v5432 = vmul.f32 %v3848, %v4431
      %v5433 = vmul.f32 %v3849, %v4436
      %v5434 = vmul.f32 %v3850, %v4441
      %v5435 = vmul.f32 %v3851, %v4446
      %v5436 = vmul.f32 %v3852, %v4451
      %v5437 = vmul.f32 %v3853, %v4456
      %v5438 = vmul.f32 %v3854, %v4461
      %v5439 = vmul.f32 %v3855, %v4466
      %v5440 = vmul.f32 %v3856, %v4471
      %v5441 = vmul.f32 %v3857, %v4476
      %v5442 = vmul.f32 %v3858, %v4481
      %v5443 = vmul.f32 %v3859, %v4486
      %v5444 = vmul.f32 %v3860, %v4491
      %v5445 = vmul.f32 %v3861, %v4496
      %v5446 = vmul.f32 %v3862, %v4501
      %v5447 = vmul.f32 %v3863, %v4506
      %v5448 = vmul.f32 %v3864, %v4511
      %v5449 = vmul.f32 %v3865, %v4516
      %v5450 = vmul.f32 %v3866, %v4521
      %v5451 = vmul.f32 %v3867, %v4526
      %v5452 = vmul.f32 %v3868, %v4531
      %v5453 = vmul.f32 %v3869, %v4536
      %v5454 = vmul.f32 %v3870, %v4541
      %v5455 = vmul.f32 %v3871, %v4546
      %v5456 = vmul.f32 %v3872, %v4551
      %v5457 = vmul.f32 %v3873, %v4556
      %v5458 = vmul.f32 %v3874, %v4561
      %v5459 = vmul.f32 %v3875, %v4566
      %v5460 = vmul.f32 %v3876, %v4571
      %v5461 = vmul.f32 %v3877, %v4576
      %v5462 = vmul.f32 %v3878, %v4581
      %v5463 = vmul.f32 %v3879, %v4586
      %v5464 = vmul.f32 %v3880, %v4591
      %v5465 = vmul.f32 %v3881, %v4596
      %v5466 = vmul.f32 %v3882, %v4601
      %v5467 = vmul.f32 %v3883, %v4606
      %v5468 = vmul.f32 %v3884, %v4611
      %v5469 = vmul.f32 %v3885, %v4616
      %v5470 = vmul.f32 %v3886, %v4621
      %v5471 = vmul.f32 %v3887, %v4626
      %v5472 = vmul.f32 %v3888, %v4631
      %v5473 = vmul.f32 %v3889, %v4636
      %v5474 = vmul.f32 %v3890, %v4641
      %v5475 = vmul.f32 %v3891, %v4646
      %v5476 = vmul.f32 %v3892, %v4651
      %v5477 = vmul.f32 %v3893, %v4656
      %v5478 = vmul.f32 %v3894, %v4661
      %v5479 = vmul.f32 %v3895, %v4666
      %v5480 = vmul.f32 %v3896, %v4671
      %v5481 = vmul.f32 %v3897, %v4676
      %v5482 = vmul.f32 %v3898, %v4681
      %v5483 = vmul.f32 %v3899, %v4686
      %v5484 = vmul.f32 %v3900, %v4691
      %v5485 = vmul.f32 %v3901, %v4696
      %v5486 = vmul.f32 %v3902, %v4701
      %v5487 = vmul.f32 %v3903, %v4706
      %v5488 = vmul.f32 %v3904, %v4711
      %v5489 = vmul.f32 %v3905, %v4716
      %v5490 = vmul.f32 %v3906, %v4721
      %v5491 = vmul.f32 %v3907, %v4726
      %v5492 = vmul.f32 %v3908, %v4731
      %v5493 = vmul.f32 %v3909, %v4736
      %v5494 = vmul.f32 %v3910, %v4741
      %v5495 = vmul.f32 %v3911, %v4746
      %v5496 = vmul.f32 %v3912, %v4751
      %v5497 = vmul.f32 %v3913, %v4756
      %v5498 = vmul.f32 %v3914, %v4761
      %v5499 = vmul.f32 %v3915, %v4766
      %v5500 = vmul.f32 %v3916, %v4771
      %v5501 = vmul.f32 %v3917, %v4776
      %v5502 = vmul.f32 %v3918, %v4781
      %v5503 = vmul.f32 %v3919, %v4786
      %v5504 = vmul.f32 %v3920, %v4791
      %v5505 = vmul.f32 %v3921, %v4796
      %v5506 = vmul.f32 %v3922, %v4801
      %v5507 = vmul.f32 %v3923, %v4806
      %v5508 = vmul.f32 %v3924, %v4811
      %v5509 = vmul.f32 %v3925, %v4816
      %v5510 = vmul.f32 %v3926, %v4821
      %v5511 = vmul.f32 %v3927, %v4826
      %v5512 = vmul.f32 %v3928, %v4831
      %v5513 = vmul.f32 %v3929, %v4836
      %v5514 = vmul.f32 %v3930, %v4841
      %v5515 = vmul.f32 %v3931, %v4846
      %v5516 = vmul.f32 %v3932, %v4851
      %v5517 = vmul.f32 %v3933, %v4856
      %v5518 = vmul.f32 %v3934, %v4861
      %v5519 = vmul.f32 %v3935, %v4866
      %v5520 = vmul.f32 %v3936, %v4871
      %v5521 = vmul.f32 %v3937, %v4876
      %v5522 = vmul.f32 %v3938, %v4881
      %v5523 = vmul.f32 %v3939, %v4886
      %v5524 = vmul.f32 %v3940, %v4891
      %v5525 = vmul.f32 %v3941, %v4896
      %v5526 = vmul.f32 %v3942, %v4901
      %v5527 = vmul.f32 %v3943, %v4906
      %v5528 = vmul.f32 %v3944, %v4911
      %v5529 = vmul.f32 %v3945, %v4916
      %v5530 = vmul.f32 %v3946, %v4921
      %v5531 = vmul.f32 %v3947, %v4926
      %v5532 = vmul.f32 %v3948, %v4931
      %v5533 = vmul.f32 %v3949, %v4936
      %v5534 = vmul.f32 %v3950, %v4941
      %v5535 = vmul.f32 %v3951, %v4946
      %v5536 = vmul.f32 %v3952, %v4951
      %v5537 = vmul.f32 %v3953, %v4956
      %v5538 = vmul.f32 %v3954, %v4961
      %v5539 = vmul.f32 %v3955, %v4966
      %v5540 = vmul.f32 %v3956, %v4971
      %v5541 = vmul.f32 %v3957, %v4976
      %v5542 = vmul.f32 %v3958, %v4981
      %v5543 = vmul.f32 %v3959, %v4986
      %v5544 = vmul.f32 %v3960, %v4991
      %v5545 = vmul.f32 %v3961, %v4996
      %v5546 = vmul.f32 %v3962, %v5001
      %v5547 = vmul.f32 %v3963, %v5006
      %v5548 = vmul.f32 %v3964, %v5011
      %v5549 = vmul.f32 %v3965, %v5016
      %v5550 = vmul.f32 %v3966, %v5021
      %v5551 = vmul.f32 %v3967, %v5026
      %v5552 = vmul.f32 %v3968, %v5031
      %v5553 = vmul.f32 %v3969, %v5036
      %v5554 = vmul.f32 %v3970, %v5041
      %v5555 = vmul.f32 %v3971, %v5046
      %v5556 = vmul.f32 %v3972, %v5051
      %v5557 = vmul.f32 %v3973, %v5056
      %v5558 = vmul.f32 %v3974, %v5061
      %v5559 = vmul.f32 %v3975, %v5066
      %v5560 = vmul.f32 %v3976, %v5071
      %v5561 = vmul.f32 %v3977, %v5076
      %v5562 = vmul.f32 %v3978, %v5081
      %v5563 = vmul.f32 %v3979, %v5086
      %v5564 = vmul.f32 %v3980, %v5091
      %v5565 = vmul.f32 %v3981, %v5096
      %v5566 = vmul.f32 %v3982, %v5101
      %v5567 = vmul.f32 %v3983, %v5106
      %v5568 = vmul.f32 %v3984, %v5111
      %v5569 = vmul.f32 %v3985, %v5116
      %v5570 = vmul.f32 %v3986, %v5121
      %v5571 = vmul.f32 %v3987, %v5126
      %v5572 = vmul.f32 %v3988, %v5131
      %v5573 = vmul.f32 %v3989, %v5136
      %v5574 = vmul.f32 %v3990, %v5141
      %v5575 = vmul.f32 %v3991, %v5146
      %v5576 = vmul.f32 %v3992, %v5151
      %v5577 = vmul.f32 %v3993, %v5156
      %v5578 = vmul.f32 %v3994, %v5161
      %v5579 = vmul.f32 %v3995, %v5166
      %v5580 = vmul.f32 %v3996, %v5171
      %v5581 = vmul.f32 %v3997, %v5176
      %v5582 = vmul.f32 %v3998, %v5181
      %v5583 = vmul.f32 %v3999, %v5186
      %v5584 = vmul.f32 %v4000, %v5191
      %v5585 = vmul.f32 %v4001, %v5196
      %v5586 = vmul.f32 %v4002, %v5201
      %v5587 = vmul.f32 %v4003, %v5206
      %v5588 = vmul.f32 %v4004, %v5211
      %v5589 = vmul.f32 %v4005, %v5216
      %v5590 = vmul.f32 %v4006, %v5221
      %v5591 = vmul.f32 %v4007, %v5226
      %v5592 = vmul.f32 %v4008, %v5231
      %v5593 = vmul.f32 %v4009, %v5236
      %v5594 = vmul.f32 %v4010, %v5241
      %v5595 = vmul.f32 %v4011, %v5246
      %v5596 = vmul.f32 %v4012, %v5251
      %v5597 = vmul.f32 %v4013, %v5256
      %v5598 = vmul.f32 %v4014, %v5261
      %v5599 = vmul.f32 %v4015, %v5266
      %v5600 = vmul.f32 %v4016, %v5271
      %v5601 = vmul.f32 %v4017, %v5276
      %v5602 = vmul.f32 %v4018, %v5281
      %v5603 = vmul.f32 %v4019, %v5286
      %v5604 = vmul.f32 %v4020, %v5291
      %v5605 = vmul.f32 %v4021, %v5296
      %v5606 = vmul.f32 %v4022, %v5301
      %v5607 = vmul.f32 %v4023, %v5306
      %v5608 = vmul.f32 %v4024, %v5311
      %v5609 = vmul.f32 %v4025, %v5316
      %v5610 = vmul.f32 %v4026, %v5321
      %v5611 = vmul.f32 %v4027, %v5326
      %v5612 = vmul.f32 %v4028, %v5331
      %v5613 = vmul.f32 %v4029, %v5336
      %v5614 = vmul.f32 %v4030, %v5341
      %v5615 = vmul.f32 %v4031, %v5346
      %v5616 = vmul.f32 %v4032, %v5351
      %v5617 = vld [vmem:[%s309] sm:$0xff]
      %v5618 = vld [vmem:[%s309 + $0x8] sm:$0xff]
      %v5619 = vld [vmem:[%s309 + $0x10] sm:$0xff]
      %v5620 = vld [vmem:[%s309 + $0x18] sm:$0xff]
      %v5621 = vld [vmem:[%s309 + $0x20] sm:$0xff]
      %v5622 = vld [vmem:[%s309 + $0x28] sm:$0xff]
      %v5623 = vld [vmem:[%s309 + $0x30] sm:$0xff]
      %v5624 = vld [vmem:[%s309 + $0x38] sm:$0xff]
      %v5625 = vld [vmem:[%s309 + $0x40] sm:$0xff]
      %v5626 = vld [vmem:[%s309 + $0x48] sm:$0xff]
      %v5627 = vld [vmem:[%s309 + $0x50] sm:$0xff]
      %v5628 = vld [vmem:[%s309 + $0x58] sm:$0xff]
      %v5629 = vld [vmem:[%s309 + $0x60] sm:$0xff]
      %v5630 = vld [vmem:[%s309 + $0x68] sm:$0xff]
      %v5631 = vld [vmem:[%s309 + $0x70] sm:$0xff]
      %v5632 = vld [vmem:[%s309 + $0x78] sm:$0xff]
      %v5633 = vld [vmem:[%s309 + $0x80] sm:$0xff]
      %v5634 = vld [vmem:[%s309 + $0x88] sm:$0xff]
      %v5635 = vld [vmem:[%s309 + $0x90] sm:$0xff]
      %v5636 = vld [vmem:[%s309 + $0x98] sm:$0xff]
      %v5637 = vld [vmem:[%s309 + $0xa0] sm:$0xff]
      %v5638 = vld [vmem:[%s309 + $0xa8] sm:$0xff]
      %v5639 = vld [vmem:[%s309 + $0xb0] sm:$0xff]
      %v5640 = vld [vmem:[%s309 + $0xb8] sm:$0xff]
      %v5641 = vld [vmem:[%s309 + $0xc0] sm:$0xff]
      %v5642 = vld [vmem:[%s309 + $0xc8] sm:$0xff]
      %v5643 = vld [vmem:[%s309 + $0xd0] sm:$0xff]
      %v5644 = vld [vmem:[%s309 + $0xd8] sm:$0xff]
      %v5645 = vld [vmem:[%s309 + $0xe0] sm:$0xff]
      %v5646 = vld [vmem:[%s309 + $0xe8] sm:$0xff]
      %v5647 = vld [vmem:[%s309 + $0xf0] sm:$0xff]
      %v5648 = vld [vmem:[%s309 + $0xf8] sm:$0xff]
      %v5649 = vld [vmem:[%s309 + $0x100] sm:$0xff]
      %v5650 = vld [vmem:[%s309 + $0x108] sm:$0xff]
      %v5651 = vld [vmem:[%s309 + $0x110] sm:$0xff]
      %v5652 = vld [vmem:[%s309 + $0x118] sm:$0xff]
      %v5653 = vld [vmem:[%s309 + $0x120] sm:$0xff]
      %v5654 = vld [vmem:[%s309 + $0x128] sm:$0xff]
      %v5655 = vld [vmem:[%s309 + $0x130] sm:$0xff]
      %v5656 = vld [vmem:[%s309 + $0x138] sm:$0xff]
      %v5657 = vld [vmem:[%s309 + $0x140] sm:$0xff]
      %v5658 = vld [vmem:[%s309 + $0x148] sm:$0xff]
      %v5659 = vld [vmem:[%s309 + $0x150] sm:$0xff]
      %v5660 = vld [vmem:[%s309 + $0x158] sm:$0xff]
      %v5661 = vld [vmem:[%s309 + $0x160] sm:$0xff]
      %v5662 = vld [vmem:[%s309 + $0x168] sm:$0xff]
      %v5663 = vld [vmem:[%s309 + $0x170] sm:$0xff]
      %v5664 = vld [vmem:[%s309 + $0x178] sm:$0xff]
      %v5665 = vld [vmem:[%s309 + $0x180] sm:$0xff]
      %v5666 = vld [vmem:[%s309 + $0x188] sm:$0xff]
      %v5667 = vld [vmem:[%s309 + $0x190] sm:$0xff]
      %v5668 = vld [vmem:[%s309 + $0x198] sm:$0xff]
      %v5669 = vld [vmem:[%s309 + $0x1a0] sm:$0xff]
      %v5670 = vld [vmem:[%s309 + $0x1a8] sm:$0xff]
      %v5671 = vld [vmem:[%s309 + $0x1b0] sm:$0xff]
      %v5672 = vld [vmem:[%s309 + $0x1b8] sm:$0xff]
      %v5673 = vld [vmem:[%s309 + $0x1c0] sm:$0xff]
      %v5674 = vld [vmem:[%s309 + $0x1c8] sm:$0xff]
      %v5675 = vld [vmem:[%s309 + $0x1d0] sm:$0xff]
      %v5676 = vld [vmem:[%s309 + $0x1d8] sm:$0xff]
      %v5677 = vld [vmem:[%s309 + $0x1e0] sm:$0xff]
      %v5678 = vld [vmem:[%s309 + $0x1e8] sm:$0xff]
      %v5679 = vld [vmem:[%s309 + $0x1f0] sm:$0xff]
      %v5680 = vld [vmem:[%s309 + $0x1f8] sm:$0xff]
      %v5681 = vld [vmem:[%s309 + $0x200] sm:$0xff]
      %v5682 = vld [vmem:[%s309 + $0x208] sm:$0xff]
      %v5683 = vld [vmem:[%s309 + $0x210] sm:$0xff]
      %v5684 = vld [vmem:[%s309 + $0x218] sm:$0xff]
      %v5685 = vld [vmem:[%s309 + $0x220] sm:$0xff]
      %v5686 = vld [vmem:[%s309 + $0x228] sm:$0xff]
      %v5687 = vld [vmem:[%s309 + $0x230] sm:$0xff]
      %v5688 = vld [vmem:[%s309 + $0x238] sm:$0xff]
      %v5689 = vld [vmem:[%s309 + $0x240] sm:$0xff]
      %v5690 = vld [vmem:[%s309 + $0x248] sm:$0xff]
      %v5691 = vld [vmem:[%s309 + $0x250] sm:$0xff]
      %v5692 = vld [vmem:[%s309 + $0x258] sm:$0xff]
      %v5693 = vld [vmem:[%s309 + $0x260] sm:$0xff]
      %v5694 = vld [vmem:[%s309 + $0x268] sm:$0xff]
      %v5695 = vld [vmem:[%s309 + $0x270] sm:$0xff]
      %v5696 = vld [vmem:[%s309 + $0x278] sm:$0xff]
      %v5697 = vld [vmem:[%s309 + $0x280] sm:$0xff]
      %v5698 = vld [vmem:[%s309 + $0x288] sm:$0xff]
      %v5699 = vld [vmem:[%s309 + $0x290] sm:$0xff]
      %v5700 = vld [vmem:[%s309 + $0x298] sm:$0xff]
      %v5701 = vld [vmem:[%s309 + $0x2a0] sm:$0xff]
      %v5702 = vld [vmem:[%s309 + $0x2a8] sm:$0xff]
      %v5703 = vld [vmem:[%s309 + $0x2b0] sm:$0xff]
      %v5704 = vld [vmem:[%s309 + $0x2b8] sm:$0xff]
      %v5705 = vld [vmem:[%s309 + $0x2c0] sm:$0xff]
      %v5706 = vld [vmem:[%s309 + $0x2c8] sm:$0xff]
      %v5707 = vld [vmem:[%s309 + $0x2d0] sm:$0xff]
      %v5708 = vld [vmem:[%s309 + $0x2d8] sm:$0xff]
      %v5709 = vld [vmem:[%s309 + $0x2e0] sm:$0xff]
      %v5710 = vld [vmem:[%s309 + $0x2e8] sm:$0xff]
      %v5711 = vld [vmem:[%s309 + $0x2f0] sm:$0xff]
      %v5712 = vld [vmem:[%s309 + $0x2f8] sm:$0xff]
      %v5713 = vld [vmem:[%s309 + $0x300] sm:$0xff]
      %v5714 = vld [vmem:[%s309 + $0x308] sm:$0xff]
      %v5715 = vld [vmem:[%s309 + $0x310] sm:$0xff]
      %v5716 = vld [vmem:[%s309 + $0x318] sm:$0xff]
      %v5717 = vld [vmem:[%s309 + $0x320] sm:$0xff]
      %v5718 = vld [vmem:[%s309 + $0x328] sm:$0xff]
      %v5719 = vld [vmem:[%s309 + $0x330] sm:$0xff]
      %v5720 = vld [vmem:[%s309 + $0x338] sm:$0xff]
      %v5721 = vld [vmem:[%s309 + $0x340] sm:$0xff]
      %v5722 = vld [vmem:[%s309 + $0x348] sm:$0xff]
      %v5723 = vld [vmem:[%s309 + $0x350] sm:$0xff]
      %v5724 = vld [vmem:[%s309 + $0x358] sm:$0xff]
      %v5725 = vld [vmem:[%s309 + $0x360] sm:$0xff]
      %v5726 = vld [vmem:[%s309 + $0x368] sm:$0xff]
      %v5727 = vld [vmem:[%s309 + $0x370] sm:$0xff]
      %v5728 = vld [vmem:[%s309 + $0x378] sm:$0xff]
      %v5729 = vld [vmem:[%s309 + $0x380] sm:$0xff]
      %v5730 = vld [vmem:[%s309 + $0x388] sm:$0xff]
      %v5731 = vld [vmem:[%s309 + $0x390] sm:$0xff]
      %v5732 = vld [vmem:[%s309 + $0x398] sm:$0xff]
      %v5733 = vld [vmem:[%s309 + $0x3a0] sm:$0xff]
      %v5734 = vld [vmem:[%s309 + $0x3a8] sm:$0xff]
      %v5735 = vld [vmem:[%s309 + $0x3b0] sm:$0xff]
      %v5736 = vld [vmem:[%s309 + $0x3b8] sm:$0xff]
      %v5737 = vld [vmem:[%s309 + $0x3c0] sm:$0xff]
      %v5738 = vld [vmem:[%s309 + $0x3c8] sm:$0xff]
      %v5739 = vld [vmem:[%s309 + $0x3d0] sm:$0xff]
      %v5740 = vld [vmem:[%s309 + $0x3d8] sm:$0xff]
      %v5741 = vld [vmem:[%s309 + $0x3e0] sm:$0xff]
      %v5742 = vld [vmem:[%s309 + $0x3e8] sm:$0xff]
      %v5743 = vld [vmem:[%s309 + $0x3f0] sm:$0xff]
      %v5744 = vld [vmem:[%s309 + $0x3f8] sm:$0xff]
      %v5745 = vld [vmem:[%s309 + $0x400] sm:$0xff]
      %v5746 = vld [vmem:[%s309 + $0x408] sm:$0xff]
      %v5747 = vld [vmem:[%s309 + $0x410] sm:$0xff]
      %v5748 = vld [vmem:[%s309 + $0x418] sm:$0xff]
      %v5749 = vld [vmem:[%s309 + $0x420] sm:$0xff]
      %v5750 = vld [vmem:[%s309 + $0x428] sm:$0xff]
      %v5751 = vld [vmem:[%s309 + $0x430] sm:$0xff]
      %v5752 = vld [vmem:[%s309 + $0x438] sm:$0xff]
      %v5753 = vld [vmem:[%s309 + $0x440] sm:$0xff]
      %v5754 = vld [vmem:[%s309 + $0x448] sm:$0xff]
      %v5755 = vld [vmem:[%s309 + $0x450] sm:$0xff]
      %v5756 = vld [vmem:[%s309 + $0x458] sm:$0xff]
      %v5757 = vld [vmem:[%s309 + $0x460] sm:$0xff]
      %v5758 = vld [vmem:[%s309 + $0x468] sm:$0xff]
      %v5759 = vld [vmem:[%s309 + $0x470] sm:$0xff]
      %v5760 = vld [vmem:[%s309 + $0x478] sm:$0xff]
      %v5761 = vld [vmem:[%s309 + $0x480] sm:$0xff]
      %v5762 = vld [vmem:[%s309 + $0x488] sm:$0xff]
      %v5763 = vld [vmem:[%s309 + $0x490] sm:$0xff]
      %v5764 = vld [vmem:[%s309 + $0x498] sm:$0xff]
      %v5765 = vld [vmem:[%s309 + $0x4a0] sm:$0xff]
      %v5766 = vld [vmem:[%s309 + $0x4a8] sm:$0xff]
      %v5767 = vld [vmem:[%s309 + $0x4b0] sm:$0xff]
      %v5768 = vld [vmem:[%s309 + $0x4b8] sm:$0xff]
      %v5769 = vld [vmem:[%s309 + $0x4c0] sm:$0xff]
      %v5770 = vld [vmem:[%s309 + $0x4c8] sm:$0xff]
      %v5771 = vld [vmem:[%s309 + $0x4d0] sm:$0xff]
      %v5772 = vld [vmem:[%s309 + $0x4d8] sm:$0xff]
      %v5773 = vld [vmem:[%s309 + $0x4e0] sm:$0xff]
      %v5774 = vld [vmem:[%s309 + $0x4e8] sm:$0xff]
      %v5775 = vld [vmem:[%s309 + $0x4f0] sm:$0xff]
      %v5776 = vld [vmem:[%s309 + $0x4f8] sm:$0xff]
      %v5777 = vld [vmem:[%s309 + $0x500] sm:$0xff]
      %v5778 = vld [vmem:[%s309 + $0x508] sm:$0xff]
      %v5779 = vld [vmem:[%s309 + $0x510] sm:$0xff]
      %v5780 = vld [vmem:[%s309 + $0x518] sm:$0xff]
      %v5781 = vld [vmem:[%s309 + $0x520] sm:$0xff]
      %v5782 = vld [vmem:[%s309 + $0x528] sm:$0xff]
      %v5783 = vld [vmem:[%s309 + $0x530] sm:$0xff]
      %v5784 = vld [vmem:[%s309 + $0x538] sm:$0xff]
      %v5785 = vld [vmem:[%s309 + $0x540] sm:$0xff]
      %v5786 = vld [vmem:[%s309 + $0x548] sm:$0xff]
      %v5787 = vld [vmem:[%s309 + $0x550] sm:$0xff]
      %v5788 = vld [vmem:[%s309 + $0x558] sm:$0xff]
      %v5789 = vld [vmem:[%s309 + $0x560] sm:$0xff]
      %v5790 = vld [vmem:[%s309 + $0x568] sm:$0xff]
      %v5791 = vld [vmem:[%s309 + $0x570] sm:$0xff]
      %v5792 = vld [vmem:[%s309 + $0x578] sm:$0xff]
      %v5793 = vld [vmem:[%s309 + $0x580] sm:$0xff]
      %v5794 = vld [vmem:[%s309 + $0x588] sm:$0xff]
      %v5795 = vld [vmem:[%s309 + $0x590] sm:$0xff]
      %v5796 = vld [vmem:[%s309 + $0x598] sm:$0xff]
      %v5797 = vld [vmem:[%s309 + $0x5a0] sm:$0xff]
      %v5798 = vld [vmem:[%s309 + $0x5a8] sm:$0xff]
      %v5799 = vld [vmem:[%s309 + $0x5b0] sm:$0xff]
      %v5800 = vld [vmem:[%s309 + $0x5b8] sm:$0xff]
      %v5801 = vld [vmem:[%s309 + $0x5c0] sm:$0xff]
      %v5802 = vld [vmem:[%s309 + $0x5c8] sm:$0xff]
      %v5803 = vld [vmem:[%s309 + $0x5d0] sm:$0xff]
      %v5804 = vld [vmem:[%s309 + $0x5d8] sm:$0xff]
      %v5805 = vld [vmem:[%s309 + $0x5e0] sm:$0xff]
      %v5806 = vld [vmem:[%s309 + $0x5e8] sm:$0xff]
      %v5807 = vld [vmem:[%s309 + $0x5f0] sm:$0xff]
      %v5808 = vld [vmem:[%s309 + $0x5f8] sm:$0xff]
      %v5809 = vld [vmem:[%s309 + $0x600] sm:$0xff]
      %v5810 = vld [vmem:[%s309 + $0x608] sm:$0xff]
      %v5811 = vld [vmem:[%s309 + $0x610] sm:$0xff]
      %v5812 = vld [vmem:[%s309 + $0x618] sm:$0xff]
      %v5813 = vld [vmem:[%s309 + $0x620] sm:$0xff]
      %v5814 = vld [vmem:[%s309 + $0x628] sm:$0xff]
      %v5815 = vld [vmem:[%s309 + $0x630] sm:$0xff]
      %v5816 = vld [vmem:[%s309 + $0x638] sm:$0xff]
      %v5817 = vld [vmem:[%s309 + $0x640] sm:$0xff]
      %v5818 = vld [vmem:[%s309 + $0x648] sm:$0xff]
      %v5819 = vld [vmem:[%s309 + $0x650] sm:$0xff]
      %v5820 = vld [vmem:[%s309 + $0x658] sm:$0xff]
      %v5821 = vld [vmem:[%s309 + $0x660] sm:$0xff]
      %v5822 = vld [vmem:[%s309 + $0x668] sm:$0xff]
      %v5823 = vld [vmem:[%s309 + $0x670] sm:$0xff]
      %v5824 = vld [vmem:[%s309 + $0x678] sm:$0xff]
      %v5825 = vld [vmem:[%s309 + $0x680] sm:$0xff]
      %v5826 = vld [vmem:[%s309 + $0x688] sm:$0xff]
      %v5827 = vld [vmem:[%s309 + $0x690] sm:$0xff]
      %v5828 = vld [vmem:[%s309 + $0x698] sm:$0xff]
      %v5829 = vld [vmem:[%s309 + $0x6a0] sm:$0xff]
      %v5830 = vld [vmem:[%s309 + $0x6a8] sm:$0xff]
      %v5831 = vld [vmem:[%s309 + $0x6b0] sm:$0xff]
      %v5832 = vld [vmem:[%s309 + $0x6b8] sm:$0xff]
      %v5833 = vld [vmem:[%s309 + $0x6c0] sm:$0xff]
      %v5834 = vld [vmem:[%s309 + $0x6c8] sm:$0xff]
      %v5835 = vld [vmem:[%s309 + $0x6d0] sm:$0xff]
      %v5836 = vld [vmem:[%s309 + $0x6d8] sm:$0xff]
      %v5837 = vld [vmem:[%s309 + $0x6e0] sm:$0xff]
      %v5838 = vld [vmem:[%s309 + $0x6e8] sm:$0xff]
      %v5839 = vld [vmem:[%s309 + $0x6f0] sm:$0xff]
      %v5840 = vld [vmem:[%s309 + $0x6f8] sm:$0xff]
      %v5841 = vld [vmem:[%s309 + $0x700] sm:$0xff]
      %v5842 = vld [vmem:[%s309 + $0x708] sm:$0xff]
      %v5843 = vld [vmem:[%s309 + $0x710] sm:$0xff]
      %v5844 = vld [vmem:[%s309 + $0x718] sm:$0xff]
      %v5845 = vld [vmem:[%s309 + $0x720] sm:$0xff]
      %v5846 = vld [vmem:[%s309 + $0x728] sm:$0xff]
      %v5847 = vld [vmem:[%s309 + $0x730] sm:$0xff]
      %v5848 = vld [vmem:[%s309 + $0x738] sm:$0xff]
      %v5849 = vld [vmem:[%s309 + $0x740] sm:$0xff]
      %v5850 = vld [vmem:[%s309 + $0x748] sm:$0xff]
      %v5851 = vld [vmem:[%s309 + $0x750] sm:$0xff]
      %v5852 = vld [vmem:[%s309 + $0x758] sm:$0xff]
      %v5853 = vld [vmem:[%s309 + $0x760] sm:$0xff]
      %v5854 = vld [vmem:[%s309 + $0x768] sm:$0xff]
      %v5855 = vld [vmem:[%s309 + $0x770] sm:$0xff]
      %v5856 = vld [vmem:[%s309 + $0x778] sm:$0xff]
      %v5857 = vld [vmem:[%s309 + $0x780] sm:$0xff]
      %v5858 = vld [vmem:[%s309 + $0x788] sm:$0xff]
      %v5859 = vld [vmem:[%s309 + $0x790] sm:$0xff]
      %v5860 = vld [vmem:[%s309 + $0x798] sm:$0xff]
      %v5861 = vld [vmem:[%s309 + $0x7a0] sm:$0xff]
      %v5862 = vld [vmem:[%s309 + $0x7a8] sm:$0xff]
      %v5863 = vld [vmem:[%s309 + $0x7b0] sm:$0xff]
      %v5864 = vld [vmem:[%s309 + $0x7b8] sm:$0xff]
      %v5865 = vld [vmem:[%s309 + $0x7c0] sm:$0xff]
      %v5866 = vld [vmem:[%s309 + $0x7c8] sm:$0xff]
      %v5867 = vld [vmem:[%s309 + $0x7d0] sm:$0xff]
      %v5868 = vld [vmem:[%s309 + $0x7d8] sm:$0xff]
      %v5869 = vld [vmem:[%s309 + $0x7e0] sm:$0xff]
      %v5870 = vld [vmem:[%s309 + $0x7e8] sm:$0xff]
      %v5871 = vld [vmem:[%s309 + $0x7f0] sm:$0xff]
      %v5872 = vld [vmem:[%s309 + $0x7f8] sm:$0xff]
      %v5873 = vld [vmem:[%s309 + $0x800] sm:$0xff]
      %v5874 = vld [vmem:[%s309 + $0x808] sm:$0xff]
      %v5875 = vld [vmem:[%s309 + $0x810] sm:$0xff]
      %v5876 = vld [vmem:[%s309 + $0x818] sm:$0xff]
      %v5877 = vld [vmem:[%s309 + $0x820] sm:$0xff]
      %v5878 = vld [vmem:[%s309 + $0x828] sm:$0xff]
      %v5879 = vld [vmem:[%s309 + $0x830] sm:$0xff]
      %v5880 = vld [vmem:[%s309 + $0x838] sm:$0xff]
      %v5881 = vld [vmem:[%s309 + $0x840] sm:$0xff]
      %v5882 = vld [vmem:[%s309 + $0x848] sm:$0xff]
      %v5883 = vld [vmem:[%s309 + $0x850] sm:$0xff]
      %v5884 = vld [vmem:[%s309 + $0x858] sm:$0xff]
      %v5885 = vld [vmem:[%s309 + $0x860] sm:$0xff]
      %v5886 = vld [vmem:[%s309 + $0x868] sm:$0xff]
      %v5887 = vld [vmem:[%s309 + $0x870] sm:$0xff]
      %v5888 = vld [vmem:[%s309 + $0x878] sm:$0xff]
      %v5889 = vld [vmem:[%s309 + $0x880] sm:$0xff]
      %v5890 = vld [vmem:[%s309 + $0x888] sm:$0xff]
      %v5891 = vld [vmem:[%s309 + $0x890] sm:$0xff]
      %v5892 = vld [vmem:[%s309 + $0x898] sm:$0xff]
      %v5893 = vld [vmem:[%s309 + $0x8a0] sm:$0xff]
      %v5894 = vld [vmem:[%s309 + $0x8a8] sm:$0xff]
      %v5895 = vld [vmem:[%s309 + $0x8b0] sm:$0xff]
      %v5896 = vld [vmem:[%s309 + $0x8b8] sm:$0xff]
      %v5897 = vld [vmem:[%s309 + $0x8c0] sm:$0xff]
      %v5898 = vld [vmem:[%s309 + $0x8c8] sm:$0xff]
      %v5899 = vld [vmem:[%s309 + $0x8d0] sm:$0xff]
      %v5900 = vld [vmem:[%s309 + $0x8d8] sm:$0xff]
      %v5901 = vld [vmem:[%s309 + $0x8e0] sm:$0xff]
      %v5902 = vld [vmem:[%s309 + $0x8e8] sm:$0xff]
      %v5903 = vld [vmem:[%s309 + $0x8f0] sm:$0xff]
      %v5904 = vld [vmem:[%s309 + $0x8f8] sm:$0xff]
      %v5905 = vld [vmem:[%s309 + $0x900] sm:$0xff]
      %v5906 = vld [vmem:[%s309 + $0x908] sm:$0xff]
      %v5907 = vld [vmem:[%s309 + $0x910] sm:$0xff]
      %v5908 = vld [vmem:[%s309 + $0x918] sm:$0xff]
      %v5909 = vld [vmem:[%s309 + $0x920] sm:$0xff]
      %v5910 = vld [vmem:[%s309 + $0x928] sm:$0xff]
      %v5911 = vld [vmem:[%s309 + $0x930] sm:$0xff]
      %v5912 = vld [vmem:[%s309 + $0x938] sm:$0xff]
      %v5913 = vld [vmem:[%s309 + $0x940] sm:$0xff]
      %v5914 = vld [vmem:[%s309 + $0x948] sm:$0xff]
      %v5915 = vld [vmem:[%s309 + $0x950] sm:$0xff]
      %v5916 = vld [vmem:[%s309 + $0x958] sm:$0xff]
      %v5917 = vld [vmem:[%s309 + $0x960] sm:$0xff]
      %v5918 = vld [vmem:[%s309 + $0x968] sm:$0xff]
      %v5919 = vld [vmem:[%s309 + $0x970] sm:$0xff]
      %v5920 = vld [vmem:[%s309 + $0x978] sm:$0xff]
      %v5921 = vld [vmem:[%s309 + $0x980] sm:$0xff]
      %v5922 = vld [vmem:[%s309 + $0x988] sm:$0xff]
      %v5923 = vld [vmem:[%s309 + $0x990] sm:$0xff]
      %v5924 = vld [vmem:[%s309 + $0x998] sm:$0xff]
      %v5925 = vld [vmem:[%s309 + $0x9a0] sm:$0xff]
      %v5926 = vld [vmem:[%s309 + $0x9a8] sm:$0xff]
      %v5927 = vld [vmem:[%s309 + $0x9b0] sm:$0xff]
      %v5928 = vld [vmem:[%s309 + $0x9b8] sm:$0xff]
      %v5929 = vld [vmem:[%s309 + $0x9c0] sm:$0xff]
      %v5930 = vld [vmem:[%s309 + $0x9c8] sm:$0xff]
      %v5931 = vld [vmem:[%s309 + $0x9d0] sm:$0xff]
      %v5932 = vld [vmem:[%s309 + $0x9d8] sm:$0xff]
      %v5933 = vld [vmem:[%s309 + $0x9e0] sm:$0xff]
      %v5934 = vld [vmem:[%s309 + $0x9e8] sm:$0xff]
      %v5935 = vld [vmem:[%s309 + $0x9f0] sm:$0xff]
      %v5936 = vld [vmem:[%s309 + $0x9f8] sm:$0xff]
      %v5937 = vld [vmem:[%s309 + $0xa00] sm:$0xff]
      %v5938 = vld [vmem:[%s309 + $0xa08] sm:$0xff]
      %v5939 = vld [vmem:[%s309 + $0xa10] sm:$0xff]
      %v5940 = vld [vmem:[%s309 + $0xa18] sm:$0xff]
      %v5941 = vld [vmem:[%s309 + $0xa20] sm:$0xff]
      %v5942 = vld [vmem:[%s309 + $0xa28] sm:$0xff]
      %v5943 = vld [vmem:[%s309 + $0xa30] sm:$0xff]
      %v5944 = vld [vmem:[%s309 + $0xa38] sm:$0xff]
      %v5945 = vld [vmem:[%s309 + $0xa40] sm:$0xff]
      %v5946 = vld [vmem:[%s309 + $0xa48] sm:$0xff]
      %v5947 = vld [vmem:[%s309 + $0xa50] sm:$0xff]
      %v5948 = vld [vmem:[%s309 + $0xa58] sm:$0xff]
      %v5949 = vld [vmem:[%s309 + $0xa60] sm:$0xff]
      %v5950 = vld [vmem:[%s309 + $0xa68] sm:$0xff]
      %v5951 = vld [vmem:[%s309 + $0xa70] sm:$0xff]
      %v5952 = vld [vmem:[%s309 + $0xa78] sm:$0xff]
      %v5953 = vld [vmem:[%s309 + $0xa80] sm:$0xff]
      %v5954 = vld [vmem:[%s309 + $0xa88] sm:$0xff]
      %v5955 = vld [vmem:[%s309 + $0xa90] sm:$0xff]
      %v5956 = vld [vmem:[%s309 + $0xa98] sm:$0xff]
      %v5957 = vld [vmem:[%s309 + $0xaa0] sm:$0xff]
      %v5958 = vld [vmem:[%s309 + $0xaa8] sm:$0xff]
      %v5959 = vld [vmem:[%s309 + $0xab0] sm:$0xff]
      %v5960 = vld [vmem:[%s309 + $0xab8] sm:$0xff]
      %v5961 = vld [vmem:[%s309 + $0xac0] sm:$0xff]
      %v5962 = vld [vmem:[%s309 + $0xac8] sm:$0xff]
      %v5963 = vld [vmem:[%s309 + $0xad0] sm:$0xff]
      %v5964 = vld [vmem:[%s309 + $0xad8] sm:$0xff]
      %v5965 = vld [vmem:[%s309 + $0xae0] sm:$0xff]
      %v5966 = vld [vmem:[%s309 + $0xae8] sm:$0xff]
      %v5967 = vld [vmem:[%s309 + $0xaf0] sm:$0xff]
      %v5968 = vld [vmem:[%s309 + $0xaf8] sm:$0xff]
      %v5969 = vld [vmem:[%s309 + $0xb00] sm:$0xff]
      %v5970 = vld [vmem:[%s309 + $0xb08] sm:$0xff]
      %v5971 = vld [vmem:[%s309 + $0xb10] sm:$0xff]
      %v5972 = vld [vmem:[%s309 + $0xb18] sm:$0xff]
      %v5973 = vld [vmem:[%s309 + $0xb20] sm:$0xff]
      %v5974 = vld [vmem:[%s309 + $0xb28] sm:$0xff]
      %v5975 = vld [vmem:[%s309 + $0xb30] sm:$0xff]
      %v5976 = vld [vmem:[%s309 + $0xb38] sm:$0xff]
      %v5977 = vld [vmem:[%s309 + $0xb40] sm:$0xff]
      %v5978 = vld [vmem:[%s309 + $0xb48] sm:$0xff]
      %v5979 = vld [vmem:[%s309 + $0xb50] sm:$0xff]
      %v5980 = vld [vmem:[%s309 + $0xb58] sm:$0xff]
      %v5981 = vld [vmem:[%s309 + $0xb60] sm:$0xff]
      %v5982 = vld [vmem:[%s309 + $0xb68] sm:$0xff]
      %v5983 = vld [vmem:[%s309 + $0xb70] sm:$0xff]
      %v5984 = vld [vmem:[%s309 + $0xb78] sm:$0xff]
      %v5985 = vld [vmem:[%s309 + $0xb80] sm:$0xff]
      %v5986 = vld [vmem:[%s309 + $0xb88] sm:$0xff]
      %v5987 = vld [vmem:[%s309 + $0xb90] sm:$0xff]
      %v5988 = vld [vmem:[%s309 + $0xb98] sm:$0xff]
      %v5989 = vld [vmem:[%s309 + $0xba0] sm:$0xff]
      %v5990 = vld [vmem:[%s309 + $0xba8] sm:$0xff]
      %vm5991 = vcmask 523264
      %v5993 = vsel %vm5991, %v5633, 0
      %v5996 = vsel %vm5991, %v5650, 0
      %v5999 = vsel %vm5991, %v5667, 0
      %v6002 = vsel %vm5991, %v5684, 0
      %v6005 = vsel %vm5991, %v5701, 0
      %v6008 = vsel %vm5991, %v5718, 0
      %v6011 = vsel %vm5991, %v5735, 0
      %v6014 = vsel %vm5991, %v5752, 0
      %v6017 = vsel %vm5991, %v5769, 0
      %v6020 = vsel %vm5991, %v5786, 0
      %v6023 = vsel %vm5991, %v5803, 0
      %v6026 = vsel %vm5991, %v5820, 0
      %v6029 = vsel %vm5991, %v5837, 0
      %v6032 = vsel %vm5991, %v5854, 0
      %v6035 = vsel %vm5991, %v5871, 0
      %v6038 = vsel %vm5991, %v5888, 0
      %v6041 = vsel %vm5991, %v5905, 0
      %v6044 = vsel %vm5991, %v5922, 0
      %v6047 = vsel %vm5991, %v5939, 0
      %v6050 = vsel %vm5991, %v5956, 0
      %v6053 = vsel %vm5991, %v5973, 0
      %v6056 = vsel %vm5991, %v5990, 0
      %6058 = vmatprep.subr.mxu0 0.0
      %6059 = vmatpush1.msra.mxu0 %v5353
      %6060 = vmatprep.subr.mxu0 0.0
      %6061 = vmatpush1.msra.mxu0 %v5354
      %6062 = vmatprep.subr.mxu0 0.0
      %6063 = vmatpush1.msra.mxu0 %v5355
      %6064 = vmatprep.subr.mxu0 0.0
      %6065 = vmatpush1.msra.mxu0 %v5356
      %6066 = vmatprep.subr.mxu0 0.0
      %6067 = vmatpush1.msra.mxu0 %v5357
      %6068 = vmatprep.subr.mxu0 0.0
      %6069 = vmatpush1.msra.mxu0 %v5358
      %6070 = vmatprep.subr.mxu0 0.0
      %6071 = vmatpush1.msra.mxu0 %v5359
      %6072 = vmatprep.subr.mxu0 0.0
      %6073 = vmatpush1.msra.mxu0 %v5360
      %6074 = vmatprep.subr.mxu0 0.0
      %6075 = vmatpush1.msra.mxu0 %v5361
      %6076 = vmatprep.subr.mxu0 0.0
      %6077 = vmatpush1.msra.mxu0 %v5362
      %6078 = vmatprep.subr.mxu0 0.0
      %6079 = vmatpush1.msra.mxu0 %v5363
      %6080 = vmatprep.subr.mxu0 0.0
      %6081 = vmatpush1.msra.mxu0 %v5364
      %6082 = vmatprep.subr.mxu0 0.0
      %6083 = vmatpush1.msra.mxu0 %v5365
      %6084 = vmatprep.subr.mxu0 0.0
      %6085 = vmatpush1.msra.mxu0 %v5366
      %6086 = vmatprep.subr.mxu0 0.0
      %6087 = vmatpush1.msra.mxu0 %v5367
      %6088 = vmatprep.subr.mxu0 0.0
      %6089 = vmatpush1.msra.mxu0 %v5368
      %6090 = vmatprep.subr.mxu0 0.0
      %6091 = vmatpush1.msra.mxu0 %v5369
      %6092 = vmatprep.subr.mxu0 0.0
      %6093 = vmatpush1.msra.mxu0 %v5370
      %6094 = vmatprep.subr.mxu0 0.0
      %6095 = vmatpush1.msra.mxu0 %v5371
      %6096 = vmatprep.subr.mxu0 0.0
      %6097 = vmatpush1.msra.mxu0 %v5372
      %6098 = vmatprep.subr.mxu0 0.0
      %6099 = vmatpush1.msra.mxu0 %v5373
      %6100 = vmatprep.subr.mxu0 0.0
      %6101 = vmatpush1.msra.mxu0 %v5374
      %6102 = vmatprep.subr.mxu0 0.0
      %6103 = vmatpush1.msra.mxu0 %v5375
      %6104 = vmatprep.subr.mxu0 0.0
      %6105 = vmatpush1.msra.mxu0 %v5376
      %6106 = vmatprep.subr.mxu0 0.0
      %6107 = vmatpush1.msra.mxu0 %v5377
      %6108 = vmatprep.subr.mxu0 0.0
      %6109 = vmatpush1.msra.mxu0 %v5378
      %6110 = vmatprep.subr.mxu0 0.0
      %6111 = vmatpush1.msra.mxu0 %v5379
      %6112 = vmatprep.subr.mxu0 0.0
      %6113 = vmatpush1.msra.mxu0 %v5380
      %6114 = vmatprep.subr.mxu0 0.0
      %6115 = vmatpush1.msra.mxu0 %v5381
      %6116 = vmatprep.subr.mxu0 0.0
      %6117 = vmatpush1.msra.mxu0 %v5382
      %6118 = vmatprep.subr.mxu0 0.0
      %6119 = vmatpush1.msra.mxu0 %v5383
      %6120 = vmatprep.subr.mxu0 0.0
      %6121 = vmatpush1.msra.mxu0 %v5384
      %6122 = vmatprep.mubr.f32.mxu0 %v5618
      %6123 = vmatmul.mubr.f32.gmra.mrb[0].mxu0 %v5617
      %v6124 = vpop.f32.mrb[0].mxu0
      %v6125 = vadd.f32 0.0, %v6124
      %v6126 = vpop.f32.mrb[0].mxu0
      %6127 = vmatprep.mubr.f32.mxu0 %v5635
      %6128 = vmatmul.mubr.f32.gmra.mrb[0].mxu0 %v5634
      %v6129 = vpop.f32.mrb[0].mxu0
      %v6130 = vadd.f32 0.0, %v6129
      %v6131 = vpop.f32.mrb[0].mxu0
      %6132 = vmatprep.mubr.f32.mxu0 %v5652
      %6133 = vmatmul.mubr.f32.gmra.mrb[0].mxu0 %v5651
      %v6134 = vpop.f32.mrb[0].mxu0
      %v6135 = vadd.f32 0.0, %v6134
      %v6136 = vpop.f32.mrb[0].mxu0
      %6137 = vmatprep.mubr.f32.mxu0 %v5669
      %6138 = vmatmul.mubr.f32.gmra.mrb[0].mxu0 %v5668
      %v6139 = vpop.f32.mrb[0].mxu0
      %v6140 = vadd.f32 0.0, %v6139
      %v6141 = vpop.f32.mrb[0].mxu0
      %6142 = vmatprep.mubr.f32.mxu0 %v5686
      %6143 = vmatmul.mubr.f32.gmra.mrb[0].mxu0 %v5685
      %v6144 = vpop.f32.mrb[0].mxu0
      %v6145 = vadd.f32 0.0, %v6144
      %v6146 = vpop.f32.mrb[0].mxu0
      %6147 = vmatprep.mubr.f32.mxu0 %v5703
      %6148 = vmatmul.mubr.f32.gmra.mrb[0].mxu0 %v5702
      %v6149 = vpop.f32.mrb[0].mxu0
      %v6150 = vadd.f32 0.0, %v6149
      %v6151 = vpop.f32.mrb[0].mxu0
      %6152 = vmatprep.mubr.f32.mxu0 %v5720
      %6153 = vmatmul.mubr.f32.gmra.mrb[0].mxu0 %v5719
      %v6154 = vpop.f32.mrb[0].mxu0
      %v6155 = vadd.f32 0.0, %v6154
      %v6156 = vpop.f32.mrb[0].mxu0
      %6157 = vmatprep.mubr.f32.mxu0 %v5737
      %6158 = vmatmul.mubr.f32.gmra.mrb[0].mxu0 %v5736
      %v6159 = vpop.f32.mrb[0].mxu0
      %v6160 = vadd.f32 0.0, %v6159
      %v6161 = vpop.f32.mrb[0].mxu0
      %6162 = vmatprep.mubr.f32.mxu0 %v5754
      %6163 = vmatmul.mubr.f32.gmra.mrb[0].mxu0 %v5753
      %v6164 = vpop.f32.mrb[0].mxu0
      %v6165 = vadd.f32 0.0, %v6164
      %v6166 = vpop.f32.mrb[0].mxu0
      %6167 = vmatprep.mubr.f32.mxu0 %v5771
      %6168 = vmatmul.mubr.f32.gmra.mrb[0].mxu0 %v5770
      %v6169 = vpop.f32.mrb[0].mxu0
      %v6170 = vadd.f32 0.0, %v6169
      %v6171 = vpop.f32.mrb[0].mxu0
      %6172 = vmatprep.mubr.f32.mxu0 %v5788
      %6173 = vmatmul.mubr.f32.gmra.mrb[0].mxu0 %v5787
      %v6174 = vpop.f32.mrb[0].mxu0
      %v6175 = vadd.f32 0.0, %v6174
      %v6176 = vpop.f32.mrb[0].mxu0
      %6177 = vmatprep.mubr.f32.mxu0 %v5805
      %6178 = vmatmul.mubr.f32.gmra.mrb[0].mxu0 %v5804
      %v6179 = vpop.f32.mrb[0].mxu0
      %v6180 = vadd.f32 0.0, %v6179
      %v6181 = vpop.f32.mrb[0].mxu0
      %6182 = vmatprep.mubr.f32.mxu0 %v5822
      %6183 = vmatmul.mubr.f32.gmra.mrb[0].mxu0 %v5821
      %v6184 = vpop.f32.mrb[0].mxu0
      %v6185 = vadd.f32 0.0, %v6184
      %v6186 = vpop.f32.mrb[0].mxu0
      %6187 = vmatprep.mubr.f32.mxu0 %v5839
      %6188 = vmatmul.mubr.f32.gmra.mrb[0].mxu0 %v5838
      %v6189 = vpop.f32.mrb[0].mxu0
      %v6190 = vadd.f32 0.0, %v6189
      %v6191 = vpop.f32.mrb[0].mxu0
      %6192 = vmatprep.mubr.f32.mxu0 %v5856
      %6193 = vmatmul.mubr.f32.gmra.mrb[0].mxu0 %v5855
      %v6194 = vpop.f32.mrb[0].mxu0
      %v6195 = vadd.f32 0.0, %v6194
      %v6196 = vpop.f32.mrb[0].mxu0
      %6197 = vmatprep.mubr.f32.mxu0 %v5873
      %6198 = vmatmul.mubr.f32.gmra.mrb[0].mxu0 %v5872
      %v6199 = vpop.f32.mrb[0].mxu0
      %v6200 = vadd.f32 0.0, %v6199
      %v6201 = vpop.f32.mrb[0].mxu0
      %6202 = vmatprep.mubr.f32.mxu0 %v5890
      %6203 = vmatmul.mubr.f32.gmra.mrb[0].mxu0 %v5889
      %v6204 = vpop.f32.mrb[0].mxu0
      %v6205 = vadd.f32 0.0, %v6204
      %v6206 = vpop.f32.mrb[0].mxu0
      %6207 = vmatprep.mubr.f32.mxu0 %v5907
      %6208 = vmatmul.mubr.f32.gmra.mrb[0].mxu0 %v5906
      %v6209 = vpop.f32.mrb[0].mxu0
      %v6210 = vadd.f32 0.0, %v6209
      %v6211 = vpop.f32.mrb[0].mxu0
      %6212 = vmatprep.mubr.f32.mxu0 %v5924
      %6213 = vmatmul.mubr.f32.gmra.mrb[0].mxu0 %v5923
      %v6214 = vpop.f32.mrb[0].mxu0
      %v6215 = vadd.f32 0.0, %v6214
      %v6216 = vpop.f32.mrb[0].mxu0
      %6217 = vmatprep.mubr.f32.mxu0 %v5941
      %6218 = vmatmul.mubr.f32.gmra.mrb[0].mxu0 %v5940
      %v6219 = vpop.f32.mrb[0].mxu0
      %v6220 = vadd.f32 0.0, %v6219
      %v6221 = vpop.f32.mrb[0].mxu0
      %6222 = vmatprep.mubr.f32.mxu0 %v5958
      %6223 = vmatmul.mubr.f32.gmra.mrb[0].mxu0 %v5957
      %v6224 = vpop.f32.mrb[0].mxu0
      %v6225 = vadd.f32 0.0, %v6224
      %v6226 = vpop.f32.mrb[0].mxu0
      %6227 = vmatprep.mubr.f32.mxu0 %v5975
      %6228 = vmatmul.mubr.f32.gmra.mrb[0].mxu0 %v5974
      %v6229 = vpop.f32.mrb[0].mxu0
      %v6230 = vadd.f32 0.0, %v6229
      %v6231 = vpop.f32.mrb[0].mxu0
      %6232 = vdwg.mxu0
      %6233 = vmatprep.subr.mxu0 0.0
      %6234 = vmatpush1.msra.mxu0 %v5385
      %6235 = vmatprep.subr.mxu0 0.0
      %6236 = vmatpush1.msra.mxu0 %v5386
      %6237 = vmatprep.subr.mxu0 0.0
      %6238 = vmatpush1.msra.mxu0 %v5387
      %6239 = vmatprep.subr.mxu0 0.0
      %6240 = vmatpush1.msra.mxu0 %v5388
      %6241 = vmatprep.subr.mxu0 0.0
      %6242 = vmatpush1.msra.mxu0 %v5389
      %6243 = vmatprep.subr.mxu0 0.0
      %6244 = vmatpush1.msra.mxu0 %v5390
      %6245 = vmatprep.subr.mxu0 0.0
      %6246 = vmatpush1.msra.mxu0 %v5391
      %6247 = vmatprep.subr.mxu0 0.0
      %6248 = vmatpush1.msra.mxu0 %v5392
      %6249 = vmatprep.subr.mxu0 0.0
      %6250 = vmatpush1.msra.mxu0 %v5393
      %6251 = vmatprep.subr.mxu0 0.0
      %6252 = vmatpush1.msra.mxu0 %v5394
      %6253 = vmatprep.subr.mxu0 0.0
      %6254 = vmatpush1.msra.mxu0 %v5395
      %6255 = vmatprep.subr.mxu0 0.0
      %6256 = vmatpush1.msra.mxu0 %v5396
      %6257 = vmatprep.subr.mxu0 0.0
      %6258 = vmatpush1.msra.mxu0 %v5397
      %6259 = vmatprep.subr.mxu0 0.0
      %6260 = vmatpush1.msra.mxu0 %v5398
      %6261 = vmatprep.subr.mxu0 0.0
      %6262 = vmatpush1.msra.mxu0 %v5399
      %6263 = vmatprep.subr.mxu0 0.0
      %6264 = vmatpush1.msra.mxu0 %v5400
      %6265 = vmatprep.subr.mxu0 0.0
      %6266 = vmatpush1.msra.mxu0 %v5401
      %6267 = vmatprep.subr.mxu0 0.0
      %6268 = vmatpush1.msra.mxu0 %v5402
      %6269 = vmatprep.subr.mxu0 0.0
      %6270 = vmatpush1.msra.mxu0 %v5403
      %6271 = vmatprep.subr.mxu0 0.0
      %6272 = vmatpush1.msra.mxu0 %v5404
      %6273 = vmatprep.subr.mxu0 0.0
      %6274 = vmatpush1.msra.mxu0 %v5405
      %6275 = vmatprep.subr.mxu0 0.0
      %6276 = vmatpush1.msra.mxu0 %v5406
      %6277 = vmatprep.subr.mxu0 0.0
      %6278 = vmatpush1.msra.mxu0 %v5407
      %6279 = vmatprep.subr.mxu0 0.0
      %6280 = vmatpush1.msra.mxu0 %v5408
      %6281 = vmatprep.subr.mxu0 0.0
      %6282 = vmatpush1.msra.mxu0 %v5409
      %6283 = vmatprep.subr.mxu0 0.0
      %6284 = vmatpush1.msra.mxu0 %v5410
      %6285 = vmatprep.subr.mxu0 0.0
      %6286 = vmatpush1.msra.mxu0 %v5411
      %6287 = vmatprep.subr.mxu0 0.0
      %6288 = vmatpush1.msra.mxu0 %v5412
      %6289 = vmatprep.subr.mxu0 0.0
      %6290 = vmatpush1.msra.mxu0 %v5413
      %6291 = vmatprep.subr.mxu0 0.0
      %6292 = vmatpush1.msra.mxu0 %v5414
      %6293 = vmatprep.subr.mxu0 0.0
      %6294 = vmatpush1.msra.mxu0 %v5415
      %6295 = vmatprep.subr.mxu0 0.0
      %6296 = vmatpush1.msra.mxu0 %v5416
      %6297 = vmatprep.mubr.f32.mxu0 %v5620
      %6298 = vmatmul.mubr.f32.gmra.mrb[0].mxu0 %v5619
      %v6299 = vpop.f32.mrb[0].mxu0
      %v6300 = vadd.f32 %v6125, %v6299
      %v6301 = vpop.f32.mrb[0].mxu0
      %6302 = vmatprep.mubr.f32.mxu0 %v5637
      %6303 = vmatmul.mubr.f32.gmra.mrb[0].mxu0 %v5636
      %v6304 = vpop.f32.mrb[0].mxu0
      %v6305 = vadd.f32 %v6130, %v6304
      %v6306 = vpop.f32.mrb[0].mxu0
      %6307 = vmatprep.mubr.f32.mxu0 %v5654
      %6308 = vmatmul.mubr.f32.gmra.mrb[0].mxu0 %v5653
      %v6309 = vpop.f32.mrb[0].mxu0
      %v6310 = vadd.f32 %v6135, %v6309
      %v6311 = vpop.f32.mrb[0].mxu0
      %6312 = vmatprep.mubr.f32.mxu0 %v5671
      %6313 = vmatmul.mubr.f32.gmra.mrb[0].mxu0 %v5670
      %v6314 = vpop.f32.mrb[0].mxu0
      %v6315 = vadd.f32 %v6140, %v6314
      %v6316 = vpop.f32.mrb[0].mxu0
      %6317 = vmatprep.mubr.f32.mxu0 %v5688
      %6318 = vmatmul.mubr.f32.gmra.mrb[0].mxu0 %v5687
      %v6319 = vpop.f32.mrb[0].mxu0
      %v6320 = vadd.f32 %v6145, %v6319
      %v6321 = vpop.f32.mrb[0].mxu0
      %6322 = vmatprep.mubr.f32.mxu0 %v5705
      %6323 = vmatmul.mubr.f32.gmra.mrb[0].mxu0 %v5704
      %v6324 = vpop.f32.mrb[0].mxu0
      %v6325 = vadd.f32 %v6150, %v6324
      %v6326 = vpop.f32.mrb[0].mxu0
      %6327 = vmatprep.mubr.f32.mxu0 %v5722
      %6328 = vmatmul.mubr.f32.gmra.mrb[0].mxu0 %v5721
      %v6329 = vpop.f32.mrb[0].mxu0
      %v6330 = vadd.f32 %v6155, %v6329
      %v6331 = vpop.f32.mrb[0].mxu0
      %6332 = vmatprep.mubr.f32.mxu0 %v5739
      %6333 = vmatmul.mubr.f32.gmra.mrb[0].mxu0 %v5738
      %v6334 = vpop.f32.mrb[0].mxu0
      %v6335 = vadd.f32 %v6160, %v6334
      %v6336 = vpop.f32.mrb[0].mxu0
      %6337 = vmatprep.mubr.f32.mxu0 %v5756
      %6338 = vmatmul.mubr.f32.gmra.mrb[0].mxu0 %v5755
      %v6339 = vpop.f32.mrb[0].mxu0
      %v6340 = vadd.f32 %v6165, %v6339
      %v6341 = vpop.f32.mrb[0].mxu0
      %6342 = vmatprep.mubr.f32.mxu0 %v5773
      %6343 = vmatmul.mubr.f32.gmra.mrb[0].mxu0 %v5772
      %v6344 = vpop.f32.mrb[0].mxu0
      %v6345 = vadd.f32 %v6170, %v6344
      %v6346 = vpop.f32.mrb[0].mxu0
      %6347 = vmatprep.mubr.f32.mxu0 %v5790
      %6348 = vmatmul.mubr.f32.gmra.mrb[0].mxu0 %v5789
      %v6349 = vpop.f32.mrb[0].mxu0
      %v6350 = vadd.f32 %v6175, %v6349
      %v6351 = vpop.f32.mrb[0].mxu0
      %6352 = vmatprep.mubr.f32.mxu0 %v5807
      %6353 = vmatmul.mubr.f32.gmra.mrb[0].mxu0 %v5806
      %v6354 = vpop.f32.mrb[0].mxu0
      %v6355 = vadd.f32 %v6180, %v6354
      %v6356 = vpop.f32.mrb[0].mxu0
      %6357 = vmatprep.mubr.f32.mxu0 %v5824
      %6358 = vmatmul.mubr.f32.gmra.mrb[0].mxu0 %v5823
      %v6359 = vpop.f32.mrb[0].mxu0
      %v6360 = vadd.f32 %v6185, %v6359
      %v6361 = vpop.f32.mrb[0].mxu0
      %6362 = vmatprep.mubr.f32.mxu0 %v5841
      %6363 = vmatmul.mubr.f32.gmra.mrb[0].mxu0 %v5840
      %v6364 = vpop.f32.mrb[0].mxu0
      %v6365 = vadd.f32 %v6190, %v6364
      %v6366 = vpop.f32.mrb[0].mxu0
      %6367 = vmatprep.mubr.f32.mxu0 %v5858
      %6368 = vmatmul.mubr.f32.gmra.mrb[0].mxu0 %v5857
      %v6369 = vpop.f32.mrb[0].mxu0
      %v6370 = vadd.f32 %v6195, %v6369
      %v6371 = vpop.f32.mrb[0].mxu0
      %6372 = vmatprep.mubr.f32.mxu0 %v5875
      %6373 = vmatmul.mubr.f32.gmra.mrb[0].mxu0 %v5874
      %v6374 = vpop.f32.mrb[0].mxu0
      %v6375 = vadd.f32 %v6200, %v6374
      %v6376 = vpop.f32.mrb[0].mxu0
      %6377 = vmatprep.mubr.f32.mxu0 %v5892
      %6378 = vmatmul.mubr.f32.gmra.mrb[0].mxu0 %v5891
      %v6379 = vpop.f32.mrb[0].mxu0
      %v6380 = vadd.f32 %v6205, %v6379
      %v6381 = vpop.f32.mrb[0].mxu0
      %6382 = vmatprep.mubr.f32.mxu0 %v5909
      %6383 = vmatmul.mubr.f32.gmra.mrb[0].mxu0 %v5908
      %v6384 = vpop.f32.mrb[0].mxu0
      %v6385 = vadd.f32 %v6210, %v6384
      %v6386 = vpop.f32.mrb[0].mxu0
      %6387 = vmatprep.mubr.f32.mxu0 %v5926
      %6388 = vmatmul.mubr.f32.gmra.mrb[0].mxu0 %v5925
      %v6389 = vpop.f32.mrb[0].mxu0
      %v6390 = vadd.f32 %v6215, %v6389
      %v6391 = vpop.f32.mrb[0].mxu0
      %6392 = vmatprep.mubr.f32.mxu0 %v5943
      %6393 = vmatmul.mubr.f32.gmra.mrb[0].mxu0 %v5942
      %v6394 = vpop.f32.mrb[0].mxu0
      %v6395 = vadd.f32 %v6220, %v6394
      %v6396 = vpop.f32.mrb[0].mxu0
      %6397 = vmatprep.mubr.f32.mxu0 %v5960
      %6398 = vmatmul.mubr.f32.gmra.mrb[0].mxu0 %v5959
      %v6399 = vpop.f32.mrb[0].mxu0
      %v6400 = vadd.f32 %v6225, %v6399
      %v6401 = vpop.f32.mrb[0].mxu0
      %6402 = vmatprep.mubr.f32.mxu0 %v5977
      %6403 = vmatmul.mubr.f32.gmra.mrb[0].mxu0 %v5976
      %v6404 = vpop.f32.mrb[0].mxu0
      %v6405 = vadd.f32 %v6230, %v6404
      %v6406 = vpop.f32.mrb[0].mxu0
      %6407 = vdwg.mxu0
      %6408 = vmatprep.subr.mxu0 0.0
      %6409 = vmatpush1.msra.mxu0 %v5417
      %6410 = vmatprep.subr.mxu0 0.0
      %6411 = vmatpush1.msra.mxu0 %v5418
      %6412 = vmatprep.subr.mxu0 0.0
      %6413 = vmatpush1.msra.mxu0 %v5419
      %6414 = vmatprep.subr.mxu0 0.0
      %6415 = vmatpush1.msra.mxu0 %v5420
      %6416 = vmatprep.subr.mxu0 0.0
      %6417 = vmatpush1.msra.mxu0 %v5421
      %6418 = vmatprep.subr.mxu0 0.0
      %6419 = vmatpush1.msra.mxu0 %v5422
      %6420 = vmatprep.subr.mxu0 0.0
      %6421 = vmatpush1.msra.mxu0 %v5423
      %6422 = vmatprep.subr.mxu0 0.0
      %6423 = vmatpush1.msra.mxu0 %v5424
      %6424 = vmatprep.subr.mxu0 0.0
      %6425 = vmatpush1.msra.mxu0 %v5425
      %6426 = vmatprep.subr.mxu0 0.0
      %6427 = vmatpush1.msra.mxu0 %v5426
      %6428 = vmatprep.subr.mxu0 0.0
      %6429 = vmatpush1.msra.mxu0 %v5427
      %6430 = vmatprep.subr.mxu0 0.0
      %6431 = vmatpush1.msra.mxu0 %v5428
      %6432 = vmatprep.subr.mxu0 0.0
      %6433 = vmatpush1.msra.mxu0 %v5429
      %6434 = vmatprep.subr.mxu0 0.0
      %6435 = vmatpush1.msra.mxu0 %v5430
      %6436 = vmatprep.subr.mxu0 0.0
      %6437 = vmatpush1.msra.mxu0 %v5431
      %6438 = vmatprep.subr.mxu0 0.0
      %6439 = vmatpush1.msra.mxu0 %v5432
      %6440 = vmatprep.subr.mxu0 0.0
      %6441 = vmatpush1.msra.mxu0 %v5433
      %6442 = vmatprep.subr.mxu0 0.0
      %6443 = vmatpush1.msra.mxu0 %v5434
      %6444 = vmatprep.subr.mxu0 0.0
      %6445 = vmatpush1.msra.mxu0 %v5435
      %6446 = vmatprep.subr.mxu0 0.0
      %6447 = vmatpush1.msra.mxu0 %v5436
      %6448 = vmatprep.subr.mxu0 0.0
      %6449 = vmatpush1.msra.mxu0 %v5437
      %6450 = vmatprep.subr.mxu0 0.0
      %6451 = vmatpush1.msra.mxu0 %v5438
      %6452 = vmatprep.subr.mxu0 0.0
      %6453 = vmatpush1.msra.mxu0 %v5439
      %6454 = vmatprep.subr.mxu0 0.0
      %6455 = vmatpush1.msra.mxu0 %v5440
      %6456 = vmatprep.subr.mxu0 0.0
      %6457 = vmatpush1.msra.mxu0 %v5441
      %6458 = vmatprep.subr.mxu0 0.0
      %6459 = vmatpush1.msra.mxu0 %v5442
      %6460 = vmatprep.subr.mxu0 0.0
      %6461 = vmatpush1.msra.mxu0 %v5443
      %6462 = vmatprep.subr.mxu0 0.0
      %6463 = vmatpush1.msra.mxu0 %v5444
      %6464 = vmatprep.subr.mxu0 0.0
      %6465 = vmatpush1.msra.mxu0 %v5445
      %6466 = vmatprep.subr.mxu0 0.0
      %6467 = vmatpush1.msra.mxu0 %v5446
      %6468 = vmatprep.subr.mxu0 0.0
      %6469 = vmatpush1.msra.mxu0 %v5447
      %6470 = vmatprep.subr.mxu0 0.0
      %6471 = vmatpush1.msra.mxu0 %v5448
      %6472 = vmatprep.mubr.f32.mxu0 %v5622
      %6473 = vmatmul.mubr.f32.gmra.mrb[0].mxu0 %v5621
      %v6474 = vpop.f32.mrb[0].mxu0
      %v6475 = vadd.f32 %v6300, %v6474
      %v6476 = vpop.f32.mrb[0].mxu0
      %6477 = vmatprep.mubr.f32.mxu0 %v5639
      %6478 = vmatmul.mubr.f32.gmra.mrb[0].mxu0 %v5638
      %v6479 = vpop.f32.mrb[0].mxu0
      %v6480 = vadd.f32 %v6305, %v6479
      %v6481 = vpop.f32.mrb[0].mxu0
      %6482 = vmatprep.mubr.f32.mxu0 %v5656
      %6483 = vmatmul.mubr.f32.gmra.mrb[0].mxu0 %v5655
      %v6484 = vpop.f32.mrb[0].mxu0
      %v6485 = vadd.f32 %v6310, %v6484
      %v6486 = vpop.f32.mrb[0].mxu0
      %6487 = vmatprep.mubr.f32.mxu0 %v5673
      %6488 = vmatmul.mubr.f32.gmra.mrb[0].mxu0 %v5672
      %v6489 = vpop.f32.mrb[0].mxu0
      %v6490 = vadd.f32 %v6315, %v6489
      %v6491 = vpop.f32.mrb[0].mxu0
      %6492 = vmatprep.mubr.f32.mxu0 %v5690
      %6493 = vmatmul.mubr.f32.gmra.mrb[0].mxu0 %v5689
      %v6494 = vpop.f32.mrb[0].mxu0
      %v6495 = vadd.f32 %v6320, %v6494
      %v6496 = vpop.f32.mrb[0].mxu0
      %6497 = vmatprep.mubr.f32.mxu0 %v5707
      %6498 = vmatmul.mubr.f32.gmra.mrb[0].mxu0 %v5706
      %v6499 = vpop.f32.mrb[0].mxu0
      %v6500 = vadd.f32 %v6325, %v6499
      %v6501 = vpop.f32.mrb[0].mxu0
      %6502 = vmatprep.mubr.f32.mxu0 %v5724
      %6503 = vmatmul.mubr.f32.gmra.mrb[0].mxu0 %v5723
      %v6504 = vpop.f32.mrb[0].mxu0
      %v6505 = vadd.f32 %v6330, %v6504
      %v6506 = vpop.f32.mrb[0].mxu0
      %6507 = vmatprep.mubr.f32.mxu0 %v5741
      %6508 = vmatmul.mubr.f32.gmra.mrb[0].mxu0 %v5740
      %v6509 = vpop.f32.mrb[0].mxu0
      %v6510 = vadd.f32 %v6335, %v6509
      %v6511 = vpop.f32.mrb[0].mxu0
      %6512 = vmatprep.mubr.f32.mxu0 %v5758
      %6513 = vmatmul.mubr.f32.gmra.mrb[0].mxu0 %v5757
      %v6514 = vpop.f32.mrb[0].mxu0
      %v6515 = vadd.f32 %v6340, %v6514
      %v6516 = vpop.f32.mrb[0].mxu0
      %6517 = vmatprep.mubr.f32.mxu0 %v5775
      %6518 = vmatmul.mubr.f32.gmra.mrb[0].mxu0 %v5774
      %v6519 = vpop.f32.mrb[0].mxu0
      %v6520 = vadd.f32 %v6345, %v6519
      %v6521 = vpop.f32.mrb[0].mxu0
      %6522 = vmatprep.mubr.f32.mxu0 %v5792
      %6523 = vmatmul.mubr.f32.gmra.mrb[0].mxu0 %v5791
      %v6524 = vpop.f32.mrb[0].mxu0
      %v6525 = vadd.f32 %v6350, %v6524
      %v6526 = vpop.f32.mrb[0].mxu0
      %6527 = vmatprep.mubr.f32.mxu0 %v5809
      %6528 = vmatmul.mubr.f32.gmra.mrb[0].mxu0 %v5808
      %v6529 = vpop.f32.mrb[0].mxu0
      %v6530 = vadd.f32 %v6355, %v6529
      %v6531 = vpop.f32.mrb[0].mxu0
      %6532 = vmatprep.mubr.f32.mxu0 %v5826
      %6533 = vmatmul.mubr.f32.gmra.mrb[0].mxu0 %v5825
      %v6534 = vpop.f32.mrb[0].mxu0
      %v6535 = vadd.f32 %v6360, %v6534
      %v6536 = vpop.f32.mrb[0].mxu0
      %6537 = vmatprep.mubr.f32.mxu0 %v5843
      %6538 = vmatmul.mubr.f32.gmra.mrb[0].mxu0 %v5842
      %v6539 = vpop.f32.mrb[0].mxu0
      %v6540 = vadd.f32 %v6365, %v6539
      %v6541 = vpop.f32.mrb[0].mxu0
      %6542 = vmatprep.mubr.f32.mxu0 %v5860
      %6543 = vmatmul.mubr.f32.gmra.mrb[0].mxu0 %v5859
      %v6544 = vpop.f32.mrb[0].mxu0
      %v6545 = vadd.f32 %v6370, %v6544
      %v6546 = vpop.f32.mrb[0].mxu0
      %6547 = vmatprep.mubr.f32.mxu0 %v5877
      %6548 = vmatmul.mubr.f32.gmra.mrb[0].mxu0 %v5876
      %v6549 = vpop.f32.mrb[0].mxu0
      %v6550 = vadd.f32 %v6375, %v6549
      %v6551 = vpop.f32.mrb[0].mxu0
      %6552 = vmatprep.mubr.f32.mxu0 %v5894
      %6553 = vmatmul.mubr.f32.gmra.mrb[0].mxu0 %v5893
      %v6554 = vpop.f32.mrb[0].mxu0
      %v6555 = vadd.f32 %v6380, %v6554
      %v6556 = vpop.f32.mrb[0].mxu0
      %6557 = vmatprep.mubr.f32.mxu0 %v5911
      %6558 = vmatmul.mubr.f32.gmra.mrb[0].mxu0 %v5910
      %v6559 = vpop.f32.mrb[0].mxu0
      %v6560 = vadd.f32 %v6385, %v6559
      %v6561 = vpop.f32.mrb[0].mxu0
      %6562 = vmatprep.mubr.f32.mxu0 %v5928
      %6563 = vmatmul.mubr.f32.gmra.mrb[0].mxu0 %v5927
      %v6564 = vpop.f32.mrb[0].mxu0
      %v6565 = vadd.f32 %v6390, %v6564
      %v6566 = vpop.f32.mrb[0].mxu0
      %6567 = vmatprep.mubr.f32.mxu0 %v5945
      %6568 = vmatmul.mubr.f32.gmra.mrb[0].mxu0 %v5944
      %v6569 = vpop.f32.mrb[0].mxu0
      %v6570 = vadd.f32 %v6395, %v6569
      %v6571 = vpop.f32.mrb[0].mxu0
      %6572 = vmatprep.mubr.f32.mxu0 %v5962
      %6573 = vmatmul.mubr.f32.gmra.mrb[0].mxu0 %v5961
      %v6574 = vpop.f32.mrb[0].mxu0
      %v6575 = vadd.f32 %v6400, %v6574
      %v6576 = vpop.f32.mrb[0].mxu0
      %6577 = vmatprep.mubr.f32.mxu0 %v5979
      %6578 = vmatmul.mubr.f32.gmra.mrb[0].mxu0 %v5978
      %v6579 = vpop.f32.mrb[0].mxu0
      %v6580 = vadd.f32 %v6405, %v6579
      %v6581 = vpop.f32.mrb[0].mxu0
      %6582 = vdwg.mxu0
      %6583 = vmatprep.subr.mxu0 0.0
      %6584 = vmatpush1.msra.mxu0 %v5449
      %6585 = vmatprep.subr.mxu0 0.0
      %6586 = vmatpush1.msra.mxu0 %v5450
      %6587 = vmatprep.subr.mxu0 0.0
      %6588 = vmatpush1.msra.mxu0 %v5451
      %6589 = vmatprep.subr.mxu0 0.0
      %6590 = vmatpush1.msra.mxu0 %v5452
      %6591 = vmatprep.subr.mxu0 0.0
      %6592 = vmatpush1.msra.mxu0 %v5453
      %6593 = vmatprep.subr.mxu0 0.0
      %6594 = vmatpush1.msra.mxu0 %v5454
      %6595 = vmatprep.subr.mxu0 0.0
      %6596 = vmatpush1.msra.mxu0 %v5455
      %6597 = vmatprep.subr.mxu0 0.0
      %6598 = vmatpush1.msra.mxu0 %v5456
      %6599 = vmatprep.subr.mxu0 0.0
      %6600 = vmatpush1.msra.mxu0 %v5457
      %6601 = vmatprep.subr.mxu0 0.0
      %6602 = vmatpush1.msra.mxu0 %v5458
      %6603 = vmatprep.subr.mxu0 0.0
      %6604 = vmatpush1.msra.mxu0 %v5459
      %6605 = vmatprep.subr.mxu0 0.0
      %6606 = vmatpush1.msra.mxu0 %v5460
      %6607 = vmatprep.subr.mxu0 0.0
      %6608 = vmatpush1.msra.mxu0 %v5461
      %6609 = vmatprep.subr.mxu0 0.0
      %6610 = vmatpush1.msra.mxu0 %v5462
      %6611 = vmatprep.subr.mxu0 0.0
      %6612 = vmatpush1.msra.mxu0 %v5463
      %6613 = vmatprep.subr.mxu0 0.0
      %6614 = vmatpush1.msra.mxu0 %v5464
      %6615 = vmatprep.subr.mxu0 0.0
      %6616 = vmatpush1.msra.mxu0 %v5465
      %6617 = vmatprep.subr.mxu0 0.0
      %6618 = vmatpush1.msra.mxu0 %v5466
      %6619 = vmatprep.subr.mxu0 0.0
      %6620 = vmatpush1.msra.mxu0 %v5467
      %6621 = vmatprep.subr.mxu0 0.0
      %6622 = vmatpush1.msra.mxu0 %v5468
      %6623 = vmatprep.subr.mxu0 0.0
      %6624 = vmatpush1.msra.mxu0 %v5469
      %6625 = vmatprep.subr.mxu0 0.0
      %6626 = vmatpush1.msra.mxu0 %v5470
      %6627 = vmatprep.subr.mxu0 0.0
      %6628 = vmatpush1.msra.mxu0 %v5471
      %6629 = vmatprep.subr.mxu0 0.0
      %6630 = vmatpush1.msra.mxu0 %v5472
      %6631 = vmatprep.subr.mxu0 0.0
      %6632 = vmatpush1.msra.mxu0 %v5473
      %6633 = vmatprep.subr.mxu0 0.0
      %6634 = vmatpush1.msra.mxu0 %v5474
      %6635 = vmatprep.subr.mxu0 0.0
      %6636 = vmatpush1.msra.mxu0 %v5475
      %6637 = vmatprep.subr.mxu0 0.0
      %6638 = vmatpush1.msra.mxu0 %v5476
      %6639 = vmatprep.subr.mxu0 0.0
      %6640 = vmatpush1.msra.mxu0 %v5477
      %6641 = vmatprep.subr.mxu0 0.0
      %6642 = vmatpush1.msra.mxu0 %v5478
      %6643 = vmatprep.subr.mxu0 0.0
      %6644 = vmatpush1.msra.mxu0 %v5479
      %6645 = vmatprep.subr.mxu0 0.0
      %6646 = vmatpush1.msra.mxu0 %v5480
      %6647 = vmatprep.mubr.f32.mxu0 %v5624
      %6648 = vmatmul.mubr.f32.gmra.mrb[0].mxu0 %v5623
      %v6649 = vpop.f32.mrb[0].mxu0
      %v6650 = vadd.f32 %v6475, %v6649
      %v6651 = vpop.f32.mrb[0].mxu0
      %6652 = vmatprep.mubr.f32.mxu0 %v5641
      %6653 = vmatmul.mubr.f32.gmra.mrb[0].mxu0 %v5640
      %v6654 = vpop.f32.mrb[0].mxu0
      %v6655 = vadd.f32 %v6480, %v6654
      %v6656 = vpop.f32.mrb[0].mxu0
      %6657 = vmatprep.mubr.f32.mxu0 %v5658
      %6658 = vmatmul.mubr.f32.gmra.mrb[0].mxu0 %v5657
      %v6659 = vpop.f32.mrb[0].mxu0
      %v6660 = vadd.f32 %v6485, %v6659
      %v6661 = vpop.f32.mrb[0].mxu0
      %6662 = vmatprep.mubr.f32.mxu0 %v5675
      %6663 = vmatmul.mubr.f32.gmra.mrb[0].mxu0 %v5674
      %v6664 = vpop.f32.mrb[0].mxu0
      %v6665 = vadd.f32 %v6490, %v6664
      %v6666 = vpop.f32.mrb[0].mxu0
      %6667 = vmatprep.mubr.f32.mxu0 %v5692
      %6668 = vmatmul.mubr.f32.gmra.mrb[0].mxu0 %v5691
      %v6669 = vpop.f32.mrb[0].mxu0
      %v6670 = vadd.f32 %v6495, %v6669
      %v6671 = vpop.f32.mrb[0].mxu0
      %6672 = vmatprep.mubr.f32.mxu0 %v5709
      %6673 = vmatmul.mubr.f32.gmra.mrb[0].mxu0 %v5708
      %v6674 = vpop.f32.mrb[0].mxu0
      %v6675 = vadd.f32 %v6500, %v6674
      %v6676 = vpop.f32.mrb[0].mxu0
      %6677 = vmatprep.mubr.f32.mxu0 %v5726
      %6678 = vmatmul.mubr.f32.gmra.mrb[0].mxu0 %v5725
      %v6679 = vpop.f32.mrb[0].mxu0
      %v6680 = vadd.f32 %v6505, %v6679
      %v6681 = vpop.f32.mrb[0].mxu0
      %6682 = vmatprep.mubr.f32.mxu0 %v5743
      %6683 = vmatmul.mubr.f32.gmra.mrb[0].mxu0 %v5742
      %v6684 = vpop.f32.mrb[0].mxu0
      %v6685 = vadd.f32 %v6510, %v6684
      %v6686 = vpop.f32.mrb[0].mxu0
      %6687 = vmatprep.mubr.f32.mxu0 %v5760
      %6688 = vmatmul.mubr.f32.gmra.mrb[0].mxu0 %v5759
      %v6689 = vpop.f32.mrb[0].mxu0
      %v6690 = vadd.f32 %v6515, %v6689
      %v6691 = vpop.f32.mrb[0].mxu0
      %6692 = vmatprep.mubr.f32.mxu0 %v5777
      %6693 = vmatmul.mubr.f32.gmra.mrb[0].mxu0 %v5776
      %v6694 = vpop.f32.mrb[0].mxu0
      %v6695 = vadd.f32 %v6520, %v6694
      %v6696 = vpop.f32.mrb[0].mxu0
      %6697 = vmatprep.mubr.f32.mxu0 %v5794
      %6698 = vmatmul.mubr.f32.gmra.mrb[0].mxu0 %v5793
      %v6699 = vpop.f32.mrb[0].mxu0
      %v6700 = vadd.f32 %v6525, %v6699
      %v6701 = vpop.f32.mrb[0].mxu0
      %6702 = vmatprep.mubr.f32.mxu0 %v5811
      %6703 = vmatmul.mubr.f32.gmra.mrb[0].mxu0 %v5810
      %v6704 = vpop.f32.mrb[0].mxu0
      %v6705 = vadd.f32 %v6530, %v6704
      %v6706 = vpop.f32.mrb[0].mxu0
      %6707 = vmatprep.mubr.f32.mxu0 %v5828
      %6708 = vmatmul.mubr.f32.gmra.mrb[0].mxu0 %v5827
      %v6709 = vpop.f32.mrb[0].mxu0
      %v6710 = vadd.f32 %v6535, %v6709
      %v6711 = vpop.f32.mrb[0].mxu0
      %6712 = vmatprep.mubr.f32.mxu0 %v5845
      %6713 = vmatmul.mubr.f32.gmra.mrb[0].mxu0 %v5844
      %v6714 = vpop.f32.mrb[0].mxu0
      %v6715 = vadd.f32 %v6540, %v6714
      %v6716 = vpop.f32.mrb[0].mxu0
      %6717 = vmatprep.mubr.f32.mxu0 %v5862
      %6718 = vmatmul.mubr.f32.gmra.mrb[0].mxu0 %v5861
      %v6719 = vpop.f32.mrb[0].mxu0
      %v6720 = vadd.f32 %v6545, %v6719
      %v6721 = vpop.f32.mrb[0].mxu0
      %6722 = vmatprep.mubr.f32.mxu0 %v5879
      %6723 = vmatmul.mubr.f32.gmra.mrb[0].mxu0 %v5878
      %v6724 = vpop.f32.mrb[0].mxu0
      %v6725 = vadd.f32 %v6550, %v6724
      %v6726 = vpop.f32.mrb[0].mxu0
      %6727 = vmatprep.mubr.f32.mxu0 %v5896
      %6728 = vmatmul.mubr.f32.gmra.mrb[0].mxu0 %v5895
      %v6729 = vpop.f32.mrb[0].mxu0
      %v6730 = vadd.f32 %v6555, %v6729
      %v6731 = vpop.f32.mrb[0].mxu0
      %6732 = vmatprep.mubr.f32.mxu0 %v5913
      %6733 = vmatmul.mubr.f32.gmra.mrb[0].mxu0 %v5912
      %v6734 = vpop.f32.mrb[0].mxu0
      %v6735 = vadd.f32 %v6560, %v6734
      %v6736 = vpop.f32.mrb[0].mxu0
      %6737 = vmatprep.mubr.f32.mxu0 %v5930
      %6738 = vmatmul.mubr.f32.gmra.mrb[0].mxu0 %v5929
      %v6739 = vpop.f32.mrb[0].mxu0
      %v6740 = vadd.f32 %v6565, %v6739
      %v6741 = vpop.f32.mrb[0].mxu0
      %6742 = vmatprep.mubr.f32.mxu0 %v5947
      %6743 = vmatmul.mubr.f32.gmra.mrb[0].mxu0 %v5946
      %v6744 = vpop.f32.mrb[0].mxu0
      %v6745 = vadd.f32 %v6570, %v6744
      %v6746 = vpop.f32.mrb[0].mxu0
      %6747 = vmatprep.mubr.f32.mxu0 %v5964
      %6748 = vmatmul.mubr.f32.gmra.mrb[0].mxu0 %v5963
      %v6749 = vpop.f32.mrb[0].mxu0
      %v6750 = vadd.f32 %v6575, %v6749
      %v6751 = vpop.f32.mrb[0].mxu0
      %6752 = vmatprep.mubr.f32.mxu0 %v5981
      %6753 = vmatmul.mubr.f32.gmra.mrb[0].mxu0 %v5980
      %v6754 = vpop.f32.mrb[0].mxu0
      %v6755 = vadd.f32 %v6580, %v6754
      %v6756 = vpop.f32.mrb[0].mxu0
      %6757 = vdwg.mxu0
      %6758 = vmatprep.subr.mxu0 0.0
      %6759 = vmatpush1.msra.mxu0 %v5481
      %6760 = vmatprep.subr.mxu0 0.0
      %6761 = vmatpush1.msra.mxu0 %v5482
      %6762 = vmatprep.subr.mxu0 0.0
      %6763 = vmatpush1.msra.mxu0 %v5483
      %6764 = vmatprep.subr.mxu0 0.0
      %6765 = vmatpush1.msra.mxu0 %v5484
      %6766 = vmatprep.subr.mxu0 0.0
      %6767 = vmatpush1.msra.mxu0 %v5485
      %6768 = vmatprep.subr.mxu0 0.0
      %6769 = vmatpush1.msra.mxu0 %v5486
      %6770 = vmatprep.subr.mxu0 0.0
      %6771 = vmatpush1.msra.mxu0 %v5487
      %6772 = vmatprep.subr.mxu0 0.0
      %6773 = vmatpush1.msra.mxu0 %v5488
      %6774 = vmatprep.subr.mxu0 0.0
      %6775 = vmatpush1.msra.mxu0 %v5489
      %6776 = vmatprep.subr.mxu0 0.0
      %6777 = vmatpush1.msra.mxu0 %v5490
      %6778 = vmatprep.subr.mxu0 0.0
      %6779 = vmatpush1.msra.mxu0 %v5491
      %6780 = vmatprep.subr.mxu0 0.0
      %6781 = vmatpush1.msra.mxu0 %v5492
      %6782 = vmatprep.subr.mxu0 0.0
      %6783 = vmatpush1.msra.mxu0 %v5493
      %6784 = vmatprep.subr.mxu0 0.0
      %6785 = vmatpush1.msra.mxu0 %v5494
      %6786 = vmatprep.subr.mxu0 0.0
      %6787 = vmatpush1.msra.mxu0 %v5495
      %6788 = vmatprep.subr.mxu0 0.0
      %6789 = vmatpush1.msra.mxu0 %v5496
      %6790 = vmatprep.subr.mxu0 0.0
      %6791 = vmatpush1.msra.mxu0 %v5497
      %6792 = vmatprep.subr.mxu0 0.0
      %6793 = vmatpush1.msra.mxu0 %v5498
      %6794 = vmatprep.subr.mxu0 0.0
      %6795 = vmatpush1.msra.mxu0 %v5499
      %6796 = vmatprep.subr.mxu0 0.0
      %6797 = vmatpush1.msra.mxu0 %v5500
      %6798 = vmatprep.subr.mxu0 0.0
      %6799 = vmatpush1.msra.mxu0 %v5501
      %6800 = vmatprep.subr.mxu0 0.0
      %6801 = vmatpush1.msra.mxu0 %v5502
      %6802 = vmatprep.subr.mxu0 0.0
      %6803 = vmatpush1.msra.mxu0 %v5503
      %6804 = vmatprep.subr.mxu0 0.0
      %6805 = vmatpush1.msra.mxu0 %v5504
      %6806 = vmatprep.subr.mxu0 0.0
      %6807 = vmatpush1.msra.mxu0 %v5505
      %6808 = vmatprep.subr.mxu0 0.0
      %6809 = vmatpush1.msra.mxu0 %v5506
      %6810 = vmatprep.subr.mxu0 0.0
      %6811 = vmatpush1.msra.mxu0 %v5507
      %6812 = vmatprep.subr.mxu0 0.0
      %6813 = vmatpush1.msra.mxu0 %v5508
      %6814 = vmatprep.subr.mxu0 0.0
      %6815 = vmatpush1.msra.mxu0 %v5509
      %6816 = vmatprep.subr.mxu0 0.0
      %6817 = vmatpush1.msra.mxu0 %v5510
      %6818 = vmatprep.subr.mxu0 0.0
      %6819 = vmatpush1.msra.mxu0 %v5511
      %6820 = vmatprep.subr.mxu0 0.0
      %6821 = vmatpush1.msra.mxu0 %v5512
      %6822 = vmatprep.mubr.f32.mxu0 %v5626
      %6823 = vmatmul.mubr.f32.gmra.mrb[0].mxu0 %v5625
      %v6824 = vpop.f32.mrb[0].mxu0
      %v6825 = vadd.f32 %v6650, %v6824
      %v6826 = vpop.f32.mrb[0].mxu0
      %6827 = vmatprep.mubr.f32.mxu0 %v5643
      %6828 = vmatmul.mubr.f32.gmra.mrb[0].mxu0 %v5642
      %v6829 = vpop.f32.mrb[0].mxu0
      %v6830 = vadd.f32 %v6655, %v6829
      %v6831 = vpop.f32.mrb[0].mxu0
      %6832 = vmatprep.mubr.f32.mxu0 %v5660
      %6833 = vmatmul.mubr.f32.gmra.mrb[0].mxu0 %v5659
      %v6834 = vpop.f32.mrb[0].mxu0
      %v6835 = vadd.f32 %v6660, %v6834
      %v6836 = vpop.f32.mrb[0].mxu0
      %6837 = vmatprep.mubr.f32.mxu0 %v5677
      %6838 = vmatmul.mubr.f32.gmra.mrb[0].mxu0 %v5676
      %v6839 = vpop.f32.mrb[0].mxu0
      %v6840 = vadd.f32 %v6665, %v6839
      %v6841 = vpop.f32.mrb[0].mxu0
      %6842 = vmatprep.mubr.f32.mxu0 %v5694
      %6843 = vmatmul.mubr.f32.gmra.mrb[0].mxu0 %v5693
      %v6844 = vpop.f32.mrb[0].mxu0
      %v6845 = vadd.f32 %v6670, %v6844
      %v6846 = vpop.f32.mrb[0].mxu0
      %6847 = vmatprep.mubr.f32.mxu0 %v5711
      %6848 = vmatmul.mubr.f32.gmra.mrb[0].mxu0 %v5710
      %v6849 = vpop.f32.mrb[0].mxu0
      %v6850 = vadd.f32 %v6675, %v6849
      %v6851 = vpop.f32.mrb[0].mxu0
      %6852 = vmatprep.mubr.f32.mxu0 %v5728
      %6853 = vmatmul.mubr.f32.gmra.mrb[0].mxu0 %v5727
      %v6854 = vpop.f32.mrb[0].mxu0
      %v6855 = vadd.f32 %v6680, %v6854
      %v6856 = vpop.f32.mrb[0].mxu0
      %6857 = vmatprep.mubr.f32.mxu0 %v5745
      %6858 = vmatmul.mubr.f32.gmra.mrb[0].mxu0 %v5744
      %v6859 = vpop.f32.mrb[0].mxu0
      %v6860 = vadd.f32 %v6685, %v6859
      %v6861 = vpop.f32.mrb[0].mxu0
      %6862 = vmatprep.mubr.f32.mxu0 %v5762
      %6863 = vmatmul.mubr.f32.gmra.mrb[0].mxu0 %v5761
      %v6864 = vpop.f32.mrb[0].mxu0
      %v6865 = vadd.f32 %v6690, %v6864
      %v6866 = vpop.f32.mrb[0].mxu0
      %6867 = vmatprep.mubr.f32.mxu0 %v5779
      %6868 = vmatmul.mubr.f32.gmra.mrb[0].mxu0 %v5778
      %v6869 = vpop.f32.mrb[0].mxu0
      %v6870 = vadd.f32 %v6695, %v6869
      %v6871 = vpop.f32.mrb[0].mxu0
      %6872 = vmatprep.mubr.f32.mxu0 %v5796
      %6873 = vmatmul.mubr.f32.gmra.mrb[0].mxu0 %v5795
      %v6874 = vpop.f32.mrb[0].mxu0
      %v6875 = vadd.f32 %v6700, %v6874
      %v6876 = vpop.f32.mrb[0].mxu0
      %6877 = vmatprep.mubr.f32.mxu0 %v5813
      %6878 = vmatmul.mubr.f32.gmra.mrb[0].mxu0 %v5812
      %v6879 = vpop.f32.mrb[0].mxu0
      %v6880 = vadd.f32 %v6705, %v6879
      %v6881 = vpop.f32.mrb[0].mxu0
      %6882 = vmatprep.mubr.f32.mxu0 %v5830
      %6883 = vmatmul.mubr.f32.gmra.mrb[0].mxu0 %v5829
      %v6884 = vpop.f32.mrb[0].mxu0
      %v6885 = vadd.f32 %v6710, %v6884
      %v6886 = vpop.f32.mrb[0].mxu0
      %6887 = vmatprep.mubr.f32.mxu0 %v5847
      %6888 = vmatmul.mubr.f32.gmra.mrb[0].mxu0 %v5846
      %v6889 = vpop.f32.mrb[0].mxu0
      %v6890 = vadd.f32 %v6715, %v6889
      %v6891 = vpop.f32.mrb[0].mxu0
      %6892 = vmatprep.mubr.f32.mxu0 %v5864
      %6893 = vmatmul.mubr.f32.gmra.mrb[0].mxu0 %v5863
      %v6894 = vpop.f32.mrb[0].mxu0
      %v6895 = vadd.f32 %v6720, %v6894
      %v6896 = vpop.f32.mrb[0].mxu0
      %6897 = vmatprep.mubr.f32.mxu0 %v5881
      %6898 = vmatmul.mubr.f32.gmra.mrb[0].mxu0 %v5880
      %v6899 = vpop.f32.mrb[0].mxu0
      %v6900 = vadd.f32 %v6725, %v6899
      %v6901 = vpop.f32.mrb[0].mxu0
      %6902 = vmatprep.mubr.f32.mxu0 %v5898
      %6903 = vmatmul.mubr.f32.gmra.mrb[0].mxu0 %v5897
      %v6904 = vpop.f32.mrb[0].mxu0
      %v6905 = vadd.f32 %v6730, %v6904
      %v6906 = vpop.f32.mrb[0].mxu0
      %6907 = vmatprep.mubr.f32.mxu0 %v5915
      %6908 = vmatmul.mubr.f32.gmra.mrb[0].mxu0 %v5914
      %v6909 = vpop.f32.mrb[0].mxu0
      %v6910 = vadd.f32 %v6735, %v6909
      %v6911 = vpop.f32.mrb[0].mxu0
      %6912 = vmatprep.mubr.f32.mxu0 %v5932
      %6913 = vmatmul.mubr.f32.gmra.mrb[0].mxu0 %v5931
      %v6914 = vpop.f32.mrb[0].mxu0
      %v6915 = vadd.f32 %v6740, %v6914
      %v6916 = vpop.f32.mrb[0].mxu0
      %6917 = vmatprep.mubr.f32.mxu0 %v5949
      %6918 = vmatmul.mubr.f32.gmra.mrb[0].mxu0 %v5948
      %v6919 = vpop.f32.mrb[0].mxu0
      %v6920 = vadd.f32 %v6745, %v6919
      %v6921 = vpop.f32.mrb[0].mxu0
      %6922 = vmatprep.mubr.f32.mxu0 %v5966
      %6923 = vmatmul.mubr.f32.gmra.mrb[0].mxu0 %v5965
      %v6924 = vpop.f32.mrb[0].mxu0
      %v6925 = vadd.f32 %v6750, %v6924
      %v6926 = vpop.f32.mrb[0].mxu0
      %6927 = vmatprep.mubr.f32.mxu0 %v5983
      %6928 = vmatmul.mubr.f32.gmra.mrb[0].mxu0 %v5982
      %v6929 = vpop.f32.mrb[0].mxu0
      %v6930 = vadd.f32 %v6755, %v6929
      %v6931 = vpop.f32.mrb[0].mxu0
      %6932 = vdwg.mxu0
      %6933 = vmatprep.subr.mxu0 0.0
      %6934 = vmatpush1.msra.mxu0 %v5513
      %6935 = vmatprep.subr.mxu0 0.0
      %6936 = vmatpush1.msra.mxu0 %v5514
      %6937 = vmatprep.subr.mxu0 0.0
      %6938 = vmatpush1.msra.mxu0 %v5515
      %6939 = vmatprep.subr.mxu0 0.0
      %6940 = vmatpush1.msra.mxu0 %v5516
      %6941 = vmatprep.subr.mxu0 0.0
      %6942 = vmatpush1.msra.mxu0 %v5517
      %6943 = vmatprep.subr.mxu0 0.0
      %6944 = vmatpush1.msra.mxu0 %v5518
      %6945 = vmatprep.subr.mxu0 0.0
      %6946 = vmatpush1.msra.mxu0 %v5519
      %6947 = vmatprep.subr.mxu0 0.0
      %6948 = vmatpush1.msra.mxu0 %v5520
      %6949 = vmatprep.subr.mxu0 0.0
      %6950 = vmatpush1.msra.mxu0 %v5521
      %6951 = vmatprep.subr.mxu0 0.0
      %6952 = vmatpush1.msra.mxu0 %v5522
      %6953 = vmatprep.subr.mxu0 0.0
      %6954 = vmatpush1.msra.mxu0 %v5523
      %6955 = vmatprep.subr.mxu0 0.0
      %6956 = vmatpush1.msra.mxu0 %v5524
      %6957 = vmatprep.subr.mxu0 0.0
      %6958 = vmatpush1.msra.mxu0 %v5525
      %6959 = vmatprep.subr.mxu0 0.0
      %6960 = vmatpush1.msra.mxu0 %v5526
      %6961 = vmatprep.subr.mxu0 0.0
      %6962 = vmatpush1.msra.mxu0 %v5527
      %6963 = vmatprep.subr.mxu0 0.0
      %6964 = vmatpush1.msra.mxu0 %v5528
      %6965 = vmatprep.subr.mxu0 0.0
      %6966 = vmatpush1.msra.mxu0 %v5529
      %6967 = vmatprep.subr.mxu0 0.0
      %6968 = vmatpush1.msra.mxu0 %v5530
      %6969 = vmatprep.subr.mxu0 0.0
      %6970 = vmatpush1.msra.mxu0 %v5531
      %6971 = vmatprep.subr.mxu0 0.0
      %6972 = vmatpush1.msra.mxu0 %v5532
      %6973 = vmatprep.subr.mxu0 0.0
      %6974 = vmatpush1.msra.mxu0 %v5533
      %6975 = vmatprep.subr.mxu0 0.0
      %6976 = vmatpush1.msra.mxu0 %v5534
      %6977 = vmatprep.subr.mxu0 0.0
      %6978 = vmatpush1.msra.mxu0 %v5535
      %6979 = vmatprep.subr.mxu0 0.0
      %6980 = vmatpush1.msra.mxu0 %v5536
      %6981 = vmatprep.subr.mxu0 0.0
      %6982 = vmatpush1.msra.mxu0 %v5537
      %6983 = vmatprep.subr.mxu0 0.0
      %6984 = vmatpush1.msra.mxu0 %v5538
      %6985 = vmatprep.subr.mxu0 0.0
      %6986 = vmatpush1.msra.mxu0 %v5539
      %6987 = vmatprep.subr.mxu0 0.0
      %6988 = vmatpush1.msra.mxu0 %v5540
      %6989 = vmatprep.subr.mxu0 0.0
      %6990 = vmatpush1.msra.mxu0 %v5541
      %6991 = vmatprep.subr.mxu0 0.0
      %6992 = vmatpush1.msra.mxu0 %v5542
      %6993 = vmatprep.subr.mxu0 0.0
      %6994 = vmatpush1.msra.mxu0 %v5543
      %6995 = vmatprep.subr.mxu0 0.0
      %6996 = vmatpush1.msra.mxu0 %v5544
      %6997 = vmatprep.mubr.f32.mxu0 %v5628
      %6998 = vmatmul.mubr.f32.gmra.mrb[0].mxu0 %v5627
      %v6999 = vpop.f32.mrb[0].mxu0
      %v7000 = vadd.f32 %v6825, %v6999
      %v7001 = vpop.f32.mrb[0].mxu0
      %7002 = vmatprep.mubr.f32.mxu0 %v5645
      %7003 = vmatmul.mubr.f32.gmra.mrb[0].mxu0 %v5644
      %v7004 = vpop.f32.mrb[0].mxu0
      %v7005 = vadd.f32 %v6830, %v7004
      %v7006 = vpop.f32.mrb[0].mxu0
      %7007 = vmatprep.mubr.f32.mxu0 %v5662
      %7008 = vmatmul.mubr.f32.gmra.mrb[0].mxu0 %v5661
      %v7009 = vpop.f32.mrb[0].mxu0
      %v7010 = vadd.f32 %v6835, %v7009
      %v7011 = vpop.f32.mrb[0].mxu0
      %7012 = vmatprep.mubr.f32.mxu0 %v5679
      %7013 = vmatmul.mubr.f32.gmra.mrb[0].mxu0 %v5678
      %v7014 = vpop.f32.mrb[0].mxu0
      %v7015 = vadd.f32 %v6840, %v7014
      %v7016 = vpop.f32.mrb[0].mxu0
      %7017 = vmatprep.mubr.f32.mxu0 %v5696
      %7018 = vmatmul.mubr.f32.gmra.mrb[0].mxu0 %v5695
      %v7019 = vpop.f32.mrb[0].mxu0
      %v7020 = vadd.f32 %v6845, %v7019
      %v7021 = vpop.f32.mrb[0].mxu0
      %7022 = vmatprep.mubr.f32.mxu0 %v5713
      %7023 = vmatmul.mubr.f32.gmra.mrb[0].mxu0 %v5712
      %v7024 = vpop.f32.mrb[0].mxu0
      %v7025 = vadd.f32 %v6850, %v7024
      %v7026 = vpop.f32.mrb[0].mxu0
      %7027 = vmatprep.mubr.f32.mxu0 %v5730
      %7028 = vmatmul.mubr.f32.gmra.mrb[0].mxu0 %v5729
      %v7029 = vpop.f32.mrb[0].mxu0
      %v7030 = vadd.f32 %v6855, %v7029
      %v7031 = vpop.f32.mrb[0].mxu0
      %7032 = vmatprep.mubr.f32.mxu0 %v5747
      %7033 = vmatmul.mubr.f32.gmra.mrb[0].mxu0 %v5746
      %v7034 = vpop.f32.mrb[0].mxu0
      %v7035 = vadd.f32 %v6860, %v7034
      %v7036 = vpop.f32.mrb[0].mxu0
      %7037 = vmatprep.mubr.f32.mxu0 %v5764
      %7038 = vmatmul.mubr.f32.gmra.mrb[0].mxu0 %v5763
      %v7039 = vpop.f32.mrb[0].mxu0
      %v7040 = vadd.f32 %v6865, %v7039
      %v7041 = vpop.f32.mrb[0].mxu0
      %7042 = vmatprep.mubr.f32.mxu0 %v5781
      %7043 = vmatmul.mubr.f32.gmra.mrb[0].mxu0 %v5780
      %v7044 = vpop.f32.mrb[0].mxu0
      %v7045 = vadd.f32 %v6870, %v7044
      %v7046 = vpop.f32.mrb[0].mxu0
      %7047 = vmatprep.mubr.f32.mxu0 %v5798
      %7048 = vmatmul.mubr.f32.gmra.mrb[0].mxu0 %v5797
      %v7049 = vpop.f32.mrb[0].mxu0
      %v7050 = vadd.f32 %v6875, %v7049
      %v7051 = vpop.f32.mrb[0].mxu0
      %7052 = vmatprep.mubr.f32.mxu0 %v5815
      %7053 = vmatmul.mubr.f32.gmra.mrb[0].mxu0 %v5814
      %v7054 = vpop.f32.mrb[0].mxu0
      %v7055 = vadd.f32 %v6880, %v7054
      %v7056 = vpop.f32.mrb[0].mxu0
      %7057 = vmatprep.mubr.f32.mxu0 %v5832
      %7058 = vmatmul.mubr.f32.gmra.mrb[0].mxu0 %v5831
      %v7059 = vpop.f32.mrb[0].mxu0
      %v7060 = vadd.f32 %v6885, %v7059
      %v7061 = vpop.f32.mrb[0].mxu0
      %7062 = vmatprep.mubr.f32.mxu0 %v5849
      %7063 = vmatmul.mubr.f32.gmra.mrb[0].mxu0 %v5848
      %v7064 = vpop.f32.mrb[0].mxu0
      %v7065 = vadd.f32 %v6890, %v7064
      %v7066 = vpop.f32.mrb[0].mxu0
      %7067 = vmatprep.mubr.f32.mxu0 %v5866
      %7068 = vmatmul.mubr.f32.gmra.mrb[0].mxu0 %v5865
      %v7069 = vpop.f32.mrb[0].mxu0
      %v7070 = vadd.f32 %v6895, %v7069
      %v7071 = vpop.f32.mrb[0].mxu0
      %7072 = vmatprep.mubr.f32.mxu0 %v5883
      %7073 = vmatmul.mubr.f32.gmra.mrb[0].mxu0 %v5882
      %v7074 = vpop.f32.mrb[0].mxu0
      %v7075 = vadd.f32 %v6900, %v7074
      %v7076 = vpop.f32.mrb[0].mxu0
      %7077 = vmatprep.mubr.f32.mxu0 %v5900
      %7078 = vmatmul.mubr.f32.gmra.mrb[0].mxu0 %v5899
      %v7079 = vpop.f32.mrb[0].mxu0
      %v7080 = vadd.f32 %v6905, %v7079
      %v7081 = vpop.f32.mrb[0].mxu0
      %7082 = vmatprep.mubr.f32.mxu0 %v5917
      %7083 = vmatmul.mubr.f32.gmra.mrb[0].mxu0 %v5916
      %v7084 = vpop.f32.mrb[0].mxu0
      %v7085 = vadd.f32 %v6910, %v7084
      %v7086 = vpop.f32.mrb[0].mxu0
      %7087 = vmatprep.mubr.f32.mxu0 %v5934
      %7088 = vmatmul.mubr.f32.gmra.mrb[0].mxu0 %v5933
      %v7089 = vpop.f32.mrb[0].mxu0
      %v7090 = vadd.f32 %v6915, %v7089
      %v7091 = vpop.f32.mrb[0].mxu0
      %7092 = vmatprep.mubr.f32.mxu0 %v5951
      %7093 = vmatmul.mubr.f32.gmra.mrb[0].mxu0 %v5950
      %v7094 = vpop.f32.mrb[0].mxu0
      %v7095 = vadd.f32 %v6920, %v7094
      %v7096 = vpop.f32.mrb[0].mxu0
      %7097 = vmatprep.mubr.f32.mxu0 %v5968
      %7098 = vmatmul.mubr.f32.gmra.mrb[0].mxu0 %v5967
      %v7099 = vpop.f32.mrb[0].mxu0
      %v7100 = vadd.f32 %v6925, %v7099
      %v7101 = vpop.f32.mrb[0].mxu0
      %7102 = vmatprep.mubr.f32.mxu0 %v5985
      %7103 = vmatmul.mubr.f32.gmra.mrb[0].mxu0 %v5984
      %v7104 = vpop.f32.mrb[0].mxu0
      %v7105 = vadd.f32 %v6930, %v7104
      %v7106 = vpop.f32.mrb[0].mxu0
      %7107 = vdwg.mxu0
      %7108 = vmatprep.subr.mxu0 0.0
      %7109 = vmatpush1.msra.mxu0 %v5545
      %7110 = vmatprep.subr.mxu0 0.0
      %7111 = vmatpush1.msra.mxu0 %v5546
      %7112 = vmatprep.subr.mxu0 0.0
      %7113 = vmatpush1.msra.mxu0 %v5547
      %7114 = vmatprep.subr.mxu0 0.0
      %7115 = vmatpush1.msra.mxu0 %v5548
      %7116 = vmatprep.subr.mxu0 0.0
      %7117 = vmatpush1.msra.mxu0 %v5549
      %7118 = vmatprep.subr.mxu0 0.0
      %7119 = vmatpush1.msra.mxu0 %v5550
      %7120 = vmatprep.subr.mxu0 0.0
      %7121 = vmatpush1.msra.mxu0 %v5551
      %7122 = vmatprep.subr.mxu0 0.0
      %7123 = vmatpush1.msra.mxu0 %v5552
      %7124 = vmatprep.subr.mxu0 0.0
      %7125 = vmatpush1.msra.mxu0 %v5553
      %7126 = vmatprep.subr.mxu0 0.0
      %7127 = vmatpush1.msra.mxu0 %v5554
      %7128 = vmatprep.subr.mxu0 0.0
      %7129 = vmatpush1.msra.mxu0 %v5555
      %7130 = vmatprep.subr.mxu0 0.0
      %7131 = vmatpush1.msra.mxu0 %v5556
      %7132 = vmatprep.subr.mxu0 0.0
      %7133 = vmatpush1.msra.mxu0 %v5557
      %7134 = vmatprep.subr.mxu0 0.0
      %7135 = vmatpush1.msra.mxu0 %v5558
      %7136 = vmatprep.subr.mxu0 0.0
      %7137 = vmatpush1.msra.mxu0 %v5559
      %7138 = vmatprep.subr.mxu0 0.0
      %7139 = vmatpush1.msra.mxu0 %v5560
      %7140 = vmatprep.subr.mxu0 0.0
      %7141 = vmatpush1.msra.mxu0 %v5561
      %7142 = vmatprep.subr.mxu0 0.0
      %7143 = vmatpush1.msra.mxu0 %v5562
      %7144 = vmatprep.subr.mxu0 0.0
      %7145 = vmatpush1.msra.mxu0 %v5563
      %7146 = vmatprep.subr.mxu0 0.0
      %7147 = vmatpush1.msra.mxu0 %v5564
      %7148 = vmatprep.subr.mxu0 0.0
      %7149 = vmatpush1.msra.mxu0 %v5565
      %7150 = vmatprep.subr.mxu0 0.0
      %7151 = vmatpush1.msra.mxu0 %v5566
      %7152 = vmatprep.subr.mxu0 0.0
      %7153 = vmatpush1.msra.mxu0 %v5567
      %7154 = vmatprep.subr.mxu0 0.0
      %7155 = vmatpush1.msra.mxu0 %v5568
      %7156 = vmatprep.subr.mxu0 0.0
      %7157 = vmatpush1.msra.mxu0 %v5569
      %7158 = vmatprep.subr.mxu0 0.0
      %7159 = vmatpush1.msra.mxu0 %v5570
      %7160 = vmatprep.subr.mxu0 0.0
      %7161 = vmatpush1.msra.mxu0 %v5571
      %7162 = vmatprep.subr.mxu0 0.0
      %7163 = vmatpush1.msra.mxu0 %v5572
      %7164 = vmatprep.subr.mxu0 0.0
      %7165 = vmatpush1.msra.mxu0 %v5573
      %7166 = vmatprep.subr.mxu0 0.0
      %7167 = vmatpush1.msra.mxu0 %v5574
      %7168 = vmatprep.subr.mxu0 0.0
      %7169 = vmatpush1.msra.mxu0 %v5575
      %7170 = vmatprep.subr.mxu0 0.0
      %7171 = vmatpush1.msra.mxu0 %v5576
      %7172 = vmatprep.mubr.f32.mxu0 %v5630
      %7173 = vmatmul.mubr.f32.gmra.mrb[0].mxu0 %v5629
      %v7174 = vpop.f32.mrb[0].mxu0
      %v7175 = vadd.f32 %v7000, %v7174
      %v7176 = vpop.f32.mrb[0].mxu0
      %7177 = vmatprep.mubr.f32.mxu0 %v5647
      %7178 = vmatmul.mubr.f32.gmra.mrb[0].mxu0 %v5646
      %v7179 = vpop.f32.mrb[0].mxu0
      %v7180 = vadd.f32 %v7005, %v7179
      %v7181 = vpop.f32.mrb[0].mxu0
      %7182 = vmatprep.mubr.f32.mxu0 %v5664
      %7183 = vmatmul.mubr.f32.gmra.mrb[0].mxu0 %v5663
      %v7184 = vpop.f32.mrb[0].mxu0
      %v7185 = vadd.f32 %v7010, %v7184
      %v7186 = vpop.f32.mrb[0].mxu0
      %7187 = vmatprep.mubr.f32.mxu0 %v5681
      %7188 = vmatmul.mubr.f32.gmra.mrb[0].mxu0 %v5680
      %v7189 = vpop.f32.mrb[0].mxu0
      %v7190 = vadd.f32 %v7015, %v7189
      %v7191 = vpop.f32.mrb[0].mxu0
      %7192 = vmatprep.mubr.f32.mxu0 %v5698
      %7193 = vmatmul.mubr.f32.gmra.mrb[0].mxu0 %v5697
      %v7194 = vpop.f32.mrb[0].mxu0
      %v7195 = vadd.f32 %v7020, %v7194
      %v7196 = vpop.f32.mrb[0].mxu0
      %7197 = vmatprep.mubr.f32.mxu0 %v5715
      %7198 = vmatmul.mubr.f32.gmra.mrb[0].mxu0 %v5714
      %v7199 = vpop.f32.mrb[0].mxu0
      %v7200 = vadd.f32 %v7025, %v7199
      %v7201 = vpop.f32.mrb[0].mxu0
      %7202 = vmatprep.mubr.f32.mxu0 %v5732
      %7203 = vmatmul.mubr.f32.gmra.mrb[0].mxu0 %v5731
      %v7204 = vpop.f32.mrb[0].mxu0
      %v7205 = vadd.f32 %v7030, %v7204
      %v7206 = vpop.f32.mrb[0].mxu0
      %7207 = vmatprep.mubr.f32.mxu0 %v5749
      %7208 = vmatmul.mubr.f32.gmra.mrb[0].mxu0 %v5748
      %v7209 = vpop.f32.mrb[0].mxu0
      %v7210 = vadd.f32 %v7035, %v7209
      %v7211 = vpop.f32.mrb[0].mxu0
      %7212 = vmatprep.mubr.f32.mxu0 %v5766
      %7213 = vmatmul.mubr.f32.gmra.mrb[0].mxu0 %v5765
      %v7214 = vpop.f32.mrb[0].mxu0
      %v7215 = vadd.f32 %v7040, %v7214
      %v7216 = vpop.f32.mrb[0].mxu0
      %7217 = vmatprep.mubr.f32.mxu0 %v5783
      %7218 = vmatmul.mubr.f32.gmra.mrb[0].mxu0 %v5782
      %v7219 = vpop.f32.mrb[0].mxu0
      %v7220 = vadd.f32 %v7045, %v7219
      %v7221 = vpop.f32.mrb[0].mxu0
      %7222 = vmatprep.mubr.f32.mxu0 %v5800
      %7223 = vmatmul.mubr.f32.gmra.mrb[0].mxu0 %v5799
      %v7224 = vpop.f32.mrb[0].mxu0
      %v7225 = vadd.f32 %v7050, %v7224
      %v7226 = vpop.f32.mrb[0].mxu0
      %7227 = vmatprep.mubr.f32.mxu0 %v5817
      %7228 = vmatmul.mubr.f32.gmra.mrb[0].mxu0 %v5816
      %v7229 = vpop.f32.mrb[0].mxu0
      %v7230 = vadd.f32 %v7055, %v7229
      %v7231 = vpop.f32.mrb[0].mxu0
      %7232 = vmatprep.mubr.f32.mxu0 %v5834
      %7233 = vmatmul.mubr.f32.gmra.mrb[0].mxu0 %v5833
      %v7234 = vpop.f32.mrb[0].mxu0
      %v7235 = vadd.f32 %v7060, %v7234
      %v7236 = vpop.f32.mrb[0].mxu0
      %7237 = vmatprep.mubr.f32.mxu0 %v5851
      %7238 = vmatmul.mubr.f32.gmra.mrb[0].mxu0 %v5850
      %v7239 = vpop.f32.mrb[0].mxu0
      %v7240 = vadd.f32 %v7065, %v7239
      %v7241 = vpop.f32.mrb[0].mxu0
      %7242 = vmatprep.mubr.f32.mxu0 %v5868
      %7243 = vmatmul.mubr.f32.gmra.mrb[0].mxu0 %v5867
      %v7244 = vpop.f32.mrb[0].mxu0
      %v7245 = vadd.f32 %v7070, %v7244
      %v7246 = vpop.f32.mrb[0].mxu0
      %7247 = vmatprep.mubr.f32.mxu0 %v5885
      %7248 = vmatmul.mubr.f32.gmra.mrb[0].mxu0 %v5884
      %v7249 = vpop.f32.mrb[0].mxu0
      %v7250 = vadd.f32 %v7075, %v7249
      %v7251 = vpop.f32.mrb[0].mxu0
      %7252 = vmatprep.mubr.f32.mxu0 %v5902
      %7253 = vmatmul.mubr.f32.gmra.mrb[0].mxu0 %v5901
      %v7254 = vpop.f32.mrb[0].mxu0
      %v7255 = vadd.f32 %v7080, %v7254
      %v7256 = vpop.f32.mrb[0].mxu0
      %7257 = vmatprep.mubr.f32.mxu0 %v5919
      %7258 = vmatmul.mubr.f32.gmra.mrb[0].mxu0 %v5918
      %v7259 = vpop.f32.mrb[0].mxu0
      %v7260 = vadd.f32 %v7085, %v7259
      %v7261 = vpop.f32.mrb[0].mxu0
      %7262 = vmatprep.mubr.f32.mxu0 %v5936
      %7263 = vmatmul.mubr.f32.gmra.mrb[0].mxu0 %v5935
      %v7264 = vpop.f32.mrb[0].mxu0
      %v7265 = vadd.f32 %v7090, %v7264
      %v7266 = vpop.f32.mrb[0].mxu0
      %7267 = vmatprep.mubr.f32.mxu0 %v5953
      %7268 = vmatmul.mubr.f32.gmra.mrb[0].mxu0 %v5952
      %v7269 = vpop.f32.mrb[0].mxu0
      %v7270 = vadd.f32 %v7095, %v7269
      %v7271 = vpop.f32.mrb[0].mxu0
      %7272 = vmatprep.mubr.f32.mxu0 %v5970
      %7273 = vmatmul.mubr.f32.gmra.mrb[0].mxu0 %v5969
      %v7274 = vpop.f32.mrb[0].mxu0
      %v7275 = vadd.f32 %v7100, %v7274
      %v7276 = vpop.f32.mrb[0].mxu0
      %7277 = vmatprep.mubr.f32.mxu0 %v5987
      %7278 = vmatmul.mubr.f32.gmra.mrb[0].mxu0 %v5986
      %v7279 = vpop.f32.mrb[0].mxu0
      %v7280 = vadd.f32 %v7105, %v7279
      %v7281 = vpop.f32.mrb[0].mxu0
      %7282 = vdwg.mxu0
      %7283 = vmatprep.subr.mxu0 0.0
      %7284 = vmatpush1.msra.mxu0 %v5577
      %7285 = vmatprep.subr.mxu0 0.0
      %7286 = vmatpush1.msra.mxu0 %v5578
      %7287 = vmatprep.subr.mxu0 0.0
      %7288 = vmatpush1.msra.mxu0 %v5579
      %7289 = vmatprep.subr.mxu0 0.0
      %7290 = vmatpush1.msra.mxu0 %v5580
      %7291 = vmatprep.subr.mxu0 0.0
      %7292 = vmatpush1.msra.mxu0 %v5581
      %7293 = vmatprep.subr.mxu0 0.0
      %7294 = vmatpush1.msra.mxu0 %v5582
      %7295 = vmatprep.subr.mxu0 0.0
      %7296 = vmatpush1.msra.mxu0 %v5583
      %7297 = vmatprep.subr.mxu0 0.0
      %7298 = vmatpush1.msra.mxu0 %v5584
      %7299 = vmatprep.subr.mxu0 0.0
      %7300 = vmatpush1.msra.mxu0 %v5585
      %7301 = vmatprep.subr.mxu0 0.0
      %7302 = vmatpush1.msra.mxu0 %v5586
      %7303 = vmatprep.subr.mxu0 0.0
      %7304 = vmatpush1.msra.mxu0 %v5587
      %7305 = vmatprep.subr.mxu0 0.0
      %7306 = vmatpush1.msra.mxu0 %v5588
      %7307 = vmatprep.subr.mxu0 0.0
      %7308 = vmatpush1.msra.mxu0 %v5589
      %7309 = vmatprep.subr.mxu0 0.0
      %7310 = vmatpush1.msra.mxu0 %v5590
      %7311 = vmatprep.subr.mxu0 0.0
      %7312 = vmatpush1.msra.mxu0 %v5591
      %7313 = vmatprep.subr.mxu0 0.0
      %7314 = vmatpush1.msra.mxu0 %v5592
      %7315 = vmatprep.subr.mxu0 0.0
      %7316 = vmatpush1.msra.mxu0 %v5593
      %7317 = vmatprep.subr.mxu0 0.0
      %7318 = vmatpush1.msra.mxu0 %v5594
      %7319 = vmatprep.subr.mxu0 0.0
      %7320 = vmatpush1.msra.mxu0 %v5595
      %7321 = vmatprep.subr.mxu0 0.0
      %7322 = vmatpush1.msra.mxu0 %v5596
      %7323 = vmatprep.subr.mxu0 0.0
      %7324 = vmatpush1.msra.mxu0 %v5597
      %7325 = vmatprep.subr.mxu0 0.0
      %7326 = vmatpush1.msra.mxu0 %v5598
      %7327 = vmatprep.subr.mxu0 0.0
      %7328 = vmatpush1.msra.mxu0 %v5599
      %7329 = vmatprep.subr.mxu0 0.0
      %7330 = vmatpush1.msra.mxu0 %v5600
      %7331 = vmatprep.subr.mxu0 0.0
      %7332 = vmatpush1.msra.mxu0 %v5601
      %7333 = vmatprep.subr.mxu0 0.0
      %7334 = vmatpush1.msra.mxu0 %v5602
      %7335 = vmatprep.subr.mxu0 0.0
      %7336 = vmatpush1.msra.mxu0 %v5603
      %7337 = vmatprep.subr.mxu0 0.0
      %7338 = vmatpush1.msra.mxu0 %v5604
      %7339 = vmatprep.subr.mxu0 0.0
      %7340 = vmatpush1.msra.mxu0 %v5605
      %7341 = vmatprep.subr.mxu0 0.0
      %7342 = vmatpush1.msra.mxu0 %v5606
      %7343 = vmatprep.subr.mxu0 0.0
      %7344 = vmatpush1.msra.mxu0 %v5607
      %7345 = vmatprep.subr.mxu0 0.0
      %7346 = vmatpush1.msra.mxu0 %v5608
      %7347 = vmatprep.mubr.f32.mxu0 %v5632
      %7348 = vmatmul.mubr.f32.gmra.mrb[0].mxu0 %v5631
      %v7349 = vpop.f32.mrb[0].mxu0
      %v7350 = vadd.f32 %v7175, %v7349
      %v7351 = vpop.f32.mrb[0].mxu0
      %7352 = vmatprep.mubr.f32.mxu0 %v5649
      %7353 = vmatmul.mubr.f32.gmra.mrb[0].mxu0 %v5648
      %v7354 = vpop.f32.mrb[0].mxu0
      %v7355 = vadd.f32 %v7180, %v7354
      %v7356 = vpop.f32.mrb[0].mxu0
      %7357 = vmatprep.mubr.f32.mxu0 %v5666
      %7358 = vmatmul.mubr.f32.gmra.mrb[0].mxu0 %v5665
      %v7359 = vpop.f32.mrb[0].mxu0
      %v7360 = vadd.f32 %v7185, %v7359
      %v7361 = vpop.f32.mrb[0].mxu0
      %7362 = vmatprep.mubr.f32.mxu0 %v5683
      %7363 = vmatmul.mubr.f32.gmra.mrb[0].mxu0 %v5682
      %v7364 = vpop.f32.mrb[0].mxu0
      %v7365 = vadd.f32 %v7190, %v7364
      %v7366 = vpop.f32.mrb[0].mxu0
      %7367 = vmatprep.mubr.f32.mxu0 %v5700
      %7368 = vmatmul.mubr.f32.gmra.mrb[0].mxu0 %v5699
      %v7369 = vpop.f32.mrb[0].mxu0
      %v7370 = vadd.f32 %v7195, %v7369
      %v7371 = vpop.f32.mrb[0].mxu0
      %7372 = vmatprep.mubr.f32.mxu0 %v5717
      %7373 = vmatmul.mubr.f32.gmra.mrb[0].mxu0 %v5716
      %v7374 = vpop.f32.mrb[0].mxu0
      %v7375 = vadd.f32 %v7200, %v7374
      %v7376 = vpop.f32.mrb[0].mxu0
      %7377 = vmatprep.mubr.f32.mxu0 %v5734
      %7378 = vmatmul.mubr.f32.gmra.mrb[0].mxu0 %v5733
      %v7379 = vpop.f32.mrb[0].mxu0
      %v7380 = vadd.f32 %v7205, %v7379
      %v7381 = vpop.f32.mrb[0].mxu0
      %7382 = vmatprep.mubr.f32.mxu0 %v5751
      %7383 = vmatmul.mubr.f32.gmra.mrb[0].mxu0 %v5750
      %v7384 = vpop.f32.mrb[0].mxu0
      %v7385 = vadd.f32 %v7210, %v7384
      %v7386 = vpop.f32.mrb[0].mxu0
      %7387 = vmatprep.mubr.f32.mxu0 %v5768
      %7388 = vmatmul.mubr.f32.gmra.mrb[0].mxu0 %v5767
      %v7389 = vpop.f32.mrb[0].mxu0
      %v7390 = vadd.f32 %v7215, %v7389
      %v7391 = vpop.f32.mrb[0].mxu0
      %7392 = vmatprep.mubr.f32.mxu0 %v5785
      %7393 = vmatmul.mubr.f32.gmra.mrb[0].mxu0 %v5784
      %v7394 = vpop.f32.mrb[0].mxu0
      %v7395 = vadd.f32 %v7220, %v7394
      %v7396 = vpop.f32.mrb[0].mxu0
      %7397 = vmatprep.mubr.f32.mxu0 %v5802
      %7398 = vmatmul.mubr.f32.gmra.mrb[0].mxu0 %v5801
      %v7399 = vpop.f32.mrb[0].mxu0
      %v7400 = vadd.f32 %v7225, %v7399
      %v7401 = vpop.f32.mrb[0].mxu0
      %7402 = vmatprep.mubr.f32.mxu0 %v5819
      %7403 = vmatmul.mubr.f32.gmra.mrb[0].mxu0 %v5818
      %v7404 = vpop.f32.mrb[0].mxu0
      %v7405 = vadd.f32 %v7230, %v7404
      %v7406 = vpop.f32.mrb[0].mxu0
      %7407 = vmatprep.mubr.f32.mxu0 %v5836
      %7408 = vmatmul.mubr.f32.gmra.mrb[0].mxu0 %v5835
      %v7409 = vpop.f32.mrb[0].mxu0
      %v7410 = vadd.f32 %v7235, %v7409
      %v7411 = vpop.f32.mrb[0].mxu0
      %7412 = vmatprep.mubr.f32.mxu0 %v5853
      %7413 = vmatmul.mubr.f32.gmra.mrb[0].mxu0 %v5852
      %v7414 = vpop.f32.mrb[0].mxu0
      %v7415 = vadd.f32 %v7240, %v7414
      %v7416 = vpop.f32.mrb[0].mxu0
      %7417 = vmatprep.mubr.f32.mxu0 %v5870
      %7418 = vmatmul.mubr.f32.gmra.mrb[0].mxu0 %v5869
      %v7419 = vpop.f32.mrb[0].mxu0
      %v7420 = vadd.f32 %v7245, %v7419
      %v7421 = vpop.f32.mrb[0].mxu0
      %7422 = vmatprep.mubr.f32.mxu0 %v5887
      %7423 = vmatmul.mubr.f32.gmra.mrb[0].mxu0 %v5886
      %v7424 = vpop.f32.mrb[0].mxu0
      %v7425 = vadd.f32 %v7250, %v7424
      %v7426 = vpop.f32.mrb[0].mxu0
      %7427 = vmatprep.mubr.f32.mxu0 %v5904
      %7428 = vmatmul.mubr.f32.gmra.mrb[0].mxu0 %v5903
      %v7429 = vpop.f32.mrb[0].mxu0
      %v7430 = vadd.f32 %v7255, %v7429
      %v7431 = vpop.f32.mrb[0].mxu0
      %7432 = vmatprep.mubr.f32.mxu0 %v5921
      %7433 = vmatmul.mubr.f32.gmra.mrb[0].mxu0 %v5920
      %v7434 = vpop.f32.mrb[0].mxu0
      %v7435 = vadd.f32 %v7260, %v7434
      %v7436 = vpop.f32.mrb[0].mxu0
      %7437 = vmatprep.mubr.f32.mxu0 %v5938
      %7438 = vmatmul.mubr.f32.gmra.mrb[0].mxu0 %v5937
      %v7439 = vpop.f32.mrb[0].mxu0
      %v7440 = vadd.f32 %v7265, %v7439
      %v7441 = vpop.f32.mrb[0].mxu0
      %7442 = vmatprep.mubr.f32.mxu0 %v5955
      %7443 = vmatmul.mubr.f32.gmra.mrb[0].mxu0 %v5954
      %v7444 = vpop.f32.mrb[0].mxu0
      %v7445 = vadd.f32 %v7270, %v7444
      %v7446 = vpop.f32.mrb[0].mxu0
      %7447 = vmatprep.mubr.f32.mxu0 %v5972
      %7448 = vmatmul.mubr.f32.gmra.mrb[0].mxu0 %v5971
      %v7449 = vpop.f32.mrb[0].mxu0
      %v7450 = vadd.f32 %v7275, %v7449
      %v7451 = vpop.f32.mrb[0].mxu0
      %7452 = vmatprep.mubr.f32.mxu0 %v5989
      %7453 = vmatmul.mubr.f32.gmra.mrb[0].mxu0 %v5988
      %v7454 = vpop.f32.mrb[0].mxu0
      %v7455 = vadd.f32 %v7280, %v7454
      %v7456 = vpop.f32.mrb[0].mxu0
      %7457 = vdwg.mxu0
      %7458 = vmatprep.subr.mxu0 0.0
      %7459 = vmatpush1.msra.mxu0 %v5609
      %7460 = vmatprep.subr.mxu0 0.0
      %7461 = vmatpush1.msra.mxu0 %v5610
      %7462 = vmatprep.subr.mxu0 0.0
      %7463 = vmatpush1.msra.mxu0 %v5611
      %7464 = vmatprep.subr.mxu0 0.0
      %7465 = vmatpush1.msra.mxu0 %v5612
      %7466 = vmatprep.subr.mxu0 0.0
      %7467 = vmatpush1.msra.mxu0 %v5613
      %7468 = vmatprep.subr.mxu0 0.0
      %7469 = vmatpush1.msra.mxu0 %v5614
      %7470 = vmatprep.subr.mxu0 0.0
      %7471 = vmatpush1.msra.mxu0 %v5615
      %7472 = vmatprep.subr.mxu0 0.0
      %7473 = vmatpush1.msra.mxu0 %v5616
      %7474 = vmatprep.subr.mxu0 0.0
      %7475 = vmatpush1.msra.mxu0 0.0
      %7476 = vmatprep.subr.mxu0 0.0
      %7477 = vmatpush1.msra.mxu0 0.0
      %7478 = vmatprep.subr.mxu0 0.0
      %7479 = vmatpush1.msra.mxu0 0.0
      %7480 = vmatprep.subr.mxu0 0.0
      %7481 = vmatpush1.msra.mxu0 0.0
      %7482 = vmatprep.subr.mxu0 0.0
      %7483 = vmatpush1.msra.mxu0 0.0
      %7484 = vmatprep.subr.mxu0 0.0
      %7485 = vmatpush1.msra.mxu0 0.0
      %7486 = vmatprep.subr.mxu0 0.0
      %7487 = vmatpush1.msra.mxu0 0.0
      %7488 = vmatprep.subr.mxu0 0.0
      %7489 = vmatpush1.msra.mxu0 0.0
      %7490 = vmatprep.subr.mxu0 0.0
      %7491 = vmatpush1.msra.mxu0 0.0
      %7492 = vmatprep.subr.mxu0 0.0
      %7493 = vmatpush1.msra.mxu0 0.0
      %7494 = vmatprep.subr.mxu0 0.0
      %7495 = vmatpush1.msra.mxu0 0.0
      %7496 = vmatprep.subr.mxu0 0.0
      %7497 = vmatpush1.msra.mxu0 0.0
      %7498 = vmatprep.subr.mxu0 0.0
      %7499 = vmatpush1.msra.mxu0 0.0
      %7500 = vmatprep.subr.mxu0 0.0
      %7501 = vmatpush1.msra.mxu0 0.0
      %7502 = vmatprep.subr.mxu0 0.0
      %7503 = vmatpush1.msra.mxu0 0.0
      %7504 = vmatprep.subr.mxu0 0.0
      %7505 = vmatpush1.msra.mxu0 0.0
      %7506 = vmatprep.subr.mxu0 0.0
      %7507 = vmatpush1.msra.mxu0 0.0
      %7508 = vmatprep.subr.mxu0 0.0
      %7509 = vmatpush1.msra.mxu0 0.0
      %7510 = vmatprep.subr.mxu0 0.0
      %7511 = vmatpush1.msra.mxu0 0.0
      %7512 = vmatprep.subr.mxu0 0.0
      %7513 = vmatpush1.msra.mxu0 0.0
      %7514 = vmatprep.subr.mxu0 0.0
      %7515 = vmatpush1.msra.mxu0 0.0
      %7516 = vmatprep.subr.mxu0 0.0
      %7517 = vmatpush1.msra.mxu0 0.0
      %7518 = vmatprep.subr.mxu0 0.0
      %7519 = vmatpush1.msra.mxu0 0.0
      %7520 = vmatprep.subr.mxu0 0.0
      %7521 = vmatpush1.msra.mxu0 0.0
      %7522 = vmatprep.mubr.f32.mxu0 0.0
      %7523 = vmatmul.mubr.f32.gmra.mrb[0].mxu0 %v5993
      %v7524 = vpop.f32.mrb[0].mxu0
      %v7525 = vadd.f32 %v7350, %v7524
      %v7526 = vpop.f32.mrb[0].mxu0
      %7527 = vmatprep.mubr.f32.mxu0 0.0
      %7528 = vmatmul.mubr.f32.gmra.mrb[0].mxu0 %v5996
      %v7529 = vpop.f32.mrb[0].mxu0
      %v7530 = vadd.f32 %v7355, %v7529
      %v7531 = vpop.f32.mrb[0].mxu0
      %7532 = vmatprep.mubr.f32.mxu0 0.0
      %7533 = vmatmul.mubr.f32.gmra.mrb[0].mxu0 %v5999
      %v7534 = vpop.f32.mrb[0].mxu0
      %v7535 = vadd.f32 %v7360, %v7534
      %v7536 = vpop.f32.mrb[0].mxu0
      %7537 = vmatprep.mubr.f32.mxu0 0.0
      %7538 = vmatmul.mubr.f32.gmra.mrb[0].mxu0 %v6002
      %v7539 = vpop.f32.mrb[0].mxu0
      %v7540 = vadd.f32 %v7365, %v7539
      %v7541 = vpop.f32.mrb[0].mxu0
      %7542 = vmatprep.mubr.f32.mxu0 0.0
      %7543 = vmatmul.mubr.f32.gmra.mrb[0].mxu0 %v6005
      %v7544 = vpop.f32.mrb[0].mxu0
      %v7545 = vadd.f32 %v7370, %v7544
      %v7546 = vpop.f32.mrb[0].mxu0
      %7547 = vmatprep.mubr.f32.mxu0 0.0
      %7548 = vmatmul.mubr.f32.gmra.mrb[0].mxu0 %v6008
      %v7549 = vpop.f32.mrb[0].mxu0
      %v7550 = vadd.f32 %v7375, %v7549
      %v7551 = vpop.f32.mrb[0].mxu0
      %7552 = vmatprep.mubr.f32.mxu0 0.0
      %7553 = vmatmul.mubr.f32.gmra.mrb[0].mxu0 %v6011
      %v7554 = vpop.f32.mrb[0].mxu0
      %v7555 = vadd.f32 %v7380, %v7554
      %v7556 = vpop.f32.mrb[0].mxu0
      %7557 = vmatprep.mubr.f32.mxu0 0.0
      %7558 = vmatmul.mubr.f32.gmra.mrb[0].mxu0 %v6014
      %v7559 = vpop.f32.mrb[0].mxu0
      %v7560 = vadd.f32 %v7385, %v7559
      %v7561 = vpop.f32.mrb[0].mxu0
      %7562 = vmatprep.mubr.f32.mxu0 0.0
      %7563 = vmatmul.mubr.f32.gmra.mrb[0].mxu0 %v6017
      %v7564 = vpop.f32.mrb[0].mxu0
      %v7565 = vadd.f32 %v7390, %v7564
      %v7566 = vpop.f32.mrb[0].mxu0
      %7567 = vmatprep.mubr.f32.mxu0 0.0
      %7568 = vmatmul.mubr.f32.gmra.mrb[0].mxu0 %v6020
      %v7569 = vpop.f32.mrb[0].mxu0
      %v7570 = vadd.f32 %v7395, %v7569
      %v7571 = vpop.f32.mrb[0].mxu0
      %7572 = vmatprep.mubr.f32.mxu0 0.0
      %7573 = vmatmul.mubr.f32.gmra.mrb[0].mxu0 %v6023
      %v7574 = vpop.f32.mrb[0].mxu0
      %v7575 = vadd.f32 %v7400, %v7574
      %v7576 = vpop.f32.mrb[0].mxu0
      %7577 = vmatprep.mubr.f32.mxu0 0.0
      %7578 = vmatmul.mubr.f32.gmra.mrb[0].mxu0 %v6026
      %v7579 = vpop.f32.mrb[0].mxu0
      %v7580 = vadd.f32 %v7405, %v7579
      %v7581 = vpop.f32.mrb[0].mxu0
      %7582 = vmatprep.mubr.f32.mxu0 0.0
      %7583 = vmatmul.mubr.f32.gmra.mrb[0].mxu0 %v6029
      %v7584 = vpop.f32.mrb[0].mxu0
      %v7585 = vadd.f32 %v7410, %v7584
      %v7586 = vpop.f32.mrb[0].mxu0
      %7587 = vmatprep.mubr.f32.mxu0 0.0
      %7588 = vmatmul.mubr.f32.gmra.mrb[0].mxu0 %v6032
      %v7589 = vpop.f32.mrb[0].mxu0
      %v7590 = vadd.f32 %v7415, %v7589
      %v7591 = vpop.f32.mrb[0].mxu0
      %7592 = vmatprep.mubr.f32.mxu0 0.0
      %7593 = vmatmul.mubr.f32.gmra.mrb[0].mxu0 %v6035
      %v7594 = vpop.f32.mrb[0].mxu0
      %v7595 = vadd.f32 %v7420, %v7594
      %v7596 = vpop.f32.mrb[0].mxu0
      %7597 = vmatprep.mubr.f32.mxu0 0.0
      %7598 = vmatmul.mubr.f32.gmra.mrb[0].mxu0 %v6038
      %v7599 = vpop.f32.mrb[0].mxu0
      %v7600 = vadd.f32 %v7425, %v7599
      %v7601 = vpop.f32.mrb[0].mxu0
      %7602 = vmatprep.mubr.f32.mxu0 0.0
      %7603 = vmatmul.mubr.f32.gmra.mrb[0].mxu0 %v6041
      %v7604 = vpop.f32.mrb[0].mxu0
      %v7605 = vadd.f32 %v7430, %v7604
      %v7606 = vpop.f32.mrb[0].mxu0
      %7607 = vmatprep.mubr.f32.mxu0 0.0
      %7608 = vmatmul.mubr.f32.gmra.mrb[0].mxu0 %v6044
      %v7609 = vpop.f32.mrb[0].mxu0
      %v7610 = vadd.f32 %v7435, %v7609
      %v7611 = vpop.f32.mrb[0].mxu0
      %7612 = vmatprep.mubr.f32.mxu0 0.0
      %7613 = vmatmul.mubr.f32.gmra.mrb[0].mxu0 %v6047
      %v7614 = vpop.f32.mrb[0].mxu0
      %v7615 = vadd.f32 %v7440, %v7614
      %v7616 = vpop.f32.mrb[0].mxu0
      %7617 = vmatprep.mubr.f32.mxu0 0.0
      %7618 = vmatmul.mubr.f32.gmra.mrb[0].mxu0 %v6050
      %v7619 = vpop.f32.mrb[0].mxu0
      %v7620 = vadd.f32 %v7445, %v7619
      %v7621 = vpop.f32.mrb[0].mxu0
      %7622 = vmatprep.mubr.f32.mxu0 0.0
      %7623 = vmatmul.mubr.f32.gmra.mrb[0].mxu0 %v6053
      %v7624 = vpop.f32.mrb[0].mxu0
      %v7625 = vadd.f32 %v7450, %v7624
      %v7626 = vpop.f32.mrb[0].mxu0
      %7627 = vmatprep.mubr.f32.mxu0 0.0
      %7628 = vmatmul.mubr.f32.gmra.mrb[0].mxu0 %v6056
      %v7629 = vpop.f32.mrb[0].mxu0
      %v7630 = vadd.f32 %v7455, %v7629
      %v7631 = vpop.f32.mrb[0].mxu0
      %7632 = vdwg.mxu0
      %vm7633 = vcmask 400384
      %v7634 = vsel %vm7633, %v7525, 0.0
      %7635 = vadd.xlane.f32.xlu0 %v7634
      %v7636 = vpop.xlane.xlu0 %7635
      %v7637 = vsel %vm7633, %v7530, 0.0
      %7638 = vadd.xlane.f32.xlu0 %v7637
      %v7639 = vpop.xlane.xlu0 %7638
      %v7640 = vsel %vm7633, %v7535, 0.0
      %7641 = vadd.xlane.f32.xlu0 %v7640
      %v7642 = vpop.xlane.xlu0 %7641
      %v7643 = vsel %vm7633, %v7540, 0.0
      %7644 = vadd.xlane.f32.xlu0 %v7643
      %v7645 = vpop.xlane.xlu0 %7644
      %v7646 = vsel %vm7633, %v7545, 0.0
      %7647 = vadd.xlane.f32.xlu0 %v7646
      %v7648 = vpop.xlane.xlu0 %7647
      %v7649 = vsel %vm7633, %v7550, 0.0
      %7650 = vadd.xlane.f32.xlu0 %v7649
      %v7651 = vpop.xlane.xlu0 %7650
      %v7652 = vsel %vm7633, %v7555, 0.0
      %7653 = vadd.xlane.f32.xlu0 %v7652
      %v7654 = vpop.xlane.xlu0 %7653
      %v7655 = vsel %vm7633, %v7560, 0.0
      %7656 = vadd.xlane.f32.xlu0 %v7655
      %v7657 = vpop.xlane.xlu0 %7656
      %v7658 = vsel %vm7633, %v7565, 0.0
      %7659 = vadd.xlane.f32.xlu0 %v7658
      %v7660 = vpop.xlane.xlu0 %7659
      %v7661 = vsel %vm7633, %v7570, 0.0
      %7662 = vadd.xlane.f32.xlu0 %v7661
      %v7663 = vpop.xlane.xlu0 %7662
      %v7664 = vsel %vm7633, %v7575, 0.0
      %7665 = vadd.xlane.f32.xlu0 %v7664
      %v7666 = vpop.xlane.xlu0 %7665
      %v7667 = vsel %vm7633, %v7580, 0.0
      %7668 = vadd.xlane.f32.xlu0 %v7667
      %v7669 = vpop.xlane.xlu0 %7668
      %v7670 = vsel %vm7633, %v7585, 0.0
      %7671 = vadd.xlane.f32.xlu0 %v7670
      %v7672 = vpop.xlane.xlu0 %7671
      %v7673 = vsel %vm7633, %v7590, 0.0
      %7674 = vadd.xlane.f32.xlu0 %v7673
      %v7675 = vpop.xlane.xlu0 %7674
      %v7676 = vsel %vm7633, %v7595, 0.0
      %7677 = vadd.xlane.f32.xlu0 %v7676
      %v7678 = vpop.xlane.xlu0 %7677
      %v7679 = vsel %vm7633, %v7600, 0.0
      %7680 = vadd.xlane.f32.xlu0 %v7679
      %v7681 = vpop.xlane.xlu0 %7680
      %v7682 = vsel %vm7633, %v7605, 0.0
      %7683 = vadd.xlane.f32.xlu0 %v7682
      %v7684 = vpop.xlane.xlu0 %7683
      %v7685 = vsel %vm7633, %v7610, 0.0
      %7686 = vadd.xlane.f32.xlu0 %v7685
      %v7687 = vpop.xlane.xlu0 %7686
      %v7688 = vsel %vm7633, %v7615, 0.0
      %7689 = vadd.xlane.f32.xlu0 %v7688
      %v7690 = vpop.xlane.xlu0 %7689
      %v7691 = vsel %vm7633, %v7620, 0.0
      %7692 = vadd.xlane.f32.xlu0 %v7691
      %v7693 = vpop.xlane.xlu0 %7692
      %v7694 = vsel %vm7633, %v7625, 0.0
      %7695 = vadd.xlane.f32.xlu0 %v7694
      %v7696 = vpop.xlane.xlu0 %7695
      %v7697 = vsel %vm7633, %v7630, 0.0
      %7698 = vadd.xlane.f32.xlu0 %v7697
      %v7699 = vpop.xlane.xlu0 %7698
      %v7700 = vmul.f32 %v7636, 0.020408163
      %v7701 = vmul.f32 %v7639, 0.020408163
      %v7702 = vmul.f32 %v7642, 0.020408163
      %v7703 = vmul.f32 %v7645, 0.020408163
      %v7704 = vmul.f32 %v7648, 0.020408163
      %v7705 = vmul.f32 %v7651, 0.020408163
      %v7706 = vmul.f32 %v7654, 0.020408163
      %v7707 = vmul.f32 %v7657, 0.020408163
      %v7708 = vmul.f32 %v7660, 0.020408163
      %v7709 = vmul.f32 %v7663, 0.020408163
      %v7710 = vmul.f32 %v7666, 0.020408163
      %v7711 = vmul.f32 %v7669, 0.020408163
      %v7712 = vmul.f32 %v7672, 0.020408163
      %v7713 = vmul.f32 %v7675, 0.020408163
      %v7714 = vmul.f32 %v7678, 0.020408163
      %v7715 = vmul.f32 %v7681, 0.020408163
      %v7716 = vmul.f32 %v7684, 0.020408163
      %v7717 = vmul.f32 %v7687, 0.020408163
      %v7718 = vmul.f32 %v7690, 0.020408163
      %v7719 = vmul.f32 %v7693, 0.020408163
      %v7720 = vmul.f32 %v7696, 0.020408163
      %v7721 = vmul.f32 %v7699, 0.020408163
      %v7722 = vsub.f32 %v7525, %v7700
      %v7723 = vsub.f32 %v7530, %v7701
      %v7724 = vsub.f32 %v7535, %v7702
      %v7725 = vsub.f32 %v7540, %v7703
      %v7726 = vsub.f32 %v7545, %v7704
      %v7727 = vsub.f32 %v7550, %v7705
      %v7728 = vsub.f32 %v7555, %v7706
      %v7729 = vsub.f32 %v7560, %v7707
      %v7730 = vsub.f32 %v7565, %v7708
      %v7731 = vsub.f32 %v7570, %v7709
      %v7732 = vsub.f32 %v7575, %v7710
      %v7733 = vsub.f32 %v7580, %v7711
      %v7734 = vsub.f32 %v7585, %v7712
      %v7735 = vsub.f32 %v7590, %v7713
      %v7736 = vsub.f32 %v7595, %v7714
      %v7737 = vsub.f32 %v7600, %v7715
      %v7738 = vsub.f32 %v7605, %v7716
      %v7739 = vsub.f32 %v7610, %v7717
      %v7740 = vsub.f32 %v7615, %v7718
      %v7741 = vsub.f32 %v7620, %v7719
      %v7742 = vsub.f32 %v7625, %v7720
      %v7743 = vsub.f32 %v7630, %v7721
      %v7744 = vmul.f32 %v7722, %v7722
      %v7745 = vmul.f32 %v7723, %v7723
      %v7746 = vmul.f32 %v7724, %v7724
      %v7747 = vmul.f32 %v7725, %v7725
      %v7748 = vmul.f32 %v7726, %v7726
      %v7749 = vmul.f32 %v7727, %v7727
      %v7750 = vmul.f32 %v7728, %v7728
      %v7751 = vmul.f32 %v7729, %v7729
      %v7752 = vmul.f32 %v7730, %v7730
      %v7753 = vmul.f32 %v7731, %v7731
      %v7754 = vmul.f32 %v7732, %v7732
      %v7755 = vmul.f32 %v7733, %v7733
      %v7756 = vmul.f32 %v7734, %v7734
      %v7757 = vmul.f32 %v7735, %v7735
      %v7758 = vmul.f32 %v7736, %v7736
      %v7759 = vmul.f32 %v7737, %v7737
      %v7760 = vmul.f32 %v7738, %v7738
      %v7761 = vmul.f32 %v7739, %v7739
      %v7762 = vmul.f32 %v7740, %v7740
      %v7763 = vmul.f32 %v7741, %v7741
      %v7764 = vmul.f32 %v7742, %v7742
      %v7765 = vmul.f32 %v7743, %v7743
      %v7766 = vsel %vm7633, %v7744, 0.0
      %7767 = vadd.xlane.f32.xlu0 %v7766
      %v7768 = vpop.xlane.xlu0 %7767
      %v7769 = vsel %vm7633, %v7745, 0.0
      %7770 = vadd.xlane.f32.xlu0 %v7769
      %v7771 = vpop.xlane.xlu0 %7770
      %v7772 = vsel %vm7633, %v7746, 0.0
      %7773 = vadd.xlane.f32.xlu0 %v7772
      %v7774 = vpop.xlane.xlu0 %7773
      %v7775 = vsel %vm7633, %v7747, 0.0
      %7776 = vadd.xlane.f32.xlu0 %v7775
      %v7777 = vpop.xlane.xlu0 %7776
      %v7778 = vsel %vm7633, %v7748, 0.0
      %7779 = vadd.xlane.f32.xlu0 %v7778
      %v7780 = vpop.xlane.xlu0 %7779
      %v7781 = vsel %vm7633, %v7749, 0.0
      %7782 = vadd.xlane.f32.xlu0 %v7781
      %v7783 = vpop.xlane.xlu0 %7782
      %v7784 = vsel %vm7633, %v7750, 0.0
      %7785 = vadd.xlane.f32.xlu0 %v7784
      %v7786 = vpop.xlane.xlu0 %7785
      %v7787 = vsel %vm7633, %v7751, 0.0
      %7788 = vadd.xlane.f32.xlu0 %v7787
      %v7789 = vpop.xlane.xlu0 %7788
      %v7790 = vsel %vm7633, %v7752, 0.0
      %7791 = vadd.xlane.f32.xlu0 %v7790
      %v7792 = vpop.xlane.xlu0 %7791
      %v7793 = vsel %vm7633, %v7753, 0.0
      %7794 = vadd.xlane.f32.xlu0 %v7793
      %v7795 = vpop.xlane.xlu0 %7794
      %v7796 = vsel %vm7633, %v7754, 0.0
      %7797 = vadd.xlane.f32.xlu0 %v7796
      %v7798 = vpop.xlane.xlu0 %7797
      %v7799 = vsel %vm7633, %v7755, 0.0
      %7800 = vadd.xlane.f32.xlu0 %v7799
      %v7801 = vpop.xlane.xlu0 %7800
      %v7802 = vsel %vm7633, %v7756, 0.0
      %7803 = vadd.xlane.f32.xlu0 %v7802
      %v7804 = vpop.xlane.xlu0 %7803
      %v7805 = vsel %vm7633, %v7757, 0.0
      %7806 = vadd.xlane.f32.xlu0 %v7805
      %v7807 = vpop.xlane.xlu0 %7806
      %v7808 = vsel %vm7633, %v7758, 0.0
      %7809 = vadd.xlane.f32.xlu0 %v7808
      %v7810 = vpop.xlane.xlu0 %7809
      %v7811 = vsel %vm7633, %v7759, 0.0
      %7812 = vadd.xlane.f32.xlu0 %v7811
      %v7813 = vpop.xlane.xlu0 %7812
      %v7814 = vsel %vm7633, %v7760, 0.0
      %7815 = vadd.xlane.f32.xlu0 %v7814
      %v7816 = vpop.xlane.xlu0 %7815
      %v7817 = vsel %vm7633, %v7761, 0.0
      %7818 = vadd.xlane.f32.xlu0 %v7817
      %v7819 = vpop.xlane.xlu0 %7818
      %v7820 = vsel %vm7633, %v7762, 0.0
      %7821 = vadd.xlane.f32.xlu0 %v7820
      %v7822 = vpop.xlane.xlu0 %7821
      %v7823 = vsel %vm7633, %v7763, 0.0
      %7824 = vadd.xlane.f32.xlu0 %v7823
      %v7825 = vpop.xlane.xlu0 %7824
      %v7826 = vsel %vm7633, %v7764, 0.0
      %7827 = vadd.xlane.f32.xlu0 %v7826
      %v7828 = vpop.xlane.xlu0 %7827
      %v7829 = vsel %vm7633, %v7765, 0.0
      %7830 = vadd.xlane.f32.xlu0 %v7829
      %v7831 = vpop.xlane.xlu0 %7830
      %v7832 = vmul.f32 %v7768, 0.020408163
      %v7833 = vmul.f32 %v7771, 0.020408163
      %v7834 = vmul.f32 %v7774, 0.020408163
      %v7835 = vmul.f32 %v7777, 0.020408163
      %v7836 = vmul.f32 %v7780, 0.020408163
      %v7837 = vmul.f32 %v7783, 0.020408163
      %v7838 = vmul.f32 %v7786, 0.020408163
      %v7839 = vmul.f32 %v7789, 0.020408163
      %v7840 = vmul.f32 %v7792, 0.020408163
      %v7841 = vmul.f32 %v7795, 0.020408163
      %v7842 = vmul.f32 %v7798, 0.020408163
      %v7843 = vmul.f32 %v7801, 0.020408163
      %v7844 = vmul.f32 %v7804, 0.020408163
      %v7845 = vmul.f32 %v7807, 0.020408163
      %v7846 = vmul.f32 %v7810, 0.020408163
      %v7847 = vmul.f32 %v7813, 0.020408163
      %v7848 = vmul.f32 %v7816, 0.020408163
      %v7849 = vmul.f32 %v7819, 0.020408163
      %v7850 = vmul.f32 %v7822, 0.020408163
      %v7851 = vmul.f32 %v7825, 0.020408163
      %v7852 = vmul.f32 %v7828, 0.020408163
      %v7853 = vmul.f32 %v7831, 0.020408163
      %v7854 = vadd.f32 %v7832, 1e-05
      %v7855 = vadd.f32 %v7833, 1e-05
      %v7856 = vadd.f32 %v7834, 1e-05
      %v7857 = vadd.f32 %v7835, 1e-05
      %v7858 = vadd.f32 %v7836, 1e-05
      %v7859 = vadd.f32 %v7837, 1e-05
      %v7860 = vadd.f32 %v7838, 1e-05
      %v7861 = vadd.f32 %v7839, 1e-05
      %v7862 = vadd.f32 %v7840, 1e-05
      %v7863 = vadd.f32 %v7841, 1e-05
      %v7864 = vadd.f32 %v7842, 1e-05
      %v7865 = vadd.f32 %v7843, 1e-05
      %v7866 = vadd.f32 %v7844, 1e-05
      %v7867 = vadd.f32 %v7845, 1e-05
      %v7868 = vadd.f32 %v7846, 1e-05
      %v7869 = vadd.f32 %v7847, 1e-05
      %v7870 = vadd.f32 %v7848, 1e-05
      %v7871 = vadd.f32 %v7849, 1e-05
      %v7872 = vadd.f32 %v7850, 1e-05
      %v7873 = vadd.f32 %v7851, 1e-05
      %v7874 = vadd.f32 %v7852, 1e-05
      %v7875 = vadd.f32 %v7853, 1e-05
      %v7876 = vrsqrt.pop %v7854
      %v7877 = vrsqrt.pop %v7855
      %v7878 = vrsqrt.pop %v7856
      %v7879 = vrsqrt.pop %v7857
      %v7880 = vrsqrt.pop %v7858
      %v7881 = vrsqrt.pop %v7859
      %v7882 = vrsqrt.pop %v7860
      %v7883 = vrsqrt.pop %v7861
      %v7884 = vrsqrt.pop %v7862
      %v7885 = vrsqrt.pop %v7863
      %v7886 = vrsqrt.pop %v7864
      %v7887 = vrsqrt.pop %v7865
      %v7888 = vrsqrt.pop %v7866
      %v7889 = vrsqrt.pop %v7867
      %v7890 = vrsqrt.pop %v7868
      %v7891 = vrsqrt.pop %v7869
      %v7892 = vrsqrt.pop %v7870
      %v7893 = vrsqrt.pop %v7871
      %v7894 = vrsqrt.pop %v7872
      %v7895 = vrsqrt.pop %v7873
      %v7896 = vrsqrt.pop %v7874
      %v7897 = vrsqrt.pop %v7875
      %v7898 = vld [vmem:[%s315] sm:$0xff]
      %v7899 = vld [vmem:[%s315 + $0x8] sm:$0xff]
      %v7900 = vld [vmem:[%s315 + $0x10] sm:$0xff]
      %v7901 = vld [vmem:[%s315 + $0x18] sm:$0xff]
      %v7902 = vld [vmem:[%s315 + $0x20] sm:$0xff]
      %v7903 = vld [vmem:[%s315 + $0x28] sm:$0xff]
      %v7904 = vld [vmem:[%s315 + $0x30] sm:$0xff]
      %v7905 = vld [vmem:[%s315 + $0x38] sm:$0xff]
      %v7906 = vld [vmem:[%s315 + $0x40] sm:$0xff]
      %v7907 = vld [vmem:[%s315 + $0x48] sm:$0xff]
      %v7908 = vld [vmem:[%s315 + $0x50] sm:$0xff]
      %v7909 = vld [vmem:[%s315 + $0x58] sm:$0xff]
      %v7910 = vld [vmem:[%s315 + $0x60] sm:$0xff]
      %v7911 = vld [vmem:[%s315 + $0x68] sm:$0xff]
      %v7912 = vld [vmem:[%s315 + $0x70] sm:$0xff]
      %v7913 = vld [vmem:[%s315 + $0x78] sm:$0xff]
      %v7914 = vld [vmem:[%s315 + $0x80] sm:$0xff]
      %v7915 = vld [vmem:[%s315 + $0x88] sm:$0xff]
      %v7916 = vld [vmem:[%s315 + $0x90] sm:$0xff]
      %v7917 = vld [vmem:[%s315 + $0x98] sm:$0xff]
      %v7918 = vld [vmem:[%s315 + $0xa0] sm:$0xff]
      %v7919 = vld [vmem:[%s315 + $0xa8] sm:$0xff]
      %v7920 = vmul.f32 %v7876, %v7898
      %v7921 = vmul.f32 %v7877, %v7899
      %v7922 = vmul.f32 %v7878, %v7900
      %v7923 = vmul.f32 %v7879, %v7901
      %v7924 = vmul.f32 %v7880, %v7902
      %v7925 = vmul.f32 %v7881, %v7903
      %v7926 = vmul.f32 %v7882, %v7904
      %v7927 = vmul.f32 %v7883, %v7905
      %v7928 = vmul.f32 %v7884, %v7906
      %v7929 = vmul.f32 %v7885, %v7907
      %v7930 = vmul.f32 %v7886, %v7908
      %v7931 = vmul.f32 %v7887, %v7909
      %v7932 = vmul.f32 %v7888, %v7910
      %v7933 = vmul.f32 %v7889, %v7911
      %v7934 = vmul.f32 %v7890, %v7912
      %v7935 = vmul.f32 %v7891, %v7913
      %v7936 = vmul.f32 %v7892, %v7914
      %v7937 = vmul.f32 %v7893, %v7915
      %v7938 = vmul.f32 %v7894, %v7916
      %v7939 = vmul.f32 %v7895, %v7917
      %v7940 = vmul.f32 %v7896, %v7918
      %v7941 = vmul.f32 %v7897, %v7919
      %7943 = vset.pattern.permute.xlu0 0
      %7944 = vperm.xlu0 %7943, %v7920
      %v7945 = vpop.permute.xlu0 %7944
      %7948 = vset.pattern.permute.xlu0 0
      %7949 = vperm.xlu0 %7948, %v7921
      %v7950 = vpop.permute.xlu0 %7949
      %7953 = vset.pattern.permute.xlu0 0
      %7954 = vperm.xlu0 %7953, %v7922
      %v7955 = vpop.permute.xlu0 %7954
      %7958 = vset.pattern.permute.xlu0 0
      %7959 = vperm.xlu0 %7958, %v7923
      %v7960 = vpop.permute.xlu0 %7959
      %7963 = vset.pattern.permute.xlu0 0
      %7964 = vperm.xlu0 %7963, %v7924
      %v7965 = vpop.permute.xlu0 %7964
      %7968 = vset.pattern.permute.xlu0 0
      %7969 = vperm.xlu0 %7968, %v7925
      %v7970 = vpop.permute.xlu0 %7969
      %7973 = vset.pattern.permute.xlu0 0
      %7974 = vperm.xlu0 %7973, %v7926
      %v7975 = vpop.permute.xlu0 %7974
      %7978 = vset.pattern.permute.xlu0 0
      %7979 = vperm.xlu0 %7978, %v7927
      %v7980 = vpop.permute.xlu0 %7979
      %7983 = vset.pattern.permute.xlu0 0
      %7984 = vperm.xlu0 %7983, %v7928
      %v7985 = vpop.permute.xlu0 %7984
      %7988 = vset.pattern.permute.xlu0 0
      %7989 = vperm.xlu0 %7988, %v7929
      %v7990 = vpop.permute.xlu0 %7989
      %7993 = vset.pattern.permute.xlu0 0
      %7994 = vperm.xlu0 %7993, %v7930
      %v7995 = vpop.permute.xlu0 %7994
      %7998 = vset.pattern.permute.xlu0 0
      %7999 = vperm.xlu0 %7998, %v7931
      %v8000 = vpop.permute.xlu0 %7999
      %8003 = vset.pattern.permute.xlu0 0
      %8004 = vperm.xlu0 %8003, %v7932
      %v8005 = vpop.permute.xlu0 %8004
      %8008 = vset.pattern.permute.xlu0 0
      %8009 = vperm.xlu0 %8008, %v7933
      %v8010 = vpop.permute.xlu0 %8009
      %8013 = vset.pattern.permute.xlu0 0
      %8014 = vperm.xlu0 %8013, %v7934
      %v8015 = vpop.permute.xlu0 %8014
      %8018 = vset.pattern.permute.xlu0 0
      %8019 = vperm.xlu0 %8018, %v7935
      %v8020 = vpop.permute.xlu0 %8019
      %8023 = vset.pattern.permute.xlu0 0
      %8024 = vperm.xlu0 %8023, %v7936
      %v8025 = vpop.permute.xlu0 %8024
      %8028 = vset.pattern.permute.xlu0 0
      %8029 = vperm.xlu0 %8028, %v7937
      %v8030 = vpop.permute.xlu0 %8029
      %8033 = vset.pattern.permute.xlu0 0
      %8034 = vperm.xlu0 %8033, %v7938
      %v8035 = vpop.permute.xlu0 %8034
      %8038 = vset.pattern.permute.xlu0 0
      %8039 = vperm.xlu0 %8038, %v7939
      %v8040 = vpop.permute.xlu0 %8039
      %8043 = vset.pattern.permute.xlu0 0
      %8044 = vperm.xlu0 %8043, %v7940
      %v8045 = vpop.permute.xlu0 %8044
      %8048 = vset.pattern.permute.xlu0 0
      %8049 = vperm.xlu0 %8048, %v7941
      %v8050 = vpop.permute.xlu0 %8049
      %v8052 = vmul.f32 %v7722, %v7945
      %v8053 = vmul.f32 %v7723, %v7950
      %v8054 = vmul.f32 %v7724, %v7955
      %v8055 = vmul.f32 %v7725, %v7960
      %v8056 = vmul.f32 %v7726, %v7965
      %v8057 = vmul.f32 %v7727, %v7970
      %v8058 = vmul.f32 %v7728, %v7975
      %v8059 = vmul.f32 %v7729, %v7980
      %v8060 = vmul.f32 %v7730, %v7985
      %v8061 = vmul.f32 %v7731, %v7990
      %v8062 = vmul.f32 %v7732, %v7995
      %v8063 = vmul.f32 %v7733, %v8000
      %v8064 = vmul.f32 %v7734, %v8005
      %v8065 = vmul.f32 %v7735, %v8010
      %v8066 = vmul.f32 %v7736, %v8015
      %v8067 = vmul.f32 %v7737, %v8020
      %v8068 = vmul.f32 %v7738, %v8025
      %v8069 = vmul.f32 %v7739, %v8030
      %v8070 = vmul.f32 %v7740, %v8035
      %v8071 = vmul.f32 %v7741, %v8040
      %v8072 = vmul.f32 %v7742, %v8045
      %v8073 = vmul.f32 %v7743, %v8050
      %v8074 = vld [vmem:[%s321] sm:$0xff]
      %v8075 = vld [vmem:[%s321 + $0x8] sm:$0xff]
      %v8076 = vld [vmem:[%s321 + $0x10] sm:$0xff]
      %v8077 = vld [vmem:[%s321 + $0x18] sm:$0xff]
      %v8078 = vld [vmem:[%s321 + $0x20] sm:$0xff]
      %v8079 = vld [vmem:[%s321 + $0x28] sm:$0xff]
      %v8080 = vld [vmem:[%s321 + $0x30] sm:$0xff]
      %v8081 = vld [vmem:[%s321 + $0x38] sm:$0xff]
      %v8082 = vld [vmem:[%s321 + $0x40] sm:$0xff]
      %v8083 = vld [vmem:[%s321 + $0x48] sm:$0xff]
      %v8084 = vld [vmem:[%s321 + $0x50] sm:$0xff]
      %v8085 = vld [vmem:[%s321 + $0x58] sm:$0xff]
      %v8086 = vld [vmem:[%s321 + $0x60] sm:$0xff]
      %v8087 = vld [vmem:[%s321 + $0x68] sm:$0xff]
      %v8088 = vld [vmem:[%s321 + $0x70] sm:$0xff]
      %v8089 = vld [vmem:[%s321 + $0x78] sm:$0xff]
      %v8090 = vld [vmem:[%s321 + $0x80] sm:$0xff]
      %v8091 = vld [vmem:[%s321 + $0x88] sm:$0xff]
      %v8092 = vld [vmem:[%s321 + $0x90] sm:$0xff]
      %v8093 = vld [vmem:[%s321 + $0x98] sm:$0xff]
      %v8094 = vld [vmem:[%s321 + $0xa0] sm:$0xff]
      %v8095 = vld [vmem:[%s321 + $0xa8] sm:$0xff]
      %8097 = vset.pattern.permute.xlu0 0
      %8098 = vperm.xlu0 %8097, %v8074
      %v8099 = vpop.permute.xlu0 %8098
      %8102 = vset.pattern.permute.xlu0 0
      %8103 = vperm.xlu0 %8102, %v8075
      %v8104 = vpop.permute.xlu0 %8103
      %8107 = vset.pattern.permute.xlu0 0
      %8108 = vperm.xlu0 %8107, %v8076
      %v8109 = vpop.permute.xlu0 %8108
      %8112 = vset.pattern.permute.xlu0 0
      %8113 = vperm.xlu0 %8112, %v8077
      %v8114 = vpop.permute.xlu0 %8113
      %8117 = vset.pattern.permute.xlu0 0
      %8118 = vperm.xlu0 %8117, %v8078
      %v8119 = vpop.permute.xlu0 %8118
      %8122 = vset.pattern.permute.xlu0 0
      %8123 = vperm.xlu0 %8122, %v8079
      %v8124 = vpop.permute.xlu0 %8123
      %8127 = vset.pattern.permute.xlu0 0
      %8128 = vperm.xlu0 %8127, %v8080
      %v8129 = vpop.permute.xlu0 %8128
      %8132 = vset.pattern.permute.xlu0 0
      %8133 = vperm.xlu0 %8132, %v8081
      %v8134 = vpop.permute.xlu0 %8133
      %8137 = vset.pattern.permute.xlu0 0
      %8138 = vperm.xlu0 %8137, %v8082
      %v8139 = vpop.permute.xlu0 %8138
      %8142 = vset.pattern.permute.xlu0 0
      %8143 = vperm.xlu0 %8142, %v8083
      %v8144 = vpop.permute.xlu0 %8143
      %8147 = vset.pattern.permute.xlu0 0
      %8148 = vperm.xlu0 %8147, %v8084
      %v8149 = vpop.permute.xlu0 %8148
      %8152 = vset.pattern.permute.xlu0 0
      %8153 = vperm.xlu0 %8152, %v8085
      %v8154 = vpop.permute.xlu0 %8153
      %8157 = vset.pattern.permute.xlu0 0
      %8158 = vperm.xlu0 %8157, %v8086
      %v8159 = vpop.permute.xlu0 %8158
      %8162 = vset.pattern.permute.xlu0 0
      %8163 = vperm.xlu0 %8162, %v8087
      %v8164 = vpop.permute.xlu0 %8163
      %8167 = vset.pattern.permute.xlu0 0
      %8168 = vperm.xlu0 %8167, %v8088
      %v8169 = vpop.permute.xlu0 %8168
      %8172 = vset.pattern.permute.xlu0 0
      %8173 = vperm.xlu0 %8172, %v8089
      %v8174 = vpop.permute.xlu0 %8173
      %8177 = vset.pattern.permute.xlu0 0
      %8178 = vperm.xlu0 %8177, %v8090
      %v8179 = vpop.permute.xlu0 %8178
      %8182 = vset.pattern.permute.xlu0 0
      %8183 = vperm.xlu0 %8182, %v8091
      %v8184 = vpop.permute.xlu0 %8183
      %8187 = vset.pattern.permute.xlu0 0
      %8188 = vperm.xlu0 %8187, %v8092
      %v8189 = vpop.permute.xlu0 %8188
      %8192 = vset.pattern.permute.xlu0 0
      %8193 = vperm.xlu0 %8192, %v8093
      %v8194 = vpop.permute.xlu0 %8193
      %8197 = vset.pattern.permute.xlu0 0
      %8198 = vperm.xlu0 %8197, %v8094
      %v8199 = vpop.permute.xlu0 %8198
      %8202 = vset.pattern.permute.xlu0 0
      %8203 = vperm.xlu0 %8202, %v8095
      %v8204 = vpop.permute.xlu0 %8203
      %v8206 = vadd.f32 %v8052, %v8099
      %v8207 = vadd.f32 %v8053, %v8104
      %v8208 = vadd.f32 %v8054, %v8109
      %v8209 = vadd.f32 %v8055, %v8114
      %v8210 = vadd.f32 %v8056, %v8119
      %v8211 = vadd.f32 %v8057, %v8124
      %v8212 = vadd.f32 %v8058, %v8129
      %v8213 = vadd.f32 %v8059, %v8134
      %v8214 = vadd.f32 %v8060, %v8139
      %v8215 = vadd.f32 %v8061, %v8144
      %v8216 = vadd.f32 %v8062, %v8149
      %v8217 = vadd.f32 %v8063, %v8154
      %v8218 = vadd.f32 %v8064, %v8159
      %v8219 = vadd.f32 %v8065, %v8164
      %v8220 = vadd.f32 %v8066, %v8169
      %v8221 = vadd.f32 %v8067, %v8174
      %v8222 = vadd.f32 %v8068, %v8179
      %v8223 = vadd.f32 %v8069, %v8184
      %v8224 = vadd.f32 %v8070, %v8189
      %v8225 = vadd.f32 %v8071, %v8194
      %v8226 = vadd.f32 %v8072, %v8199
      %v8227 = vadd.f32 %v8073, %v8204
      %8228 = vst.msk [vmem:[%s327] sm:$0xff] %vm7633, %v8206
      %8229 = vst.msk [vmem:[%s327 + $0x8] sm:$0xff] %vm7633, %v8207
      %8230 = vst.msk [vmem:[%s327 + $0x10] sm:$0xff] %vm7633, %v8208
      %8231 = vst.msk [vmem:[%s327 + $0x18] sm:$0xff] %vm7633, %v8209
      %8232 = vst.msk [vmem:[%s327 + $0x20] sm:$0xff] %vm7633, %v8210
      %8233 = vst.msk [vmem:[%s327 + $0x28] sm:$0xff] %vm7633, %v8211
      %8234 = vst.msk [vmem:[%s327 + $0x30] sm:$0xff] %vm7633, %v8212
      %8235 = vst.msk [vmem:[%s327 + $0x38] sm:$0xff] %vm7633, %v8213
      %8236 = vst.msk [vmem:[%s327 + $0x40] sm:$0xff] %vm7633, %v8214
      %8237 = vst.msk [vmem:[%s327 + $0x48] sm:$0xff] %vm7633, %v8215
      %8238 = vst.msk [vmem:[%s327 + $0x50] sm:$0xff] %vm7633, %v8216
      %8239 = vst.msk [vmem:[%s327 + $0x58] sm:$0xff] %vm7633, %v8217
      %8240 = vst.msk [vmem:[%s327 + $0x60] sm:$0xff] %vm7633, %v8218
      %8241 = vst.msk [vmem:[%s327 + $0x68] sm:$0xff] %vm7633, %v8219
      %8242 = vst.msk [vmem:[%s327 + $0x70] sm:$0xff] %vm7633, %v8220
      %8243 = vst.msk [vmem:[%s327 + $0x78] sm:$0xff] %vm7633, %v8221
      %8244 = vst.msk [vmem:[%s327 + $0x80] sm:$0xff] %vm7633, %v8222
      %8245 = vst.msk [vmem:[%s327 + $0x88] sm:$0xff] %vm7633, %v8223
      %8246 = vst.msk [vmem:[%s327 + $0x90] sm:$0xff] %vm7633, %v8224
      %8247 = vst.msk [vmem:[%s327 + $0x98] sm:$0xff] %vm7633, %v8225
      %8248 = vst.msk [vmem:[%s327 + $0xa0] sm:$0xff] %vm7633, %v8226
      %8249 = vst.msk [vmem:[%s327 + $0xa8] sm:$0xff] %vm7633, %v8227
      %s8250 = smul.u32 22, %s18
      %p8251 = scmp.lt.s32.totalorder %s8250, 43
      %s8252 = scalar_select %p8251, %s8250, 43
      %s8253 = smul.addr %s8252, 8
      %s8254 = scalar_lea.vmem %s7, %s8253
      // Predicated region
      $region49: #{tpu_custom_call.1} parent=47 // pred_check
        %p8255 = pneg %p198
      $region50: #{tpu_custom_call.1} parent=47 // pred_check_branch
        %8257 = sbr.rel (%p8255) target = $region52
      $region51: #{tpu_custom_call.1} parent=47 // pred_region
        %s8258 = smul.u32 22, %s18
      $region52: #{tpu_custom_call.1} parent=47 // pred_fallthru
        _
    $region48: #{tpu_custom_call.1} parent=5 // pred_fallthru
      _
    %p8259 = scmp.le.s32.totalorder 2, %s13
    // Predicated region
    $region53: #{tpu_custom_call.1} parent=5 // pred_check
      %p8260 = pneg %p8259
    $region54: #{tpu_custom_call.1} parent=5 // pred_check_branch
      %8262 = sbr.rel (%p8260) target = $region56
    $region55: #{tpu_custom_call.1} parent=5 // pred_region
      %s8263 = ssub.s32 %s13, 2
      // Predicated region
      $region57: #{tpu_custom_call.1} parent=55 // pred_check
        %p8264 = pneg %p204
      $region58: #{tpu_custom_call.1} parent=55 // pred_check_branch
        %8266 = sbr.rel (%p8264) target = $region60
      $region59: #{tpu_custom_call.1} parent=55 // pred_region
        %s8267 = smul.u32 22, %s19
        %p8268 = scmp.lt.s32.totalorder %s8267, 43
        %s8269 = scalar_select %p8268, %s8267, 43
        %s8270 = smul.addr %s8269, 8
        %s8271 = scalar_lea.vmem %s7, %s8270
      $region60: #{tpu_custom_call.1} parent=55 // pred_fallthru
        _
    $region56: #{tpu_custom_call.1} parent=5 // pred_fallthru
      _
  $region6: #{tpu_custom_call.1} parent=0 // loop_footer
    %s17 = sadd.s32 1, %s13
  $region7: #{tpu_custom_call.1} parent=0 // loop_footer_branch
    %12 = sbr.rel target = $region3
  $region8: #{tpu_custom_call.1} parent=0 // loop_exit
    _

</llo_original>
